<compile_context>
chip_gen: v7x
topology: tpu7x:2x2x1
jax: 0.10.0
libtpu: 0.0.40
codegen_flags: <defaults>
</compile_context>

<pallas_src>
import jax
import jax.numpy as jnp
from jax.experimental import pallas as pl
from jax.experimental.pallas import tpu as pltpu

NEG_INF = -1e9
LN_EPS = 1e-5

# Order in which the stacked weight tensors are passed to the kernel.
W_NAMES = [
    "ln1_g", "ln1_b",
    "wq", "bq", "wk", "bk", "wv", "bv", "wo", "bo",
    "ln2_g", "ln2_b",
    "w_up", "b_up", "w_down", "b_down",
    "lnf_g", "lnf_b", "lm_w", "lm_b",
]


# --------------------------------------------------------------------------
# Shared forward math.  `w` maps name -> either a Pallas Ref (kernel) or a
# plain jnp array (reference); both are only ever *indexed*, never passed raw
# into jnp ops, so the same code runs in both contexts.
# --------------------------------------------------------------------------
def _transformer_math(x, pad_row, w, *, n_layers, n_heads, scale, approx_recip):
    """x: (S, H) f32 embedded tokens.  pad_row: (1, S) additive 0/NEG_INF."""
    S = x.shape[0]

    # causal + key-padding additive bias, generated on-the-fly (no (S,S) DMA)
    row = jax.lax.broadcasted_iota(jnp.int32, (S, S), 0)
    col = jax.lax.broadcasted_iota(jnp.int32, (S, S), 1)
    causal = jnp.where(col <= row, 0.0, NEG_INF).astype(jnp.float32)
    bias = jnp.minimum(causal, pad_row)                      # (S, S)

    def ln(v, g, b):
        mu = jnp.mean(v, axis=-1, keepdims=True)
        var = jnp.mean((v - mu) ** 2, axis=-1, keepdims=True)
        return (v - mu) * jax.lax.rsqrt(var + LN_EPS) * g + b

    def recip(d):
        if approx_recip:
            return pl.reciprocal(d, approx=True)
        return 1.0 / d

    for l in range(n_layers):
        # ---- attention block: LN1 -> per-head QKV/attn -> out-proj -> resid
        xb = ln(x, w["ln1_g"][l], w["ln1_b"][l]).astype(jnp.bfloat16)  # (S, H)
        attn = jnp.zeros_like(x)                                        # (S, H) f32
        for h in range(n_heads):
            qh = jnp.dot(xb, w["wq"][l, h],
                         preferred_element_type=jnp.float32) + w["bq"][l, h]
            kh = jnp.dot(xb, w["wk"][l, h],
                         preferred_element_type=jnp.float32) + w["bk"][l, h]
            vh = jnp.dot(xb, w["wv"][l, h],
                         preferred_element_type=jnp.float32) + w["bv"][l, h]
            s = jnp.einsum("qd,kd->qk",
                           (qh * scale).astype(jnp.bfloat16),
                           kh.astype(jnp.bfloat16),
                           preferred_element_type=jnp.float32) + bias
            s = s - jnp.max(s, axis=-1, keepdims=True)
            p = jnp.exp(s)
            p = p * recip(jnp.sum(p, axis=-1, keepdims=True))
            oh = jnp.dot(p.astype(jnp.bfloat16), vh.astype(jnp.bfloat16),
                         preferred_element_type=jnp.float32)            # (S, D)
            # accumulate output projection per head -> no lane concat
            attn = attn + jnp.dot(oh.astype(jnp.bfloat16), w["wo"][l, h],
                                  preferred_element_type=jnp.float32)
        x = x + attn + w["bo"][l]

        # ---- MLP block: LN2 -> up + GELU -> down -> residual
        xn2 = ln(x, w["ln2_g"][l], w["ln2_b"][l]).astype(jnp.bfloat16)
        up = jax.nn.gelu(
            jnp.dot(xn2, w["w_up"][l], preferred_element_type=jnp.float32)
            + w["b_up"][l],
            approximate=True)
        x = x + jnp.dot(up.astype(jnp.bfloat16), w["w_down"][l],
                        preferred_element_type=jnp.float32) + w["b_down"][l]

    # ---- final LN + LM head
    xf = ln(x, w["lnf_g"][...], w["lnf_b"][...]).astype(jnp.bfloat16)
    logits = jnp.dot(xf, w["lm_w"][...],
                     preferred_element_type=jnp.float32) + w["lm_b"][...]
    return logits                                                        # (S, V)


# --------------------------------------------------------------------------
# Single fused Pallas kernel: one grid step per batch element.
# --------------------------------------------------------------------------
def _make_kernel(n_layers, n_heads, scale):
    def kernel(x_ref, pad_ref, *rest):
        o_ref = rest[-1]
        w = dict(zip(W_NAMES, rest[:-1]))
        logits = _transformer_math(
            x_ref[0], pad_ref[0], w,
            n_layers=n_layers, n_heads=n_heads, scale=scale,
            approx_recip=True)
        o_ref[0] = logits.astype(o_ref.dtype)
    return kernel


def forward_pallas(params, input_ids, attention_mask):
    B, S = input_ids.shape
    H = params["emb"].shape[1]
    nH = params["n_heads"]
    L = params["n_layers"]
    D = H // nH
    V = params["lm_w"].shape[1]
    scale = 1.0 / float(D) ** 0.5

    # token embedding gather + learned positions (plain JAX)
    x = jnp.take(params["emb"], input_ids, axis=0) + params["pos"][:S]   # (B,S,H)
    # key-padding additive bias only; causal part is generated in-kernel
    pad = ((1.0 - attention_mask.astype(jnp.float32)) * NEG_INF).reshape(B, 1, S)

    weights = [params[n] for n in W_NAMES]

    in_specs = [
        pl.BlockSpec((1, S, H), lambda b: (b, 0, 0)),   # x (per-batch slab)
        pl.BlockSpec((1, 1, S), lambda b: (b, 0, 0)),   # padding bias
    ]
    for arr in weights:  # full-array blocks, constant index_map (resident in VMEM)
        in_specs.append(pl.BlockSpec(arr.shape, lambda b, nd=arr.ndim: (0,) * nd))

    kernel = _make_kernel(L, nH, scale)
    out = pl.pallas_call(
        kernel,
        out_shape=jax.ShapeDtypeStruct((B, S, V), jnp.float32),
        grid=(B,),
        in_specs=in_specs,
        out_specs=pl.BlockSpec((1, S, V), lambda b: (b, 0, 0)),
        compiler_params=pltpu.CompilerParams(
            dimension_semantics=("parallel",)),
    )(x, pad, *weights)
    return out


# --------------------------------------------------------------------------
# Pure-JAX reference (identical math, exact reciprocal).
# --------------------------------------------------------------------------
def forward_ref(params, input_ids, attention_mask):
    B, S = input_ids.shape
    H = params["emb"].shape[1]
    nH = params["n_heads"]
    L = params["n_layers"]
    D = H // nH
    scale = 1.0 / float(D) ** 0.5

    x = jnp.take(params["emb"], input_ids, axis=0) + params["pos"][:S]
    pad = ((1.0 - attention_mask.astype(jnp.float32)) * NEG_INF).reshape(B, 1, S)
    w = {n: params[n] for n in W_NAMES}

    outs = [
        _transformer_math(x[b], pad[b], w,
                          n_layers=L, n_heads=nH, scale=scale,
                          approx_recip=False)
        for b in range(B)
    ]
    return jnp.stack(outs, axis=0)


# --------------------------------------------------------------------------
# Synthetic parameters (per-head weight layout, bf16 matmul weights).
# --------------------------------------------------------------------------
def init_params(key, vocab, hidden, n_layers, n_heads, mlp, max_seq):
    D = hidden // n_heads

    def nrm(k, shape, dtype=jnp.float32):
        return (0.02 * jax.random.normal(k, shape, dtype=jnp.float32)).astype(dtype)

    keys = jax.random.split(key, 9)
    return {
        "n_heads": n_heads,
        "n_layers": n_layers,
        "emb": nrm(keys[0], (vocab, hidden)),
        "pos": nrm(keys[1], (max_seq, hidden)),
        "ln1_g": jnp.ones((n_layers, 1, hidden), jnp.float32),
        "ln1_b": jnp.zeros((n_layers, 1, hidden), jnp.float32),
        "wq": nrm(keys[2], (n_layers, n_heads, hidden, D), jnp.bfloat16),
        "bq": jnp.zeros((n_layers, n_heads, 1, D), jnp.float32),
        "wk": nrm(keys[3], (n_layers, n_heads, hidden, D), jnp.bfloat16),
        "bk": jnp.zeros((n_layers, n_heads, 1, D), jnp.float32),
        "wv": nrm(keys[4], (n_layers, n_heads, hidden, D), jnp.bfloat16),
        "bv": jnp.zeros((n_layers, n_heads, 1, D), jnp.float32),
        "wo": nrm(keys[5], (n_layers, n_heads, D, hidden), jnp.bfloat16),
        "bo": jnp.zeros((n_layers, 1, hidden), jnp.float32),
        "ln2_g": jnp.ones((n_layers, 1, hidden), jnp.float32),
        "ln2_b": jnp.zeros((n_layers, 1, hidden), jnp.float32),
        "w_up": nrm(keys[6], (n_layers, hidden, mlp), jnp.bfloat16),
        "b_up": jnp.zeros((n_layers, 1, mlp), jnp.float32),
        "w_down": nrm(keys[7], (n_layers, mlp, hidden), jnp.bfloat16),
        "b_down": jnp.zeros((n_layers, 1, hidden), jnp.float32),
        "lnf_g": jnp.ones((1, hidden), jnp.float32),
        "lnf_b": jnp.zeros((1, hidden), jnp.float32),
        "lm_w": nrm(keys[8], (hidden, vocab), jnp.bfloat16),
        "lm_b": jnp.zeros((1, vocab), jnp.float32),
    }


if __name__ == "__main__":
    # lane-dense sizes: hidden / mlp / vocab are multiples of 128
    VOCAB, HIDDEN, LAYERS, HEADS, MLP = 256, 128, 2, 4, 256
    B, S = 2, 8

    key = jax.random.PRNGKey(0)
    k_param, k_ids = jax.random.split(key)
    params = init_params(k_param, VOCAB, HIDDEN, LAYERS, HEADS, MLP, max_seq=S)

    input_ids = jax.random.randint(k_ids, (B, S), 0, VOCAB, dtype=jnp.int32)
    attention_mask = jnp.array(
        [[1, 1, 1, 1, 1, 1, 1, 1],
         [1, 1, 1, 1, 1, 0, 0, 0]], dtype=jnp.int32)   # second sequence padded

    logits = jax.block_until_ready(forward_pallas(params, input_ids, attention_mask))
    logits_ref = jax.block_until_ready(forward_ref(params, input_ids, attention_mask))

    assert logits.shape == (B, S, VOCAB)
    assert bool(jnp.all(jnp.isfinite(logits)))
    max_err = float(jnp.max(jnp.abs(logits - logits_ref)))
    assert jnp.allclose(logits, logits_ref, rtol=2e-2, atol=2e-2), max_err

    print("KERNEL_OK")
</pallas_src>

<mosaic_0001>
module attributes {stable_mosaic.version = 11 : i64} {
  func.func @kernel(%arg0: i32, %arg1: memref<1x8x128xf32, #tpu.memory_space<vmem>>, %arg2: memref<1x1x8xf32, #tpu.memory_space<vmem>>, %arg3: memref<2x1x128xf32, #tpu.memory_space<vmem>>, %arg4: memref<2x1x128xf32, #tpu.memory_space<vmem>>, %arg5: memref<2x4x128x32xbf16, #tpu.memory_space<vmem>>, %arg6: memref<2x4x1x32xf32, #tpu.memory_space<vmem>>, %arg7: memref<2x4x128x32xbf16, #tpu.memory_space<vmem>>, %arg8: memref<2x4x1x32xf32, #tpu.memory_space<vmem>>, %arg9: memref<2x4x128x32xbf16, #tpu.memory_space<vmem>>, %arg10: memref<2x4x1x32xf32, #tpu.memory_space<vmem>>, %arg11: memref<2x4x32x128xbf16, #tpu.memory_space<vmem>>, %arg12: memref<2x1x128xf32, #tpu.memory_space<vmem>>, %arg13: memref<2x1x128xf32, #tpu.memory_space<vmem>>, %arg14: memref<2x1x128xf32, #tpu.memory_space<vmem>>, %arg15: memref<2x128x256xbf16, #tpu.memory_space<vmem>>, %arg16: memref<2x1x256xf32, #tpu.memory_space<vmem>>, %arg17: memref<2x256x128xbf16, #tpu.memory_space<vmem>>, %arg18: memref<2x1x128xf32, #tpu.memory_space<vmem>>, %arg19: memref<1x128xf32, #tpu.memory_space<vmem>>, %arg20: memref<1x128xf32, #tpu.memory_space<vmem>>, %arg21: memref<128x256xbf16, #tpu.memory_space<vmem>>, %arg22: memref<1x256xf32, #tpu.memory_space<vmem>>, %arg23: memref<1x8x256xf32, #tpu.memory_space<vmem>>) attributes {dimension_semantics = [#tpu.dimension_semantics<parallel>], iteration_bounds = array<i64: 2>, scalar_prefetch = 0 : i64, scratch_operands = 0 : i64, tpu.core_type = #tpu.core_type<tc>, window_params = [{transform_indices = @transform_0, window_bounds = array<i64: 1, 8, 128>}, {transform_indices = @transform_1, window_bounds = array<i64: 1, 1, 8>}, {pipeline_mode = #tpu.pipeline_mode<synchronous>, transform_indices = @transform_2, window_bounds = array<i64: 2, 1, 128>}, {pipeline_mode = #tpu.pipeline_mode<synchronous>, transform_indices = @transform_3, window_bounds = array<i64: 2, 1, 128>}, {pipeline_mode = #tpu.pipeline_mode<synchronous>, transform_indices = @transform_4, window_bounds = array<i64: 2, 4, 128, 32>}, {pipeline_mode = #tpu.pipeline_mode<synchronous>, transform_indices = @transform_5, window_bounds = array<i64: 2, 4, 1, 32>}, {pipeline_mode = #tpu.pipeline_mode<synchronous>, transform_indices = @transform_6, window_bounds = array<i64: 2, 4, 128, 32>}, {pipeline_mode = #tpu.pipeline_mode<synchronous>, transform_indices = @transform_7, window_bounds = array<i64: 2, 4, 1, 32>}, {pipeline_mode = #tpu.pipeline_mode<synchronous>, transform_indices = @transform_8, window_bounds = array<i64: 2, 4, 128, 32>}, {pipeline_mode = #tpu.pipeline_mode<synchronous>, transform_indices = @transform_9, window_bounds = array<i64: 2, 4, 1, 32>}, {pipeline_mode = #tpu.pipeline_mode<synchronous>, transform_indices = @transform_10, window_bounds = array<i64: 2, 4, 32, 128>}, {pipeline_mode = #tpu.pipeline_mode<synchronous>, transform_indices = @transform_11, window_bounds = array<i64: 2, 1, 128>}, {pipeline_mode = #tpu.pipeline_mode<synchronous>, transform_indices = @transform_12, window_bounds = array<i64: 2, 1, 128>}, {pipeline_mode = #tpu.pipeline_mode<synchronous>, transform_indices = @transform_13, window_bounds = array<i64: 2, 1, 128>}, {pipeline_mode = #tpu.pipeline_mode<synchronous>, transform_indices = @transform_14, window_bounds = array<i64: 2, 128, 256>}, {pipeline_mode = #tpu.pipeline_mode<synchronous>, transform_indices = @transform_15, window_bounds = array<i64: 2, 1, 256>}, {pipeline_mode = #tpu.pipeline_mode<synchronous>, transform_indices = @transform_16, window_bounds = array<i64: 2, 256, 128>}, {pipeline_mode = #tpu.pipeline_mode<synchronous>, transform_indices = @transform_17, window_bounds = array<i64: 2, 1, 128>}, {pipeline_mode = #tpu.pipeline_mode<synchronous>, transform_indices = @transform_18, window_bounds = array<i64: 1, 128>}, {pipeline_mode = #tpu.pipeline_mode<synchronous>, transform_indices = @transform_19, window_bounds = array<i64: 1, 128>}, {pipeline_mode = #tpu.pipeline_mode<synchronous>, transform_indices = @transform_20, window_bounds = array<i64: 128, 256>}, {pipeline_mode = #tpu.pipeline_mode<synchronous>, transform_indices = @transform_21, window_bounds = array<i64: 1, 256>}, {transform_indices = @transform_22, window_bounds = array<i64: 1, 8, 256>}]} {
    %c0 = arith.constant 0 : index
    %c0_0 = arith.constant 0 : index
    %c0_1 = arith.constant 0 : index
    %0 = vector.load %arg1[%c0, %c0_0, %c0_1] : memref<1x8x128xf32, #tpu.memory_space<vmem>>, vector<1x8x128xf32>
    %1 = vector.shape_cast %0 : vector<1x8x128xf32> to vector<8x128xf32>
    %c0_2 = arith.constant 0 : index
    %c0_3 = arith.constant 0 : index
    %c0_4 = arith.constant 0 : index
    %2 = vector.load %arg2[%c0_2, %c0_3, %c0_4] : memref<1x1x8xf32, #tpu.memory_space<vmem>>, vector<1x1x8xf32>
    %3 = vector.shape_cast %2 : vector<1x1x8xf32> to vector<1x8xf32>
    %4 = tpu.iota {dimensions = array<i32: 0>} : vector<8x8xi32>
    %5 = tpu.iota {dimensions = array<i32: 1>} : vector<8x8xi32>
    %6 = arith.cmpi sle, %5, %4 : vector<8x8xi32>
    %cst = arith.constant 0.000000e+00 : f32
    %cst_5 = arith.constant -1.000000e+09 : f32
    %7 = vector.broadcast %cst : f32 to vector<8x8xf32>
    %8 = vector.broadcast %cst_5 : f32 to vector<8x8xf32>
    %9 = arith.select %6, %7, %8 : vector<8x8xi1>, vector<8x8xf32>
    %10 = vector.broadcast %3 : vector<1x8xf32> to vector<8x8xf32>
    %11 = arith.minimumf %9, %10 : vector<8x8xf32>
    %c0_6 = arith.constant 0 : index
    %c0_7 = arith.constant 0 : index
    %c0_8 = arith.constant 0 : index
    %12 = vector.load %arg3[%c0_6, %c0_7, %c0_8] : memref<2x1x128xf32, #tpu.memory_space<vmem>>, vector<1x1x128xf32>
    %13 = vector.shape_cast %12 : vector<1x1x128xf32> to vector<1x128xf32>
    %c0_9 = arith.constant 0 : index
    %c0_10 = arith.constant 0 : index
    %c0_11 = arith.constant 0 : index
    %14 = vector.load %arg4[%c0_9, %c0_10, %c0_11] : memref<2x1x128xf32, #tpu.memory_space<vmem>>, vector<1x1x128xf32>
    %15 = vector.shape_cast %14 : vector<1x1x128xf32> to vector<1x128xf32>
    %cst_12 = arith.constant dense<0.000000e+00> : vector<8xf32>
    %16 = vector.multi_reduction <add>, %1, %cst_12 [1] : vector<8x128xf32> to vector<8xf32>
    %17 = vector.shape_cast %16 : vector<8xf32> to vector<8x1xf32>
    %cst_13 = arith.constant 1.280000e+02 : f32
    %18 = vector.broadcast %cst_13 : f32 to vector<8x1xf32>
    %19 = arith.divf %17, %18 : vector<8x1xf32>
    %20 = vector.broadcast %19 : vector<8x1xf32> to vector<8x128xf32>
    %21 = arith.subf %1, %20 : vector<8x128xf32>
    %22 = arith.mulf %21, %21 : vector<8x128xf32>
    %cst_14 = arith.constant dense<0.000000e+00> : vector<8xf32>
    %23 = vector.multi_reduction <add>, %22, %cst_14 [1] : vector<8x128xf32> to vector<8xf32>
    %24 = vector.shape_cast %23 : vector<8xf32> to vector<8x1xf32>
    %cst_15 = arith.constant 1.280000e+02 : f32
    %25 = vector.broadcast %cst_15 : f32 to vector<8x1xf32>
    %26 = arith.divf %24, %25 : vector<8x1xf32>
    %27 = vector.broadcast %19 : vector<8x1xf32> to vector<8x128xf32>
    %28 = arith.subf %1, %27 : vector<8x128xf32>
    %cst_16 = arith.constant 9.99999974E-6 : f32
    %29 = vector.broadcast %cst_16 : f32 to vector<8x1xf32>
    %30 = arith.addf %26, %29 : vector<8x1xf32>
    %31 = math.rsqrt %30 : vector<8x1xf32>
    %32 = vector.broadcast %31 : vector<8x1xf32> to vector<8x128xf32>
    %33 = arith.mulf %28, %32 : vector<8x128xf32>
    %34 = vector.broadcast %13 : vector<1x128xf32> to vector<8x128xf32>
    %35 = arith.mulf %33, %34 : vector<8x128xf32>
    %36 = vector.broadcast %15 : vector<1x128xf32> to vector<8x128xf32>
    %37 = arith.addf %35, %36 : vector<8x128xf32>
    %38 = arith.truncf %37 : vector<8x128xf32> to vector<8x128xbf16>
    %cst_17 = arith.constant 0.000000e+00 : f32
    %39 = vector.broadcast %cst_17 : f32 to vector<8x128xf32>
    %c0_18 = arith.constant 0 : index
    %c0_19 = arith.constant 0 : index
    %c0_20 = arith.constant 0 : index
    %c0_21 = arith.constant 0 : index
    %40 = vector.load %arg5[%c0_18, %c0_19, %c0_20, %c0_21] : memref<2x4x128x32xbf16, #tpu.memory_space<vmem>>, vector<1x1x128x32xbf16>
    %41 = vector.shape_cast %40 : vector<1x1x128x32xbf16> to vector<128x32xbf16>
    %cst_22 = arith.constant dense<0.000000e+00> : vector<8x32xf32>
    %42 = tpu.matmul %38, %41, %cst_22 {dimension_numbers = #tpu.dot_dimension_numbers<[1], [0], [0], [1], [0, 0, 1, 1], [], []>} : vector<8x128xbf16>, vector<128x32xbf16>, vector<8x32xf32> -> vector<8x32xf32>
    %c0_23 = arith.constant 0 : index
    %c0_24 = arith.constant 0 : index
    %c0_25 = arith.constant 0 : index
    %c0_26 = arith.constant 0 : index
    %43 = vector.load %arg6[%c0_23, %c0_24, %c0_25, %c0_26] : memref<2x4x1x32xf32, #tpu.memory_space<vmem>>, vector<1x1x1x32xf32>
    %44 = vector.shape_cast %43 : vector<1x1x1x32xf32> to vector<1x32xf32>
    %45 = vector.broadcast %44 : vector<1x32xf32> to vector<8x32xf32>
    %46 = arith.addf %42, %45 : vector<8x32xf32>
    %c0_27 = arith.constant 0 : index
    %c0_28 = arith.constant 0 : index
    %c0_29 = arith.constant 0 : index
    %c0_30 = arith.constant 0 : index
    %47 = vector.load %arg7[%c0_27, %c0_28, %c0_29, %c0_30] : memref<2x4x128x32xbf16, #tpu.memory_space<vmem>>, vector<1x1x128x32xbf16>
    %48 = vector.shape_cast %47 : vector<1x1x128x32xbf16> to vector<128x32xbf16>
    %cst_31 = arith.constant dense<0.000000e+00> : vector<8x32xf32>
    %49 = tpu.matmul %38, %48, %cst_31 {dimension_numbers = #tpu.dot_dimension_numbers<[1], [0], [0], [1], [0, 0, 1, 1], [], []>} : vector<8x128xbf16>, vector<128x32xbf16>, vector<8x32xf32> -> vector<8x32xf32>
    %c0_32 = arith.constant 0 : index
    %c0_33 = arith.constant 0 : index
    %c0_34 = arith.constant 0 : index
    %c0_35 = arith.constant 0 : index
    %50 = vector.load %arg8[%c0_32, %c0_33, %c0_34, %c0_35] : memref<2x4x1x32xf32, #tpu.memory_space<vmem>>, vector<1x1x1x32xf32>
    %51 = vector.shape_cast %50 : vector<1x1x1x32xf32> to vector<1x32xf32>
    %52 = vector.broadcast %51 : vector<1x32xf32> to vector<8x32xf32>
    %53 = arith.addf %49, %52 : vector<8x32xf32>
    %c0_36 = arith.constant 0 : index
    %c0_37 = arith.constant 0 : index
    %c0_38 = arith.constant 0 : index
    %c0_39 = arith.constant 0 : index
    %54 = vector.load %arg9[%c0_36, %c0_37, %c0_38, %c0_39] : memref<2x4x128x32xbf16, #tpu.memory_space<vmem>>, vector<1x1x128x32xbf16>
    %55 = vector.shape_cast %54 : vector<1x1x128x32xbf16> to vector<128x32xbf16>
    %cst_40 = arith.constant dense<0.000000e+00> : vector<8x32xf32>
    %56 = tpu.matmul %38, %55, %cst_40 {dimension_numbers = #tpu.dot_dimension_numbers<[1], [0], [0], [1], [0, 0, 1, 1], [], []>} : vector<8x128xbf16>, vector<128x32xbf16>, vector<8x32xf32> -> vector<8x32xf32>
    %c0_41 = arith.constant 0 : index
    %c0_42 = arith.constant 0 : index
    %c0_43 = arith.constant 0 : index
    %c0_44 = arith.constant 0 : index
    %57 = vector.load %arg10[%c0_41, %c0_42, %c0_43, %c0_44] : memref<2x4x1x32xf32, #tpu.memory_space<vmem>>, vector<1x1x1x32xf32>
    %58 = vector.shape_cast %57 : vector<1x1x1x32xf32> to vector<1x32xf32>
    %59 = vector.broadcast %58 : vector<1x32xf32> to vector<8x32xf32>
    %60 = arith.addf %56, %59 : vector<8x32xf32>
    %cst_45 = arith.constant 0.176776692 : f32
    %61 = vector.broadcast %cst_45 : f32 to vector<8x32xf32>
    %62 = arith.mulf %46, %61 : vector<8x32xf32>
    %63 = arith.truncf %62 : vector<8x32xf32> to vector<8x32xbf16>
    %64 = arith.truncf %53 : vector<8x32xf32> to vector<8x32xbf16>
    "tpu.trace_start"() <{level = 10 : i32, message = "qd,kd->qk"}> : () -> ()
    %cst_46 = arith.constant dense<0.000000e+00> : vector<8x8xf32>
    %65 = tpu.matmul %63, %64, %cst_46 {dimension_numbers = #tpu.dot_dimension_numbers<[1], [1], [0], [0], [0, 0, 1, 0], [], []>} : vector<8x32xbf16>, vector<8x32xbf16>, vector<8x8xf32> -> vector<8x8xf32>
    "tpu.trace_stop"() : () -> ()
    %66 = arith.addf %65, %11 : vector<8x8xf32>
    %cst_47 = arith.constant dense<0xFF800000> : vector<8xf32>
    %67 = vector.multi_reduction <maximumf>, %66, %cst_47 [1] : vector<8x8xf32> to vector<8xf32>
    %68 = vector.shape_cast %67 : vector<8xf32> to vector<8x1xf32>
    %69 = vector.broadcast %68 : vector<8x1xf32> to vector<8x8xf32>
    %70 = arith.subf %66, %69 : vector<8x8xf32>
    %71 = math.exp %70 : vector<8x8xf32>
    %cst_48 = arith.constant dense<0.000000e+00> : vector<8xf32>
    %72 = vector.multi_reduction <add>, %71, %cst_48 [1] : vector<8x8xf32> to vector<8xf32>
    %73 = vector.shape_cast %72 : vector<8xf32> to vector<8x1xf32>
    %74 = tpu.reciprocal %73 {approx = true} : vector<8x1xf32> -> vector<8x1xf32>
    %75 = vector.broadcast %74 : vector<8x1xf32> to vector<8x8xf32>
    %76 = arith.mulf %71, %75 : vector<8x8xf32>
    %77 = arith.truncf %76 : vector<8x8xf32> to vector<8x8xbf16>
    %78 = arith.truncf %60 : vector<8x32xf32> to vector<8x32xbf16>
    %cst_49 = arith.constant dense<0.000000e+00> : vector<8x32xf32>
    %79 = tpu.matmul %77, %78, %cst_49 {dimension_numbers = #tpu.dot_dimension_numbers<[1], [0], [0], [1], [0, 0, 1, 1], [], []>} : vector<8x8xbf16>, vector<8x32xbf16>, vector<8x32xf32> -> vector<8x32xf32>
    %80 = arith.truncf %79 : vector<8x32xf32> to vector<8x32xbf16>
    %c0_50 = arith.constant 0 : index
    %c0_51 = arith.constant 0 : index
    %c0_52 = arith.constant 0 : index
    %c0_53 = arith.constant 0 : index
    %81 = vector.load %arg11[%c0_50, %c0_51, %c0_52, %c0_53] : memref<2x4x32x128xbf16, #tpu.memory_space<vmem>>, vector<1x1x32x128xbf16>
    %82 = vector.shape_cast %81 : vector<1x1x32x128xbf16> to vector<32x128xbf16>
    %cst_54 = arith.constant dense<0.000000e+00> : vector<8x128xf32>
    %83 = tpu.matmul %80, %82, %cst_54 {dimension_numbers = #tpu.dot_dimension_numbers<[1], [0], [0], [1], [0, 0, 1, 1], [], []>} : vector<8x32xbf16>, vector<32x128xbf16>, vector<8x128xf32> -> vector<8x128xf32>
    %84 = arith.addf %39, %83 : vector<8x128xf32>
    %c0_55 = arith.constant 0 : index
    %c1 = arith.constant 1 : index
    %c0_56 = arith.constant 0 : index
    %c0_57 = arith.constant 0 : index
    %85 = vector.load %arg5[%c0_55, %c1, %c0_56, %c0_57] : memref<2x4x128x32xbf16, #tpu.memory_space<vmem>>, vector<1x1x128x32xbf16>
    %86 = vector.shape_cast %85 : vector<1x1x128x32xbf16> to vector<128x32xbf16>
    %cst_58 = arith.constant dense<0.000000e+00> : vector<8x32xf32>
    %87 = tpu.matmul %38, %86, %cst_58 {dimension_numbers = #tpu.dot_dimension_numbers<[1], [0], [0], [1], [0, 0, 1, 1], [], []>} : vector<8x128xbf16>, vector<128x32xbf16>, vector<8x32xf32> -> vector<8x32xf32>
    %c0_59 = arith.constant 0 : index
    %c1_60 = arith.constant 1 : index
    %c0_61 = arith.constant 0 : index
    %c0_62 = arith.constant 0 : index
    %88 = vector.load %arg6[%c0_59, %c1_60, %c0_61, %c0_62] : memref<2x4x1x32xf32, #tpu.memory_space<vmem>>, vector<1x1x1x32xf32>
    %89 = vector.shape_cast %88 : vector<1x1x1x32xf32> to vector<1x32xf32>
    %90 = vector.broadcast %89 : vector<1x32xf32> to vector<8x32xf32>
    %91 = arith.addf %87, %90 : vector<8x32xf32>
    %c0_63 = arith.constant 0 : index
    %c1_64 = arith.constant 1 : index
    %c0_65 = arith.constant 0 : index
    %c0_66 = arith.constant 0 : index
    %92 = vector.load %arg7[%c0_63, %c1_64, %c0_65, %c0_66] : memref<2x4x128x32xbf16, #tpu.memory_space<vmem>>, vector<1x1x128x32xbf16>
    %93 = vector.shape_cast %92 : vector<1x1x128x32xbf16> to vector<128x32xbf16>
    %cst_67 = arith.constant dense<0.000000e+00> : vector<8x32xf32>
    %94 = tpu.matmul %38, %93, %cst_67 {dimension_numbers = #tpu.dot_dimension_numbers<[1], [0], [0], [1], [0, 0, 1, 1], [], []>} : vector<8x128xbf16>, vector<128x32xbf16>, vector<8x32xf32> -> vector<8x32xf32>
    %c0_68 = arith.constant 0 : index
    %c1_69 = arith.constant 1 : index
    %c0_70 = arith.constant 0 : index
    %c0_71 = arith.constant 0 : index
    %95 = vector.load %arg8[%c0_68, %c1_69, %c0_70, %c0_71] : memref<2x4x1x32xf32, #tpu.memory_space<vmem>>, vector<1x1x1x32xf32>
    %96 = vector.shape_cast %95 : vector<1x1x1x32xf32> to vector<1x32xf32>
    %97 = vector.broadcast %96 : vector<1x32xf32> to vector<8x32xf32>
    %98 = arith.addf %94, %97 : vector<8x32xf32>
    %c0_72 = arith.constant 0 : index
    %c1_73 = arith.constant 1 : index
    %c0_74 = arith.constant 0 : index
    %c0_75 = arith.constant 0 : index
    %99 = vector.load %arg9[%c0_72, %c1_73, %c0_74, %c0_75] : memref<2x4x128x32xbf16, #tpu.memory_space<vmem>>, vector<1x1x128x32xbf16>
    %100 = vector.shape_cast %99 : vector<1x1x128x32xbf16> to vector<128x32xbf16>
    %cst_76 = arith.constant dense<0.000000e+00> : vector<8x32xf32>
    %101 = tpu.matmul %38, %100, %cst_76 {dimension_numbers = #tpu.dot_dimension_numbers<[1], [0], [0], [1], [0, 0, 1, 1], [], []>} : vector<8x128xbf16>, vector<128x32xbf16>, vector<8x32xf32> -> vector<8x32xf32>
    %c0_77 = arith.constant 0 : index
    %c1_78 = arith.constant 1 : index
    %c0_79 = arith.constant 0 : index
    %c0_80 = arith.constant 0 : index
    %102 = vector.load %arg10[%c0_77, %c1_78, %c0_79, %c0_80] : memref<2x4x1x32xf32, #tpu.memory_space<vmem>>, vector<1x1x1x32xf32>
    %103 = vector.shape_cast %102 : vector<1x1x1x32xf32> to vector<1x32xf32>
    %104 = vector.broadcast %103 : vector<1x32xf32> to vector<8x32xf32>
    %105 = arith.addf %101, %104 : vector<8x32xf32>
    %cst_81 = arith.constant 0.176776692 : f32
    %106 = vector.broadcast %cst_81 : f32 to vector<8x32xf32>
    %107 = arith.mulf %91, %106 : vector<8x32xf32>
    %108 = arith.truncf %107 : vector<8x32xf32> to vector<8x32xbf16>
    %109 = arith.truncf %98 : vector<8x32xf32> to vector<8x32xbf16>
    "tpu.trace_start"() <{level = 10 : i32, message = "qd,kd->qk"}> : () -> ()
    %cst_82 = arith.constant dense<0.000000e+00> : vector<8x8xf32>
    %110 = tpu.matmul %108, %109, %cst_82 {dimension_numbers = #tpu.dot_dimension_numbers<[1], [1], [0], [0], [0, 0, 1, 0], [], []>} : vector<8x32xbf16>, vector<8x32xbf16>, vector<8x8xf32> -> vector<8x8xf32>
    "tpu.trace_stop"() : () -> ()
    %111 = arith.addf %110, %11 : vector<8x8xf32>
    %cst_83 = arith.constant dense<0xFF800000> : vector<8xf32>
    %112 = vector.multi_reduction <maximumf>, %111, %cst_83 [1] : vector<8x8xf32> to vector<8xf32>
    %113 = vector.shape_cast %112 : vector<8xf32> to vector<8x1xf32>
    %114 = vector.broadcast %113 : vector<8x1xf32> to vector<8x8xf32>
    %115 = arith.subf %111, %114 : vector<8x8xf32>
    %116 = math.exp %115 : vector<8x8xf32>
    %cst_84 = arith.constant dense<0.000000e+00> : vector<8xf32>
    %117 = vector.multi_reduction <add>, %116, %cst_84 [1] : vector<8x8xf32> to vector<8xf32>
    %118 = vector.shape_cast %117 : vector<8xf32> to vector<8x1xf32>
    %119 = tpu.reciprocal %118 {approx = true} : vector<8x1xf32> -> vector<8x1xf32>
    %120 = vector.broadcast %119 : vector<8x1xf32> to vector<8x8xf32>
    %121 = arith.mulf %116, %120 : vector<8x8xf32>
    %122 = arith.truncf %121 : vector<8x8xf32> to vector<8x8xbf16>
    %123 = arith.truncf %105 : vector<8x32xf32> to vector<8x32xbf16>
    %cst_85 = arith.constant dense<0.000000e+00> : vector<8x32xf32>
    %124 = tpu.matmul %122, %123, %cst_85 {dimension_numbers = #tpu.dot_dimension_numbers<[1], [0], [0], [1], [0, 0, 1, 1], [], []>} : vector<8x8xbf16>, vector<8x32xbf16>, vector<8x32xf32> -> vector<8x32xf32>
    %125 = arith.truncf %124 : vector<8x32xf32> to vector<8x32xbf16>
    %c0_86 = arith.constant 0 : index
    %c1_87 = arith.constant 1 : index
    %c0_88 = arith.constant 0 : index
    %c0_89 = arith.constant 0 : index
    %126 = vector.load %arg11[%c0_86, %c1_87, %c0_88, %c0_89] : memref<2x4x32x128xbf16, #tpu.memory_space<vmem>>, vector<1x1x32x128xbf16>
    %127 = vector.shape_cast %126 : vector<1x1x32x128xbf16> to vector<32x128xbf16>
    %cst_90 = arith.constant dense<0.000000e+00> : vector<8x128xf32>
    %128 = tpu.matmul %125, %127, %cst_90 {dimension_numbers = #tpu.dot_dimension_numbers<[1], [0], [0], [1], [0, 0, 1, 1], [], []>} : vector<8x32xbf16>, vector<32x128xbf16>, vector<8x128xf32> -> vector<8x128xf32>
    %129 = arith.addf %84, %128 : vector<8x128xf32>
    %c0_91 = arith.constant 0 : index
    %c2 = arith.constant 2 : index
    %c0_92 = arith.constant 0 : index
    %c0_93 = arith.constant 0 : index
    %130 = vector.load %arg5[%c0_91, %c2, %c0_92, %c0_93] : memref<2x4x128x32xbf16, #tpu.memory_space<vmem>>, vector<1x1x128x32xbf16>
    %131 = vector.shape_cast %130 : vector<1x1x128x32xbf16> to vector<128x32xbf16>
    %cst_94 = arith.constant dense<0.000000e+00> : vector<8x32xf32>
    %132 = tpu.matmul %38, %131, %cst_94 {dimension_numbers = #tpu.dot_dimension_numbers<[1], [0], [0], [1], [0, 0, 1, 1], [], []>} : vector<8x128xbf16>, vector<128x32xbf16>, vector<8x32xf32> -> vector<8x32xf32>
    %c0_95 = arith.constant 0 : index
    %c2_96 = arith.constant 2 : index
    %c0_97 = arith.constant 0 : index
    %c0_98 = arith.constant 0 : index
    %133 = vector.load %arg6[%c0_95, %c2_96, %c0_97, %c0_98] : memref<2x4x1x32xf32, #tpu.memory_space<vmem>>, vector<1x1x1x32xf32>
    %134 = vector.shape_cast %133 : vector<1x1x1x32xf32> to vector<1x32xf32>
    %135 = vector.broadcast %134 : vector<1x32xf32> to vector<8x32xf32>
    %136 = arith.addf %132, %135 : vector<8x32xf32>
    %c0_99 = arith.constant 0 : index
    %c2_100 = arith.constant 2 : index
    %c0_101 = arith.constant 0 : index
    %c0_102 = arith.constant 0 : index
    %137 = vector.load %arg7[%c0_99, %c2_100, %c0_101, %c0_102] : memref<2x4x128x32xbf16, #tpu.memory_space<vmem>>, vector<1x1x128x32xbf16>
    %138 = vector.shape_cast %137 : vector<1x1x128x32xbf16> to vector<128x32xbf16>
    %cst_103 = arith.constant dense<0.000000e+00> : vector<8x32xf32>
    %139 = tpu.matmul %38, %138, %cst_103 {dimension_numbers = #tpu.dot_dimension_numbers<[1], [0], [0], [1], [0, 0, 1, 1], [], []>} : vector<8x128xbf16>, vector<128x32xbf16>, vector<8x32xf32> -> vector<8x32xf32>
    %c0_104 = arith.constant 0 : index
    %c2_105 = arith.constant 2 : index
    %c0_106 = arith.constant 0 : index
    %c0_107 = arith.constant 0 : index
    %140 = vector.load %arg8[%c0_104, %c2_105, %c0_106, %c0_107] : memref<2x4x1x32xf32, #tpu.memory_space<vmem>>, vector<1x1x1x32xf32>
    %141 = vector.shape_cast %140 : vector<1x1x1x32xf32> to vector<1x32xf32>
    %142 = vector.broadcast %141 : vector<1x32xf32> to vector<8x32xf32>
    %143 = arith.addf %139, %142 : vector<8x32xf32>
    %c0_108 = arith.constant 0 : index
    %c2_109 = arith.constant 2 : index
    %c0_110 = arith.constant 0 : index
    %c0_111 = arith.constant 0 : index
    %144 = vector.load %arg9[%c0_108, %c2_109, %c0_110, %c0_111] : memref<2x4x128x32xbf16, #tpu.memory_space<vmem>>, vector<1x1x128x32xbf16>
    %145 = vector.shape_cast %144 : vector<1x1x128x32xbf16> to vector<128x32xbf16>
    %cst_112 = arith.constant dense<0.000000e+00> : vector<8x32xf32>
    %146 = tpu.matmul %38, %145, %cst_112 {dimension_numbers = #tpu.dot_dimension_numbers<[1], [0], [0], [1], [0, 0, 1, 1], [], []>} : vector<8x128xbf16>, vector<128x32xbf16>, vector<8x32xf32> -> vector<8x32xf32>
    %c0_113 = arith.constant 0 : index
    %c2_114 = arith.constant 2 : index
    %c0_115 = arith.constant 0 : index
    %c0_116 = arith.constant 0 : index
    %147 = vector.load %arg10[%c0_113, %c2_114, %c0_115, %c0_116] : memref<2x4x1x32xf32, #tpu.memory_space<vmem>>, vector<1x1x1x32xf32>
    %148 = vector.shape_cast %147 : vector<1x1x1x32xf32> to vector<1x32xf32>
    %149 = vector.broadcast %148 : vector<1x32xf32> to vector<8x32xf32>
    %150 = arith.addf %146, %149 : vector<8x32xf32>
    %cst_117 = arith.constant 0.176776692 : f32
    %151 = vector.broadcast %cst_117 : f32 to vector<8x32xf32>
    %152 = arith.mulf %136, %151 : vector<8x32xf32>
    %153 = arith.truncf %152 : vector<8x32xf32> to vector<8x32xbf16>
    %154 = arith.truncf %143 : vector<8x32xf32> to vector<8x32xbf16>
    "tpu.trace_start"() <{level = 10 : i32, message = "qd,kd->qk"}> : () -> ()
    %cst_118 = arith.constant dense<0.000000e+00> : vector<8x8xf32>
    %155 = tpu.matmul %153, %154, %cst_118 {dimension_numbers = #tpu.dot_dimension_numbers<[1], [1], [0], [0], [0, 0, 1, 0], [], []>} : vector<8x32xbf16>, vector<8x32xbf16>, vector<8x8xf32> -> vector<8x8xf32>
    "tpu.trace_stop"() : () -> ()
    %156 = arith.addf %155, %11 : vector<8x8xf32>
    %cst_119 = arith.constant dense<0xFF800000> : vector<8xf32>
    %157 = vector.multi_reduction <maximumf>, %156, %cst_119 [1] : vector<8x8xf32> to vector<8xf32>
    %158 = vector.shape_cast %157 : vector<8xf32> to vector<8x1xf32>
    %159 = vector.broadcast %158 : vector<8x1xf32> to vector<8x8xf32>
    %160 = arith.subf %156, %159 : vector<8x8xf32>
    %161 = math.exp %160 : vector<8x8xf32>
    %cst_120 = arith.constant dense<0.000000e+00> : vector<8xf32>
    %162 = vector.multi_reduction <add>, %161, %cst_120 [1] : vector<8x8xf32> to vector<8xf32>
    %163 = vector.shape_cast %162 : vector<8xf32> to vector<8x1xf32>
    %164 = tpu.reciprocal %163 {approx = true} : vector<8x1xf32> -> vector<8x1xf32>
    %165 = vector.broadcast %164 : vector<8x1xf32> to vector<8x8xf32>
    %166 = arith.mulf %161, %165 : vector<8x8xf32>
    %167 = arith.truncf %166 : vector<8x8xf32> to vector<8x8xbf16>
    %168 = arith.truncf %150 : vector<8x32xf32> to vector<8x32xbf16>
    %cst_121 = arith.constant dense<0.000000e+00> : vector<8x32xf32>
    %169 = tpu.matmul %167, %168, %cst_121 {dimension_numbers = #tpu.dot_dimension_numbers<[1], [0], [0], [1], [0, 0, 1, 1], [], []>} : vector<8x8xbf16>, vector<8x32xbf16>, vector<8x32xf32> -> vector<8x32xf32>
    %170 = arith.truncf %169 : vector<8x32xf32> to vector<8x32xbf16>
    %c0_122 = arith.constant 0 : index
    %c2_123 = arith.constant 2 : index
    %c0_124 = arith.constant 0 : index
    %c0_125 = arith.constant 0 : index
    %171 = vector.load %arg11[%c0_122, %c2_123, %c0_124, %c0_125] : memref<2x4x32x128xbf16, #tpu.memory_space<vmem>>, vector<1x1x32x128xbf16>
    %172 = vector.shape_cast %171 : vector<1x1x32x128xbf16> to vector<32x128xbf16>
    %cst_126 = arith.constant dense<0.000000e+00> : vector<8x128xf32>
    %173 = tpu.matmul %170, %172, %cst_126 {dimension_numbers = #tpu.dot_dimension_numbers<[1], [0], [0], [1], [0, 0, 1, 1], [], []>} : vector<8x32xbf16>, vector<32x128xbf16>, vector<8x128xf32> -> vector<8x128xf32>
    %174 = arith.addf %129, %173 : vector<8x128xf32>
    %c0_127 = arith.constant 0 : index
    %c3 = arith.constant 3 : index
    %c0_128 = arith.constant 0 : index
    %c0_129 = arith.constant 0 : index
    %175 = vector.load %arg5[%c0_127, %c3, %c0_128, %c0_129] : memref<2x4x128x32xbf16, #tpu.memory_space<vmem>>, vector<1x1x128x32xbf16>
    %176 = vector.shape_cast %175 : vector<1x1x128x32xbf16> to vector<128x32xbf16>
    %cst_130 = arith.constant dense<0.000000e+00> : vector<8x32xf32>
    %177 = tpu.matmul %38, %176, %cst_130 {dimension_numbers = #tpu.dot_dimension_numbers<[1], [0], [0], [1], [0, 0, 1, 1], [], []>} : vector<8x128xbf16>, vector<128x32xbf16>, vector<8x32xf32> -> vector<8x32xf32>
    %c0_131 = arith.constant 0 : index
    %c3_132 = arith.constant 3 : index
    %c0_133 = arith.constant 0 : index
    %c0_134 = arith.constant 0 : index
    %178 = vector.load %arg6[%c0_131, %c3_132, %c0_133, %c0_134] : memref<2x4x1x32xf32, #tpu.memory_space<vmem>>, vector<1x1x1x32xf32>
    %179 = vector.shape_cast %178 : vector<1x1x1x32xf32> to vector<1x32xf32>
    %180 = vector.broadcast %179 : vector<1x32xf32> to vector<8x32xf32>
    %181 = arith.addf %177, %180 : vector<8x32xf32>
    %c0_135 = arith.constant 0 : index
    %c3_136 = arith.constant 3 : index
    %c0_137 = arith.constant 0 : index
    %c0_138 = arith.constant 0 : index
    %182 = vector.load %arg7[%c0_135, %c3_136, %c0_137, %c0_138] : memref<2x4x128x32xbf16, #tpu.memory_space<vmem>>, vector<1x1x128x32xbf16>
    %183 = vector.shape_cast %182 : vector<1x1x128x32xbf16> to vector<128x32xbf16>
    %cst_139 = arith.constant dense<0.000000e+00> : vector<8x32xf32>
    %184 = tpu.matmul %38, %183, %cst_139 {dimension_numbers = #tpu.dot_dimension_numbers<[1], [0], [0], [1], [0, 0, 1, 1], [], []>} : vector<8x128xbf16>, vector<128x32xbf16>, vector<8x32xf32> -> vector<8x32xf32>
    %c0_140 = arith.constant 0 : index
    %c3_141 = arith.constant 3 : index
    %c0_142 = arith.constant 0 : index
    %c0_143 = arith.constant 0 : index
    %185 = vector.load %arg8[%c0_140, %c3_141, %c0_142, %c0_143] : memref<2x4x1x32xf32, #tpu.memory_space<vmem>>, vector<1x1x1x32xf32>
    %186 = vector.shape_cast %185 : vector<1x1x1x32xf32> to vector<1x32xf32>
    %187 = vector.broadcast %186 : vector<1x32xf32> to vector<8x32xf32>
    %188 = arith.addf %184, %187 : vector<8x32xf32>
    %c0_144 = arith.constant 0 : index
    %c3_145 = arith.constant 3 : index
    %c0_146 = arith.constant 0 : index
    %c0_147 = arith.constant 0 : index
    %189 = vector.load %arg9[%c0_144, %c3_145, %c0_146, %c0_147] : memref<2x4x128x32xbf16, #tpu.memory_space<vmem>>, vector<1x1x128x32xbf16>
    %190 = vector.shape_cast %189 : vector<1x1x128x32xbf16> to vector<128x32xbf16>
    %cst_148 = arith.constant dense<0.000000e+00> : vector<8x32xf32>
    %191 = tpu.matmul %38, %190, %cst_148 {dimension_numbers = #tpu.dot_dimension_numbers<[1], [0], [0], [1], [0, 0, 1, 1], [], []>} : vector<8x128xbf16>, vector<128x32xbf16>, vector<8x32xf32> -> vector<8x32xf32>
    %c0_149 = arith.constant 0 : index
    %c3_150 = arith.constant 3 : index
    %c0_151 = arith.constant 0 : index
    %c0_152 = arith.constant 0 : index
    %192 = vector.load %arg10[%c0_149, %c3_150, %c0_151, %c0_152] : memref<2x4x1x32xf32, #tpu.memory_space<vmem>>, vector<1x1x1x32xf32>
    %193 = vector.shape_cast %192 : vector<1x1x1x32xf32> to vector<1x32xf32>
    %194 = vector.broadcast %193 : vector<1x32xf32> to vector<8x32xf32>
    %195 = arith.addf %191, %194 : vector<8x32xf32>
    %cst_153 = arith.constant 0.176776692 : f32
    %196 = vector.broadcast %cst_153 : f32 to vector<8x32xf32>
    %197 = arith.mulf %181, %196 : vector<8x32xf32>
    %198 = arith.truncf %197 : vector<8x32xf32> to vector<8x32xbf16>
    %199 = arith.truncf %188 : vector<8x32xf32> to vector<8x32xbf16>
    "tpu.trace_start"() <{level = 10 : i32, message = "qd,kd->qk"}> : () -> ()
    %cst_154 = arith.constant dense<0.000000e+00> : vector<8x8xf32>
    %200 = tpu.matmul %198, %199, %cst_154 {dimension_numbers = #tpu.dot_dimension_numbers<[1], [1], [0], [0], [0, 0, 1, 0], [], []>} : vector<8x32xbf16>, vector<8x32xbf16>, vector<8x8xf32> -> vector<8x8xf32>
    "tpu.trace_stop"() : () -> ()
    %201 = arith.addf %200, %11 : vector<8x8xf32>
    %cst_155 = arith.constant dense<0xFF800000> : vector<8xf32>
    %202 = vector.multi_reduction <maximumf>, %201, %cst_155 [1] : vector<8x8xf32> to vector<8xf32>
    %203 = vector.shape_cast %202 : vector<8xf32> to vector<8x1xf32>
    %204 = vector.broadcast %203 : vector<8x1xf32> to vector<8x8xf32>
    %205 = arith.subf %201, %204 : vector<8x8xf32>
    %206 = math.exp %205 : vector<8x8xf32>
    %cst_156 = arith.constant dense<0.000000e+00> : vector<8xf32>
    %207 = vector.multi_reduction <add>, %206, %cst_156 [1] : vector<8x8xf32> to vector<8xf32>
    %208 = vector.shape_cast %207 : vector<8xf32> to vector<8x1xf32>
    %209 = tpu.reciprocal %208 {approx = true} : vector<8x1xf32> -> vector<8x1xf32>
    %210 = vector.broadcast %209 : vector<8x1xf32> to vector<8x8xf32>
    %211 = arith.mulf %206, %210 : vector<8x8xf32>
    %212 = arith.truncf %211 : vector<8x8xf32> to vector<8x8xbf16>
    %213 = arith.truncf %195 : vector<8x32xf32> to vector<8x32xbf16>
    %cst_157 = arith.constant dense<0.000000e+00> : vector<8x32xf32>
    %214 = tpu.matmul %212, %213, %cst_157 {dimension_numbers = #tpu.dot_dimension_numbers<[1], [0], [0], [1], [0, 0, 1, 1], [], []>} : vector<8x8xbf16>, vector<8x32xbf16>, vector<8x32xf32> -> vector<8x32xf32>
    %215 = arith.truncf %214 : vector<8x32xf32> to vector<8x32xbf16>
    %c0_158 = arith.constant 0 : index
    %c3_159 = arith.constant 3 : index
    %c0_160 = arith.constant 0 : index
    %c0_161 = arith.constant 0 : index
    %216 = vector.load %arg11[%c0_158, %c3_159, %c0_160, %c0_161] : memref<2x4x32x128xbf16, #tpu.memory_space<vmem>>, vector<1x1x32x128xbf16>
    %217 = vector.shape_cast %216 : vector<1x1x32x128xbf16> to vector<32x128xbf16>
    %cst_162 = arith.constant dense<0.000000e+00> : vector<8x128xf32>
    %218 = tpu.matmul %215, %217, %cst_162 {dimension_numbers = #tpu.dot_dimension_numbers<[1], [0], [0], [1], [0, 0, 1, 1], [], []>} : vector<8x32xbf16>, vector<32x128xbf16>, vector<8x128xf32> -> vector<8x128xf32>
    %219 = arith.addf %174, %218 : vector<8x128xf32>
    %220 = arith.addf %1, %219 : vector<8x128xf32>
    %c0_163 = arith.constant 0 : index
    %c0_164 = arith.constant 0 : index
    %c0_165 = arith.constant 0 : index
    %221 = vector.load %arg12[%c0_163, %c0_164, %c0_165] : memref<2x1x128xf32, #tpu.memory_space<vmem>>, vector<1x1x128xf32>
    %222 = vector.shape_cast %221 : vector<1x1x128xf32> to vector<1x128xf32>
    %223 = vector.broadcast %222 : vector<1x128xf32> to vector<8x128xf32>
    %224 = arith.addf %220, %223 : vector<8x128xf32>
    %c0_166 = arith.constant 0 : index
    %c0_167 = arith.constant 0 : index
    %c0_168 = arith.constant 0 : index
    %225 = vector.load %arg13[%c0_166, %c0_167, %c0_168] : memref<2x1x128xf32, #tpu.memory_space<vmem>>, vector<1x1x128xf32>
    %226 = vector.shape_cast %225 : vector<1x1x128xf32> to vector<1x128xf32>
    %c0_169 = arith.constant 0 : index
    %c0_170 = arith.constant 0 : index
    %c0_171 = arith.constant 0 : index
    %227 = vector.load %arg14[%c0_169, %c0_170, %c0_171] : memref<2x1x128xf32, #tpu.memory_space<vmem>>, vector<1x1x128xf32>
    %228 = vector.shape_cast %227 : vector<1x1x128xf32> to vector<1x128xf32>
    %cst_172 = arith.constant dense<0.000000e+00> : vector<8xf32>
    %229 = vector.multi_reduction <add>, %224, %cst_172 [1] : vector<8x128xf32> to vector<8xf32>
    %230 = vector.shape_cast %229 : vector<8xf32> to vector<8x1xf32>
    %cst_173 = arith.constant 1.280000e+02 : f32
    %231 = vector.broadcast %cst_173 : f32 to vector<8x1xf32>
    %232 = arith.divf %230, %231 : vector<8x1xf32>
    %233 = vector.broadcast %232 : vector<8x1xf32> to vector<8x128xf32>
    %234 = arith.subf %224, %233 : vector<8x128xf32>
    %235 = arith.mulf %234, %234 : vector<8x128xf32>
    %cst_174 = arith.constant dense<0.000000e+00> : vector<8xf32>
    %236 = vector.multi_reduction <add>, %235, %cst_174 [1] : vector<8x128xf32> to vector<8xf32>
    %237 = vector.shape_cast %236 : vector<8xf32> to vector<8x1xf32>
    %cst_175 = arith.constant 1.280000e+02 : f32
    %238 = vector.broadcast %cst_175 : f32 to vector<8x1xf32>
    %239 = arith.divf %237, %238 : vector<8x1xf32>
    %240 = vector.broadcast %232 : vector<8x1xf32> to vector<8x128xf32>
    %241 = arith.subf %224, %240 : vector<8x128xf32>
    %cst_176 = arith.constant 9.99999974E-6 : f32
    %242 = vector.broadcast %cst_176 : f32 to vector<8x1xf32>
    %243 = arith.addf %239, %242 : vector<8x1xf32>
    %244 = math.rsqrt %243 : vector<8x1xf32>
    %245 = vector.broadcast %244 : vector<8x1xf32> to vector<8x128xf32>
    %246 = arith.mulf %241, %245 : vector<8x128xf32>
    %247 = vector.broadcast %226 : vector<1x128xf32> to vector<8x128xf32>
    %248 = arith.mulf %246, %247 : vector<8x128xf32>
    %249 = vector.broadcast %228 : vector<1x128xf32> to vector<8x128xf32>
    %250 = arith.addf %248, %249 : vector<8x128xf32>
    %251 = arith.truncf %250 : vector<8x128xf32> to vector<8x128xbf16>
    %c0_177 = arith.constant 0 : index
    %c0_178 = arith.constant 0 : index
    %c0_179 = arith.constant 0 : index
    %252 = vector.load %arg15[%c0_177, %c0_178, %c0_179] : memref<2x128x256xbf16, #tpu.memory_space<vmem>>, vector<1x128x256xbf16>
    %253 = vector.shape_cast %252 : vector<1x128x256xbf16> to vector<128x256xbf16>
    %cst_180 = arith.constant dense<0.000000e+00> : vector<8x256xf32>
    %254 = tpu.matmul %251, %253, %cst_180 {dimension_numbers = #tpu.dot_dimension_numbers<[1], [0], [0], [1], [0, 0, 1, 1], [], []>} : vector<8x128xbf16>, vector<128x256xbf16>, vector<8x256xf32> -> vector<8x256xf32>
    %c0_181 = arith.constant 0 : index
    %c0_182 = arith.constant 0 : index
    %c0_183 = arith.constant 0 : index
    %255 = vector.load %arg16[%c0_181, %c0_182, %c0_183] : memref<2x1x256xf32, #tpu.memory_space<vmem>>, vector<1x1x256xf32>
    %256 = vector.shape_cast %255 : vector<1x1x256xf32> to vector<1x256xf32>
    %257 = vector.broadcast %256 : vector<1x256xf32> to vector<8x256xf32>
    %258 = arith.addf %254, %257 : vector<8x256xf32>
    %259 = arith.mulf %258, %258 : vector<8x256xf32>
    %260 = arith.mulf %258, %259 : vector<8x256xf32>
    %cst_184 = arith.constant 4.471500e-02 : f32
    %261 = vector.broadcast %cst_184 : f32 to vector<8x256xf32>
    %262 = arith.mulf %261, %260 : vector<8x256xf32>
    %263 = arith.addf %258, %262 : vector<8x256xf32>
    %cst_185 = arith.constant 0.797884583 : f32
    %264 = vector.broadcast %cst_185 : f32 to vector<8x256xf32>
    %265 = arith.mulf %264, %263 : vector<8x256xf32>
    %266 = math.tanh %265 : vector<8x256xf32>
    %cst_186 = arith.constant 1.000000e+00 : f32
    %267 = vector.broadcast %cst_186 : f32 to vector<8x256xf32>
    %268 = arith.addf %267, %266 : vector<8x256xf32>
    %cst_187 = arith.constant 5.000000e-01 : f32
    %269 = vector.broadcast %cst_187 : f32 to vector<8x256xf32>
    %270 = arith.mulf %269, %268 : vector<8x256xf32>
    %271 = arith.mulf %258, %270 : vector<8x256xf32>
    %272 = arith.truncf %271 : vector<8x256xf32> to vector<8x256xbf16>
    %c0_188 = arith.constant 0 : index
    %c0_189 = arith.constant 0 : index
    %c0_190 = arith.constant 0 : index
    %273 = vector.load %arg17[%c0_188, %c0_189, %c0_190] : memref<2x256x128xbf16, #tpu.memory_space<vmem>>, vector<1x256x128xbf16>
    %274 = vector.shape_cast %273 : vector<1x256x128xbf16> to vector<256x128xbf16>
    %cst_191 = arith.constant dense<0.000000e+00> : vector<8x128xf32>
    %275 = tpu.matmul %272, %274, %cst_191 {dimension_numbers = #tpu.dot_dimension_numbers<[1], [0], [0], [1], [0, 0, 1, 1], [], []>} : vector<8x256xbf16>, vector<256x128xbf16>, vector<8x128xf32> -> vector<8x128xf32>
    %276 = arith.addf %224, %275 : vector<8x128xf32>
    %c0_192 = arith.constant 0 : index
    %c0_193 = arith.constant 0 : index
    %c0_194 = arith.constant 0 : index
    %277 = vector.load %arg18[%c0_192, %c0_193, %c0_194] : memref<2x1x128xf32, #tpu.memory_space<vmem>>, vector<1x1x128xf32>
    %278 = vector.shape_cast %277 : vector<1x1x128xf32> to vector<1x128xf32>
    %279 = vector.broadcast %278 : vector<1x128xf32> to vector<8x128xf32>
    %280 = arith.addf %276, %279 : vector<8x128xf32>
    %c1_195 = arith.constant 1 : index
    %c0_196 = arith.constant 0 : index
    %c0_197 = arith.constant 0 : index
    %281 = vector.load %arg3[%c1_195, %c0_196, %c0_197] : memref<2x1x128xf32, #tpu.memory_space<vmem>>, vector<1x1x128xf32>
    %282 = vector.shape_cast %281 : vector<1x1x128xf32> to vector<1x128xf32>
    %c1_198 = arith.constant 1 : index
    %c0_199 = arith.constant 0 : index
    %c0_200 = arith.constant 0 : index
    %283 = vector.load %arg4[%c1_198, %c0_199, %c0_200] : memref<2x1x128xf32, #tpu.memory_space<vmem>>, vector<1x1x128xf32>
    %284 = vector.shape_cast %283 : vector<1x1x128xf32> to vector<1x128xf32>
    %cst_201 = arith.constant dense<0.000000e+00> : vector<8xf32>
    %285 = vector.multi_reduction <add>, %280, %cst_201 [1] : vector<8x128xf32> to vector<8xf32>
    %286 = vector.shape_cast %285 : vector<8xf32> to vector<8x1xf32>
    %cst_202 = arith.constant 1.280000e+02 : f32
    %287 = vector.broadcast %cst_202 : f32 to vector<8x1xf32>
    %288 = arith.divf %286, %287 : vector<8x1xf32>
    %289 = vector.broadcast %288 : vector<8x1xf32> to vector<8x128xf32>
    %290 = arith.subf %280, %289 : vector<8x128xf32>
    %291 = arith.mulf %290, %290 : vector<8x128xf32>
    %cst_203 = arith.constant dense<0.000000e+00> : vector<8xf32>
    %292 = vector.multi_reduction <add>, %291, %cst_203 [1] : vector<8x128xf32> to vector<8xf32>
    %293 = vector.shape_cast %292 : vector<8xf32> to vector<8x1xf32>
    %cst_204 = arith.constant 1.280000e+02 : f32
    %294 = vector.broadcast %cst_204 : f32 to vector<8x1xf32>
    %295 = arith.divf %293, %294 : vector<8x1xf32>
    %296 = vector.broadcast %288 : vector<8x1xf32> to vector<8x128xf32>
    %297 = arith.subf %280, %296 : vector<8x128xf32>
    %cst_205 = arith.constant 9.99999974E-6 : f32
    %298 = vector.broadcast %cst_205 : f32 to vector<8x1xf32>
    %299 = arith.addf %295, %298 : vector<8x1xf32>
    %300 = math.rsqrt %299 : vector<8x1xf32>
    %301 = vector.broadcast %300 : vector<8x1xf32> to vector<8x128xf32>
    %302 = arith.mulf %297, %301 : vector<8x128xf32>
    %303 = vector.broadcast %282 : vector<1x128xf32> to vector<8x128xf32>
    %304 = arith.mulf %302, %303 : vector<8x128xf32>
    %305 = vector.broadcast %284 : vector<1x128xf32> to vector<8x128xf32>
    %306 = arith.addf %304, %305 : vector<8x128xf32>
    %307 = arith.truncf %306 : vector<8x128xf32> to vector<8x128xbf16>
    %cst_206 = arith.constant 0.000000e+00 : f32
    %308 = vector.broadcast %cst_206 : f32 to vector<8x128xf32>
    %c1_207 = arith.constant 1 : index
    %c0_208 = arith.constant 0 : index
    %c0_209 = arith.constant 0 : index
    %c0_210 = arith.constant 0 : index
    %309 = vector.load %arg5[%c1_207, %c0_208, %c0_209, %c0_210] : memref<2x4x128x32xbf16, #tpu.memory_space<vmem>>, vector<1x1x128x32xbf16>
    %310 = vector.shape_cast %309 : vector<1x1x128x32xbf16> to vector<128x32xbf16>
    %cst_211 = arith.constant dense<0.000000e+00> : vector<8x32xf32>
    %311 = tpu.matmul %307, %310, %cst_211 {dimension_numbers = #tpu.dot_dimension_numbers<[1], [0], [0], [1], [0, 0, 1, 1], [], []>} : vector<8x128xbf16>, vector<128x32xbf16>, vector<8x32xf32> -> vector<8x32xf32>
    %c1_212 = arith.constant 1 : index
    %c0_213 = arith.constant 0 : index
    %c0_214 = arith.constant 0 : index
    %c0_215 = arith.constant 0 : index
    %312 = vector.load %arg6[%c1_212, %c0_213, %c0_214, %c0_215] : memref<2x4x1x32xf32, #tpu.memory_space<vmem>>, vector<1x1x1x32xf32>
    %313 = vector.shape_cast %312 : vector<1x1x1x32xf32> to vector<1x32xf32>
    %314 = vector.broadcast %313 : vector<1x32xf32> to vector<8x32xf32>
    %315 = arith.addf %311, %314 : vector<8x32xf32>
    %c1_216 = arith.constant 1 : index
    %c0_217 = arith.constant 0 : index
    %c0_218 = arith.constant 0 : index
    %c0_219 = arith.constant 0 : index
    %316 = vector.load %arg7[%c1_216, %c0_217, %c0_218, %c0_219] : memref<2x4x128x32xbf16, #tpu.memory_space<vmem>>, vector<1x1x128x32xbf16>
    %317 = vector.shape_cast %316 : vector<1x1x128x32xbf16> to vector<128x32xbf16>
    %cst_220 = arith.constant dense<0.000000e+00> : vector<8x32xf32>
    %318 = tpu.matmul %307, %317, %cst_220 {dimension_numbers = #tpu.dot_dimension_numbers<[1], [0], [0], [1], [0, 0, 1, 1], [], []>} : vector<8x128xbf16>, vector<128x32xbf16>, vector<8x32xf32> -> vector<8x32xf32>
    %c1_221 = arith.constant 1 : index
    %c0_222 = arith.constant 0 : index
    %c0_223 = arith.constant 0 : index
    %c0_224 = arith.constant 0 : index
    %319 = vector.load %arg8[%c1_221, %c0_222, %c0_223, %c0_224] : memref<2x4x1x32xf32, #tpu.memory_space<vmem>>, vector<1x1x1x32xf32>
    %320 = vector.shape_cast %319 : vector<1x1x1x32xf32> to vector<1x32xf32>
    %321 = vector.broadcast %320 : vector<1x32xf32> to vector<8x32xf32>
    %322 = arith.addf %318, %321 : vector<8x32xf32>
    %c1_225 = arith.constant 1 : index
    %c0_226 = arith.constant 0 : index
    %c0_227 = arith.constant 0 : index
    %c0_228 = arith.constant 0 : index
    %323 = vector.load %arg9[%c1_225, %c0_226, %c0_227, %c0_228] : memref<2x4x128x32xbf16, #tpu.memory_space<vmem>>, vector<1x1x128x32xbf16>
    %324 = vector.shape_cast %323 : vector<1x1x128x32xbf16> to vector<128x32xbf16>
    %cst_229 = arith.constant dense<0.000000e+00> : vector<8x32xf32>
    %325 = tpu.matmul %307, %324, %cst_229 {dimension_numbers = #tpu.dot_dimension_numbers<[1], [0], [0], [1], [0, 0, 1, 1], [], []>} : vector<8x128xbf16>, vector<128x32xbf16>, vector<8x32xf32> -> vector<8x32xf32>
    %c1_230 = arith.constant 1 : index
    %c0_231 = arith.constant 0 : index
    %c0_232 = arith.constant 0 : index
    %c0_233 = arith.constant 0 : index
    %326 = vector.load %arg10[%c1_230, %c0_231, %c0_232, %c0_233] : memref<2x4x1x32xf32, #tpu.memory_space<vmem>>, vector<1x1x1x32xf32>
    %327 = vector.shape_cast %326 : vector<1x1x1x32xf32> to vector<1x32xf32>
    %328 = vector.broadcast %327 : vector<1x32xf32> to vector<8x32xf32>
    %329 = arith.addf %325, %328 : vector<8x32xf32>
    %cst_234 = arith.constant 0.176776692 : f32
    %330 = vector.broadcast %cst_234 : f32 to vector<8x32xf32>
    %331 = arith.mulf %315, %330 : vector<8x32xf32>
    %332 = arith.truncf %331 : vector<8x32xf32> to vector<8x32xbf16>
    %333 = arith.truncf %322 : vector<8x32xf32> to vector<8x32xbf16>
    "tpu.trace_start"() <{level = 10 : i32, message = "qd,kd->qk"}> : () -> ()
    %cst_235 = arith.constant dense<0.000000e+00> : vector<8x8xf32>
    %334 = tpu.matmul %332, %333, %cst_235 {dimension_numbers = #tpu.dot_dimension_numbers<[1], [1], [0], [0], [0, 0, 1, 0], [], []>} : vector<8x32xbf16>, vector<8x32xbf16>, vector<8x8xf32> -> vector<8x8xf32>
    "tpu.trace_stop"() : () -> ()
    %335 = arith.addf %334, %11 : vector<8x8xf32>
    %cst_236 = arith.constant dense<0xFF800000> : vector<8xf32>
    %336 = vector.multi_reduction <maximumf>, %335, %cst_236 [1] : vector<8x8xf32> to vector<8xf32>
    %337 = vector.shape_cast %336 : vector<8xf32> to vector<8x1xf32>
    %338 = vector.broadcast %337 : vector<8x1xf32> to vector<8x8xf32>
    %339 = arith.subf %335, %338 : vector<8x8xf32>
    %340 = math.exp %339 : vector<8x8xf32>
    %cst_237 = arith.constant dense<0.000000e+00> : vector<8xf32>
    %341 = vector.multi_reduction <add>, %340, %cst_237 [1] : vector<8x8xf32> to vector<8xf32>
    %342 = vector.shape_cast %341 : vector<8xf32> to vector<8x1xf32>
    %343 = tpu.reciprocal %342 {approx = true} : vector<8x1xf32> -> vector<8x1xf32>
    %344 = vector.broadcast %343 : vector<8x1xf32> to vector<8x8xf32>
    %345 = arith.mulf %340, %344 : vector<8x8xf32>
    %346 = arith.truncf %345 : vector<8x8xf32> to vector<8x8xbf16>
    %347 = arith.truncf %329 : vector<8x32xf32> to vector<8x32xbf16>
    %cst_238 = arith.constant dense<0.000000e+00> : vector<8x32xf32>
    %348 = tpu.matmul %346, %347, %cst_238 {dimension_numbers = #tpu.dot_dimension_numbers<[1], [0], [0], [1], [0, 0, 1, 1], [], []>} : vector<8x8xbf16>, vector<8x32xbf16>, vector<8x32xf32> -> vector<8x32xf32>
    %349 = arith.truncf %348 : vector<8x32xf32> to vector<8x32xbf16>
    %c1_239 = arith.constant 1 : index
    %c0_240 = arith.constant 0 : index
    %c0_241 = arith.constant 0 : index
    %c0_242 = arith.constant 0 : index
    %350 = vector.load %arg11[%c1_239, %c0_240, %c0_241, %c0_242] : memref<2x4x32x128xbf16, #tpu.memory_space<vmem>>, vector<1x1x32x128xbf16>
    %351 = vector.shape_cast %350 : vector<1x1x32x128xbf16> to vector<32x128xbf16>
    %cst_243 = arith.constant dense<0.000000e+00> : vector<8x128xf32>
    %352 = tpu.matmul %349, %351, %cst_243 {dimension_numbers = #tpu.dot_dimension_numbers<[1], [0], [0], [1], [0, 0, 1, 1], [], []>} : vector<8x32xbf16>, vector<32x128xbf16>, vector<8x128xf32> -> vector<8x128xf32>
    %353 = arith.addf %308, %352 : vector<8x128xf32>
    %c1_244 = arith.constant 1 : index
    %c1_245 = arith.constant 1 : index
    %c0_246 = arith.constant 0 : index
    %c0_247 = arith.constant 0 : index
    %354 = vector.load %arg5[%c1_244, %c1_245, %c0_246, %c0_247] : memref<2x4x128x32xbf16, #tpu.memory_space<vmem>>, vector<1x1x128x32xbf16>
    %355 = vector.shape_cast %354 : vector<1x1x128x32xbf16> to vector<128x32xbf16>
    %cst_248 = arith.constant dense<0.000000e+00> : vector<8x32xf32>
    %356 = tpu.matmul %307, %355, %cst_248 {dimension_numbers = #tpu.dot_dimension_numbers<[1], [0], [0], [1], [0, 0, 1, 1], [], []>} : vector<8x128xbf16>, vector<128x32xbf16>, vector<8x32xf32> -> vector<8x32xf32>
    %c1_249 = arith.constant 1 : index
    %c1_250 = arith.constant 1 : index
    %c0_251 = arith.constant 0 : index
    %c0_252 = arith.constant 0 : index
    %357 = vector.load %arg6[%c1_249, %c1_250, %c0_251, %c0_252] : memref<2x4x1x32xf32, #tpu.memory_space<vmem>>, vector<1x1x1x32xf32>
    %358 = vector.shape_cast %357 : vector<1x1x1x32xf32> to vector<1x32xf32>
    %359 = vector.broadcast %358 : vector<1x32xf32> to vector<8x32xf32>
    %360 = arith.addf %356, %359 : vector<8x32xf32>
    %c1_253 = arith.constant 1 : index
    %c1_254 = arith.constant 1 : index
    %c0_255 = arith.constant 0 : index
    %c0_256 = arith.constant 0 : index
    %361 = vector.load %arg7[%c1_253, %c1_254, %c0_255, %c0_256] : memref<2x4x128x32xbf16, #tpu.memory_space<vmem>>, vector<1x1x128x32xbf16>
    %362 = vector.shape_cast %361 : vector<1x1x128x32xbf16> to vector<128x32xbf16>
    %cst_257 = arith.constant dense<0.000000e+00> : vector<8x32xf32>
    %363 = tpu.matmul %307, %362, %cst_257 {dimension_numbers = #tpu.dot_dimension_numbers<[1], [0], [0], [1], [0, 0, 1, 1], [], []>} : vector<8x128xbf16>, vector<128x32xbf16>, vector<8x32xf32> -> vector<8x32xf32>
    %c1_258 = arith.constant 1 : index
    %c1_259 = arith.constant 1 : index
    %c0_260 = arith.constant 0 : index
    %c0_261 = arith.constant 0 : index
    %364 = vector.load %arg8[%c1_258, %c1_259, %c0_260, %c0_261] : memref<2x4x1x32xf32, #tpu.memory_space<vmem>>, vector<1x1x1x32xf32>
    %365 = vector.shape_cast %364 : vector<1x1x1x32xf32> to vector<1x32xf32>
    %366 = vector.broadcast %365 : vector<1x32xf32> to vector<8x32xf32>
    %367 = arith.addf %363, %366 : vector<8x32xf32>
    %c1_262 = arith.constant 1 : index
    %c1_263 = arith.constant 1 : index
    %c0_264 = arith.constant 0 : index
    %c0_265 = arith.constant 0 : index
    %368 = vector.load %arg9[%c1_262, %c1_263, %c0_264, %c0_265] : memref<2x4x128x32xbf16, #tpu.memory_space<vmem>>, vector<1x1x128x32xbf16>
    %369 = vector.shape_cast %368 : vector<1x1x128x32xbf16> to vector<128x32xbf16>
    %cst_266 = arith.constant dense<0.000000e+00> : vector<8x32xf32>
    %370 = tpu.matmul %307, %369, %cst_266 {dimension_numbers = #tpu.dot_dimension_numbers<[1], [0], [0], [1], [0, 0, 1, 1], [], []>} : vector<8x128xbf16>, vector<128x32xbf16>, vector<8x32xf32> -> vector<8x32xf32>
    %c1_267 = arith.constant 1 : index
    %c1_268 = arith.constant 1 : index
    %c0_269 = arith.constant 0 : index
    %c0_270 = arith.constant 0 : index
    %371 = vector.load %arg10[%c1_267, %c1_268, %c0_269, %c0_270] : memref<2x4x1x32xf32, #tpu.memory_space<vmem>>, vector<1x1x1x32xf32>
    %372 = vector.shape_cast %371 : vector<1x1x1x32xf32> to vector<1x32xf32>
    %373 = vector.broadcast %372 : vector<1x32xf32> to vector<8x32xf32>
    %374 = arith.addf %370, %373 : vector<8x32xf32>
    %cst_271 = arith.constant 0.176776692 : f32
    %375 = vector.broadcast %cst_271 : f32 to vector<8x32xf32>
    %376 = arith.mulf %360, %375 : vector<8x32xf32>
    %377 = arith.truncf %376 : vector<8x32xf32> to vector<8x32xbf16>
    %378 = arith.truncf %367 : vector<8x32xf32> to vector<8x32xbf16>
    "tpu.trace_start"() <{level = 10 : i32, message = "qd,kd->qk"}> : () -> ()
    %cst_272 = arith.constant dense<0.000000e+00> : vector<8x8xf32>
    %379 = tpu.matmul %377, %378, %cst_272 {dimension_numbers = #tpu.dot_dimension_numbers<[1], [1], [0], [0], [0, 0, 1, 0], [], []>} : vector<8x32xbf16>, vector<8x32xbf16>, vector<8x8xf32> -> vector<8x8xf32>
    "tpu.trace_stop"() : () -> ()
    %380 = arith.addf %379, %11 : vector<8x8xf32>
    %cst_273 = arith.constant dense<0xFF800000> : vector<8xf32>
    %381 = vector.multi_reduction <maximumf>, %380, %cst_273 [1] : vector<8x8xf32> to vector<8xf32>
    %382 = vector.shape_cast %381 : vector<8xf32> to vector<8x1xf32>
    %383 = vector.broadcast %382 : vector<8x1xf32> to vector<8x8xf32>
    %384 = arith.subf %380, %383 : vector<8x8xf32>
    %385 = math.exp %384 : vector<8x8xf32>
    %cst_274 = arith.constant dense<0.000000e+00> : vector<8xf32>
    %386 = vector.multi_reduction <add>, %385, %cst_274 [1] : vector<8x8xf32> to vector<8xf32>
    %387 = vector.shape_cast %386 : vector<8xf32> to vector<8x1xf32>
    %388 = tpu.reciprocal %387 {approx = true} : vector<8x1xf32> -> vector<8x1xf32>
    %389 = vector.broadcast %388 : vector<8x1xf32> to vector<8x8xf32>
    %390 = arith.mulf %385, %389 : vector<8x8xf32>
    %391 = arith.truncf %390 : vector<8x8xf32> to vector<8x8xbf16>
    %392 = arith.truncf %374 : vector<8x32xf32> to vector<8x32xbf16>
    %cst_275 = arith.constant dense<0.000000e+00> : vector<8x32xf32>
    %393 = tpu.matmul %391, %392, %cst_275 {dimension_numbers = #tpu.dot_dimension_numbers<[1], [0], [0], [1], [0, 0, 1, 1], [], []>} : vector<8x8xbf16>, vector<8x32xbf16>, vector<8x32xf32> -> vector<8x32xf32>
    %394 = arith.truncf %393 : vector<8x32xf32> to vector<8x32xbf16>
    %c1_276 = arith.constant 1 : index
    %c1_277 = arith.constant 1 : index
    %c0_278 = arith.constant 0 : index
    %c0_279 = arith.constant 0 : index
    %395 = vector.load %arg11[%c1_276, %c1_277, %c0_278, %c0_279] : memref<2x4x32x128xbf16, #tpu.memory_space<vmem>>, vector<1x1x32x128xbf16>
    %396 = vector.shape_cast %395 : vector<1x1x32x128xbf16> to vector<32x128xbf16>
    %cst_280 = arith.constant dense<0.000000e+00> : vector<8x128xf32>
    %397 = tpu.matmul %394, %396, %cst_280 {dimension_numbers = #tpu.dot_dimension_numbers<[1], [0], [0], [1], [0, 0, 1, 1], [], []>} : vector<8x32xbf16>, vector<32x128xbf16>, vector<8x128xf32> -> vector<8x128xf32>
    %398 = arith.addf %353, %397 : vector<8x128xf32>
    %c1_281 = arith.constant 1 : index
    %c2_282 = arith.constant 2 : index
    %c0_283 = arith.constant 0 : index
    %c0_284 = arith.constant 0 : index
    %399 = vector.load %arg5[%c1_281, %c2_282, %c0_283, %c0_284] : memref<2x4x128x32xbf16, #tpu.memory_space<vmem>>, vector<1x1x128x32xbf16>
    %400 = vector.shape_cast %399 : vector<1x1x128x32xbf16> to vector<128x32xbf16>
    %cst_285 = arith.constant dense<0.000000e+00> : vector<8x32xf32>
    %401 = tpu.matmul %307, %400, %cst_285 {dimension_numbers = #tpu.dot_dimension_numbers<[1], [0], [0], [1], [0, 0, 1, 1], [], []>} : vector<8x128xbf16>, vector<128x32xbf16>, vector<8x32xf32> -> vector<8x32xf32>
    %c1_286 = arith.constant 1 : index
    %c2_287 = arith.constant 2 : index
    %c0_288 = arith.constant 0 : index
    %c0_289 = arith.constant 0 : index
    %402 = vector.load %arg6[%c1_286, %c2_287, %c0_288, %c0_289] : memref<2x4x1x32xf32, #tpu.memory_space<vmem>>, vector<1x1x1x32xf32>
    %403 = vector.shape_cast %402 : vector<1x1x1x32xf32> to vector<1x32xf32>
    %404 = vector.broadcast %403 : vector<1x32xf32> to vector<8x32xf32>
    %405 = arith.addf %401, %404 : vector<8x32xf32>
    %c1_290 = arith.constant 1 : index
    %c2_291 = arith.constant 2 : index
    %c0_292 = arith.constant 0 : index
    %c0_293 = arith.constant 0 : index
    %406 = vector.load %arg7[%c1_290, %c2_291, %c0_292, %c0_293] : memref<2x4x128x32xbf16, #tpu.memory_space<vmem>>, vector<1x1x128x32xbf16>
    %407 = vector.shape_cast %406 : vector<1x1x128x32xbf16> to vector<128x32xbf16>
    %cst_294 = arith.constant dense<0.000000e+00> : vector<8x32xf32>
    %408 = tpu.matmul %307, %407, %cst_294 {dimension_numbers = #tpu.dot_dimension_numbers<[1], [0], [0], [1], [0, 0, 1, 1], [], []>} : vector<8x128xbf16>, vector<128x32xbf16>, vector<8x32xf32> -> vector<8x32xf32>
    %c1_295 = arith.constant 1 : index
    %c2_296 = arith.constant 2 : index
    %c0_297 = arith.constant 0 : index
    %c0_298 = arith.constant 0 : index
    %409 = vector.load %arg8[%c1_295, %c2_296, %c0_297, %c0_298] : memref<2x4x1x32xf32, #tpu.memory_space<vmem>>, vector<1x1x1x32xf32>
    %410 = vector.shape_cast %409 : vector<1x1x1x32xf32> to vector<1x32xf32>
    %411 = vector.broadcast %410 : vector<1x32xf32> to vector<8x32xf32>
    %412 = arith.addf %408, %411 : vector<8x32xf32>
    %c1_299 = arith.constant 1 : index
    %c2_300 = arith.constant 2 : index
    %c0_301 = arith.constant 0 : index
    %c0_302 = arith.constant 0 : index
    %413 = vector.load %arg9[%c1_299, %c2_300, %c0_301, %c0_302] : memref<2x4x128x32xbf16, #tpu.memory_space<vmem>>, vector<1x1x128x32xbf16>
    %414 = vector.shape_cast %413 : vector<1x1x128x32xbf16> to vector<128x32xbf16>
    %cst_303 = arith.constant dense<0.000000e+00> : vector<8x32xf32>
    %415 = tpu.matmul %307, %414, %cst_303 {dimension_numbers = #tpu.dot_dimension_numbers<[1], [0], [0], [1], [0, 0, 1, 1], [], []>} : vector<8x128xbf16>, vector<128x32xbf16>, vector<8x32xf32> -> vector<8x32xf32>
    %c1_304 = arith.constant 1 : index
    %c2_305 = arith.constant 2 : index
    %c0_306 = arith.constant 0 : index
    %c0_307 = arith.constant 0 : index
    %416 = vector.load %arg10[%c1_304, %c2_305, %c0_306, %c0_307] : memref<2x4x1x32xf32, #tpu.memory_space<vmem>>, vector<1x1x1x32xf32>
    %417 = vector.shape_cast %416 : vector<1x1x1x32xf32> to vector<1x32xf32>
    %418 = vector.broadcast %417 : vector<1x32xf32> to vector<8x32xf32>
    %419 = arith.addf %415, %418 : vector<8x32xf32>
    %cst_308 = arith.constant 0.176776692 : f32
    %420 = vector.broadcast %cst_308 : f32 to vector<8x32xf32>
    %421 = arith.mulf %405, %420 : vector<8x32xf32>
    %422 = arith.truncf %421 : vector<8x32xf32> to vector<8x32xbf16>
    %423 = arith.truncf %412 : vector<8x32xf32> to vector<8x32xbf16>
    "tpu.trace_start"() <{level = 10 : i32, message = "qd,kd->qk"}> : () -> ()
    %cst_309 = arith.constant dense<0.000000e+00> : vector<8x8xf32>
    %424 = tpu.matmul %422, %423, %cst_309 {dimension_numbers = #tpu.dot_dimension_numbers<[1], [1], [0], [0], [0, 0, 1, 0], [], []>} : vector<8x32xbf16>, vector<8x32xbf16>, vector<8x8xf32> -> vector<8x8xf32>
    "tpu.trace_stop"() : () -> ()
    %425 = arith.addf %424, %11 : vector<8x8xf32>
    %cst_310 = arith.constant dense<0xFF800000> : vector<8xf32>
    %426 = vector.multi_reduction <maximumf>, %425, %cst_310 [1] : vector<8x8xf32> to vector<8xf32>
    %427 = vector.shape_cast %426 : vector<8xf32> to vector<8x1xf32>
    %428 = vector.broadcast %427 : vector<8x1xf32> to vector<8x8xf32>
    %429 = arith.subf %425, %428 : vector<8x8xf32>
    %430 = math.exp %429 : vector<8x8xf32>
    %cst_311 = arith.constant dense<0.000000e+00> : vector<8xf32>
    %431 = vector.multi_reduction <add>, %430, %cst_311 [1] : vector<8x8xf32> to vector<8xf32>
    %432 = vector.shape_cast %431 : vector<8xf32> to vector<8x1xf32>
    %433 = tpu.reciprocal %432 {approx = true} : vector<8x1xf32> -> vector<8x1xf32>
    %434 = vector.broadcast %433 : vector<8x1xf32> to vector<8x8xf32>
    %435 = arith.mulf %430, %434 : vector<8x8xf32>
    %436 = arith.truncf %435 : vector<8x8xf32> to vector<8x8xbf16>
    %437 = arith.truncf %419 : vector<8x32xf32> to vector<8x32xbf16>
    %cst_312 = arith.constant dense<0.000000e+00> : vector<8x32xf32>
    %438 = tpu.matmul %436, %437, %cst_312 {dimension_numbers = #tpu.dot_dimension_numbers<[1], [0], [0], [1], [0, 0, 1, 1], [], []>} : vector<8x8xbf16>, vector<8x32xbf16>, vector<8x32xf32> -> vector<8x32xf32>
    %439 = arith.truncf %438 : vector<8x32xf32> to vector<8x32xbf16>
    %c1_313 = arith.constant 1 : index
    %c2_314 = arith.constant 2 : index
    %c0_315 = arith.constant 0 : index
    %c0_316 = arith.constant 0 : index
    %440 = vector.load %arg11[%c1_313, %c2_314, %c0_315, %c0_316] : memref<2x4x32x128xbf16, #tpu.memory_space<vmem>>, vector<1x1x32x128xbf16>
    %441 = vector.shape_cast %440 : vector<1x1x32x128xbf16> to vector<32x128xbf16>
    %cst_317 = arith.constant dense<0.000000e+00> : vector<8x128xf32>
    %442 = tpu.matmul %439, %441, %cst_317 {dimension_numbers = #tpu.dot_dimension_numbers<[1], [0], [0], [1], [0, 0, 1, 1], [], []>} : vector<8x32xbf16>, vector<32x128xbf16>, vector<8x128xf32> -> vector<8x128xf32>
    %443 = arith.addf %398, %442 : vector<8x128xf32>
    %c1_318 = arith.constant 1 : index
    %c3_319 = arith.constant 3 : index
    %c0_320 = arith.constant 0 : index
    %c0_321 = arith.constant 0 : index
    %444 = vector.load %arg5[%c1_318, %c3_319, %c0_320, %c0_321] : memref<2x4x128x32xbf16, #tpu.memory_space<vmem>>, vector<1x1x128x32xbf16>
    %445 = vector.shape_cast %444 : vector<1x1x128x32xbf16> to vector<128x32xbf16>
    %cst_322 = arith.constant dense<0.000000e+00> : vector<8x32xf32>
    %446 = tpu.matmul %307, %445, %cst_322 {dimension_numbers = #tpu.dot_dimension_numbers<[1], [0], [0], [1], [0, 0, 1, 1], [], []>} : vector<8x128xbf16>, vector<128x32xbf16>, vector<8x32xf32> -> vector<8x32xf32>
    %c1_323 = arith.constant 1 : index
    %c3_324 = arith.constant 3 : index
    %c0_325 = arith.constant 0 : index
    %c0_326 = arith.constant 0 : index
    %447 = vector.load %arg6[%c1_323, %c3_324, %c0_325, %c0_326] : memref<2x4x1x32xf32, #tpu.memory_space<vmem>>, vector<1x1x1x32xf32>
    %448 = vector.shape_cast %447 : vector<1x1x1x32xf32> to vector<1x32xf32>
    %449 = vector.broadcast %448 : vector<1x32xf32> to vector<8x32xf32>
    %450 = arith.addf %446, %449 : vector<8x32xf32>
    %c1_327 = arith.constant 1 : index
    %c3_328 = arith.constant 3 : index
    %c0_329 = arith.constant 0 : index
    %c0_330 = arith.constant 0 : index
    %451 = vector.load %arg7[%c1_327, %c3_328, %c0_329, %c0_330] : memref<2x4x128x32xbf16, #tpu.memory_space<vmem>>, vector<1x1x128x32xbf16>
    %452 = vector.shape_cast %451 : vector<1x1x128x32xbf16> to vector<128x32xbf16>
    %cst_331 = arith.constant dense<0.000000e+00> : vector<8x32xf32>
    %453 = tpu.matmul %307, %452, %cst_331 {dimension_numbers = #tpu.dot_dimension_numbers<[1], [0], [0], [1], [0, 0, 1, 1], [], []>} : vector<8x128xbf16>, vector<128x32xbf16>, vector<8x32xf32> -> vector<8x32xf32>
    %c1_332 = arith.constant 1 : index
    %c3_333 = arith.constant 3 : index
    %c0_334 = arith.constant 0 : index
    %c0_335 = arith.constant 0 : index
    %454 = vector.load %arg8[%c1_332, %c3_333, %c0_334, %c0_335] : memref<2x4x1x32xf32, #tpu.memory_space<vmem>>, vector<1x1x1x32xf32>
    %455 = vector.shape_cast %454 : vector<1x1x1x32xf32> to vector<1x32xf32>
    %456 = vector.broadcast %455 : vector<1x32xf32> to vector<8x32xf32>
    %457 = arith.addf %453, %456 : vector<8x32xf32>
    %c1_336 = arith.constant 1 : index
    %c3_337 = arith.constant 3 : index
    %c0_338 = arith.constant 0 : index
    %c0_339 = arith.constant 0 : index
    %458 = vector.load %arg9[%c1_336, %c3_337, %c0_338, %c0_339] : memref<2x4x128x32xbf16, #tpu.memory_space<vmem>>, vector<1x1x128x32xbf16>
    %459 = vector.shape_cast %458 : vector<1x1x128x32xbf16> to vector<128x32xbf16>
    %cst_340 = arith.constant dense<0.000000e+00> : vector<8x32xf32>
    %460 = tpu.matmul %307, %459, %cst_340 {dimension_numbers = #tpu.dot_dimension_numbers<[1], [0], [0], [1], [0, 0, 1, 1], [], []>} : vector<8x128xbf16>, vector<128x32xbf16>, vector<8x32xf32> -> vector<8x32xf32>
    %c1_341 = arith.constant 1 : index
    %c3_342 = arith.constant 3 : index
    %c0_343 = arith.constant 0 : index
    %c0_344 = arith.constant 0 : index
    %461 = vector.load %arg10[%c1_341, %c3_342, %c0_343, %c0_344] : memref<2x4x1x32xf32, #tpu.memory_space<vmem>>, vector<1x1x1x32xf32>
    %462 = vector.shape_cast %461 : vector<1x1x1x32xf32> to vector<1x32xf32>
    %463 = vector.broadcast %462 : vector<1x32xf32> to vector<8x32xf32>
    %464 = arith.addf %460, %463 : vector<8x32xf32>
    %cst_345 = arith.constant 0.176776692 : f32
    %465 = vector.broadcast %cst_345 : f32 to vector<8x32xf32>
    %466 = arith.mulf %450, %465 : vector<8x32xf32>
    %467 = arith.truncf %466 : vector<8x32xf32> to vector<8x32xbf16>
    %468 = arith.truncf %457 : vector<8x32xf32> to vector<8x32xbf16>
    "tpu.trace_start"() <{level = 10 : i32, message = "qd,kd->qk"}> : () -> ()
    %cst_346 = arith.constant dense<0.000000e+00> : vector<8x8xf32>
    %469 = tpu.matmul %467, %468, %cst_346 {dimension_numbers = #tpu.dot_dimension_numbers<[1], [1], [0], [0], [0, 0, 1, 0], [], []>} : vector<8x32xbf16>, vector<8x32xbf16>, vector<8x8xf32> -> vector<8x8xf32>
    "tpu.trace_stop"() : () -> ()
    %470 = arith.addf %469, %11 : vector<8x8xf32>
    %cst_347 = arith.constant dense<0xFF800000> : vector<8xf32>
    %471 = vector.multi_reduction <maximumf>, %470, %cst_347 [1] : vector<8x8xf32> to vector<8xf32>
    %472 = vector.shape_cast %471 : vector<8xf32> to vector<8x1xf32>
    %473 = vector.broadcast %472 : vector<8x1xf32> to vector<8x8xf32>
    %474 = arith.subf %470, %473 : vector<8x8xf32>
    %475 = math.exp %474 : vector<8x8xf32>
    %cst_348 = arith.constant dense<0.000000e+00> : vector<8xf32>
    %476 = vector.multi_reduction <add>, %475, %cst_348 [1] : vector<8x8xf32> to vector<8xf32>
    %477 = vector.shape_cast %476 : vector<8xf32> to vector<8x1xf32>
    %478 = tpu.reciprocal %477 {approx = true} : vector<8x1xf32> -> vector<8x1xf32>
    %479 = vector.broadcast %478 : vector<8x1xf32> to vector<8x8xf32>
    %480 = arith.mulf %475, %479 : vector<8x8xf32>
    %481 = arith.truncf %480 : vector<8x8xf32> to vector<8x8xbf16>
    %482 = arith.truncf %464 : vector<8x32xf32> to vector<8x32xbf16>
    %cst_349 = arith.constant dense<0.000000e+00> : vector<8x32xf32>
    %483 = tpu.matmul %481, %482, %cst_349 {dimension_numbers = #tpu.dot_dimension_numbers<[1], [0], [0], [1], [0, 0, 1, 1], [], []>} : vector<8x8xbf16>, vector<8x32xbf16>, vector<8x32xf32> -> vector<8x32xf32>
    %484 = arith.truncf %483 : vector<8x32xf32> to vector<8x32xbf16>
    %c1_350 = arith.constant 1 : index
    %c3_351 = arith.constant 3 : index
    %c0_352 = arith.constant 0 : index
    %c0_353 = arith.constant 0 : index
    %485 = vector.load %arg11[%c1_350, %c3_351, %c0_352, %c0_353] : memref<2x4x32x128xbf16, #tpu.memory_space<vmem>>, vector<1x1x32x128xbf16>
    %486 = vector.shape_cast %485 : vector<1x1x32x128xbf16> to vector<32x128xbf16>
    %cst_354 = arith.constant dense<0.000000e+00> : vector<8x128xf32>
    %487 = tpu.matmul %484, %486, %cst_354 {dimension_numbers = #tpu.dot_dimension_numbers<[1], [0], [0], [1], [0, 0, 1, 1], [], []>} : vector<8x32xbf16>, vector<32x128xbf16>, vector<8x128xf32> -> vector<8x128xf32>
    %488 = arith.addf %443, %487 : vector<8x128xf32>
    %489 = arith.addf %280, %488 : vector<8x128xf32>
    %c1_355 = arith.constant 1 : index
    %c0_356 = arith.constant 0 : index
    %c0_357 = arith.constant 0 : index
    %490 = vector.load %arg12[%c1_355, %c0_356, %c0_357] : memref<2x1x128xf32, #tpu.memory_space<vmem>>, vector<1x1x128xf32>
    %491 = vector.shape_cast %490 : vector<1x1x128xf32> to vector<1x128xf32>
    %492 = vector.broadcast %491 : vector<1x128xf32> to vector<8x128xf32>
    %493 = arith.addf %489, %492 : vector<8x128xf32>
    %c1_358 = arith.constant 1 : index
    %c0_359 = arith.constant 0 : index
    %c0_360 = arith.constant 0 : index
    %494 = vector.load %arg13[%c1_358, %c0_359, %c0_360] : memref<2x1x128xf32, #tpu.memory_space<vmem>>, vector<1x1x128xf32>
    %495 = vector.shape_cast %494 : vector<1x1x128xf32> to vector<1x128xf32>
    %c1_361 = arith.constant 1 : index
    %c0_362 = arith.constant 0 : index
    %c0_363 = arith.constant 0 : index
    %496 = vector.load %arg14[%c1_361, %c0_362, %c0_363] : memref<2x1x128xf32, #tpu.memory_space<vmem>>, vector<1x1x128xf32>
    %497 = vector.shape_cast %496 : vector<1x1x128xf32> to vector<1x128xf32>
    %cst_364 = arith.constant dense<0.000000e+00> : vector<8xf32>
    %498 = vector.multi_reduction <add>, %493, %cst_364 [1] : vector<8x128xf32> to vector<8xf32>
    %499 = vector.shape_cast %498 : vector<8xf32> to vector<8x1xf32>
    %cst_365 = arith.constant 1.280000e+02 : f32
    %500 = vector.broadcast %cst_365 : f32 to vector<8x1xf32>
    %501 = arith.divf %499, %500 : vector<8x1xf32>
    %502 = vector.broadcast %501 : vector<8x1xf32> to vector<8x128xf32>
    %503 = arith.subf %493, %502 : vector<8x128xf32>
    %504 = arith.mulf %503, %503 : vector<8x128xf32>
    %cst_366 = arith.constant dense<0.000000e+00> : vector<8xf32>
    %505 = vector.multi_reduction <add>, %504, %cst_366 [1] : vector<8x128xf32> to vector<8xf32>
    %506 = vector.shape_cast %505 : vector<8xf32> to vector<8x1xf32>
    %cst_367 = arith.constant 1.280000e+02 : f32
    %507 = vector.broadcast %cst_367 : f32 to vector<8x1xf32>
    %508 = arith.divf %506, %507 : vector<8x1xf32>
    %509 = vector.broadcast %501 : vector<8x1xf32> to vector<8x128xf32>
    %510 = arith.subf %493, %509 : vector<8x128xf32>
    %cst_368 = arith.constant 9.99999974E-6 : f32
    %511 = vector.broadcast %cst_368 : f32 to vector<8x1xf32>
    %512 = arith.addf %508, %511 : vector<8x1xf32>
    %513 = math.rsqrt %512 : vector<8x1xf32>
    %514 = vector.broadcast %513 : vector<8x1xf32> to vector<8x128xf32>
    %515 = arith.mulf %510, %514 : vector<8x128xf32>
    %516 = vector.broadcast %495 : vector<1x128xf32> to vector<8x128xf32>
    %517 = arith.mulf %515, %516 : vector<8x128xf32>
    %518 = vector.broadcast %497 : vector<1x128xf32> to vector<8x128xf32>
    %519 = arith.addf %517, %518 : vector<8x128xf32>
    %520 = arith.truncf %519 : vector<8x128xf32> to vector<8x128xbf16>
    %c1_369 = arith.constant 1 : index
    %c0_370 = arith.constant 0 : index
    %c0_371 = arith.constant 0 : index
    %521 = vector.load %arg15[%c1_369, %c0_370, %c0_371] : memref<2x128x256xbf16, #tpu.memory_space<vmem>>, vector<1x128x256xbf16>
    %522 = vector.shape_cast %521 : vector<1x128x256xbf16> to vector<128x256xbf16>
    %cst_372 = arith.constant dense<0.000000e+00> : vector<8x256xf32>
    %523 = tpu.matmul %520, %522, %cst_372 {dimension_numbers = #tpu.dot_dimension_numbers<[1], [0], [0], [1], [0, 0, 1, 1], [], []>} : vector<8x128xbf16>, vector<128x256xbf16>, vector<8x256xf32> -> vector<8x256xf32>
    %c1_373 = arith.constant 1 : index
    %c0_374 = arith.constant 0 : index
    %c0_375 = arith.constant 0 : index
    %524 = vector.load %arg16[%c1_373, %c0_374, %c0_375] : memref<2x1x256xf32, #tpu.memory_space<vmem>>, vector<1x1x256xf32>
    %525 = vector.shape_cast %524 : vector<1x1x256xf32> to vector<1x256xf32>
    %526 = vector.broadcast %525 : vector<1x256xf32> to vector<8x256xf32>
    %527 = arith.addf %523, %526 : vector<8x256xf32>
    %528 = arith.mulf %527, %527 : vector<8x256xf32>
    %529 = arith.mulf %527, %528 : vector<8x256xf32>
    %cst_376 = arith.constant 4.471500e-02 : f32
    %530 = vector.broadcast %cst_376 : f32 to vector<8x256xf32>
    %531 = arith.mulf %530, %529 : vector<8x256xf32>
    %532 = arith.addf %527, %531 : vector<8x256xf32>
    %cst_377 = arith.constant 0.797884583 : f32
    %533 = vector.broadcast %cst_377 : f32 to vector<8x256xf32>
    %534 = arith.mulf %533, %532 : vector<8x256xf32>
    %535 = math.tanh %534 : vector<8x256xf32>
    %cst_378 = arith.constant 1.000000e+00 : f32
    %536 = vector.broadcast %cst_378 : f32 to vector<8x256xf32>
    %537 = arith.addf %536, %535 : vector<8x256xf32>
    %cst_379 = arith.constant 5.000000e-01 : f32
    %538 = vector.broadcast %cst_379 : f32 to vector<8x256xf32>
    %539 = arith.mulf %538, %537 : vector<8x256xf32>
    %540 = arith.mulf %527, %539 : vector<8x256xf32>
    %541 = arith.truncf %540 : vector<8x256xf32> to vector<8x256xbf16>
    %c1_380 = arith.constant 1 : index
    %c0_381 = arith.constant 0 : index
    %c0_382 = arith.constant 0 : index
    %542 = vector.load %arg17[%c1_380, %c0_381, %c0_382] : memref<2x256x128xbf16, #tpu.memory_space<vmem>>, vector<1x256x128xbf16>
    %543 = vector.shape_cast %542 : vector<1x256x128xbf16> to vector<256x128xbf16>
    %cst_383 = arith.constant dense<0.000000e+00> : vector<8x128xf32>
    %544 = tpu.matmul %541, %543, %cst_383 {dimension_numbers = #tpu.dot_dimension_numbers<[1], [0], [0], [1], [0, 0, 1, 1], [], []>} : vector<8x256xbf16>, vector<256x128xbf16>, vector<8x128xf32> -> vector<8x128xf32>
    %545 = arith.addf %493, %544 : vector<8x128xf32>
    %c1_384 = arith.constant 1 : index
    %c0_385 = arith.constant 0 : index
    %c0_386 = arith.constant 0 : index
    %546 = vector.load %arg18[%c1_384, %c0_385, %c0_386] : memref<2x1x128xf32, #tpu.memory_space<vmem>>, vector<1x1x128xf32>
    %547 = vector.shape_cast %546 : vector<1x1x128xf32> to vector<1x128xf32>
    %548 = vector.broadcast %547 : vector<1x128xf32> to vector<8x128xf32>
    %549 = arith.addf %545, %548 : vector<8x128xf32>
    %c0_387 = arith.constant 0 : index
    %c0_388 = arith.constant 0 : index
    %550 = vector.load %arg19[%c0_387, %c0_388] : memref<1x128xf32, #tpu.memory_space<vmem>>, vector<1x128xf32>
    %c0_389 = arith.constant 0 : index
    %c0_390 = arith.constant 0 : index
    %551 = vector.load %arg20[%c0_389, %c0_390] : memref<1x128xf32, #tpu.memory_space<vmem>>, vector<1x128xf32>
    %cst_391 = arith.constant dense<0.000000e+00> : vector<8xf32>
    %552 = vector.multi_reduction <add>, %549, %cst_391 [1] : vector<8x128xf32> to vector<8xf32>
    %553 = vector.shape_cast %552 : vector<8xf32> to vector<8x1xf32>
    %cst_392 = arith.constant 1.280000e+02 : f32
    %554 = vector.broadcast %cst_392 : f32 to vector<8x1xf32>
    %555 = arith.divf %553, %554 : vector<8x1xf32>
    %556 = vector.broadcast %555 : vector<8x1xf32> to vector<8x128xf32>
    %557 = arith.subf %549, %556 : vector<8x128xf32>
    %558 = arith.mulf %557, %557 : vector<8x128xf32>
    %cst_393 = arith.constant dense<0.000000e+00> : vector<8xf32>
    %559 = vector.multi_reduction <add>, %558, %cst_393 [1] : vector<8x128xf32> to vector<8xf32>
    %560 = vector.shape_cast %559 : vector<8xf32> to vector<8x1xf32>
    %cst_394 = arith.constant 1.280000e+02 : f32
    %561 = vector.broadcast %cst_394 : f32 to vector<8x1xf32>
    %562 = arith.divf %560, %561 : vector<8x1xf32>
    %563 = vector.broadcast %555 : vector<8x1xf32> to vector<8x128xf32>
    %564 = arith.subf %549, %563 : vector<8x128xf32>
    %cst_395 = arith.constant 9.99999974E-6 : f32
    %565 = vector.broadcast %cst_395 : f32 to vector<8x1xf32>
    %566 = arith.addf %562, %565 : vector<8x1xf32>
    %567 = math.rsqrt %566 : vector<8x1xf32>
    %568 = vector.broadcast %567 : vector<8x1xf32> to vector<8x128xf32>
    %569 = arith.mulf %564, %568 : vector<8x128xf32>
    %570 = vector.broadcast %550 : vector<1x128xf32> to vector<8x128xf32>
    %571 = arith.mulf %569, %570 : vector<8x128xf32>
    %572 = vector.broadcast %551 : vector<1x128xf32> to vector<8x128xf32>
    %573 = arith.addf %571, %572 : vector<8x128xf32>
    %574 = arith.truncf %573 : vector<8x128xf32> to vector<8x128xbf16>
    %c0_396 = arith.constant 0 : index
    %c0_397 = arith.constant 0 : index
    %575 = vector.load %arg21[%c0_396, %c0_397] : memref<128x256xbf16, #tpu.memory_space<vmem>>, vector<128x256xbf16>
    %cst_398 = arith.constant dense<0.000000e+00> : vector<8x256xf32>
    %576 = tpu.matmul %574, %575, %cst_398 {dimension_numbers = #tpu.dot_dimension_numbers<[1], [0], [0], [1], [0, 0, 1, 1], [], []>} : vector<8x128xbf16>, vector<128x256xbf16>, vector<8x256xf32> -> vector<8x256xf32>
    %c0_399 = arith.constant 0 : index
    %c0_400 = arith.constant 0 : index
    %577 = vector.load %arg22[%c0_399, %c0_400] : memref<1x256xf32, #tpu.memory_space<vmem>>, vector<1x256xf32>
    %578 = vector.broadcast %577 : vector<1x256xf32> to vector<8x256xf32>
    %579 = arith.addf %576, %578 : vector<8x256xf32>
    %c0_401 = arith.constant 0 : index
    %c0_402 = arith.constant 0 : index
    %c0_403 = arith.constant 0 : index
    %580 = vector.load %arg23[%c0_401, %c0_402, %c0_403] : memref<1x8x256xf32, #tpu.memory_space<vmem>>, vector<1x8x256xf32>
    %581 = vector.shape_cast %580 : vector<1x8x256xf32> to vector<8x256xf32>
    %582 = vector.shape_cast %579 : vector<8x256xf32> to vector<1x8x256xf32>
    tpu.vector_store %arg23[%c0_401, %c0_402, %c0_403], %582 {strides = array<i32>} : memref<1x8x256xf32, #tpu.memory_space<vmem>>, vector<1x8x256xf32>,
    return
  }
  func.func @transform_0(%arg0: i32) -> (i32, i32, i32) {
    %c0_i32 = arith.constant 0 : i32
    %c0_i32_0 = arith.constant 0 : i32
    %c0_i32_1 = arith.constant 0 : i32
    return %arg0, %c0_i32, %c0_i32_0 : i32, i32, i32
  }
  func.func @transform_1(%arg0: i32) -> (i32, i32, i32) {
    %c0_i32 = arith.constant 0 : i32
    %c0_i32_0 = arith.constant 0 : i32
    %c0_i32_1 = arith.constant 0 : i32
    return %arg0, %c0_i32, %c0_i32_0 : i32, i32, i32
  }
  func.func @transform_2(%arg0: i32) -> (i32, i32, i32) {
    %c0_i32 = arith.constant 0 : i32
    %c0_i32_0 = arith.constant 0 : i32
    %c0_i32_1 = arith.constant 0 : i32
    %c0_i32_2 = arith.constant 0 : i32
    return %c0_i32, %c0_i32_0, %c0_i32_1 : i32, i32, i32
  }
  func.func @transform_3(%arg0: i32) -> (i32, i32, i32) {
    %c0_i32 = arith.constant 0 : i32
    %c0_i32_0 = arith.constant 0 : i32
    %c0_i32_1 = arith.constant 0 : i32
    %c0_i32_2 = arith.constant 0 : i32
    return %c0_i32, %c0_i32_0, %c0_i32_1 : i32, i32, i32
  }
  func.func @transform_4(%arg0: i32) -> (i32, i32, i32, i32) {
    %c0_i32 = arith.constant 0 : i32
    %c0_i32_0 = arith.constant 0 : i32
    %c0_i32_1 = arith.constant 0 : i32
    %c0_i32_2 = arith.constant 0 : i32
    %c0_i32_3 = arith.constant 0 : i32
    return %c0_i32, %c0_i32_0, %c0_i32_1, %c0_i32_2 : i32, i32, i32, i32
  }
  func.func @transform_5(%arg0: i32) -> (i32, i32, i32, i32) {
    %c0_i32 = arith.constant 0 : i32
    %c0_i32_0 = arith.constant 0 : i32
    %c0_i32_1 = arith.constant 0 : i32
    %c0_i32_2 = arith.constant 0 : i32
    %c0_i32_3 = arith.constant 0 : i32
    return %c0_i32, %c0_i32_0, %c0_i32_1, %c0_i32_2 : i32, i32, i32, i32
  }
  func.func @transform_6(%arg0: i32) -> (i32, i32, i32, i32) {
    %c0_i32 = arith.constant 0 : i32
    %c0_i32_0 = arith.constant 0 : i32
    %c0_i32_1 = arith.constant 0 : i32
    %c0_i32_2 = arith.constant 0 : i32
    %c0_i32_3 = arith.constant 0 : i32
    return %c0_i32, %c0_i32_0, %c0_i32_1, %c0_i32_2 : i32, i32, i32, i32
  }
  func.func @transform_7(%arg0: i32) -> (i32, i32, i32, i32) {
    %c0_i32 = arith.constant 0 : i32
    %c0_i32_0 = arith.constant 0 : i32
    %c0_i32_1 = arith.constant 0 : i32
    %c0_i32_2 = arith.constant 0 : i32
    %c0_i32_3 = arith.constant 0 : i32
    return %c0_i32, %c0_i32_0, %c0_i32_1, %c0_i32_2 : i32, i32, i32, i32
  }
  func.func @transform_8(%arg0: i32) -> (i32, i32, i32, i32) {
    %c0_i32 = arith.constant 0 : i32
    %c0_i32_0 = arith.constant 0 : i32
    %c0_i32_1 = arith.constant 0 : i32
    %c0_i32_2 = arith.constant 0 : i32
    %c0_i32_3 = arith.constant 0 : i32
    return %c0_i32, %c0_i32_0, %c0_i32_1, %c0_i32_2 : i32, i32, i32, i32
  }
  func.func @transform_9(%arg0: i32) -> (i32, i32, i32, i32) {
    %c0_i32 = arith.constant 0 : i32
    %c0_i32_0 = arith.constant 0 : i32
    %c0_i32_1 = arith.constant 0 : i32
    %c0_i32_2 = arith.constant 0 : i32
    %c0_i32_3 = arith.constant 0 : i32
    return %c0_i32, %c0_i32_0, %c0_i32_1, %c0_i32_2 : i32, i32, i32, i32
  }
  func.func @transform_10(%arg0: i32) -> (i32, i32, i32, i32) {
    %c0_i32 = arith.constant 0 : i32
    %c0_i32_0 = arith.constant 0 : i32
    %c0_i32_1 = arith.constant 0 : i32
    %c0_i32_2 = arith.constant 0 : i32
    %c0_i32_3 = arith.constant 0 : i32
    return %c0_i32, %c0_i32_0, %c0_i32_1, %c0_i32_2 : i32, i32, i32, i32
  }
  func.func @transform_11(%arg0: i32) -> (i32, i32, i32) {
    %c0_i32 = arith.constant 0 : i32
    %c0_i32_0 = arith.constant 0 : i32
    %c0_i32_1 = arith.constant 0 : i32
    %c0_i32_2 = arith.constant 0 : i32
    return %c0_i32, %c0_i32_0, %c0_i32_1 : i32, i32, i32
  }
  func.func @transform_12(%arg0: i32) -> (i32, i32, i32) {
    %c0_i32 = arith.constant 0 : i32
    %c0_i32_0 = arith.constant 0 : i32
    %c0_i32_1 = arith.constant 0 : i32
    %c0_i32_2 = arith.constant 0 : i32
    return %c0_i32, %c0_i32_0, %c0_i32_1 : i32, i32, i32
  }
  func.func @transform_13(%arg0: i32) -> (i32, i32, i32) {
    %c0_i32 = arith.constant 0 : i32
    %c0_i32_0 = arith.constant 0 : i32
    %c0_i32_1 = arith.constant 0 : i32
    %c0_i32_2 = arith.constant 0 : i32
    return %c0_i32, %c0_i32_0, %c0_i32_1 : i32, i32, i32
  }
  func.func @transform_14(%arg0: i32) -> (i32, i32, i32) {
    %c0_i32 = arith.constant 0 : i32
    %c0_i32_0 = arith.constant 0 : i32
    %c0_i32_1 = arith.constant 0 : i32
    %c0_i32_2 = arith.constant 0 : i32
    return %c0_i32, %c0_i32_0, %c0_i32_1 : i32, i32, i32
  }
  func.func @transform_15(%arg0: i32) -> (i32, i32, i32) {
    %c0_i32 = arith.constant 0 : i32
    %c0_i32_0 = arith.constant 0 : i32
    %c0_i32_1 = arith.constant 0 : i32
    %c0_i32_2 = arith.constant 0 : i32
    return %c0_i32, %c0_i32_0, %c0_i32_1 : i32, i32, i32
  }
  func.func @transform_16(%arg0: i32) -> (i32, i32, i32) {
    %c0_i32 = arith.constant 0 : i32
    %c0_i32_0 = arith.constant 0 : i32
    %c0_i32_1 = arith.constant 0 : i32
    %c0_i32_2 = arith.constant 0 : i32
    return %c0_i32, %c0_i32_0, %c0_i32_1 : i32, i32, i32
  }
  func.func @transform_17(%arg0: i32) -> (i32, i32, i32) {
    %c0_i32 = arith.constant 0 : i32
    %c0_i32_0 = arith.constant 0 : i32
    %c0_i32_1 = arith.constant 0 : i32
    %c0_i32_2 = arith.constant 0 : i32
    return %c0_i32, %c0_i32_0, %c0_i32_1 : i32, i32, i32
  }
  func.func @transform_18(%arg0: i32) -> (i32, i32) {
    %c0_i32 = arith.constant 0 : i32
    %c0_i32_0 = arith.constant 0 : i32
    %c0_i32_1 = arith.constant 0 : i32
    return %c0_i32, %c0_i32_0 : i32, i32
  }
  func.func @transform_19(%arg0: i32) -> (i32, i32) {
    %c0_i32 = arith.constant 0 : i32
    %c0_i32_0 = arith.constant 0 : i32
    %c0_i32_1 = arith.constant 0 : i32
    return %c0_i32, %c0_i32_0 : i32, i32
  }
  func.func @transform_20(%arg0: i32) -> (i32, i32) {
    %c0_i32 = arith.constant 0 : i32
    %c0_i32_0 = arith.constant 0 : i32
    %c0_i32_1 = arith.constant 0 : i32
    return %c0_i32, %c0_i32_0 : i32, i32
  }
  func.func @transform_21(%arg0: i32) -> (i32, i32) {
    %c0_i32 = arith.constant 0 : i32
    %c0_i32_0 = arith.constant 0 : i32
    %c0_i32_1 = arith.constant 0 : i32
    return %c0_i32, %c0_i32_0 : i32, i32
  }
  func.func @transform_22(%arg0: i32) -> (i32, i32, i32) {
    %c0_i32 = arith.constant 0 : i32
    %c0_i32_0 = arith.constant 0 : i32
    %c0_i32_1 = arith.constant 0 : i32
    return %arg0, %c0_i32, %c0_i32_0 : i32, i32, i32
  }
}

</mosaic_0001>

<llo_original>
// kernel: tpu_custom_call.1
$region0: #{tpu_custom_call.1}
  #allocation0 [shape = 'u32[]', space=smem, size = 0x4, offset = 0x4, fixed_abs, tag = 'smem constant byte address 0x4 - core index']
  #allocation1 [shape = 'u32[144,128]{1,0:T(1,128)}', space=vmem, size = 0x12000, scoped, tag = 'internal scratch']
  %s0 = inlined_call_operand.vmem [shape: f32[2,8,128], index: 0, kind: input, shape index: {}]
  %s1 = inlined_call_operand.vmem [shape: f32[2,1,8], index: 1, kind: input, shape index: {}]
  %s2 = inlined_call_operand.vmem [shape: f32[2,1,128], index: 2, kind: input, shape index: {}]
  %s3 = inlined_call_operand.vmem [shape: f32[2,1,128], index: 3, kind: input, shape index: {}]
  %s4 = inlined_call_operand.vmem [shape: bf16[2,4,128,32], index: 4, kind: input, shape index: {}]
  %s5 = inlined_call_operand.vmem [shape: f32[2,4,1,32], index: 5, kind: input, shape index: {}]
  %s6 = inlined_call_operand.vmem [shape: bf16[2,4,128,32], index: 6, kind: input, shape index: {}]
  %s7 = inlined_call_operand.vmem [shape: f32[2,4,1,32], index: 7, kind: input, shape index: {}]
  %s8 = inlined_call_operand.vmem [shape: bf16[2,4,128,32], index: 8, kind: input, shape index: {}]
  %s9 = inlined_call_operand.vmem [shape: f32[2,4,1,32], index: 9, kind: input, shape index: {}]
  %s10 = inlined_call_operand.vmem [shape: bf16[2,4,32,128], index: 10, kind: input, shape index: {}]
  %s11 = inlined_call_operand.vmem [shape: f32[2,1,128], index: 11, kind: input, shape index: {}]
  %s12 = inlined_call_operand.vmem [shape: f32[2,1,128], index: 12, kind: input, shape index: {}]
  %s13 = inlined_call_operand.vmem [shape: f32[2,1,128], index: 13, kind: input, shape index: {}]
  %s14 = inlined_call_operand.vmem [shape: bf16[2,128,256], index: 14, kind: input, shape index: {}]
  %s15 = inlined_call_operand.vmem [shape: f32[2,1,256], index: 15, kind: input, shape index: {}]
  %s16 = inlined_call_operand.vmem [shape: bf16[2,256,128], index: 16, kind: input, shape index: {}]
  %s17 = inlined_call_operand.vmem [shape: f32[2,1,128], index: 17, kind: input, shape index: {}]
  %s18 = inlined_call_operand.vmem [shape: f32[1,128], index: 18, kind: input, shape index: {}]
  %s19 = inlined_call_operand.vmem [shape: f32[1,128], index: 19, kind: input, shape index: {}]
  %s20 = inlined_call_operand.vmem [shape: bf16[128,256], index: 20, kind: input, shape index: {}]
  %s21 = inlined_call_operand.vmem [shape: f32[1,256], index: 21, kind: input, shape index: {}]
  %s22 = inlined_call_operand.hbm [shape: f32[2,8,256], index: 22, kind: output, shape index: {}]
  %s23 = sld [smem:[#allocation0]]
  $region121: #{tpu_custom_call.1} parent=0
    _
  %s25 = ssub.s32 1, %s23
  %s26 = scalar_select 0, %s25, %s23
  $region1: #{tpu_custom_call.1} parent=0
    #allocation2 [shape = 'u8[16384]{0}', space=vmem, size = 0x4000, scoped, tag = 'output window, operand 0']
    #allocation3 [shape = 's32[2]{0}', space=sflag, size = 0x8, scoped, tag = 'scoped memory for tpu_custom_call.1']
    %27 = vsyncpa [#allocation3], 0
    %s28 = scalar_lea.sflag [#allocation3], 1
    %29 = vsyncpa %s28, 0
    loop: start=0, step=1, limit=4
    $region2: #{tpu_custom_call.1} parent=1 // loop_pre_header
      _
    $region3: #{tpu_custom_call.1} parent=1 // loop_header
      %s31 = sphi 0, %s35
      %p32 = scmp.ge.s32.totalorder %s31, 4
      %s41 = sphi 0, %s43
      %s44 = sphi 0, %s41
      %s45 = sphi 0, %s44
      %s61 = sphi 0, %s45
      %s67 = sphi 0, %s69
      %s70 = sphi 0, %s67
      %s71 = sphi 0, %s70
      %s87 = sphi 0, %s71
      %s91 = sphi 0, %s91
      %s93 = sphi 0, %s91
      %s94 = sphi 0, %s93
      %s108 = sphi 0, %s94
      %s112 = sphi 0, %s112
      %s114 = sphi 0, %s112
      %s115 = sphi 0, %s114
      %s129 = sphi 0, %s115
      %s133 = sphi 0, %s133
      %s135 = sphi 0, %s133
      %s136 = sphi 0, %s135
      %s150 = sphi 0, %s136
      %s154 = sphi 0, %s154
      %s156 = sphi 0, %s154
      %s157 = sphi 0, %s156
      %s171 = sphi 0, %s157
      %s175 = sphi 0, %s175
      %s177 = sphi 0, %s175
      %s178 = sphi 0, %s177
      %s192 = sphi 0, %s178
      %s196 = sphi 0, %s196
      %s198 = sphi 0, %s196
      %s199 = sphi 0, %s198
      %s213 = sphi 0, %s199
      %s217 = sphi 0, %s217
      %s219 = sphi 0, %s217
      %s220 = sphi 0, %s219
      %s234 = sphi 0, %s220
      %s238 = sphi 0, %s238
      %s240 = sphi 0, %s238
      %s241 = sphi 0, %s240
      %s255 = sphi 0, %s241
      %s259 = sphi 0, %s259
      %s261 = sphi 0, %s259
      %s262 = sphi 0, %s261
      %s276 = sphi 0, %s262
      %s280 = sphi 0, %s280
      %s282 = sphi 0, %s280
      %s283 = sphi 0, %s282
      %s297 = sphi 0, %s283
      %s301 = sphi 0, %s301
      %s303 = sphi 0, %s301
      %s304 = sphi 0, %s303
      %s318 = sphi 0, %s304
      %s322 = sphi 0, %s322
      %s324 = sphi 0, %s322
      %s325 = sphi 0, %s324
      %s339 = sphi 0, %s325
      %s343 = sphi 0, %s343
      %s345 = sphi 0, %s343
      %s346 = sphi 0, %s345
      %s360 = sphi 0, %s346
      %s364 = sphi 0, %s364
      %s366 = sphi 0, %s364
      %s367 = sphi 0, %s366
      %s381 = sphi 0, %s367
      %s385 = sphi 0, %s385
      %s387 = sphi 0, %s385
      %s388 = sphi 0, %s387
      %s402 = sphi 0, %s388
      %s406 = sphi 0, %s406
      %s408 = sphi 0, %s406
      %s409 = sphi 0, %s408
      %s423 = sphi 0, %s409
      %s427 = sphi 0, %s427
      %s429 = sphi 0, %s427
      %s430 = sphi 0, %s429
      %s444 = sphi 0, %s430
      %s448 = sphi 0, %s448
      %s450 = sphi 0, %s448
      %s451 = sphi 0, %s450
      %s465 = sphi 0, %s451
      %s469 = sphi 0, %s469
      %s471 = sphi 0, %s469
      %s472 = sphi 0, %s471
      %s486 = sphi 0, %s472
      %s490 = sphi 0, %s490
      %s492 = sphi 0, %s490
      %s493 = sphi 0, %s492
      %s507 = sphi 0, %s493
      %s513 = sphi 0, %s515
      %s516 = sphi 0, %s513
      %s517 = sphi 0, %s516
      %s533 = sphi 0, %s517
    $region4: #{tpu_custom_call.1} parent=1 // loop_header_branch
      %34 = sbr.rel (%p32) target = $region8
    $region5: #{tpu_custom_call.1} parent=1 // loop_body
      %s36 = ssub.s32 %s31, 1
      %s37 = ssub.s32 %s31, 2
      %s38 = sadd.s32 %s31, 1
      %s39 = ssub.s32 %s31, %s38
      %p40 = scmp.eq.s32.totalorder %s39, 0
      %s42 = sadd.s32 %s41, 1
      %s43 = scalar_select %p40, %s41, %s42
      %p46 = pneg %p40
      %p47 = scmp.eq.s32.totalorder %s31, 1
      %p48 = por %p46, %p47
      %p49 = scmp.ne.s32.totalorder %s41, %s44
      %p50 = scmp.eq.s32.totalorder %s31, 0
      %p51 = por %p49, %p50
      %p52 = scmp.ne.s32.totalorder %s41, %s44
      %p53 = scmp.eq.s32.totalorder %s36, 1
      %p54 = por %p52, %p53
      %p55 = scmp.ne.s32.totalorder %s44, %s45
      %p56 = scmp.eq.s32.totalorder %s36, 0
      %p57 = por %p55, %p56
      %p58 = scmp.ne.s32.totalorder %s44, %s45
      %p59 = scmp.eq.s32.totalorder %s37, 1
      %p60 = por %p58, %p59
      %p62 = scmp.ne.s32.totalorder %s45, %s61
      %p63 = scmp.eq.s32.totalorder %s37, 0
      %p64 = por %p62, %p63
      %s65 = ssub.s32 %s31, %s38
      %p66 = scmp.eq.s32.totalorder %s65, 0
      %s68 = sadd.s32 %s67, 1
      %s69 = scalar_select %p66, %s67, %s68
      %p72 = pneg %p66
      %p73 = scmp.eq.s32.totalorder %s31, 1
      %p74 = por %p72, %p73
      %p75 = scmp.ne.s32.totalorder %s67, %s70
      %p76 = scmp.eq.s32.totalorder %s31, 0
      %p77 = por %p75, %p76
      %p78 = scmp.ne.s32.totalorder %s67, %s70
      %p79 = scmp.eq.s32.totalorder %s36, 1
      %p80 = por %p78, %p79
      %p81 = scmp.ne.s32.totalorder %s70, %s71
      %p82 = scmp.eq.s32.totalorder %s36, 0
      %p83 = por %p81, %p82
      %p84 = scmp.ne.s32.totalorder %s70, %s71
      %p85 = scmp.eq.s32.totalorder %s37, 1
      %p86 = por %p84, %p85
      %p88 = scmp.ne.s32.totalorder %s71, %s87
      %p89 = scmp.eq.s32.totalorder %s37, 0
      %p90 = por %p88, %p89
      %s92 = sadd.s32 %s91, 1
      %p95 = scmp.eq.s32.totalorder %s31, 1
      %p96 = scmp.ne.s32.totalorder %s91, %s93
      %p97 = scmp.eq.s32.totalorder %s31, 0
      %p98 = por %p96, %p97
      %p99 = scmp.ne.s32.totalorder %s91, %s93
      %p100 = scmp.eq.s32.totalorder %s36, 1
      %p101 = por %p99, %p100
      %p102 = scmp.ne.s32.totalorder %s93, %s94
      %p103 = scmp.eq.s32.totalorder %s36, 0
      %p104 = por %p102, %p103
      %p105 = scmp.ne.s32.totalorder %s93, %s94
      %p106 = scmp.eq.s32.totalorder %s37, 1
      %p107 = por %p105, %p106
      %p109 = scmp.ne.s32.totalorder %s94, %s108
      %p110 = scmp.eq.s32.totalorder %s37, 0
      %p111 = por %p109, %p110
      %s113 = sadd.s32 %s112, 1
      %p116 = scmp.eq.s32.totalorder %s31, 1
      %p117 = scmp.ne.s32.totalorder %s112, %s114
      %p118 = scmp.eq.s32.totalorder %s31, 0
      %p119 = por %p117, %p118
      %p120 = scmp.ne.s32.totalorder %s112, %s114
      %p121 = scmp.eq.s32.totalorder %s36, 1
      %p122 = por %p120, %p121
      %p123 = scmp.ne.s32.totalorder %s114, %s115
      %p124 = scmp.eq.s32.totalorder %s36, 0
      %p125 = por %p123, %p124
      %p126 = scmp.ne.s32.totalorder %s114, %s115
      %p127 = scmp.eq.s32.totalorder %s37, 1
      %p128 = por %p126, %p127
      %p130 = scmp.ne.s32.totalorder %s115, %s129
      %p131 = scmp.eq.s32.totalorder %s37, 0
      %p132 = por %p130, %p131
      %s134 = sadd.s32 %s133, 1
      %p137 = scmp.eq.s32.totalorder %s31, 1
      %p138 = scmp.ne.s32.totalorder %s133, %s135
      %p139 = scmp.eq.s32.totalorder %s31, 0
      %p140 = por %p138, %p139
      %p141 = scmp.ne.s32.totalorder %s133, %s135
      %p142 = scmp.eq.s32.totalorder %s36, 1
      %p143 = por %p141, %p142
      %p144 = scmp.ne.s32.totalorder %s135, %s136
      %p145 = scmp.eq.s32.totalorder %s36, 0
      %p146 = por %p144, %p145
      %p147 = scmp.ne.s32.totalorder %s135, %s136
      %p148 = scmp.eq.s32.totalorder %s37, 1
      %p149 = por %p147, %p148
      %p151 = scmp.ne.s32.totalorder %s136, %s150
      %p152 = scmp.eq.s32.totalorder %s37, 0
      %p153 = por %p151, %p152
      %s155 = sadd.s32 %s154, 1
      %p158 = scmp.eq.s32.totalorder %s31, 1
      %p159 = scmp.ne.s32.totalorder %s154, %s156
      %p160 = scmp.eq.s32.totalorder %s31, 0
      %p161 = por %p159, %p160
      %p162 = scmp.ne.s32.totalorder %s154, %s156
      %p163 = scmp.eq.s32.totalorder %s36, 1
      %p164 = por %p162, %p163
      %p165 = scmp.ne.s32.totalorder %s156, %s157
      %p166 = scmp.eq.s32.totalorder %s36, 0
      %p167 = por %p165, %p166
      %p168 = scmp.ne.s32.totalorder %s156, %s157
      %p169 = scmp.eq.s32.totalorder %s37, 1
      %p170 = por %p168, %p169
      %p172 = scmp.ne.s32.totalorder %s157, %s171
      %p173 = scmp.eq.s32.totalorder %s37, 0
      %p174 = por %p172, %p173
      %s176 = sadd.s32 %s175, 1
      %p179 = scmp.eq.s32.totalorder %s31, 1
      %p180 = scmp.ne.s32.totalorder %s175, %s177
      %p181 = scmp.eq.s32.totalorder %s31, 0
      %p182 = por %p180, %p181
      %p183 = scmp.ne.s32.totalorder %s175, %s177
      %p184 = scmp.eq.s32.totalorder %s36, 1
      %p185 = por %p183, %p184
      %p186 = scmp.ne.s32.totalorder %s177, %s178
      %p187 = scmp.eq.s32.totalorder %s36, 0
      %p188 = por %p186, %p187
      %p189 = scmp.ne.s32.totalorder %s177, %s178
      %p190 = scmp.eq.s32.totalorder %s37, 1
      %p191 = por %p189, %p190
      %p193 = scmp.ne.s32.totalorder %s178, %s192
      %p194 = scmp.eq.s32.totalorder %s37, 0
      %p195 = por %p193, %p194
      %s197 = sadd.s32 %s196, 1
      %p200 = scmp.eq.s32.totalorder %s31, 1
      %p201 = scmp.ne.s32.totalorder %s196, %s198
      %p202 = scmp.eq.s32.totalorder %s31, 0
      %p203 = por %p201, %p202
      %p204 = scmp.ne.s32.totalorder %s196, %s198
      %p205 = scmp.eq.s32.totalorder %s36, 1
      %p206 = por %p204, %p205
      %p207 = scmp.ne.s32.totalorder %s198, %s199
      %p208 = scmp.eq.s32.totalorder %s36, 0
      %p209 = por %p207, %p208
      %p210 = scmp.ne.s32.totalorder %s198, %s199
      %p211 = scmp.eq.s32.totalorder %s37, 1
      %p212 = por %p210, %p211
      %p214 = scmp.ne.s32.totalorder %s199, %s213
      %p215 = scmp.eq.s32.totalorder %s37, 0
      %p216 = por %p214, %p215
      %s218 = sadd.s32 %s217, 1
      %p221 = scmp.eq.s32.totalorder %s31, 1
      %p222 = scmp.ne.s32.totalorder %s217, %s219
      %p223 = scmp.eq.s32.totalorder %s31, 0
      %p224 = por %p222, %p223
      %p225 = scmp.ne.s32.totalorder %s217, %s219
      %p226 = scmp.eq.s32.totalorder %s36, 1
      %p227 = por %p225, %p226
      %p228 = scmp.ne.s32.totalorder %s219, %s220
      %p229 = scmp.eq.s32.totalorder %s36, 0
      %p230 = por %p228, %p229
      %p231 = scmp.ne.s32.totalorder %s219, %s220
      %p232 = scmp.eq.s32.totalorder %s37, 1
      %p233 = por %p231, %p232
      %p235 = scmp.ne.s32.totalorder %s220, %s234
      %p236 = scmp.eq.s32.totalorder %s37, 0
      %p237 = por %p235, %p236
      %s239 = sadd.s32 %s238, 1
      %p242 = scmp.eq.s32.totalorder %s31, 1
      %p243 = scmp.ne.s32.totalorder %s238, %s240
      %p244 = scmp.eq.s32.totalorder %s31, 0
      %p245 = por %p243, %p244
      %p246 = scmp.ne.s32.totalorder %s238, %s240
      %p247 = scmp.eq.s32.totalorder %s36, 1
      %p248 = por %p246, %p247
      %p249 = scmp.ne.s32.totalorder %s240, %s241
      %p250 = scmp.eq.s32.totalorder %s36, 0
      %p251 = por %p249, %p250
      %p252 = scmp.ne.s32.totalorder %s240, %s241
      %p253 = scmp.eq.s32.totalorder %s37, 1
      %p254 = por %p252, %p253
      %p256 = scmp.ne.s32.totalorder %s241, %s255
      %p257 = scmp.eq.s32.totalorder %s37, 0
      %p258 = por %p256, %p257
      %s260 = sadd.s32 %s259, 1
      %p263 = scmp.eq.s32.totalorder %s31, 1
      %p264 = scmp.ne.s32.totalorder %s259, %s261
      %p265 = scmp.eq.s32.totalorder %s31, 0
      %p266 = por %p264, %p265
      %p267 = scmp.ne.s32.totalorder %s259, %s261
      %p268 = scmp.eq.s32.totalorder %s36, 1
      %p269 = por %p267, %p268
      %p270 = scmp.ne.s32.totalorder %s261, %s262
      %p271 = scmp.eq.s32.totalorder %s36, 0
      %p272 = por %p270, %p271
      %p273 = scmp.ne.s32.totalorder %s261, %s262
      %p274 = scmp.eq.s32.totalorder %s37, 1
      %p275 = por %p273, %p274
      %p277 = scmp.ne.s32.totalorder %s262, %s276
      %p278 = scmp.eq.s32.totalorder %s37, 0
      %p279 = por %p277, %p278
      %s281 = sadd.s32 %s280, 1
      %p284 = scmp.eq.s32.totalorder %s31, 1
      %p285 = scmp.ne.s32.totalorder %s280, %s282
      %p286 = scmp.eq.s32.totalorder %s31, 0
      %p287 = por %p285, %p286
      %p288 = scmp.ne.s32.totalorder %s280, %s282
      %p289 = scmp.eq.s32.totalorder %s36, 1
      %p290 = por %p288, %p289
      %p291 = scmp.ne.s32.totalorder %s282, %s283
      %p292 = scmp.eq.s32.totalorder %s36, 0
      %p293 = por %p291, %p292
      %p294 = scmp.ne.s32.totalorder %s282, %s283
      %p295 = scmp.eq.s32.totalorder %s37, 1
      %p296 = por %p294, %p295
      %p298 = scmp.ne.s32.totalorder %s283, %s297
      %p299 = scmp.eq.s32.totalorder %s37, 0
      %p300 = por %p298, %p299
      %s302 = sadd.s32 %s301, 1
      %p305 = scmp.eq.s32.totalorder %s31, 1
      %p306 = scmp.ne.s32.totalorder %s301, %s303
      %p307 = scmp.eq.s32.totalorder %s31, 0
      %p308 = por %p306, %p307
      %p309 = scmp.ne.s32.totalorder %s301, %s303
      %p310 = scmp.eq.s32.totalorder %s36, 1
      %p311 = por %p309, %p310
      %p312 = scmp.ne.s32.totalorder %s303, %s304
      %p313 = scmp.eq.s32.totalorder %s36, 0
      %p314 = por %p312, %p313
      %p315 = scmp.ne.s32.totalorder %s303, %s304
      %p316 = scmp.eq.s32.totalorder %s37, 1
      %p317 = por %p315, %p316
      %p319 = scmp.ne.s32.totalorder %s304, %s318
      %p320 = scmp.eq.s32.totalorder %s37, 0
      %p321 = por %p319, %p320
      %s323 = sadd.s32 %s322, 1
      %p326 = scmp.eq.s32.totalorder %s31, 1
      %p327 = scmp.ne.s32.totalorder %s322, %s324
      %p328 = scmp.eq.s32.totalorder %s31, 0
      %p329 = por %p327, %p328
      %p330 = scmp.ne.s32.totalorder %s322, %s324
      %p331 = scmp.eq.s32.totalorder %s36, 1
      %p332 = por %p330, %p331
      %p333 = scmp.ne.s32.totalorder %s324, %s325
      %p334 = scmp.eq.s32.totalorder %s36, 0
      %p335 = por %p333, %p334
      %p336 = scmp.ne.s32.totalorder %s324, %s325
      %p337 = scmp.eq.s32.totalorder %s37, 1
      %p338 = por %p336, %p337
      %p340 = scmp.ne.s32.totalorder %s325, %s339
      %p341 = scmp.eq.s32.totalorder %s37, 0
      %p342 = por %p340, %p341
      %s344 = sadd.s32 %s343, 1
      %p347 = scmp.eq.s32.totalorder %s31, 1
      %p348 = scmp.ne.s32.totalorder %s343, %s345
      %p349 = scmp.eq.s32.totalorder %s31, 0
      %p350 = por %p348, %p349
      %p351 = scmp.ne.s32.totalorder %s343, %s345
      %p352 = scmp.eq.s32.totalorder %s36, 1
      %p353 = por %p351, %p352
      %p354 = scmp.ne.s32.totalorder %s345, %s346
      %p355 = scmp.eq.s32.totalorder %s36, 0
      %p356 = por %p354, %p355
      %p357 = scmp.ne.s32.totalorder %s345, %s346
      %p358 = scmp.eq.s32.totalorder %s37, 1
      %p359 = por %p357, %p358
      %p361 = scmp.ne.s32.totalorder %s346, %s360
      %p362 = scmp.eq.s32.totalorder %s37, 0
      %p363 = por %p361, %p362
      %s365 = sadd.s32 %s364, 1
      %p368 = scmp.eq.s32.totalorder %s31, 1
      %p369 = scmp.ne.s32.totalorder %s364, %s366
      %p370 = scmp.eq.s32.totalorder %s31, 0
      %p371 = por %p369, %p370
      %p372 = scmp.ne.s32.totalorder %s364, %s366
      %p373 = scmp.eq.s32.totalorder %s36, 1
      %p374 = por %p372, %p373
      %p375 = scmp.ne.s32.totalorder %s366, %s367
      %p376 = scmp.eq.s32.totalorder %s36, 0
      %p377 = por %p375, %p376
      %p378 = scmp.ne.s32.totalorder %s366, %s367
      %p379 = scmp.eq.s32.totalorder %s37, 1
      %p380 = por %p378, %p379
      %p382 = scmp.ne.s32.totalorder %s367, %s381
      %p383 = scmp.eq.s32.totalorder %s37, 0
      %p384 = por %p382, %p383
      %s386 = sadd.s32 %s385, 1
      %p389 = scmp.eq.s32.totalorder %s31, 1
      %p390 = scmp.ne.s32.totalorder %s385, %s387
      %p391 = scmp.eq.s32.totalorder %s31, 0
      %p392 = por %p390, %p391
      %p393 = scmp.ne.s32.totalorder %s385, %s387
      %p394 = scmp.eq.s32.totalorder %s36, 1
      %p395 = por %p393, %p394
      %p396 = scmp.ne.s32.totalorder %s387, %s388
      %p397 = scmp.eq.s32.totalorder %s36, 0
      %p398 = por %p396, %p397
      %p399 = scmp.ne.s32.totalorder %s387, %s388
      %p400 = scmp.eq.s32.totalorder %s37, 1
      %p401 = por %p399, %p400
      %p403 = scmp.ne.s32.totalorder %s388, %s402
      %p404 = scmp.eq.s32.totalorder %s37, 0
      %p405 = por %p403, %p404
      %s407 = sadd.s32 %s406, 1
      %p410 = scmp.eq.s32.totalorder %s31, 1
      %p411 = scmp.ne.s32.totalorder %s406, %s408
      %p412 = scmp.eq.s32.totalorder %s31, 0
      %p413 = por %p411, %p412
      %p414 = scmp.ne.s32.totalorder %s406, %s408
      %p415 = scmp.eq.s32.totalorder %s36, 1
      %p416 = por %p414, %p415
      %p417 = scmp.ne.s32.totalorder %s408, %s409
      %p418 = scmp.eq.s32.totalorder %s36, 0
      %p419 = por %p417, %p418
      %p420 = scmp.ne.s32.totalorder %s408, %s409
      %p421 = scmp.eq.s32.totalorder %s37, 1
      %p422 = por %p420, %p421
      %p424 = scmp.ne.s32.totalorder %s409, %s423
      %p425 = scmp.eq.s32.totalorder %s37, 0
      %p426 = por %p424, %p425
      %s428 = sadd.s32 %s427, 1
      %p431 = scmp.eq.s32.totalorder %s31, 1
      %p432 = scmp.ne.s32.totalorder %s427, %s429
      %p433 = scmp.eq.s32.totalorder %s31, 0
      %p434 = por %p432, %p433
      %p435 = scmp.ne.s32.totalorder %s427, %s429
      %p436 = scmp.eq.s32.totalorder %s36, 1
      %p437 = por %p435, %p436
      %p438 = scmp.ne.s32.totalorder %s429, %s430
      %p439 = scmp.eq.s32.totalorder %s36, 0
      %p440 = por %p438, %p439
      %p441 = scmp.ne.s32.totalorder %s429, %s430
      %p442 = scmp.eq.s32.totalorder %s37, 1
      %p443 = por %p441, %p442
      %p445 = scmp.ne.s32.totalorder %s430, %s444
      %p446 = scmp.eq.s32.totalorder %s37, 0
      %p447 = por %p445, %p446
      %s449 = sadd.s32 %s448, 1
      %p452 = scmp.eq.s32.totalorder %s31, 1
      %p453 = scmp.ne.s32.totalorder %s448, %s450
      %p454 = scmp.eq.s32.totalorder %s31, 0
      %p455 = por %p453, %p454
      %p456 = scmp.ne.s32.totalorder %s448, %s450
      %p457 = scmp.eq.s32.totalorder %s36, 1
      %p458 = por %p456, %p457
      %p459 = scmp.ne.s32.totalorder %s450, %s451
      %p460 = scmp.eq.s32.totalorder %s36, 0
      %p461 = por %p459, %p460
      %p462 = scmp.ne.s32.totalorder %s450, %s451
      %p463 = scmp.eq.s32.totalorder %s37, 1
      %p464 = por %p462, %p463
      %p466 = scmp.ne.s32.totalorder %s451, %s465
      %p467 = scmp.eq.s32.totalorder %s37, 0
      %p468 = por %p466, %p467
      %s470 = sadd.s32 %s469, 1
      %p473 = scmp.eq.s32.totalorder %s31, 1
      %p474 = scmp.ne.s32.totalorder %s469, %s471
      %p475 = scmp.eq.s32.totalorder %s31, 0
      %p476 = por %p474, %p475
      %p477 = scmp.ne.s32.totalorder %s469, %s471
      %p478 = scmp.eq.s32.totalorder %s36, 1
      %p479 = por %p477, %p478
      %p480 = scmp.ne.s32.totalorder %s471, %s472
      %p481 = scmp.eq.s32.totalorder %s36, 0
      %p482 = por %p480, %p481
      %p483 = scmp.ne.s32.totalorder %s471, %s472
      %p484 = scmp.eq.s32.totalorder %s37, 1
      %p485 = por %p483, %p484
      %p487 = scmp.ne.s32.totalorder %s472, %s486
      %p488 = scmp.eq.s32.totalorder %s37, 0
      %p489 = por %p487, %p488
      %s491 = sadd.s32 %s490, 1
      %p494 = scmp.eq.s32.totalorder %s31, 1
      %p495 = scmp.ne.s32.totalorder %s490, %s492
      %p496 = scmp.eq.s32.totalorder %s31, 0
      %p497 = por %p495, %p496
      %p498 = scmp.ne.s32.totalorder %s490, %s492
      %p499 = scmp.eq.s32.totalorder %s36, 1
      %p500 = por %p498, %p499
      %p501 = scmp.ne.s32.totalorder %s492, %s493
      %p502 = scmp.eq.s32.totalorder %s36, 0
      %p503 = por %p501, %p502
      %p504 = scmp.ne.s32.totalorder %s492, %s493
      %p505 = scmp.eq.s32.totalorder %s37, 1
      %p506 = por %p504, %p505
      %p508 = scmp.ne.s32.totalorder %s493, %s507
      %p509 = scmp.eq.s32.totalorder %s37, 0
      %p510 = por %p508, %p509
      %s511 = ssub.s32 %s31, %s38
      %p512 = scmp.eq.s32.totalorder %s511, 0
      %s514 = sadd.s32 %s513, 1
      %s515 = scalar_select %p512, %s513, %s514
      %p518 = pneg %p512
      %p519 = scmp.eq.s32.totalorder %s31, 1
      %p520 = por %p518, %p519
      %p521 = scmp.ne.s32.totalorder %s513, %s516
      %p522 = scmp.eq.s32.totalorder %s31, 0
      %p523 = por %p521, %p522
      %p524 = scmp.ne.s32.totalorder %s513, %s516
      %p525 = scmp.eq.s32.totalorder %s36, 1
      %p526 = por %p524, %p525
      %p527 = scmp.ne.s32.totalorder %s516, %s517
      %p528 = scmp.eq.s32.totalorder %s36, 0
      %p529 = por %p527, %p528
      %p530 = scmp.ne.s32.totalorder %s516, %s517
      %p531 = scmp.eq.s32.totalorder %s37, 1
      %p532 = por %p530, %p531
      %p534 = scmp.ne.s32.totalorder %s517, %s533
      %p535 = scmp.eq.s32.totalorder %s37, 0
      %p536 = por %p534, %p535
      %p537 = scmp.le.s32.totalorder 1, %s31
      %p538 = scmp.lt.s32.totalorder %s31, 3
      %p539 = pnand %p537, %p538
      %p540 = pneg %p539
      // Predicated region
      $region9: #{tpu_custom_call.1} parent=5 // pred_check
        _
      $region10: #{tpu_custom_call.1} parent=5 // pred_check_branch
        %542 = sbr.rel (%p539) target = $region12
      $region11: #{tpu_custom_call.1} parent=5 // pred_region
        %s543 = ssub.s32 %s31, 1
        // Predicated region
        $region13: #{tpu_custom_call.1} parent=11 // pred_check
          %p544 = pneg %p104
        $region14: #{tpu_custom_call.1} parent=11 // pred_check_branch
          %546 = sbr.rel (%p544) target = $region16
        $region15: #{tpu_custom_call.1} parent=11 // pred_region
          _
        $region16: #{tpu_custom_call.1} parent=11 // pred_fallthru
          _
        // Predicated region
        $region17: #{tpu_custom_call.1} parent=11 // pred_check
          %p547 = pneg %p125
        $region18: #{tpu_custom_call.1} parent=11 // pred_check_branch
          %549 = sbr.rel (%p547) target = $region20
        $region19: #{tpu_custom_call.1} parent=11 // pred_region
          _
        $region20: #{tpu_custom_call.1} parent=11 // pred_fallthru
          _
        // Predicated region
        $region21: #{tpu_custom_call.1} parent=11 // pred_check
          %p550 = pneg %p146
        $region22: #{tpu_custom_call.1} parent=11 // pred_check_branch
          %552 = sbr.rel (%p550) target = $region24
        $region23: #{tpu_custom_call.1} parent=11 // pred_region
          _
        $region24: #{tpu_custom_call.1} parent=11 // pred_fallthru
          _
        // Predicated region
        $region25: #{tpu_custom_call.1} parent=11 // pred_check
          %p553 = pneg %p167
        $region26: #{tpu_custom_call.1} parent=11 // pred_check_branch
          %555 = sbr.rel (%p553) target = $region28
        $region27: #{tpu_custom_call.1} parent=11 // pred_region
          _
        $region28: #{tpu_custom_call.1} parent=11 // pred_fallthru
          _
        // Predicated region
        $region29: #{tpu_custom_call.1} parent=11 // pred_check
          %p556 = pneg %p188
        $region30: #{tpu_custom_call.1} parent=11 // pred_check_branch
          %558 = sbr.rel (%p556) target = $region32
        $region31: #{tpu_custom_call.1} parent=11 // pred_region
          _
        $region32: #{tpu_custom_call.1} parent=11 // pred_fallthru
          _
        // Predicated region
        $region33: #{tpu_custom_call.1} parent=11 // pred_check
          %p559 = pneg %p209
        $region34: #{tpu_custom_call.1} parent=11 // pred_check_branch
          %561 = sbr.rel (%p559) target = $region36
        $region35: #{tpu_custom_call.1} parent=11 // pred_region
          _
        $region36: #{tpu_custom_call.1} parent=11 // pred_fallthru
          _
        // Predicated region
        $region37: #{tpu_custom_call.1} parent=11 // pred_check
          %p562 = pneg %p230
        $region38: #{tpu_custom_call.1} parent=11 // pred_check_branch
          %564 = sbr.rel (%p562) target = $region40
        $region39: #{tpu_custom_call.1} parent=11 // pred_region
          _
        $region40: #{tpu_custom_call.1} parent=11 // pred_fallthru
          _
        // Predicated region
        $region41: #{tpu_custom_call.1} parent=11 // pred_check
          %p565 = pneg %p251
        $region42: #{tpu_custom_call.1} parent=11 // pred_check_branch
          %567 = sbr.rel (%p565) target = $region44
        $region43: #{tpu_custom_call.1} parent=11 // pred_region
          _
        $region44: #{tpu_custom_call.1} parent=11 // pred_fallthru
          _
        // Predicated region
        $region45: #{tpu_custom_call.1} parent=11 // pred_check
          %p568 = pneg %p272
        $region46: #{tpu_custom_call.1} parent=11 // pred_check_branch
          %570 = sbr.rel (%p568) target = $region48
        $region47: #{tpu_custom_call.1} parent=11 // pred_region
          _
        $region48: #{tpu_custom_call.1} parent=11 // pred_fallthru
          _
        // Predicated region
        $region49: #{tpu_custom_call.1} parent=11 // pred_check
          %p571 = pneg %p293
        $region50: #{tpu_custom_call.1} parent=11 // pred_check_branch
          %573 = sbr.rel (%p571) target = $region52
        $region51: #{tpu_custom_call.1} parent=11 // pred_region
          _
        $region52: #{tpu_custom_call.1} parent=11 // pred_fallthru
          _
        // Predicated region
        $region53: #{tpu_custom_call.1} parent=11 // pred_check
          %p574 = pneg %p314
        $region54: #{tpu_custom_call.1} parent=11 // pred_check_branch
          %576 = sbr.rel (%p574) target = $region56
        $region55: #{tpu_custom_call.1} parent=11 // pred_region
          _
        $region56: #{tpu_custom_call.1} parent=11 // pred_fallthru
          _
        // Predicated region
        $region57: #{tpu_custom_call.1} parent=11 // pred_check
          %p577 = pneg %p335
        $region58: #{tpu_custom_call.1} parent=11 // pred_check_branch
          %579 = sbr.rel (%p577) target = $region60
        $region59: #{tpu_custom_call.1} parent=11 // pred_region
          _
        $region60: #{tpu_custom_call.1} parent=11 // pred_fallthru
          _
        // Predicated region
        $region61: #{tpu_custom_call.1} parent=11 // pred_check
          %p580 = pneg %p356
        $region62: #{tpu_custom_call.1} parent=11 // pred_check_branch
          %582 = sbr.rel (%p580) target = $region64
        $region63: #{tpu_custom_call.1} parent=11 // pred_region
          _
        $region64: #{tpu_custom_call.1} parent=11 // pred_fallthru
          _
        // Predicated region
        $region65: #{tpu_custom_call.1} parent=11 // pred_check
          %p583 = pneg %p377
        $region66: #{tpu_custom_call.1} parent=11 // pred_check_branch
          %585 = sbr.rel (%p583) target = $region68
        $region67: #{tpu_custom_call.1} parent=11 // pred_region
          _
        $region68: #{tpu_custom_call.1} parent=11 // pred_fallthru
          _
        // Predicated region
        $region69: #{tpu_custom_call.1} parent=11 // pred_check
          %p586 = pneg %p398
        $region70: #{tpu_custom_call.1} parent=11 // pred_check_branch
          %588 = sbr.rel (%p586) target = $region72
        $region71: #{tpu_custom_call.1} parent=11 // pred_region
          _
        $region72: #{tpu_custom_call.1} parent=11 // pred_fallthru
          _
        // Predicated region
        $region73: #{tpu_custom_call.1} parent=11 // pred_check
          %p589 = pneg %p419
        $region74: #{tpu_custom_call.1} parent=11 // pred_check_branch
          %591 = sbr.rel (%p589) target = $region76
        $region75: #{tpu_custom_call.1} parent=11 // pred_region
          _
        $region76: #{tpu_custom_call.1} parent=11 // pred_fallthru
          _
        // Predicated region
        $region77: #{tpu_custom_call.1} parent=11 // pred_check
          %p592 = pneg %p440
        $region78: #{tpu_custom_call.1} parent=11 // pred_check_branch
          %594 = sbr.rel (%p592) target = $region80
        $region79: #{tpu_custom_call.1} parent=11 // pred_region
          _
        $region80: #{tpu_custom_call.1} parent=11 // pred_fallthru
          _
        // Predicated region
        $region81: #{tpu_custom_call.1} parent=11 // pred_check
          %p595 = pneg %p461
        $region82: #{tpu_custom_call.1} parent=11 // pred_check_branch
          %597 = sbr.rel (%p595) target = $region84
        $region83: #{tpu_custom_call.1} parent=11 // pred_region
          _
        $region84: #{tpu_custom_call.1} parent=11 // pred_fallthru
          _
        // Predicated region
        $region85: #{tpu_custom_call.1} parent=11 // pred_check
          %p598 = pneg %p482
        $region86: #{tpu_custom_call.1} parent=11 // pred_check_branch
          %600 = sbr.rel (%p598) target = $region88
        $region87: #{tpu_custom_call.1} parent=11 // pred_region
          _
        $region88: #{tpu_custom_call.1} parent=11 // pred_fallthru
          _
        // Predicated region
        $region89: #{tpu_custom_call.1} parent=11 // pred_check
          %p601 = pneg %p503
        $region90: #{tpu_custom_call.1} parent=11 // pred_check_branch
          %603 = sbr.rel (%p601) target = $region92
        $region91: #{tpu_custom_call.1} parent=11 // pred_region
          _
        $region92: #{tpu_custom_call.1} parent=11 // pred_fallthru
          _
      $region12: #{tpu_custom_call.1} parent=5 // pred_fallthru
        _
      %p604 = scmp.lt.s32.totalorder %s31, 2
      // Predicated region
      $region93: #{tpu_custom_call.1} parent=5 // pred_check
        %p605 = pneg %p604
      $region94: #{tpu_custom_call.1} parent=5 // pred_check_branch
        %607 = sbr.rel (%p605) target = $region96
      $region95: #{tpu_custom_call.1} parent=5 // pred_region
        // Predicated region
        $region97: #{tpu_custom_call.1} parent=95 // pred_check
          %p608 = pneg %p51
        $region98: #{tpu_custom_call.1} parent=95 // pred_check_branch
          %610 = sbr.rel (%p608) target = $region100
        $region99: #{tpu_custom_call.1} parent=95 // pred_region
          %p611 = scmp.lt.s32.totalorder %s31, 1
          %s612 = scalar_select %p611, %s31, 1
          %s613 = smul.addr %s612, 8
          %s614 = scalar_lea.vmem %s0, %s613
        $region100: #{tpu_custom_call.1} parent=95 // pred_fallthru
          _
        // Predicated region
        $region101: #{tpu_custom_call.1} parent=95 // pred_check
          %p615 = pneg %p77
        $region102: #{tpu_custom_call.1} parent=95 // pred_check_branch
          %617 = sbr.rel (%p615) target = $region104
        $region103: #{tpu_custom_call.1} parent=95 // pred_region
          %p618 = scmp.lt.s32.totalorder %s31, 1
          %s619 = scalar_select %p618, %s31, 1
          %s620 = scalar_lea.vmem %s1, %s619
        $region104: #{tpu_custom_call.1} parent=95 // pred_fallthru
          _
      $region96: #{tpu_custom_call.1} parent=5 // pred_fallthru
        _
      %p621 = scmp.le.s32.totalorder 1, %s31
      %p622 = scmp.lt.s32.totalorder %s31, 3
      %p623 = pnand %p621, %p622
      %p624 = pneg %p623
      // Predicated region
      $region105: #{tpu_custom_call.1} parent=5 // pred_check
        _
      $region106: #{tpu_custom_call.1} parent=5 // pred_check_branch
        %626 = sbr.rel (%p623) target = $region108
      $region107: #{tpu_custom_call.1} parent=5 // pred_region
        %s627 = ssub.s32 %s31, 1
        %p628 = scmp.lt.s32.totalorder %s36, 1
        %s629 = scalar_select %p628, %s36, 1
        %s630 = smul.addr %s629, 8
        %s631 = scalar_lea.vmem %s0, %s630
        %p632 = pneg %p57
        %p633 = pneg %p54
        %p634 = scmp.lt.s32.totalorder %s36, 1
        %s635 = scalar_select %p634, %s36, 1
        %s636 = scalar_lea.vmem %s1, %s635
        %p637 = pneg %p83
        %p638 = pneg %p80
        %p639 = pneg %p104
        %p640 = pneg %p101
        %p641 = pneg %p125
        %p642 = pneg %p122
        %p643 = pneg %p146
        %p644 = pneg %p143
        %p645 = pneg %p167
        %p646 = pneg %p164
        %p647 = pneg %p188
        %p648 = pneg %p185
        %p649 = pneg %p209
        %p650 = pneg %p206
        %p651 = pneg %p230
        %p652 = pneg %p227
        %p653 = pneg %p251
        %p654 = pneg %p248
        %p655 = pneg %p272
        %p656 = pneg %p269
        %p657 = pneg %p293
        %p658 = pneg %p290
        %p659 = pneg %p314
        %p660 = pneg %p311
        %p661 = pneg %p335
        %p662 = pneg %p332
        %p663 = pneg %p356
        %p664 = pneg %p353
        %p665 = pneg %p377
        %p666 = pneg %p374
        %p667 = pneg %p398
        %p668 = pneg %p395
        %p669 = pneg %p419
        %p670 = pneg %p416
        %p671 = pneg %p440
        %p672 = pneg %p437
        %p673 = pneg %p461
        %p674 = pneg %p458
        %p675 = pneg %p482
        %p676 = pneg %p479
        %p677 = pneg %p503
        %p678 = pneg %p500
        %p679 = pneg %p529
        %p680 = pneg %p526
        %s681 = sand.u32 %s516, 1
        %s682 = scalar_lea.sflag [#allocation3], %s681
        %s683 = sand.u32 %s516, 1
        %s684 = smul.addr %s683, 16
        %s685 = scalar_lea.vmem [#allocation2], %s684
        %p686 = scmp.lt.s32.totalorder %s36, 1
        %s687 = scalar_select %p686, %s36, 1
        %s688 = smul.addr %s687, 8
        %s689 = scalar_lea.vmem %s0, %s688
        %p690 = scmp.lt.s32.totalorder %s36, 1
        %s691 = scalar_select %p690, %s36, 1
        %s692 = scalar_lea.vmem %s1, %s691
        %v694 = vld [vmem:[%s689] sm:$0xff]
        %v695 = vld [vmem:[%s692] sm:$0x1]
        %v696 = vlaneseq
        %v697 = vshrl.u32 %v696, 7
        %v698 = vlaneseq
        %v699 = vand.u32 %v698, 127
        %vm700 = vcmp.le.s32.totalorder %v699, %v697
        %v701 = vsel %vm700, 0.0, -1e+09
        %v703 = vlaneseq
        %v704 = vshrl.u32 %v703, 7
        %v705 = vsub.s32 0, %v704
        %v706 = vrot.slane %v695, %v705
        %v708 = vmin.f32 %v701, %v706
        %v709 = vld [vmem:[%s2] sm:$0x1]
        %v710 = vld [vmem:[%s3] sm:$0x1]
        %711 = vadd.xlane.f32.xlu0 %v694
        %v712 = vpop.xlane.xlu0 %711
        %v713 = vrcp.pop 128.0
        %v714 = vmul.f32 %v712, %v713
        %v715 = vsub.f32 %v694, %v714
        %v716 = vmul.f32 %v715, %v715
        %717 = vadd.xlane.f32.xlu0 %v716
        %v718 = vpop.xlane.xlu0 %717
        %v719 = vmul.f32 %v718, %v713
        %v720 = vadd.f32 %v719, 1e-05
        %v721 = vrsqrt.pop %v720
        %v722 = vmul.f32 %v715, %v721
        %v724 = vlaneseq
        %v725 = vshrl.u32 %v724, 7
        %v726 = vsub.s32 0, %v725
        %v727 = vrot.slane %v709, %v726
        %v729 = vmul.f32 %v722, %v727
        %v731 = vlaneseq
        %v732 = vshrl.u32 %v731, 7
        %v733 = vsub.s32 0, %v732
        %v734 = vrot.slane %v710, %v733
        %v736 = vadd.f32 %v729, %v734
        %v737 = vpack.c.bf16 %v736, %v736
        %v738 = vld [vmem:[%s4] sm:$0xf]
        %v739 = vld [vmem:[%s4 + $0x4] sm:$0xf]
        %v740 = vld [vmem:[%s4 + $0x8] sm:$0xf]
        %v741 = vld [vmem:[%s4 + $0xc] sm:$0xf]
        %v742 = vld [vmem:[%s4 + $0x10] sm:$0xf]
        %v743 = vld [vmem:[%s4 + $0x14] sm:$0xf]
        %v744 = vld [vmem:[%s4 + $0x18] sm:$0xf]
        %v745 = vld [vmem:[%s4 + $0x1c] sm:$0xf]
        %v746 = vld [vmem:[%s4 + $0x20] sm:$0xf]
        %v747 = vld [vmem:[%s4 + $0x24] sm:$0xf]
        %v748 = vld [vmem:[%s4 + $0x28] sm:$0xf]
        %v749 = vld [vmem:[%s4 + $0x2c] sm:$0xf]
        %v750 = vld [vmem:[%s4 + $0x30] sm:$0xf]
        %v751 = vld [vmem:[%s4 + $0x34] sm:$0xf]
        %v752 = vld [vmem:[%s4 + $0x38] sm:$0xf]
        %v753 = vld [vmem:[%s4 + $0x3c] sm:$0xf]
        %v754 = vld [vmem:[%s5] sm:$0x1]
        %v756 = vlaneseq
        %v757 = vshrl.u32 %v756, 7
        %v758 = vsub.s32 0, %v757
        %v759 = vrot.slane %v754, %v758
        %v777 = vunpack.c.l.b16 %v738
        %v778 = vunpack.c.l.b16 %v739
        %v779 = vunpack.c.l.b16 %v740
        %v780 = vunpack.c.l.b16 %v741
        %v781 = vunpack.c.l.b16 %v742
        %v782 = vunpack.c.l.b16 %v743
        %v783 = vunpack.c.l.b16 %v744
        %v784 = vunpack.c.l.b16 %v745
        %v785 = vunpack.c.l.b16 %v746
        %v786 = vunpack.c.l.b16 %v747
        %v787 = vunpack.c.l.b16 %v748
        %v788 = vunpack.c.l.b16 %v749
        %v789 = vunpack.c.l.b16 %v750
        %v790 = vunpack.c.l.b16 %v751
        %v791 = vunpack.c.l.b16 %v752
        %v792 = vunpack.c.l.b16 %v753
        %v793 = vpack.c.b16 %v778, %v777
        %v794 = vpack.c.b16 %v780, %v779
        %v795 = vpack.c.b16 %v782, %v781
        %v796 = vpack.c.b16 %v784, %v783
        %v797 = vpack.c.b16 %v786, %v785
        %v798 = vpack.c.b16 %v788, %v787
        %v799 = vpack.c.b16 %v790, %v789
        %v800 = vpack.c.b16 %v792, %v791
        %809 = vmatprep.subr.bf16.mxu0 0
        %810 = vmatpush1.bf16.msra.mxu0 %v793
        %811 = vmatprep.subr.bf16.mxu0 0
        %812 = vmatpush1.bf16.msra.mxu0 %v794
        %813 = vmatprep.subr.bf16.mxu0 0
        %814 = vmatpush1.bf16.msra.mxu0 %v795
        %815 = vmatprep.subr.bf16.mxu0 0
        %816 = vmatpush1.bf16.msra.mxu0 %v796
        %817 = vmatprep.subr.bf16.mxu0 0
        %818 = vmatpush1.bf16.msra.mxu0 %v797
        %819 = vmatprep.subr.bf16.mxu0 0
        %820 = vmatpush1.bf16.msra.mxu0 %v798
        %821 = vmatprep.subr.bf16.mxu0 0
        %822 = vmatpush1.bf16.msra.mxu0 %v799
        %823 = vmatprep.subr.bf16.mxu0 0
        %824 = vmatpush1.bf16.msra.mxu0 %v800
        %825 = vmatprep.subr.bf16.mxu0 0
        %826 = vmatpush1.bf16.msra.mxu0 0
        %827 = vmatprep.subr.bf16.mxu0 0
        %828 = vmatpush1.bf16.msra.mxu0 0
        %829 = vmatprep.subr.bf16.mxu0 0
        %830 = vmatpush1.bf16.msra.mxu0 0
        %831 = vmatprep.subr.bf16.mxu0 0
        %832 = vmatpush1.bf16.msra.mxu0 0
        %833 = vmatprep.subr.bf16.mxu0 0
        %834 = vmatpush1.bf16.msra.mxu0 0
        %835 = vmatprep.subr.bf16.mxu0 0
        %836 = vmatpush1.bf16.msra.mxu0 0
        %837 = vmatprep.subr.bf16.mxu0 0
        %838 = vmatpush1.bf16.msra.mxu0 0
        %839 = vmatprep.subr.bf16.mxu0 0
        %840 = vmatpush1.bf16.msra.mxu0 0
        %841 = vmatprep.mubr.bf16.mxu0 0
        %842 = vmatmul.mubr.bf16.gmra.mrb[0].mxu0 %v737
        %v843 = vpop.f32.mrb[0].mxu0
        %v844 = vadd.f32 %v759, %v843
        %v845 = vpop.f32.mrb[0].mxu0
        %v846 = vpop.f32.mrb[0].mxu0
        %v847 = vpop.f32.mrb[0].mxu0
        %848 = vdwg.mxu0
        %v849 = vld [vmem:[%s6] sm:$0xf]
        %v850 = vld [vmem:[%s6 + $0x4] sm:$0xf]
        %v851 = vld [vmem:[%s6 + $0x8] sm:$0xf]
        %v852 = vld [vmem:[%s6 + $0xc] sm:$0xf]
        %v853 = vld [vmem:[%s6 + $0x10] sm:$0xf]
        %v854 = vld [vmem:[%s6 + $0x14] sm:$0xf]
        %v855 = vld [vmem:[%s6 + $0x18] sm:$0xf]
        %v856 = vld [vmem:[%s6 + $0x1c] sm:$0xf]
        %v857 = vld [vmem:[%s6 + $0x20] sm:$0xf]
        %v858 = vld [vmem:[%s6 + $0x24] sm:$0xf]
        %v859 = vld [vmem:[%s6 + $0x28] sm:$0xf]
        %v860 = vld [vmem:[%s6 + $0x2c] sm:$0xf]
        %v861 = vld [vmem:[%s6 + $0x30] sm:$0xf]
        %v862 = vld [vmem:[%s6 + $0x34] sm:$0xf]
        %v863 = vld [vmem:[%s6 + $0x38] sm:$0xf]
        %v864 = vld [vmem:[%s6 + $0x3c] sm:$0xf]
        %v865 = vld [vmem:[%s7] sm:$0x1]
        %v867 = vlaneseq
        %v868 = vshrl.u32 %v867, 7
        %v869 = vsub.s32 0, %v868
        %v870 = vrot.slane %v865, %v869
        %v888 = vunpack.c.l.b16 %v849
        %v889 = vunpack.c.l.b16 %v850
        %v890 = vunpack.c.l.b16 %v851
        %v891 = vunpack.c.l.b16 %v852
        %v892 = vunpack.c.l.b16 %v853
        %v893 = vunpack.c.l.b16 %v854
        %v894 = vunpack.c.l.b16 %v855
        %v895 = vunpack.c.l.b16 %v856
        %v896 = vunpack.c.l.b16 %v857
        %v897 = vunpack.c.l.b16 %v858
        %v898 = vunpack.c.l.b16 %v859
        %v899 = vunpack.c.l.b16 %v860
        %v900 = vunpack.c.l.b16 %v861
        %v901 = vunpack.c.l.b16 %v862
        %v902 = vunpack.c.l.b16 %v863
        %v903 = vunpack.c.l.b16 %v864
        %v904 = vpack.c.b16 %v889, %v888
        %v905 = vpack.c.b16 %v891, %v890
        %v906 = vpack.c.b16 %v893, %v892
        %v907 = vpack.c.b16 %v895, %v894
        %v908 = vpack.c.b16 %v897, %v896
        %v909 = vpack.c.b16 %v899, %v898
        %v910 = vpack.c.b16 %v901, %v900
        %v911 = vpack.c.b16 %v903, %v902
        %920 = vmatprep.subr.bf16.mxu0 0
        %921 = vmatpush1.bf16.msra.mxu0 %v904
        %922 = vmatprep.subr.bf16.mxu0 0
        %923 = vmatpush1.bf16.msra.mxu0 %v905
        %924 = vmatprep.subr.bf16.mxu0 0
        %925 = vmatpush1.bf16.msra.mxu0 %v906
        %926 = vmatprep.subr.bf16.mxu0 0
        %927 = vmatpush1.bf16.msra.mxu0 %v907
        %928 = vmatprep.subr.bf16.mxu0 0
        %929 = vmatpush1.bf16.msra.mxu0 %v908
        %930 = vmatprep.subr.bf16.mxu0 0
        %931 = vmatpush1.bf16.msra.mxu0 %v909
        %932 = vmatprep.subr.bf16.mxu0 0
        %933 = vmatpush1.bf16.msra.mxu0 %v910
        %934 = vmatprep.subr.bf16.mxu0 0
        %935 = vmatpush1.bf16.msra.mxu0 %v911
        %936 = vmatprep.subr.bf16.mxu0 0
        %937 = vmatpush1.bf16.msra.mxu0 0
        %938 = vmatprep.subr.bf16.mxu0 0
        %939 = vmatpush1.bf16.msra.mxu0 0
        %940 = vmatprep.subr.bf16.mxu0 0
        %941 = vmatpush1.bf16.msra.mxu0 0
        %942 = vmatprep.subr.bf16.mxu0 0
        %943 = vmatpush1.bf16.msra.mxu0 0
        %944 = vmatprep.subr.bf16.mxu0 0
        %945 = vmatpush1.bf16.msra.mxu0 0
        %946 = vmatprep.subr.bf16.mxu0 0
        %947 = vmatpush1.bf16.msra.mxu0 0
        %948 = vmatprep.subr.bf16.mxu0 0
        %949 = vmatpush1.bf16.msra.mxu0 0
        %950 = vmatprep.subr.bf16.mxu0 0
        %951 = vmatpush1.bf16.msra.mxu0 0
        %952 = vmatprep.mubr.bf16.mxu0 0
        %953 = vmatmul.mubr.bf16.gmra.mrb[0].mxu0 %v737
        %v954 = vpop.f32.mrb[0].mxu0
        %v955 = vadd.f32 %v870, %v954
        %v956 = vpop.f32.mrb[0].mxu0
        %v957 = vpop.f32.mrb[0].mxu0
        %v958 = vpop.f32.mrb[0].mxu0
        %959 = vdwg.mxu0
        %v960 = vld [vmem:[%s8] sm:$0xf]
        %v961 = vld [vmem:[%s8 + $0x4] sm:$0xf]
        %v962 = vld [vmem:[%s8 + $0x8] sm:$0xf]
        %v963 = vld [vmem:[%s8 + $0xc] sm:$0xf]
        %v964 = vld [vmem:[%s8 + $0x10] sm:$0xf]
        %v965 = vld [vmem:[%s8 + $0x14] sm:$0xf]
        %v966 = vld [vmem:[%s8 + $0x18] sm:$0xf]
        %v967 = vld [vmem:[%s8 + $0x1c] sm:$0xf]
        %v968 = vld [vmem:[%s8 + $0x20] sm:$0xf]
        %v969 = vld [vmem:[%s8 + $0x24] sm:$0xf]
        %v970 = vld [vmem:[%s8 + $0x28] sm:$0xf]
        %v971 = vld [vmem:[%s8 + $0x2c] sm:$0xf]
        %v972 = vld [vmem:[%s8 + $0x30] sm:$0xf]
        %v973 = vld [vmem:[%s8 + $0x34] sm:$0xf]
        %v974 = vld [vmem:[%s8 + $0x38] sm:$0xf]
        %v975 = vld [vmem:[%s8 + $0x3c] sm:$0xf]
        %v976 = vld [vmem:[%s9] sm:$0x1]
        %v978 = vlaneseq
        %v979 = vshrl.u32 %v978, 7
        %v980 = vsub.s32 0, %v979
        %v981 = vrot.slane %v976, %v980
        %v999 = vunpack.c.l.b16 %v960
        %v1000 = vunpack.c.l.b16 %v961
        %v1001 = vunpack.c.l.b16 %v962
        %v1002 = vunpack.c.l.b16 %v963
        %v1003 = vunpack.c.l.b16 %v964
        %v1004 = vunpack.c.l.b16 %v965
        %v1005 = vunpack.c.l.b16 %v966
        %v1006 = vunpack.c.l.b16 %v967
        %v1007 = vunpack.c.l.b16 %v968
        %v1008 = vunpack.c.l.b16 %v969
        %v1009 = vunpack.c.l.b16 %v970
        %v1010 = vunpack.c.l.b16 %v971
        %v1011 = vunpack.c.l.b16 %v972
        %v1012 = vunpack.c.l.b16 %v973
        %v1013 = vunpack.c.l.b16 %v974
        %v1014 = vunpack.c.l.b16 %v975
        %v1015 = vpack.c.b16 %v1000, %v999
        %v1016 = vpack.c.b16 %v1002, %v1001
        %v1017 = vpack.c.b16 %v1004, %v1003
        %v1018 = vpack.c.b16 %v1006, %v1005
        %v1019 = vpack.c.b16 %v1008, %v1007
        %v1020 = vpack.c.b16 %v1010, %v1009
        %v1021 = vpack.c.b16 %v1012, %v1011
        %v1022 = vpack.c.b16 %v1014, %v1013
        %1031 = vmatprep.subr.bf16.mxu0 0
        %1032 = vmatpush1.bf16.msra.mxu0 %v1015
        %1033 = vmatprep.subr.bf16.mxu0 0
        %1034 = vmatpush1.bf16.msra.mxu0 %v1016
        %1035 = vmatprep.subr.bf16.mxu0 0
        %1036 = vmatpush1.bf16.msra.mxu0 %v1017
        %1037 = vmatprep.subr.bf16.mxu0 0
        %1038 = vmatpush1.bf16.msra.mxu0 %v1018
        %1039 = vmatprep.subr.bf16.mxu0 0
        %1040 = vmatpush1.bf16.msra.mxu0 %v1019
        %1041 = vmatprep.subr.bf16.mxu0 0
        %1042 = vmatpush1.bf16.msra.mxu0 %v1020
        %1043 = vmatprep.subr.bf16.mxu0 0
        %1044 = vmatpush1.bf16.msra.mxu0 %v1021
        %1045 = vmatprep.subr.bf16.mxu0 0
        %1046 = vmatpush1.bf16.msra.mxu0 %v1022
        %1047 = vmatprep.subr.bf16.mxu0 0
        %1048 = vmatpush1.bf16.msra.mxu0 0
        %1049 = vmatprep.subr.bf16.mxu0 0
        %1050 = vmatpush1.bf16.msra.mxu0 0
        %1051 = vmatprep.subr.bf16.mxu0 0
        %1052 = vmatpush1.bf16.msra.mxu0 0
        %1053 = vmatprep.subr.bf16.mxu0 0
        %1054 = vmatpush1.bf16.msra.mxu0 0
        %1055 = vmatprep.subr.bf16.mxu0 0
        %1056 = vmatpush1.bf16.msra.mxu0 0
        %1057 = vmatprep.subr.bf16.mxu0 0
        %1058 = vmatpush1.bf16.msra.mxu0 0
        %1059 = vmatprep.subr.bf16.mxu0 0
        %1060 = vmatpush1.bf16.msra.mxu0 0
        %1061 = vmatprep.subr.bf16.mxu0 0
        %1062 = vmatpush1.bf16.msra.mxu0 0
        %1063 = vmatprep.mubr.bf16.mxu0 0
        %1064 = vmatmul.mubr.bf16.gmra.mrb[0].mxu0 %v737
        %v1065 = vpop.f32.mrb[0].mxu0
        %v1066 = vadd.f32 %v981, %v1065
        %v1067 = vpop.f32.mrb[0].mxu0
        %v1068 = vpop.f32.mrb[0].mxu0
        %v1069 = vpop.f32.mrb[0].mxu0
        %1070 = vdwg.mxu0
        %v1071 = vmul.f32 %v844, 0.17677669
        %v1072 = vpack.c.bf16 %v1071, %v1071
        %v1073 = vpack.c.bf16 %v955, %v955
        %vm1074 = vcmask 261120
        %v1076 = vsel %vm1074, %v1072, 0
        %v1079 = vsel %vm1074, %v1073, 0
        %1081 = vmatprep.subr.bf16.mxu0 0
        %1082 = vmatpush1.bf16.xpose.msra.mxu0 %v1079
        %1083 = vmatprep.subr.bf16.mxu0 0
        %1084 = vmatpush1.bf16.xpose.msra.mxu0 0
        %1085 = vmatprep.subr.bf16.mxu0 0
        %1086 = vmatpush1.bf16.xpose.msra.mxu0 0
        %1087 = vmatprep.subr.bf16.mxu0 0
        %1088 = vmatpush1.bf16.xpose.msra.mxu0 0
        %1089 = vmatprep.subr.bf16.mxu0 0
        %1090 = vmatpush1.bf16.xpose.msra.mxu0 0
        %1091 = vmatprep.subr.bf16.mxu0 0
        %1092 = vmatpush1.bf16.xpose.msra.mxu0 0
        %1093 = vmatprep.subr.bf16.mxu0 0
        %1094 = vmatpush1.bf16.xpose.msra.mxu0 0
        %1095 = vmatprep.subr.bf16.mxu0 0
        %1096 = vmatpush1.bf16.xpose.msra.mxu0 0
        %1097 = vmatprep.subr.bf16.mxu0 0
        %1098 = vmatpush1.bf16.xpose.msra.mxu0 0
        %1099 = vmatprep.subr.bf16.mxu0 0
        %1100 = vmatpush1.bf16.xpose.msra.mxu0 0
        %1101 = vmatprep.subr.bf16.mxu0 0
        %1102 = vmatpush1.bf16.xpose.msra.mxu0 0
        %1103 = vmatprep.subr.bf16.mxu0 0
        %1104 = vmatpush1.bf16.xpose.msra.mxu0 0
        %1105 = vmatprep.subr.bf16.mxu0 0
        %1106 = vmatpush1.bf16.xpose.msra.mxu0 0
        %1107 = vmatprep.subr.bf16.mxu0 0
        %1108 = vmatpush1.bf16.xpose.msra.mxu0 0
        %1109 = vmatprep.subr.bf16.mxu0 0
        %1110 = vmatpush1.bf16.xpose.msra.mxu0 0
        %1111 = vmatprep.subr.bf16.mxu0 0
        %1112 = vmatpush1.bf16.xpose.msra.mxu0 0
        %1113 = vmatprep.mubr.bf16.mxu0 0
        %1114 = vmatmul.mubr.bf16.gmra.mrb[0].mxu0 %v1076
        %v1115 = vpop.f32.mrb[0].mxu0
        %v1116 = vadd.f32 %v708, %v1115
        %v1117 = vpop.f32.mrb[0].mxu0
        %v1118 = vpop.f32.mrb[0].mxu0
        %v1119 = vpop.f32.mrb[0].mxu0
        %1120 = vdwg.mxu0
        %vm1121 = vcmask 64512
        %v1122 = vsel %vm1121, %v1116, -inf
        %1123 = vmax.xlane.f32.xlu0 %v1122
        %v1124 = vpop.xlane.xlu0 %1123
        %v1125 = vsub.f32 %v1116, %v1124
        %v1126 = vmul.f32 %v1125, 1.442695
        %v1127 = vpow.pop %v1126
        %v1128 = vsel %vm1121, %v1127, 0.0
        %1129 = vadd.xlane.f32.xlu0 %v1128
        %v1130 = vpop.xlane.xlu0 %1129
        %v1131 = vrcp.pop %v1130
        %v1132 = vmul.f32 %v1127, %v1131
        %v1133 = vpack.c.bf16 %v1132, %v1132
        %v1134 = vpack.c.bf16 %v1066, %v1066
        %v1136 = vsel %vm1121, %v1133, 0
        %vm1138 = vcmask 1043456
        %v1140 = vsel %vm1138, %v1134, 0
        %1142 = vmatprep.subr.bf16.mxu0 0
        %1143 = vmatpush1.bf16.msra.mxu0 %v1140
        %1144 = vmatprep.subr.bf16.mxu0 0
        %1145 = vmatpush1.bf16.msra.mxu0 0
        %1146 = vmatprep.subr.bf16.mxu0 0
        %1147 = vmatpush1.bf16.msra.mxu0 0
        %1148 = vmatprep.subr.bf16.mxu0 0
        %1149 = vmatpush1.bf16.msra.mxu0 0
        %1150 = vmatprep.subr.bf16.mxu0 0
        %1151 = vmatpush1.bf16.msra.mxu0 0
        %1152 = vmatprep.subr.bf16.mxu0 0
        %1153 = vmatpush1.bf16.msra.mxu0 0
        %1154 = vmatprep.subr.bf16.mxu0 0
        %1155 = vmatpush1.bf16.msra.mxu0 0
        %1156 = vmatprep.subr.bf16.mxu0 0
        %1157 = vmatpush1.bf16.msra.mxu0 0
        %1158 = vmatprep.subr.bf16.mxu0 0
        %1159 = vmatpush1.bf16.msra.mxu0 0
        %1160 = vmatprep.subr.bf16.mxu0 0
        %1161 = vmatpush1.bf16.msra.mxu0 0
        %1162 = vmatprep.subr.bf16.mxu0 0
        %1163 = vmatpush1.bf16.msra.mxu0 0
        %1164 = vmatprep.subr.bf16.mxu0 0
        %1165 = vmatpush1.bf16.msra.mxu0 0
        %1166 = vmatprep.subr.bf16.mxu0 0
        %1167 = vmatpush1.bf16.msra.mxu0 0
        %1168 = vmatprep.subr.bf16.mxu0 0
        %1169 = vmatpush1.bf16.msra.mxu0 0
        %1170 = vmatprep.subr.bf16.mxu0 0
        %1171 = vmatpush1.bf16.msra.mxu0 0
        %1172 = vmatprep.subr.bf16.mxu0 0
        %1173 = vmatpush1.bf16.msra.mxu0 0
        %1174 = vmatprep.mubr.bf16.mxu0 0
        %1175 = vmatmul.mubr.bf16.gmra.mrb[0].mxu0 %v1136
        %v1176 = vpop.f32.mrb[0].mxu0
        %v1177 = vadd.f32 0.0, %v1176
        %v1178 = vpop.f32.mrb[0].mxu0
        %v1179 = vpop.f32.mrb[0].mxu0
        %v1180 = vpop.f32.mrb[0].mxu0
        %1181 = vdwg.mxu0
        %v1182 = vpack.c.bf16 %v1177, %v1177
        %v1183 = vld [vmem:[%s10] sm:$0xf]
        %v1184 = vld [vmem:[%s10 + $0x4] sm:$0xf]
        %v1185 = vld [vmem:[%s10 + $0x8] sm:$0xf]
        %v1186 = vld [vmem:[%s10 + $0xc] sm:$0xf]
        %s1187 = scalar_lea.vmem %s4, 64
        %v1188 = vld [vmem:[%s1187] sm:$0xf]
        %v1189 = vld [vmem:[%s1187 + $0x4] sm:$0xf]
        %v1190 = vld [vmem:[%s1187 + $0x8] sm:$0xf]
        %v1191 = vld [vmem:[%s1187 + $0xc] sm:$0xf]
        %v1192 = vld [vmem:[%s1187 + $0x10] sm:$0xf]
        %v1193 = vld [vmem:[%s1187 + $0x14] sm:$0xf]
        %v1194 = vld [vmem:[%s1187 + $0x18] sm:$0xf]
        %v1195 = vld [vmem:[%s1187 + $0x1c] sm:$0xf]
        %v1196 = vld [vmem:[%s1187 + $0x20] sm:$0xf]
        %v1197 = vld [vmem:[%s1187 + $0x24] sm:$0xf]
        %v1198 = vld [vmem:[%s1187 + $0x28] sm:$0xf]
        %v1199 = vld [vmem:[%s1187 + $0x2c] sm:$0xf]
        %v1200 = vld [vmem:[%s1187 + $0x30] sm:$0xf]
        %v1201 = vld [vmem:[%s1187 + $0x34] sm:$0xf]
        %v1202 = vld [vmem:[%s1187 + $0x38] sm:$0xf]
        %v1203 = vld [vmem:[%s1187 + $0x3c] sm:$0xf]
        %s1204 = scalar_lea.vmem %s5, 1
        %v1205 = vld [vmem:[%s1204] sm:$0x1]
        %v1207 = vlaneseq
        %v1208 = vshrl.u32 %v1207, 7
        %v1209 = vsub.s32 0, %v1208
        %v1210 = vrot.slane %v1205, %v1209
        %v1228 = vunpack.c.l.b16 %v1188
        %v1229 = vunpack.c.l.b16 %v1189
        %v1230 = vunpack.c.l.b16 %v1190
        %v1231 = vunpack.c.l.b16 %v1191
        %v1232 = vunpack.c.l.b16 %v1192
        %v1233 = vunpack.c.l.b16 %v1193
        %v1234 = vunpack.c.l.b16 %v1194
        %v1235 = vunpack.c.l.b16 %v1195
        %v1236 = vunpack.c.l.b16 %v1196
        %v1237 = vunpack.c.l.b16 %v1197
        %v1238 = vunpack.c.l.b16 %v1198
        %v1239 = vunpack.c.l.b16 %v1199
        %v1240 = vunpack.c.l.b16 %v1200
        %v1241 = vunpack.c.l.b16 %v1201
        %v1242 = vunpack.c.l.b16 %v1202
        %v1243 = vunpack.c.l.b16 %v1203
        %v1244 = vpack.c.b16 %v1229, %v1228
        %v1245 = vpack.c.b16 %v1231, %v1230
        %v1246 = vpack.c.b16 %v1233, %v1232
        %v1247 = vpack.c.b16 %v1235, %v1234
        %v1248 = vpack.c.b16 %v1237, %v1236
        %v1249 = vpack.c.b16 %v1239, %v1238
        %v1250 = vpack.c.b16 %v1241, %v1240
        %v1251 = vpack.c.b16 %v1243, %v1242
        %1260 = vmatprep.subr.bf16.mxu0 0
        %1261 = vmatpush1.bf16.msra.mxu0 %v1244
        %1262 = vmatprep.subr.bf16.mxu0 0
        %1263 = vmatpush1.bf16.msra.mxu0 %v1245
        %1264 = vmatprep.subr.bf16.mxu0 0
        %1265 = vmatpush1.bf16.msra.mxu0 %v1246
        %1266 = vmatprep.subr.bf16.mxu0 0
        %1267 = vmatpush1.bf16.msra.mxu0 %v1247
        %1268 = vmatprep.subr.bf16.mxu0 0
        %1269 = vmatpush1.bf16.msra.mxu0 %v1248
        %1270 = vmatprep.subr.bf16.mxu0 0
        %1271 = vmatpush1.bf16.msra.mxu0 %v1249
        %1272 = vmatprep.subr.bf16.mxu0 0
        %1273 = vmatpush1.bf16.msra.mxu0 %v1250
        %1274 = vmatprep.subr.bf16.mxu0 0
        %1275 = vmatpush1.bf16.msra.mxu0 %v1251
        %1276 = vmatprep.subr.bf16.mxu0 0
        %1277 = vmatpush1.bf16.msra.mxu0 0
        %1278 = vmatprep.subr.bf16.mxu0 0
        %1279 = vmatpush1.bf16.msra.mxu0 0
        %1280 = vmatprep.subr.bf16.mxu0 0
        %1281 = vmatpush1.bf16.msra.mxu0 0
        %1282 = vmatprep.subr.bf16.mxu0 0
        %1283 = vmatpush1.bf16.msra.mxu0 0
        %1284 = vmatprep.subr.bf16.mxu0 0
        %1285 = vmatpush1.bf16.msra.mxu0 0
        %1286 = vmatprep.subr.bf16.mxu0 0
        %1287 = vmatpush1.bf16.msra.mxu0 0
        %1288 = vmatprep.subr.bf16.mxu0 0
        %1289 = vmatpush1.bf16.msra.mxu0 0
        %1290 = vmatprep.subr.bf16.mxu0 0
        %1291 = vmatpush1.bf16.msra.mxu0 0
        %1292 = vmatprep.mubr.bf16.mxu0 0
        %1293 = vmatmul.mubr.bf16.gmra.mrb[0].mxu0 %v737
        %v1294 = vpop.f32.mrb[0].mxu0
        %v1295 = vadd.f32 %v1210, %v1294
        %v1296 = vpop.f32.mrb[0].mxu0
        %v1297 = vpop.f32.mrb[0].mxu0
        %v1298 = vpop.f32.mrb[0].mxu0
        %1299 = vdwg.mxu0
        %s1300 = scalar_lea.vmem %s6, 64
        %v1301 = vld [vmem:[%s1300] sm:$0xf]
        %v1302 = vld [vmem:[%s1300 + $0x4] sm:$0xf]
        %v1303 = vld [vmem:[%s1300 + $0x8] sm:$0xf]
        %v1304 = vld [vmem:[%s1300 + $0xc] sm:$0xf]
        %v1305 = vld [vmem:[%s1300 + $0x10] sm:$0xf]
        %v1306 = vld [vmem:[%s1300 + $0x14] sm:$0xf]
        %v1307 = vld [vmem:[%s1300 + $0x18] sm:$0xf]
        %v1308 = vld [vmem:[%s1300 + $0x1c] sm:$0xf]
        %v1309 = vld [vmem:[%s1300 + $0x20] sm:$0xf]
        %v1310 = vld [vmem:[%s1300 + $0x24] sm:$0xf]
        %v1311 = vld [vmem:[%s1300 + $0x28] sm:$0xf]
        %v1312 = vld [vmem:[%s1300 + $0x2c] sm:$0xf]
        %v1313 = vld [vmem:[%s1300 + $0x30] sm:$0xf]
        %v1314 = vld [vmem:[%s1300 + $0x34] sm:$0xf]
        %v1315 = vld [vmem:[%s1300 + $0x38] sm:$0xf]
        %v1316 = vld [vmem:[%s1300 + $0x3c] sm:$0xf]
        %s1317 = scalar_lea.vmem %s7, 1
        %v1318 = vld [vmem:[%s1317] sm:$0x1]
        %v1320 = vlaneseq
        %v1321 = vshrl.u32 %v1320, 7
        %v1322 = vsub.s32 0, %v1321
        %v1323 = vrot.slane %v1318, %v1322
        %v1341 = vunpack.c.l.b16 %v1301
        %v1342 = vunpack.c.l.b16 %v1302
        %v1343 = vunpack.c.l.b16 %v1303
        %v1344 = vunpack.c.l.b16 %v1304
        %v1345 = vunpack.c.l.b16 %v1305
        %v1346 = vunpack.c.l.b16 %v1306
        %v1347 = vunpack.c.l.b16 %v1307
        %v1348 = vunpack.c.l.b16 %v1308
        %v1349 = vunpack.c.l.b16 %v1309
        %v1350 = vunpack.c.l.b16 %v1310
        %v1351 = vunpack.c.l.b16 %v1311
        %v1352 = vunpack.c.l.b16 %v1312
        %v1353 = vunpack.c.l.b16 %v1313
        %v1354 = vunpack.c.l.b16 %v1314
        %v1355 = vunpack.c.l.b16 %v1315
        %v1356 = vunpack.c.l.b16 %v1316
        %v1357 = vpack.c.b16 %v1342, %v1341
        %v1358 = vpack.c.b16 %v1344, %v1343
        %v1359 = vpack.c.b16 %v1346, %v1345
        %v1360 = vpack.c.b16 %v1348, %v1347
        %v1361 = vpack.c.b16 %v1350, %v1349
        %v1362 = vpack.c.b16 %v1352, %v1351
        %v1363 = vpack.c.b16 %v1354, %v1353
        %v1364 = vpack.c.b16 %v1356, %v1355
        %1373 = vmatprep.subr.bf16.mxu0 0
        %1374 = vmatpush1.bf16.msra.mxu0 %v1357
        %1375 = vmatprep.subr.bf16.mxu0 0
        %1376 = vmatpush1.bf16.msra.mxu0 %v1358
        %1377 = vmatprep.subr.bf16.mxu0 0
        %1378 = vmatpush1.bf16.msra.mxu0 %v1359
        %1379 = vmatprep.subr.bf16.mxu0 0
        %1380 = vmatpush1.bf16.msra.mxu0 %v1360
        %1381 = vmatprep.subr.bf16.mxu0 0
        %1382 = vmatpush1.bf16.msra.mxu0 %v1361
        %1383 = vmatprep.subr.bf16.mxu0 0
        %1384 = vmatpush1.bf16.msra.mxu0 %v1362
        %1385 = vmatprep.subr.bf16.mxu0 0
        %1386 = vmatpush1.bf16.msra.mxu0 %v1363
        %1387 = vmatprep.subr.bf16.mxu0 0
        %1388 = vmatpush1.bf16.msra.mxu0 %v1364
        %1389 = vmatprep.subr.bf16.mxu0 0
        %1390 = vmatpush1.bf16.msra.mxu0 0
        %1391 = vmatprep.subr.bf16.mxu0 0
        %1392 = vmatpush1.bf16.msra.mxu0 0
        %1393 = vmatprep.subr.bf16.mxu0 0
        %1394 = vmatpush1.bf16.msra.mxu0 0
        %1395 = vmatprep.subr.bf16.mxu0 0
        %1396 = vmatpush1.bf16.msra.mxu0 0
        %1397 = vmatprep.subr.bf16.mxu0 0
        %1398 = vmatpush1.bf16.msra.mxu0 0
        %1399 = vmatprep.subr.bf16.mxu0 0
        %1400 = vmatpush1.bf16.msra.mxu0 0
        %1401 = vmatprep.subr.bf16.mxu0 0
        %1402 = vmatpush1.bf16.msra.mxu0 0
        %1403 = vmatprep.subr.bf16.mxu0 0
        %1404 = vmatpush1.bf16.msra.mxu0 0
        %1405 = vmatprep.mubr.bf16.mxu0 0
        %1406 = vmatmul.mubr.bf16.gmra.mrb[0].mxu0 %v737
        %v1407 = vpop.f32.mrb[0].mxu0
        %v1408 = vadd.f32 %v1323, %v1407
        %v1409 = vpop.f32.mrb[0].mxu0
        %v1410 = vpop.f32.mrb[0].mxu0
        %v1411 = vpop.f32.mrb[0].mxu0
        %1412 = vdwg.mxu0
        %s1413 = scalar_lea.vmem %s8, 64
        %v1414 = vld [vmem:[%s1413] sm:$0xf]
        %v1415 = vld [vmem:[%s1413 + $0x4] sm:$0xf]
        %v1416 = vld [vmem:[%s1413 + $0x8] sm:$0xf]
        %v1417 = vld [vmem:[%s1413 + $0xc] sm:$0xf]
        %v1418 = vld [vmem:[%s1413 + $0x10] sm:$0xf]
        %v1419 = vld [vmem:[%s1413 + $0x14] sm:$0xf]
        %v1420 = vld [vmem:[%s1413 + $0x18] sm:$0xf]
        %v1421 = vld [vmem:[%s1413 + $0x1c] sm:$0xf]
        %v1422 = vld [vmem:[%s1413 + $0x20] sm:$0xf]
        %v1423 = vld [vmem:[%s1413 + $0x24] sm:$0xf]
        %v1424 = vld [vmem:[%s1413 + $0x28] sm:$0xf]
        %v1425 = vld [vmem:[%s1413 + $0x2c] sm:$0xf]
        %v1426 = vld [vmem:[%s1413 + $0x30] sm:$0xf]
        %v1427 = vld [vmem:[%s1413 + $0x34] sm:$0xf]
        %v1428 = vld [vmem:[%s1413 + $0x38] sm:$0xf]
        %v1429 = vld [vmem:[%s1413 + $0x3c] sm:$0xf]
        %s1430 = scalar_lea.vmem %s9, 1
        %v1431 = vld [vmem:[%s1430] sm:$0x1]
        %v1433 = vlaneseq
        %v1434 = vshrl.u32 %v1433, 7
        %v1435 = vsub.s32 0, %v1434
        %v1436 = vrot.slane %v1431, %v1435
        %v1454 = vunpack.c.l.b16 %v1414
        %v1455 = vunpack.c.l.b16 %v1415
        %v1456 = vunpack.c.l.b16 %v1416
        %v1457 = vunpack.c.l.b16 %v1417
        %v1458 = vunpack.c.l.b16 %v1418
        %v1459 = vunpack.c.l.b16 %v1419
        %v1460 = vunpack.c.l.b16 %v1420
        %v1461 = vunpack.c.l.b16 %v1421
        %v1462 = vunpack.c.l.b16 %v1422
        %v1463 = vunpack.c.l.b16 %v1423
        %v1464 = vunpack.c.l.b16 %v1424
        %v1465 = vunpack.c.l.b16 %v1425
        %v1466 = vunpack.c.l.b16 %v1426
        %v1467 = vunpack.c.l.b16 %v1427
        %v1468 = vunpack.c.l.b16 %v1428
        %v1469 = vunpack.c.l.b16 %v1429
        %v1470 = vpack.c.b16 %v1455, %v1454
        %v1471 = vpack.c.b16 %v1457, %v1456
        %v1472 = vpack.c.b16 %v1459, %v1458
        %v1473 = vpack.c.b16 %v1461, %v1460
        %v1474 = vpack.c.b16 %v1463, %v1462
        %v1475 = vpack.c.b16 %v1465, %v1464
        %v1476 = vpack.c.b16 %v1467, %v1466
        %v1477 = vpack.c.b16 %v1469, %v1468
        %1486 = vmatprep.subr.bf16.mxu0 0
        %1487 = vmatpush1.bf16.msra.mxu0 %v1470
        %1488 = vmatprep.subr.bf16.mxu0 0
        %1489 = vmatpush1.bf16.msra.mxu0 %v1471
        %1490 = vmatprep.subr.bf16.mxu0 0
        %1491 = vmatpush1.bf16.msra.mxu0 %v1472
        %1492 = vmatprep.subr.bf16.mxu0 0
        %1493 = vmatpush1.bf16.msra.mxu0 %v1473
        %1494 = vmatprep.subr.bf16.mxu0 0
        %1495 = vmatpush1.bf16.msra.mxu0 %v1474
        %1496 = vmatprep.subr.bf16.mxu0 0
        %1497 = vmatpush1.bf16.msra.mxu0 %v1475
        %1498 = vmatprep.subr.bf16.mxu0 0
        %1499 = vmatpush1.bf16.msra.mxu0 %v1476
        %1500 = vmatprep.subr.bf16.mxu0 0
        %1501 = vmatpush1.bf16.msra.mxu0 %v1477
        %1502 = vmatprep.subr.bf16.mxu0 0
        %1503 = vmatpush1.bf16.msra.mxu0 0
        %1504 = vmatprep.subr.bf16.mxu0 0
        %1505 = vmatpush1.bf16.msra.mxu0 0
        %1506 = vmatprep.subr.bf16.mxu0 0
        %1507 = vmatpush1.bf16.msra.mxu0 0
        %1508 = vmatprep.subr.bf16.mxu0 0
        %1509 = vmatpush1.bf16.msra.mxu0 0
        %1510 = vmatprep.subr.bf16.mxu0 0
        %1511 = vmatpush1.bf16.msra.mxu0 0
        %1512 = vmatprep.subr.bf16.mxu0 0
        %1513 = vmatpush1.bf16.msra.mxu0 0
        %1514 = vmatprep.subr.bf16.mxu0 0
        %1515 = vmatpush1.bf16.msra.mxu0 0
        %1516 = vmatprep.subr.bf16.mxu0 0
        %1517 = vmatpush1.bf16.msra.mxu0 0
        %1518 = vmatprep.mubr.bf16.mxu0 0
        %1519 = vmatmul.mubr.bf16.gmra.mrb[0].mxu0 %v737
        %v1520 = vpop.f32.mrb[0].mxu0
        %v1521 = vadd.f32 %v1436, %v1520
        %v1522 = vpop.f32.mrb[0].mxu0
        %v1523 = vpop.f32.mrb[0].mxu0
        %v1524 = vpop.f32.mrb[0].mxu0
        %1525 = vdwg.mxu0
        %v1526 = vmul.f32 %v1295, 0.17677669
        %v1527 = vpack.c.bf16 %v1526, %v1526
        %v1528 = vpack.c.bf16 %v1408, %v1408
        %v1530 = vsel %vm1074, %v1527, 0
        %v1533 = vsel %vm1074, %v1528, 0
        %1535 = vmatprep.subr.bf16.mxu0 0
        %1536 = vmatpush1.bf16.xpose.msra.mxu0 %v1533
        %1537 = vmatprep.subr.bf16.mxu0 0
        %1538 = vmatpush1.bf16.xpose.msra.mxu0 0
        %1539 = vmatprep.subr.bf16.mxu0 0
        %1540 = vmatpush1.bf16.xpose.msra.mxu0 0
        %1541 = vmatprep.subr.bf16.mxu0 0
        %1542 = vmatpush1.bf16.xpose.msra.mxu0 0
        %1543 = vmatprep.subr.bf16.mxu0 0
        %1544 = vmatpush1.bf16.xpose.msra.mxu0 0
        %1545 = vmatprep.subr.bf16.mxu0 0
        %1546 = vmatpush1.bf16.xpose.msra.mxu0 0
        %1547 = vmatprep.subr.bf16.mxu0 0
        %1548 = vmatpush1.bf16.xpose.msra.mxu0 0
        %1549 = vmatprep.subr.bf16.mxu0 0
        %1550 = vmatpush1.bf16.xpose.msra.mxu0 0
        %1551 = vmatprep.subr.bf16.mxu0 0
        %1552 = vmatpush1.bf16.xpose.msra.mxu0 0
        %1553 = vmatprep.subr.bf16.mxu0 0
        %1554 = vmatpush1.bf16.xpose.msra.mxu0 0
        %1555 = vmatprep.subr.bf16.mxu0 0
        %1556 = vmatpush1.bf16.xpose.msra.mxu0 0
        %1557 = vmatprep.subr.bf16.mxu0 0
        %1558 = vmatpush1.bf16.xpose.msra.mxu0 0
        %1559 = vmatprep.subr.bf16.mxu0 0
        %1560 = vmatpush1.bf16.xpose.msra.mxu0 0
        %1561 = vmatprep.subr.bf16.mxu0 0
        %1562 = vmatpush1.bf16.xpose.msra.mxu0 0
        %1563 = vmatprep.subr.bf16.mxu0 0
        %1564 = vmatpush1.bf16.xpose.msra.mxu0 0
        %1565 = vmatprep.subr.bf16.mxu0 0
        %1566 = vmatpush1.bf16.xpose.msra.mxu0 0
        %1567 = vmatprep.mubr.bf16.mxu0 0
        %1568 = vmatmul.mubr.bf16.gmra.mrb[0].mxu0 %v1530
        %v1569 = vpop.f32.mrb[0].mxu0
        %v1570 = vadd.f32 %v708, %v1569
        %v1571 = vpop.f32.mrb[0].mxu0
        %v1572 = vpop.f32.mrb[0].mxu0
        %v1573 = vpop.f32.mrb[0].mxu0
        %1574 = vdwg.mxu0
        %v1575 = vsel %vm1121, %v1570, -inf
        %1576 = vmax.xlane.f32.xlu0 %v1575
        %v1577 = vpop.xlane.xlu0 %1576
        %v1578 = vsub.f32 %v1570, %v1577
        %v1579 = vmul.f32 %v1578, 1.442695
        %v1580 = vpow.pop %v1579
        %v1581 = vsel %vm1121, %v1580, 0.0
        %1582 = vadd.xlane.f32.xlu0 %v1581
        %v1583 = vpop.xlane.xlu0 %1582
        %v1584 = vrcp.pop %v1583
        %v1585 = vmul.f32 %v1580, %v1584
        %v1586 = vpack.c.bf16 %v1585, %v1585
        %v1587 = vpack.c.bf16 %v1521, %v1521
        %v1589 = vsel %vm1121, %v1586, 0
        %v1592 = vsel %vm1138, %v1587, 0
        %1594 = vmatprep.subr.bf16.mxu0 0
        %1595 = vmatpush1.bf16.msra.mxu0 %v1592
        %1596 = vmatprep.subr.bf16.mxu0 0
        %1597 = vmatpush1.bf16.msra.mxu0 0
        %1598 = vmatprep.subr.bf16.mxu0 0
        %1599 = vmatpush1.bf16.msra.mxu0 0
        %1600 = vmatprep.subr.bf16.mxu0 0
        %1601 = vmatpush1.bf16.msra.mxu0 0
        %1602 = vmatprep.subr.bf16.mxu0 0
        %1603 = vmatpush1.bf16.msra.mxu0 0
        %1604 = vmatprep.subr.bf16.mxu0 0
        %1605 = vmatpush1.bf16.msra.mxu0 0
        %1606 = vmatprep.subr.bf16.mxu0 0
        %1607 = vmatpush1.bf16.msra.mxu0 0
        %1608 = vmatprep.subr.bf16.mxu0 0
        %1609 = vmatpush1.bf16.msra.mxu0 0
        %1610 = vmatprep.subr.bf16.mxu0 0
        %1611 = vmatpush1.bf16.msra.mxu0 0
        %1612 = vmatprep.subr.bf16.mxu0 0
        %1613 = vmatpush1.bf16.msra.mxu0 0
        %1614 = vmatprep.subr.bf16.mxu0 0
        %1615 = vmatpush1.bf16.msra.mxu0 0
        %1616 = vmatprep.subr.bf16.mxu0 0
        %1617 = vmatpush1.bf16.msra.mxu0 0
        %1618 = vmatprep.subr.bf16.mxu0 0
        %1619 = vmatpush1.bf16.msra.mxu0 0
        %1620 = vmatprep.subr.bf16.mxu0 0
        %1621 = vmatpush1.bf16.msra.mxu0 0
        %1622 = vmatprep.subr.bf16.mxu0 0
        %1623 = vmatpush1.bf16.msra.mxu0 0
        %1624 = vmatprep.subr.bf16.mxu0 0
        %1625 = vmatpush1.bf16.msra.mxu0 0
        %1626 = vmatprep.mubr.bf16.mxu0 0
        %1627 = vmatmul.mubr.bf16.gmra.mrb[0].mxu0 %v1589
        %v1628 = vpop.f32.mrb[0].mxu0
        %v1629 = vadd.f32 0.0, %v1628
        %v1630 = vpop.f32.mrb[0].mxu0
        %v1631 = vpop.f32.mrb[0].mxu0
        %v1632 = vpop.f32.mrb[0].mxu0
        %1633 = vdwg.mxu0
        %v1634 = vpack.c.bf16 %v1629, %v1629
        %s1635 = scalar_lea.vmem %s10, 16
        %v1636 = vld [vmem:[%s1635] sm:$0xf]
        %v1637 = vld [vmem:[%s1635 + $0x4] sm:$0xf]
        %v1638 = vld [vmem:[%s1635 + $0x8] sm:$0xf]
        %v1639 = vld [vmem:[%s1635 + $0xc] sm:$0xf]
        %v1644 = vunpack.c.l.b16 %v1636
        %v1645 = vunpack.c.l.b16 %v1637
        %v1646 = vunpack.c.l.b16 %v1638
        %v1647 = vunpack.c.l.b16 %v1639
        %v1648 = vpack.c.b16 %v1645, %v1644
        %v1649 = vpack.c.b16 %v1647, %v1646
        %v1653 = vsel %vm1074, %v1634, 0
        %1655 = vmatprep.subr.bf16.mxu0 0
        %1656 = vmatpush1.bf16.msra.mxu0 %v1648
        %1657 = vmatprep.subr.bf16.mxu0 0
        %1658 = vmatpush1.bf16.msra.mxu0 %v1649
        %1659 = vmatprep.subr.bf16.mxu0 0
        %1660 = vmatpush1.bf16.msra.mxu0 0
        %1661 = vmatprep.subr.bf16.mxu0 0
        %1662 = vmatpush1.bf16.msra.mxu0 0
        %1663 = vmatprep.subr.bf16.mxu0 0
        %1664 = vmatpush1.bf16.msra.mxu0 0
        %1665 = vmatprep.subr.bf16.mxu0 0
        %1666 = vmatpush1.bf16.msra.mxu0 0
        %1667 = vmatprep.subr.bf16.mxu0 0
        %1668 = vmatpush1.bf16.msra.mxu0 0
        %1669 = vmatprep.subr.bf16.mxu0 0
        %1670 = vmatpush1.bf16.msra.mxu0 0
        %1671 = vmatprep.subr.bf16.mxu0 0
        %1672 = vmatpush1.bf16.msra.mxu0 0
        %1673 = vmatprep.subr.bf16.mxu0 0
        %1674 = vmatpush1.bf16.msra.mxu0 0
        %1675 = vmatprep.subr.bf16.mxu0 0
        %1676 = vmatpush1.bf16.msra.mxu0 0
        %1677 = vmatprep.subr.bf16.mxu0 0
        %1678 = vmatpush1.bf16.msra.mxu0 0
        %1679 = vmatprep.subr.bf16.mxu0 0
        %1680 = vmatpush1.bf16.msra.mxu0 0
        %1681 = vmatprep.subr.bf16.mxu0 0
        %1682 = vmatpush1.bf16.msra.mxu0 0
        %1683 = vmatprep.subr.bf16.mxu0 0
        %1684 = vmatpush1.bf16.msra.mxu0 0
        %1685 = vmatprep.subr.bf16.mxu0 0
        %1686 = vmatpush1.bf16.msra.mxu0 0
        %1687 = vmatprep.mubr.bf16.mxu0 0
        %1688 = vmatmul.mubr.bf16.gmra.mrb[0].mxu0 %v1653
        %v1689 = vpop.f32.mrb[0].mxu0
        %v1690 = vadd.f32 0.0, %v1689
        %v1691 = vpop.f32.mrb[0].mxu0
        %v1692 = vpop.f32.mrb[0].mxu0
        %v1693 = vpop.f32.mrb[0].mxu0
        %1694 = vdwg.mxu0
        %v1699 = vunpack.c.l.b16 %v1183
        %v1700 = vunpack.c.l.b16 %v1184
        %v1701 = vunpack.c.l.b16 %v1185
        %v1702 = vunpack.c.l.b16 %v1186
        %v1703 = vpack.c.b16 %v1700, %v1699
        %v1704 = vpack.c.b16 %v1702, %v1701
        %v1708 = vsel %vm1074, %v1182, 0
        %1710 = vmatprep.subr.bf16.mxu0 0
        %1711 = vmatpush1.bf16.msra.mxu0 %v1703
        %1712 = vmatprep.subr.bf16.mxu0 0
        %1713 = vmatpush1.bf16.msra.mxu0 %v1704
        %1714 = vmatprep.subr.bf16.mxu0 0
        %1715 = vmatpush1.bf16.msra.mxu0 0
        %1716 = vmatprep.subr.bf16.mxu0 0
        %1717 = vmatpush1.bf16.msra.mxu0 0
        %1718 = vmatprep.subr.bf16.mxu0 0
        %1719 = vmatpush1.bf16.msra.mxu0 0
        %1720 = vmatprep.subr.bf16.mxu0 0
        %1721 = vmatpush1.bf16.msra.mxu0 0
        %1722 = vmatprep.subr.bf16.mxu0 0
        %1723 = vmatpush1.bf16.msra.mxu0 0
        %1724 = vmatprep.subr.bf16.mxu0 0
        %1725 = vmatpush1.bf16.msra.mxu0 0
        %1726 = vmatprep.subr.bf16.mxu0 0
        %1727 = vmatpush1.bf16.msra.mxu0 0
        %1728 = vmatprep.subr.bf16.mxu0 0
        %1729 = vmatpush1.bf16.msra.mxu0 0
        %1730 = vmatprep.subr.bf16.mxu0 0
        %1731 = vmatpush1.bf16.msra.mxu0 0
        %1732 = vmatprep.subr.bf16.mxu0 0
        %1733 = vmatpush1.bf16.msra.mxu0 0
        %1734 = vmatprep.subr.bf16.mxu0 0
        %1735 = vmatpush1.bf16.msra.mxu0 0
        %1736 = vmatprep.subr.bf16.mxu0 0
        %1737 = vmatpush1.bf16.msra.mxu0 0
        %1738 = vmatprep.subr.bf16.mxu0 0
        %1739 = vmatpush1.bf16.msra.mxu0 0
        %1740 = vmatprep.subr.bf16.mxu0 0
        %1741 = vmatpush1.bf16.msra.mxu0 0
        %1742 = vmatprep.mubr.bf16.mxu0 0
        %1743 = vmatmul.mubr.bf16.gmra.mrb[0].mxu0 %v1708
        %v1744 = vpop.f32.mrb[0].mxu0
        %v1745 = vadd.f32 %v1690, %v1744
        %v1746 = vpop.f32.mrb[0].mxu0
        %v1747 = vpop.f32.mrb[0].mxu0
        %v1748 = vpop.f32.mrb[0].mxu0
        %1749 = vdwg.mxu0
        %s1750 = scalar_lea.vmem %s4, 128
        %v1751 = vld [vmem:[%s1750] sm:$0xf]
        %v1752 = vld [vmem:[%s1750 + $0x4] sm:$0xf]
        %v1753 = vld [vmem:[%s1750 + $0x8] sm:$0xf]
        %v1754 = vld [vmem:[%s1750 + $0xc] sm:$0xf]
        %v1755 = vld [vmem:[%s1750 + $0x10] sm:$0xf]
        %v1756 = vld [vmem:[%s1750 + $0x14] sm:$0xf]
        %v1757 = vld [vmem:[%s1750 + $0x18] sm:$0xf]
        %v1758 = vld [vmem:[%s1750 + $0x1c] sm:$0xf]
        %v1759 = vld [vmem:[%s1750 + $0x20] sm:$0xf]
        %v1760 = vld [vmem:[%s1750 + $0x24] sm:$0xf]
        %v1761 = vld [vmem:[%s1750 + $0x28] sm:$0xf]
        %v1762 = vld [vmem:[%s1750 + $0x2c] sm:$0xf]
        %v1763 = vld [vmem:[%s1750 + $0x30] sm:$0xf]
        %v1764 = vld [vmem:[%s1750 + $0x34] sm:$0xf]
        %v1765 = vld [vmem:[%s1750 + $0x38] sm:$0xf]
        %v1766 = vld [vmem:[%s1750 + $0x3c] sm:$0xf]
        %s1767 = scalar_lea.vmem %s5, 2
        %v1768 = vld [vmem:[%s1767] sm:$0x1]
        %v1770 = vlaneseq
        %v1771 = vshrl.u32 %v1770, 7
        %v1772 = vsub.s32 0, %v1771
        %v1773 = vrot.slane %v1768, %v1772
        %v1791 = vunpack.c.l.b16 %v1751
        %v1792 = vunpack.c.l.b16 %v1752
        %v1793 = vunpack.c.l.b16 %v1753
        %v1794 = vunpack.c.l.b16 %v1754
        %v1795 = vunpack.c.l.b16 %v1755
        %v1796 = vunpack.c.l.b16 %v1756
        %v1797 = vunpack.c.l.b16 %v1757
        %v1798 = vunpack.c.l.b16 %v1758
        %v1799 = vunpack.c.l.b16 %v1759
        %v1800 = vunpack.c.l.b16 %v1760
        %v1801 = vunpack.c.l.b16 %v1761
        %v1802 = vunpack.c.l.b16 %v1762
        %v1803 = vunpack.c.l.b16 %v1763
        %v1804 = vunpack.c.l.b16 %v1764
        %v1805 = vunpack.c.l.b16 %v1765
        %v1806 = vunpack.c.l.b16 %v1766
        %v1807 = vpack.c.b16 %v1792, %v1791
        %v1808 = vpack.c.b16 %v1794, %v1793
        %v1809 = vpack.c.b16 %v1796, %v1795
        %v1810 = vpack.c.b16 %v1798, %v1797
        %v1811 = vpack.c.b16 %v1800, %v1799
        %v1812 = vpack.c.b16 %v1802, %v1801
        %v1813 = vpack.c.b16 %v1804, %v1803
        %v1814 = vpack.c.b16 %v1806, %v1805
        %1823 = vmatprep.subr.bf16.mxu0 0
        %1824 = vmatpush1.bf16.msra.mxu0 %v1807
        %1825 = vmatprep.subr.bf16.mxu0 0
        %1826 = vmatpush1.bf16.msra.mxu0 %v1808
        %1827 = vmatprep.subr.bf16.mxu0 0
        %1828 = vmatpush1.bf16.msra.mxu0 %v1809
        %1829 = vmatprep.subr.bf16.mxu0 0
        %1830 = vmatpush1.bf16.msra.mxu0 %v1810
        %1831 = vmatprep.subr.bf16.mxu0 0
        %1832 = vmatpush1.bf16.msra.mxu0 %v1811
        %1833 = vmatprep.subr.bf16.mxu0 0
        %1834 = vmatpush1.bf16.msra.mxu0 %v1812
        %1835 = vmatprep.subr.bf16.mxu0 0
        %1836 = vmatpush1.bf16.msra.mxu0 %v1813
        %1837 = vmatprep.subr.bf16.mxu0 0
        %1838 = vmatpush1.bf16.msra.mxu0 %v1814
        %1839 = vmatprep.subr.bf16.mxu0 0
        %1840 = vmatpush1.bf16.msra.mxu0 0
        %1841 = vmatprep.subr.bf16.mxu0 0
        %1842 = vmatpush1.bf16.msra.mxu0 0
        %1843 = vmatprep.subr.bf16.mxu0 0
        %1844 = vmatpush1.bf16.msra.mxu0 0
        %1845 = vmatprep.subr.bf16.mxu0 0
        %1846 = vmatpush1.bf16.msra.mxu0 0
        %1847 = vmatprep.subr.bf16.mxu0 0
        %1848 = vmatpush1.bf16.msra.mxu0 0
        %1849 = vmatprep.subr.bf16.mxu0 0
        %1850 = vmatpush1.bf16.msra.mxu0 0
        %1851 = vmatprep.subr.bf16.mxu0 0
        %1852 = vmatpush1.bf16.msra.mxu0 0
        %1853 = vmatprep.subr.bf16.mxu0 0
        %1854 = vmatpush1.bf16.msra.mxu0 0
        %1855 = vmatprep.mubr.bf16.mxu0 0
        %1856 = vmatmul.mubr.bf16.gmra.mrb[0].mxu0 %v737
        %v1857 = vpop.f32.mrb[0].mxu0
        %v1858 = vadd.f32 %v1773, %v1857
        %v1859 = vpop.f32.mrb[0].mxu0
        %v1860 = vpop.f32.mrb[0].mxu0
        %v1861 = vpop.f32.mrb[0].mxu0
        %1862 = vdwg.mxu0
        %s1863 = scalar_lea.vmem %s6, 128
        %v1864 = vld [vmem:[%s1863] sm:$0xf]
        %v1865 = vld [vmem:[%s1863 + $0x4] sm:$0xf]
        %v1866 = vld [vmem:[%s1863 + $0x8] sm:$0xf]
        %v1867 = vld [vmem:[%s1863 + $0xc] sm:$0xf]
        %v1868 = vld [vmem:[%s1863 + $0x10] sm:$0xf]
        %v1869 = vld [vmem:[%s1863 + $0x14] sm:$0xf]
        %v1870 = vld [vmem:[%s1863 + $0x18] sm:$0xf]
        %v1871 = vld [vmem:[%s1863 + $0x1c] sm:$0xf]
        %v1872 = vld [vmem:[%s1863 + $0x20] sm:$0xf]
        %v1873 = vld [vmem:[%s1863 + $0x24] sm:$0xf]
        %v1874 = vld [vmem:[%s1863 + $0x28] sm:$0xf]
        %v1875 = vld [vmem:[%s1863 + $0x2c] sm:$0xf]
        %v1876 = vld [vmem:[%s1863 + $0x30] sm:$0xf]
        %v1877 = vld [vmem:[%s1863 + $0x34] sm:$0xf]
        %v1878 = vld [vmem:[%s1863 + $0x38] sm:$0xf]
        %v1879 = vld [vmem:[%s1863 + $0x3c] sm:$0xf]
        %s1880 = scalar_lea.vmem %s7, 2
        %v1881 = vld [vmem:[%s1880] sm:$0x1]
        %v1883 = vlaneseq
        %v1884 = vshrl.u32 %v1883, 7
        %v1885 = vsub.s32 0, %v1884
        %v1886 = vrot.slane %v1881, %v1885
        %v1904 = vunpack.c.l.b16 %v1864
        %v1905 = vunpack.c.l.b16 %v1865
        %v1906 = vunpack.c.l.b16 %v1866
        %v1907 = vunpack.c.l.b16 %v1867
        %v1908 = vunpack.c.l.b16 %v1868
        %v1909 = vunpack.c.l.b16 %v1869
        %v1910 = vunpack.c.l.b16 %v1870
        %v1911 = vunpack.c.l.b16 %v1871
        %v1912 = vunpack.c.l.b16 %v1872
        %v1913 = vunpack.c.l.b16 %v1873
        %v1914 = vunpack.c.l.b16 %v1874
        %v1915 = vunpack.c.l.b16 %v1875
        %v1916 = vunpack.c.l.b16 %v1876
        %v1917 = vunpack.c.l.b16 %v1877
        %v1918 = vunpack.c.l.b16 %v1878
        %v1919 = vunpack.c.l.b16 %v1879
        %v1920 = vpack.c.b16 %v1905, %v1904
        %v1921 = vpack.c.b16 %v1907, %v1906
        %v1922 = vpack.c.b16 %v1909, %v1908
        %v1923 = vpack.c.b16 %v1911, %v1910
        %v1924 = vpack.c.b16 %v1913, %v1912
        %v1925 = vpack.c.b16 %v1915, %v1914
        %v1926 = vpack.c.b16 %v1917, %v1916
        %v1927 = vpack.c.b16 %v1919, %v1918
        %1936 = vmatprep.subr.bf16.mxu0 0
        %1937 = vmatpush1.bf16.msra.mxu0 %v1920
        %1938 = vmatprep.subr.bf16.mxu0 0
        %1939 = vmatpush1.bf16.msra.mxu0 %v1921
        %1940 = vmatprep.subr.bf16.mxu0 0
        %1941 = vmatpush1.bf16.msra.mxu0 %v1922
        %1942 = vmatprep.subr.bf16.mxu0 0
        %1943 = vmatpush1.bf16.msra.mxu0 %v1923
        %1944 = vmatprep.subr.bf16.mxu0 0
        %1945 = vmatpush1.bf16.msra.mxu0 %v1924
        %1946 = vmatprep.subr.bf16.mxu0 0
        %1947 = vmatpush1.bf16.msra.mxu0 %v1925
        %1948 = vmatprep.subr.bf16.mxu0 0
        %1949 = vmatpush1.bf16.msra.mxu0 %v1926
        %1950 = vmatprep.subr.bf16.mxu0 0
        %1951 = vmatpush1.bf16.msra.mxu0 %v1927
        %1952 = vmatprep.subr.bf16.mxu0 0
        %1953 = vmatpush1.bf16.msra.mxu0 0
        %1954 = vmatprep.subr.bf16.mxu0 0
        %1955 = vmatpush1.bf16.msra.mxu0 0
        %1956 = vmatprep.subr.bf16.mxu0 0
        %1957 = vmatpush1.bf16.msra.mxu0 0
        %1958 = vmatprep.subr.bf16.mxu0 0
        %1959 = vmatpush1.bf16.msra.mxu0 0
        %1960 = vmatprep.subr.bf16.mxu0 0
        %1961 = vmatpush1.bf16.msra.mxu0 0
        %1962 = vmatprep.subr.bf16.mxu0 0
        %1963 = vmatpush1.bf16.msra.mxu0 0
        %1964 = vmatprep.subr.bf16.mxu0 0
        %1965 = vmatpush1.bf16.msra.mxu0 0
        %1966 = vmatprep.subr.bf16.mxu0 0
        %1967 = vmatpush1.bf16.msra.mxu0 0
        %1968 = vmatprep.mubr.bf16.mxu0 0
        %1969 = vmatmul.mubr.bf16.gmra.mrb[0].mxu0 %v737
        %v1970 = vpop.f32.mrb[0].mxu0
        %v1971 = vadd.f32 %v1886, %v1970
        %v1972 = vpop.f32.mrb[0].mxu0
        %v1973 = vpop.f32.mrb[0].mxu0
        %v1974 = vpop.f32.mrb[0].mxu0
        %1975 = vdwg.mxu0
        %s1976 = scalar_lea.vmem %s8, 128
        %v1977 = vld [vmem:[%s1976] sm:$0xf]
        %v1978 = vld [vmem:[%s1976 + $0x4] sm:$0xf]
        %v1979 = vld [vmem:[%s1976 + $0x8] sm:$0xf]
        %v1980 = vld [vmem:[%s1976 + $0xc] sm:$0xf]
        %v1981 = vld [vmem:[%s1976 + $0x10] sm:$0xf]
        %v1982 = vld [vmem:[%s1976 + $0x14] sm:$0xf]
        %v1983 = vld [vmem:[%s1976 + $0x18] sm:$0xf]
        %v1984 = vld [vmem:[%s1976 + $0x1c] sm:$0xf]
        %v1985 = vld [vmem:[%s1976 + $0x20] sm:$0xf]
        %v1986 = vld [vmem:[%s1976 + $0x24] sm:$0xf]
        %v1987 = vld [vmem:[%s1976 + $0x28] sm:$0xf]
        %v1988 = vld [vmem:[%s1976 + $0x2c] sm:$0xf]
        %v1989 = vld [vmem:[%s1976 + $0x30] sm:$0xf]
        %v1990 = vld [vmem:[%s1976 + $0x34] sm:$0xf]
        %v1991 = vld [vmem:[%s1976 + $0x38] sm:$0xf]
        %v1992 = vld [vmem:[%s1976 + $0x3c] sm:$0xf]
        %s1993 = scalar_lea.vmem %s9, 2
        %v1994 = vld [vmem:[%s1993] sm:$0x1]
        %v1996 = vlaneseq
        %v1997 = vshrl.u32 %v1996, 7
        %v1998 = vsub.s32 0, %v1997
        %v1999 = vrot.slane %v1994, %v1998
        %v2017 = vunpack.c.l.b16 %v1977
        %v2018 = vunpack.c.l.b16 %v1978
        %v2019 = vunpack.c.l.b16 %v1979
        %v2020 = vunpack.c.l.b16 %v1980
        %v2021 = vunpack.c.l.b16 %v1981
        %v2022 = vunpack.c.l.b16 %v1982
        %v2023 = vunpack.c.l.b16 %v1983
        %v2024 = vunpack.c.l.b16 %v1984
        %v2025 = vunpack.c.l.b16 %v1985
        %v2026 = vunpack.c.l.b16 %v1986
        %v2027 = vunpack.c.l.b16 %v1987
        %v2028 = vunpack.c.l.b16 %v1988
        %v2029 = vunpack.c.l.b16 %v1989
        %v2030 = vunpack.c.l.b16 %v1990
        %v2031 = vunpack.c.l.b16 %v1991
        %v2032 = vunpack.c.l.b16 %v1992
        %v2033 = vpack.c.b16 %v2018, %v2017
        %v2034 = vpack.c.b16 %v2020, %v2019
        %v2035 = vpack.c.b16 %v2022, %v2021
        %v2036 = vpack.c.b16 %v2024, %v2023
        %v2037 = vpack.c.b16 %v2026, %v2025
        %v2038 = vpack.c.b16 %v2028, %v2027
        %v2039 = vpack.c.b16 %v2030, %v2029
        %v2040 = vpack.c.b16 %v2032, %v2031
        %2049 = vmatprep.subr.bf16.mxu0 0
        %2050 = vmatpush1.bf16.msra.mxu0 %v2033
        %2051 = vmatprep.subr.bf16.mxu0 0
        %2052 = vmatpush1.bf16.msra.mxu0 %v2034
        %2053 = vmatprep.subr.bf16.mxu0 0
        %2054 = vmatpush1.bf16.msra.mxu0 %v2035
        %2055 = vmatprep.subr.bf16.mxu0 0
        %2056 = vmatpush1.bf16.msra.mxu0 %v2036
        %2057 = vmatprep.subr.bf16.mxu0 0
        %2058 = vmatpush1.bf16.msra.mxu0 %v2037
        %2059 = vmatprep.subr.bf16.mxu0 0
        %2060 = vmatpush1.bf16.msra.mxu0 %v2038
        %2061 = vmatprep.subr.bf16.mxu0 0
        %2062 = vmatpush1.bf16.msra.mxu0 %v2039
        %2063 = vmatprep.subr.bf16.mxu0 0
        %2064 = vmatpush1.bf16.msra.mxu0 %v2040
        %2065 = vmatprep.subr.bf16.mxu0 0
        %2066 = vmatpush1.bf16.msra.mxu0 0
        %2067 = vmatprep.subr.bf16.mxu0 0
        %2068 = vmatpush1.bf16.msra.mxu0 0
        %2069 = vmatprep.subr.bf16.mxu0 0
        %2070 = vmatpush1.bf16.msra.mxu0 0
        %2071 = vmatprep.subr.bf16.mxu0 0
        %2072 = vmatpush1.bf16.msra.mxu0 0
        %2073 = vmatprep.subr.bf16.mxu0 0
        %2074 = vmatpush1.bf16.msra.mxu0 0
        %2075 = vmatprep.subr.bf16.mxu0 0
        %2076 = vmatpush1.bf16.msra.mxu0 0
        %2077 = vmatprep.subr.bf16.mxu0 0
        %2078 = vmatpush1.bf16.msra.mxu0 0
        %2079 = vmatprep.subr.bf16.mxu0 0
        %2080 = vmatpush1.bf16.msra.mxu0 0
        %2081 = vmatprep.mubr.bf16.mxu0 0
        %2082 = vmatmul.mubr.bf16.gmra.mrb[0].mxu0 %v737
        %v2083 = vpop.f32.mrb[0].mxu0
        %v2084 = vadd.f32 %v1999, %v2083
        %v2085 = vpop.f32.mrb[0].mxu0
        %v2086 = vpop.f32.mrb[0].mxu0
        %v2087 = vpop.f32.mrb[0].mxu0
        %2088 = vdwg.mxu0
        %v2089 = vmul.f32 %v1858, 0.17677669
        %v2090 = vpack.c.bf16 %v2089, %v2089
        %v2091 = vpack.c.bf16 %v1971, %v1971
        %v2093 = vsel %vm1074, %v2090, 0
        %v2096 = vsel %vm1074, %v2091, 0
        %2098 = vmatprep.subr.bf16.mxu0 0
        %2099 = vmatpush1.bf16.xpose.msra.mxu0 %v2096
        %2100 = vmatprep.subr.bf16.mxu0 0
        %2101 = vmatpush1.bf16.xpose.msra.mxu0 0
        %2102 = vmatprep.subr.bf16.mxu0 0
        %2103 = vmatpush1.bf16.xpose.msra.mxu0 0
        %2104 = vmatprep.subr.bf16.mxu0 0
        %2105 = vmatpush1.bf16.xpose.msra.mxu0 0
        %2106 = vmatprep.subr.bf16.mxu0 0
        %2107 = vmatpush1.bf16.xpose.msra.mxu0 0
        %2108 = vmatprep.subr.bf16.mxu0 0
        %2109 = vmatpush1.bf16.xpose.msra.mxu0 0
        %2110 = vmatprep.subr.bf16.mxu0 0
        %2111 = vmatpush1.bf16.xpose.msra.mxu0 0
        %2112 = vmatprep.subr.bf16.mxu0 0
        %2113 = vmatpush1.bf16.xpose.msra.mxu0 0
        %2114 = vmatprep.subr.bf16.mxu0 0
        %2115 = vmatpush1.bf16.xpose.msra.mxu0 0
        %2116 = vmatprep.subr.bf16.mxu0 0
        %2117 = vmatpush1.bf16.xpose.msra.mxu0 0
        %2118 = vmatprep.subr.bf16.mxu0 0
        %2119 = vmatpush1.bf16.xpose.msra.mxu0 0
        %2120 = vmatprep.subr.bf16.mxu0 0
        %2121 = vmatpush1.bf16.xpose.msra.mxu0 0
        %2122 = vmatprep.subr.bf16.mxu0 0
        %2123 = vmatpush1.bf16.xpose.msra.mxu0 0
        %2124 = vmatprep.subr.bf16.mxu0 0
        %2125 = vmatpush1.bf16.xpose.msra.mxu0 0
        %2126 = vmatprep.subr.bf16.mxu0 0
        %2127 = vmatpush1.bf16.xpose.msra.mxu0 0
        %2128 = vmatprep.subr.bf16.mxu0 0
        %2129 = vmatpush1.bf16.xpose.msra.mxu0 0
        %2130 = vmatprep.mubr.bf16.mxu0 0
        %2131 = vmatmul.mubr.bf16.gmra.mrb[0].mxu0 %v2093
        %v2132 = vpop.f32.mrb[0].mxu0
        %v2133 = vadd.f32 %v708, %v2132
        %v2134 = vpop.f32.mrb[0].mxu0
        %v2135 = vpop.f32.mrb[0].mxu0
        %v2136 = vpop.f32.mrb[0].mxu0
        %2137 = vdwg.mxu0
        %v2138 = vsel %vm1121, %v2133, -inf
        %2139 = vmax.xlane.f32.xlu0 %v2138
        %v2140 = vpop.xlane.xlu0 %2139
        %v2141 = vsub.f32 %v2133, %v2140
        %v2142 = vmul.f32 %v2141, 1.442695
        %v2143 = vpow.pop %v2142
        %v2144 = vsel %vm1121, %v2143, 0.0
        %2145 = vadd.xlane.f32.xlu0 %v2144
        %v2146 = vpop.xlane.xlu0 %2145
        %v2147 = vrcp.pop %v2146
        %v2148 = vmul.f32 %v2143, %v2147
        %v2149 = vpack.c.bf16 %v2148, %v2148
        %v2150 = vpack.c.bf16 %v2084, %v2084
        %v2152 = vsel %vm1121, %v2149, 0
        %v2155 = vsel %vm1138, %v2150, 0
        %2157 = vmatprep.subr.bf16.mxu0 0
        %2158 = vmatpush1.bf16.msra.mxu0 %v2155
        %2159 = vmatprep.subr.bf16.mxu0 0
        %2160 = vmatpush1.bf16.msra.mxu0 0
        %2161 = vmatprep.subr.bf16.mxu0 0
        %2162 = vmatpush1.bf16.msra.mxu0 0
        %2163 = vmatprep.subr.bf16.mxu0 0
        %2164 = vmatpush1.bf16.msra.mxu0 0
        %2165 = vmatprep.subr.bf16.mxu0 0
        %2166 = vmatpush1.bf16.msra.mxu0 0
        %2167 = vmatprep.subr.bf16.mxu0 0
        %2168 = vmatpush1.bf16.msra.mxu0 0
        %2169 = vmatprep.subr.bf16.mxu0 0
        %2170 = vmatpush1.bf16.msra.mxu0 0
        %2171 = vmatprep.subr.bf16.mxu0 0
        %2172 = vmatpush1.bf16.msra.mxu0 0
        %2173 = vmatprep.subr.bf16.mxu0 0
        %2174 = vmatpush1.bf16.msra.mxu0 0
        %2175 = vmatprep.subr.bf16.mxu0 0
        %2176 = vmatpush1.bf16.msra.mxu0 0
        %2177 = vmatprep.subr.bf16.mxu0 0
        %2178 = vmatpush1.bf16.msra.mxu0 0
        %2179 = vmatprep.subr.bf16.mxu0 0
        %2180 = vmatpush1.bf16.msra.mxu0 0
        %2181 = vmatprep.subr.bf16.mxu0 0
        %2182 = vmatpush1.bf16.msra.mxu0 0
        %2183 = vmatprep.subr.bf16.mxu0 0
        %2184 = vmatpush1.bf16.msra.mxu0 0
        %2185 = vmatprep.subr.bf16.mxu0 0
        %2186 = vmatpush1.bf16.msra.mxu0 0
        %2187 = vmatprep.subr.bf16.mxu0 0
        %2188 = vmatpush1.bf16.msra.mxu0 0
        %2189 = vmatprep.mubr.bf16.mxu0 0
        %2190 = vmatmul.mubr.bf16.gmra.mrb[0].mxu0 %v2152
        %v2191 = vpop.f32.mrb[0].mxu0
        %v2192 = vadd.f32 0.0, %v2191
        %v2193 = vpop.f32.mrb[0].mxu0
        %v2194 = vpop.f32.mrb[0].mxu0
        %v2195 = vpop.f32.mrb[0].mxu0
        %2196 = vdwg.mxu0
        %v2197 = vpack.c.bf16 %v2192, %v2192
        %s2198 = scalar_lea.vmem %s10, 32
        %v2199 = vld [vmem:[%s2198] sm:$0xf]
        %v2200 = vld [vmem:[%s2198 + $0x4] sm:$0xf]
        %v2201 = vld [vmem:[%s2198 + $0x8] sm:$0xf]
        %v2202 = vld [vmem:[%s2198 + $0xc] sm:$0xf]
        %v2207 = vunpack.c.l.b16 %v2199
        %v2208 = vunpack.c.l.b16 %v2200
        %v2209 = vunpack.c.l.b16 %v2201
        %v2210 = vunpack.c.l.b16 %v2202
        %v2211 = vpack.c.b16 %v2208, %v2207
        %v2212 = vpack.c.b16 %v2210, %v2209
        %v2216 = vsel %vm1074, %v2197, 0
        %2218 = vmatprep.subr.bf16.mxu0 0
        %2219 = vmatpush1.bf16.msra.mxu0 %v2211
        %2220 = vmatprep.subr.bf16.mxu0 0
        %2221 = vmatpush1.bf16.msra.mxu0 %v2212
        %2222 = vmatprep.subr.bf16.mxu0 0
        %2223 = vmatpush1.bf16.msra.mxu0 0
        %2224 = vmatprep.subr.bf16.mxu0 0
        %2225 = vmatpush1.bf16.msra.mxu0 0
        %2226 = vmatprep.subr.bf16.mxu0 0
        %2227 = vmatpush1.bf16.msra.mxu0 0
        %2228 = vmatprep.subr.bf16.mxu0 0
        %2229 = vmatpush1.bf16.msra.mxu0 0
        %2230 = vmatprep.subr.bf16.mxu0 0
        %2231 = vmatpush1.bf16.msra.mxu0 0
        %2232 = vmatprep.subr.bf16.mxu0 0
        %2233 = vmatpush1.bf16.msra.mxu0 0
        %2234 = vmatprep.subr.bf16.mxu0 0
        %2235 = vmatpush1.bf16.msra.mxu0 0
        %2236 = vmatprep.subr.bf16.mxu0 0
        %2237 = vmatpush1.bf16.msra.mxu0 0
        %2238 = vmatprep.subr.bf16.mxu0 0
        %2239 = vmatpush1.bf16.msra.mxu0 0
        %2240 = vmatprep.subr.bf16.mxu0 0
        %2241 = vmatpush1.bf16.msra.mxu0 0
        %2242 = vmatprep.subr.bf16.mxu0 0
        %2243 = vmatpush1.bf16.msra.mxu0 0
        %2244 = vmatprep.subr.bf16.mxu0 0
        %2245 = vmatpush1.bf16.msra.mxu0 0
        %2246 = vmatprep.subr.bf16.mxu0 0
        %2247 = vmatpush1.bf16.msra.mxu0 0
        %2248 = vmatprep.subr.bf16.mxu0 0
        %2249 = vmatpush1.bf16.msra.mxu0 0
        %2250 = vmatprep.mubr.bf16.mxu0 0
        %2251 = vmatmul.mubr.bf16.gmra.mrb[0].mxu0 %v2216
        %v2252 = vpop.f32.mrb[0].mxu0
        %v2253 = vadd.f32 0.0, %v2252
        %v2254 = vpop.f32.mrb[0].mxu0
        %v2255 = vpop.f32.mrb[0].mxu0
        %v2256 = vpop.f32.mrb[0].mxu0
        %2257 = vdwg.mxu0
        %v2258 = vadd.f32 %v1745, %v2253
        %s2259 = scalar_lea.vmem %s4, 192
        %v2260 = vld [vmem:[%s2259] sm:$0xf]
        %v2261 = vld [vmem:[%s2259 + $0x4] sm:$0xf]
        %v2262 = vld [vmem:[%s2259 + $0x8] sm:$0xf]
        %v2263 = vld [vmem:[%s2259 + $0xc] sm:$0xf]
        %v2264 = vld [vmem:[%s2259 + $0x10] sm:$0xf]
        %v2265 = vld [vmem:[%s2259 + $0x14] sm:$0xf]
        %v2266 = vld [vmem:[%s2259 + $0x18] sm:$0xf]
        %v2267 = vld [vmem:[%s2259 + $0x1c] sm:$0xf]
        %v2268 = vld [vmem:[%s2259 + $0x20] sm:$0xf]
        %v2269 = vld [vmem:[%s2259 + $0x24] sm:$0xf]
        %v2270 = vld [vmem:[%s2259 + $0x28] sm:$0xf]
        %v2271 = vld [vmem:[%s2259 + $0x2c] sm:$0xf]
        %v2272 = vld [vmem:[%s2259 + $0x30] sm:$0xf]
        %v2273 = vld [vmem:[%s2259 + $0x34] sm:$0xf]
        %v2274 = vld [vmem:[%s2259 + $0x38] sm:$0xf]
        %v2275 = vld [vmem:[%s2259 + $0x3c] sm:$0xf]
        %s2276 = scalar_lea.vmem %s5, 3
        %v2277 = vld [vmem:[%s2276] sm:$0x1]
        %v2279 = vlaneseq
        %v2280 = vshrl.u32 %v2279, 7
        %v2281 = vsub.s32 0, %v2280
        %v2282 = vrot.slane %v2277, %v2281
        %v2300 = vunpack.c.l.b16 %v2260
        %v2301 = vunpack.c.l.b16 %v2261
        %v2302 = vunpack.c.l.b16 %v2262
        %v2303 = vunpack.c.l.b16 %v2263
        %v2304 = vunpack.c.l.b16 %v2264
        %v2305 = vunpack.c.l.b16 %v2265
        %v2306 = vunpack.c.l.b16 %v2266
        %v2307 = vunpack.c.l.b16 %v2267
        %v2308 = vunpack.c.l.b16 %v2268
        %v2309 = vunpack.c.l.b16 %v2269
        %v2310 = vunpack.c.l.b16 %v2270
        %v2311 = vunpack.c.l.b16 %v2271
        %v2312 = vunpack.c.l.b16 %v2272
        %v2313 = vunpack.c.l.b16 %v2273
        %v2314 = vunpack.c.l.b16 %v2274
        %v2315 = vunpack.c.l.b16 %v2275
        %v2316 = vpack.c.b16 %v2301, %v2300
        %v2317 = vpack.c.b16 %v2303, %v2302
        %v2318 = vpack.c.b16 %v2305, %v2304
        %v2319 = vpack.c.b16 %v2307, %v2306
        %v2320 = vpack.c.b16 %v2309, %v2308
        %v2321 = vpack.c.b16 %v2311, %v2310
        %v2322 = vpack.c.b16 %v2313, %v2312
        %v2323 = vpack.c.b16 %v2315, %v2314
        %2332 = vmatprep.subr.bf16.mxu0 0
        %2333 = vmatpush1.bf16.msra.mxu0 %v2316
        %2334 = vmatprep.subr.bf16.mxu0 0
        %2335 = vmatpush1.bf16.msra.mxu0 %v2317
        %2336 = vmatprep.subr.bf16.mxu0 0
        %2337 = vmatpush1.bf16.msra.mxu0 %v2318
        %2338 = vmatprep.subr.bf16.mxu0 0
        %2339 = vmatpush1.bf16.msra.mxu0 %v2319
        %2340 = vmatprep.subr.bf16.mxu0 0
        %2341 = vmatpush1.bf16.msra.mxu0 %v2320
        %2342 = vmatprep.subr.bf16.mxu0 0
        %2343 = vmatpush1.bf16.msra.mxu0 %v2321
        %2344 = vmatprep.subr.bf16.mxu0 0
        %2345 = vmatpush1.bf16.msra.mxu0 %v2322
        %2346 = vmatprep.subr.bf16.mxu0 0
        %2347 = vmatpush1.bf16.msra.mxu0 %v2323
        %2348 = vmatprep.subr.bf16.mxu0 0
        %2349 = vmatpush1.bf16.msra.mxu0 0
        %2350 = vmatprep.subr.bf16.mxu0 0
        %2351 = vmatpush1.bf16.msra.mxu0 0
        %2352 = vmatprep.subr.bf16.mxu0 0
        %2353 = vmatpush1.bf16.msra.mxu0 0
        %2354 = vmatprep.subr.bf16.mxu0 0
        %2355 = vmatpush1.bf16.msra.mxu0 0
        %2356 = vmatprep.subr.bf16.mxu0 0
        %2357 = vmatpush1.bf16.msra.mxu0 0
        %2358 = vmatprep.subr.bf16.mxu0 0
        %2359 = vmatpush1.bf16.msra.mxu0 0
        %2360 = vmatprep.subr.bf16.mxu0 0
        %2361 = vmatpush1.bf16.msra.mxu0 0
        %2362 = vmatprep.subr.bf16.mxu0 0
        %2363 = vmatpush1.bf16.msra.mxu0 0
        %2364 = vmatprep.mubr.bf16.mxu0 0
        %2365 = vmatmul.mubr.bf16.gmra.mrb[0].mxu0 %v737
        %v2366 = vpop.f32.mrb[0].mxu0
        %v2367 = vadd.f32 %v2282, %v2366
        %v2368 = vpop.f32.mrb[0].mxu0
        %v2369 = vpop.f32.mrb[0].mxu0
        %v2370 = vpop.f32.mrb[0].mxu0
        %2371 = vdwg.mxu0
        %s2372 = scalar_lea.vmem %s6, 192
        %v2373 = vld [vmem:[%s2372] sm:$0xf]
        %v2374 = vld [vmem:[%s2372 + $0x4] sm:$0xf]
        %v2375 = vld [vmem:[%s2372 + $0x8] sm:$0xf]
        %v2376 = vld [vmem:[%s2372 + $0xc] sm:$0xf]
        %v2377 = vld [vmem:[%s2372 + $0x10] sm:$0xf]
        %v2378 = vld [vmem:[%s2372 + $0x14] sm:$0xf]
        %v2379 = vld [vmem:[%s2372 + $0x18] sm:$0xf]
        %v2380 = vld [vmem:[%s2372 + $0x1c] sm:$0xf]
        %v2381 = vld [vmem:[%s2372 + $0x20] sm:$0xf]
        %v2382 = vld [vmem:[%s2372 + $0x24] sm:$0xf]
        %v2383 = vld [vmem:[%s2372 + $0x28] sm:$0xf]
        %v2384 = vld [vmem:[%s2372 + $0x2c] sm:$0xf]
        %v2385 = vld [vmem:[%s2372 + $0x30] sm:$0xf]
        %v2386 = vld [vmem:[%s2372 + $0x34] sm:$0xf]
        %v2387 = vld [vmem:[%s2372 + $0x38] sm:$0xf]
        %v2388 = vld [vmem:[%s2372 + $0x3c] sm:$0xf]
        %s2389 = scalar_lea.vmem %s7, 3
        %v2390 = vld [vmem:[%s2389] sm:$0x1]
        %v2392 = vlaneseq
        %v2393 = vshrl.u32 %v2392, 7
        %v2394 = vsub.s32 0, %v2393
        %v2395 = vrot.slane %v2390, %v2394
        %v2413 = vunpack.c.l.b16 %v2373
        %v2414 = vunpack.c.l.b16 %v2374
        %v2415 = vunpack.c.l.b16 %v2375
        %v2416 = vunpack.c.l.b16 %v2376
        %v2417 = vunpack.c.l.b16 %v2377
        %v2418 = vunpack.c.l.b16 %v2378
        %v2419 = vunpack.c.l.b16 %v2379
        %v2420 = vunpack.c.l.b16 %v2380
        %v2421 = vunpack.c.l.b16 %v2381
        %v2422 = vunpack.c.l.b16 %v2382
        %v2423 = vunpack.c.l.b16 %v2383
        %v2424 = vunpack.c.l.b16 %v2384
        %v2425 = vunpack.c.l.b16 %v2385
        %v2426 = vunpack.c.l.b16 %v2386
        %v2427 = vunpack.c.l.b16 %v2387
        %v2428 = vunpack.c.l.b16 %v2388
        %v2429 = vpack.c.b16 %v2414, %v2413
        %v2430 = vpack.c.b16 %v2416, %v2415
        %v2431 = vpack.c.b16 %v2418, %v2417
        %v2432 = vpack.c.b16 %v2420, %v2419
        %v2433 = vpack.c.b16 %v2422, %v2421
        %v2434 = vpack.c.b16 %v2424, %v2423
        %v2435 = vpack.c.b16 %v2426, %v2425
        %v2436 = vpack.c.b16 %v2428, %v2427
        %2445 = vmatprep.subr.bf16.mxu0 0
        %2446 = vmatpush1.bf16.msra.mxu0 %v2429
        %2447 = vmatprep.subr.bf16.mxu0 0
        %2448 = vmatpush1.bf16.msra.mxu0 %v2430
        %2449 = vmatprep.subr.bf16.mxu0 0
        %2450 = vmatpush1.bf16.msra.mxu0 %v2431
        %2451 = vmatprep.subr.bf16.mxu0 0
        %2452 = vmatpush1.bf16.msra.mxu0 %v2432
        %2453 = vmatprep.subr.bf16.mxu0 0
        %2454 = vmatpush1.bf16.msra.mxu0 %v2433
        %2455 = vmatprep.subr.bf16.mxu0 0
        %2456 = vmatpush1.bf16.msra.mxu0 %v2434
        %2457 = vmatprep.subr.bf16.mxu0 0
        %2458 = vmatpush1.bf16.msra.mxu0 %v2435
        %2459 = vmatprep.subr.bf16.mxu0 0
        %2460 = vmatpush1.bf16.msra.mxu0 %v2436
        %2461 = vmatprep.subr.bf16.mxu0 0
        %2462 = vmatpush1.bf16.msra.mxu0 0
        %2463 = vmatprep.subr.bf16.mxu0 0
        %2464 = vmatpush1.bf16.msra.mxu0 0
        %2465 = vmatprep.subr.bf16.mxu0 0
        %2466 = vmatpush1.bf16.msra.mxu0 0
        %2467 = vmatprep.subr.bf16.mxu0 0
        %2468 = vmatpush1.bf16.msra.mxu0 0
        %2469 = vmatprep.subr.bf16.mxu0 0
        %2470 = vmatpush1.bf16.msra.mxu0 0
        %2471 = vmatprep.subr.bf16.mxu0 0
        %2472 = vmatpush1.bf16.msra.mxu0 0
        %2473 = vmatprep.subr.bf16.mxu0 0
        %2474 = vmatpush1.bf16.msra.mxu0 0
        %2475 = vmatprep.subr.bf16.mxu0 0
        %2476 = vmatpush1.bf16.msra.mxu0 0
        %2477 = vmatprep.mubr.bf16.mxu0 0
        %2478 = vmatmul.mubr.bf16.gmra.mrb[0].mxu0 %v737
        %v2479 = vpop.f32.mrb[0].mxu0
        %v2480 = vadd.f32 %v2395, %v2479
        %v2481 = vpop.f32.mrb[0].mxu0
        %v2482 = vpop.f32.mrb[0].mxu0
        %v2483 = vpop.f32.mrb[0].mxu0
        %2484 = vdwg.mxu0
        %s2485 = scalar_lea.vmem %s8, 192
        %v2486 = vld [vmem:[%s2485] sm:$0xf]
        %v2487 = vld [vmem:[%s2485 + $0x4] sm:$0xf]
        %v2488 = vld [vmem:[%s2485 + $0x8] sm:$0xf]
        %v2489 = vld [vmem:[%s2485 + $0xc] sm:$0xf]
        %v2490 = vld [vmem:[%s2485 + $0x10] sm:$0xf]
        %v2491 = vld [vmem:[%s2485 + $0x14] sm:$0xf]
        %v2492 = vld [vmem:[%s2485 + $0x18] sm:$0xf]
        %v2493 = vld [vmem:[%s2485 + $0x1c] sm:$0xf]
        %v2494 = vld [vmem:[%s2485 + $0x20] sm:$0xf]
        %v2495 = vld [vmem:[%s2485 + $0x24] sm:$0xf]
        %v2496 = vld [vmem:[%s2485 + $0x28] sm:$0xf]
        %v2497 = vld [vmem:[%s2485 + $0x2c] sm:$0xf]
        %v2498 = vld [vmem:[%s2485 + $0x30] sm:$0xf]
        %v2499 = vld [vmem:[%s2485 + $0x34] sm:$0xf]
        %v2500 = vld [vmem:[%s2485 + $0x38] sm:$0xf]
        %v2501 = vld [vmem:[%s2485 + $0x3c] sm:$0xf]
        %s2502 = scalar_lea.vmem %s9, 3
        %v2503 = vld [vmem:[%s2502] sm:$0x1]
        %v2505 = vlaneseq
        %v2506 = vshrl.u32 %v2505, 7
        %v2507 = vsub.s32 0, %v2506
        %v2508 = vrot.slane %v2503, %v2507
        %v2526 = vunpack.c.l.b16 %v2486
        %v2527 = vunpack.c.l.b16 %v2487
        %v2528 = vunpack.c.l.b16 %v2488
        %v2529 = vunpack.c.l.b16 %v2489
        %v2530 = vunpack.c.l.b16 %v2490
        %v2531 = vunpack.c.l.b16 %v2491
        %v2532 = vunpack.c.l.b16 %v2492
        %v2533 = vunpack.c.l.b16 %v2493
        %v2534 = vunpack.c.l.b16 %v2494
        %v2535 = vunpack.c.l.b16 %v2495
        %v2536 = vunpack.c.l.b16 %v2496
        %v2537 = vunpack.c.l.b16 %v2497
        %v2538 = vunpack.c.l.b16 %v2498
        %v2539 = vunpack.c.l.b16 %v2499
        %v2540 = vunpack.c.l.b16 %v2500
        %v2541 = vunpack.c.l.b16 %v2501
        %v2542 = vpack.c.b16 %v2527, %v2526
        %v2543 = vpack.c.b16 %v2529, %v2528
        %v2544 = vpack.c.b16 %v2531, %v2530
        %v2545 = vpack.c.b16 %v2533, %v2532
        %v2546 = vpack.c.b16 %v2535, %v2534
        %v2547 = vpack.c.b16 %v2537, %v2536
        %v2548 = vpack.c.b16 %v2539, %v2538
        %v2549 = vpack.c.b16 %v2541, %v2540
        %2558 = vmatprep.subr.bf16.mxu0 0
        %2559 = vmatpush1.bf16.msra.mxu0 %v2542
        %2560 = vmatprep.subr.bf16.mxu0 0
        %2561 = vmatpush1.bf16.msra.mxu0 %v2543
        %2562 = vmatprep.subr.bf16.mxu0 0
        %2563 = vmatpush1.bf16.msra.mxu0 %v2544
        %2564 = vmatprep.subr.bf16.mxu0 0
        %2565 = vmatpush1.bf16.msra.mxu0 %v2545
        %2566 = vmatprep.subr.bf16.mxu0 0
        %2567 = vmatpush1.bf16.msra.mxu0 %v2546
        %2568 = vmatprep.subr.bf16.mxu0 0
        %2569 = vmatpush1.bf16.msra.mxu0 %v2547
        %2570 = vmatprep.subr.bf16.mxu0 0
        %2571 = vmatpush1.bf16.msra.mxu0 %v2548
        %2572 = vmatprep.subr.bf16.mxu0 0
        %2573 = vmatpush1.bf16.msra.mxu0 %v2549
        %2574 = vmatprep.subr.bf16.mxu0 0
        %2575 = vmatpush1.bf16.msra.mxu0 0
        %2576 = vmatprep.subr.bf16.mxu0 0
        %2577 = vmatpush1.bf16.msra.mxu0 0
        %2578 = vmatprep.subr.bf16.mxu0 0
        %2579 = vmatpush1.bf16.msra.mxu0 0
        %2580 = vmatprep.subr.bf16.mxu0 0
        %2581 = vmatpush1.bf16.msra.mxu0 0
        %2582 = vmatprep.subr.bf16.mxu0 0
        %2583 = vmatpush1.bf16.msra.mxu0 0
        %2584 = vmatprep.subr.bf16.mxu0 0
        %2585 = vmatpush1.bf16.msra.mxu0 0
        %2586 = vmatprep.subr.bf16.mxu0 0
        %2587 = vmatpush1.bf16.msra.mxu0 0
        %2588 = vmatprep.subr.bf16.mxu0 0
        %2589 = vmatpush1.bf16.msra.mxu0 0
        %2590 = vmatprep.mubr.bf16.mxu0 0
        %2591 = vmatmul.mubr.bf16.gmra.mrb[0].mxu0 %v737
        %v2592 = vpop.f32.mrb[0].mxu0
        %v2593 = vadd.f32 %v2508, %v2592
        %v2594 = vpop.f32.mrb[0].mxu0
        %v2595 = vpop.f32.mrb[0].mxu0
        %v2596 = vpop.f32.mrb[0].mxu0
        %2597 = vdwg.mxu0
        %v2598 = vmul.f32 %v2367, 0.17677669
        %v2599 = vpack.c.bf16 %v2598, %v2598
        %v2600 = vpack.c.bf16 %v2480, %v2480
        %v2602 = vsel %vm1074, %v2599, 0
        %v2605 = vsel %vm1074, %v2600, 0
        %2607 = vmatprep.subr.bf16.mxu0 0
        %2608 = vmatpush1.bf16.xpose.msra.mxu0 %v2605
        %2609 = vmatprep.subr.bf16.mxu0 0
        %2610 = vmatpush1.bf16.xpose.msra.mxu0 0
        %2611 = vmatprep.subr.bf16.mxu0 0
        %2612 = vmatpush1.bf16.xpose.msra.mxu0 0
        %2613 = vmatprep.subr.bf16.mxu0 0
        %2614 = vmatpush1.bf16.xpose.msra.mxu0 0
        %2615 = vmatprep.subr.bf16.mxu0 0
        %2616 = vmatpush1.bf16.xpose.msra.mxu0 0
        %2617 = vmatprep.subr.bf16.mxu0 0
        %2618 = vmatpush1.bf16.xpose.msra.mxu0 0
        %2619 = vmatprep.subr.bf16.mxu0 0
        %2620 = vmatpush1.bf16.xpose.msra.mxu0 0
        %2621 = vmatprep.subr.bf16.mxu0 0
        %2622 = vmatpush1.bf16.xpose.msra.mxu0 0
        %2623 = vmatprep.subr.bf16.mxu0 0
        %2624 = vmatpush1.bf16.xpose.msra.mxu0 0
        %2625 = vmatprep.subr.bf16.mxu0 0
        %2626 = vmatpush1.bf16.xpose.msra.mxu0 0
        %2627 = vmatprep.subr.bf16.mxu0 0
        %2628 = vmatpush1.bf16.xpose.msra.mxu0 0
        %2629 = vmatprep.subr.bf16.mxu0 0
        %2630 = vmatpush1.bf16.xpose.msra.mxu0 0
        %2631 = vmatprep.subr.bf16.mxu0 0
        %2632 = vmatpush1.bf16.xpose.msra.mxu0 0
        %2633 = vmatprep.subr.bf16.mxu0 0
        %2634 = vmatpush1.bf16.xpose.msra.mxu0 0
        %2635 = vmatprep.subr.bf16.mxu0 0
        %2636 = vmatpush1.bf16.xpose.msra.mxu0 0
        %2637 = vmatprep.subr.bf16.mxu0 0
        %2638 = vmatpush1.bf16.xpose.msra.mxu0 0
        %2639 = vmatprep.mubr.bf16.mxu0 0
        %2640 = vmatmul.mubr.bf16.gmra.mrb[0].mxu0 %v2602
        %v2641 = vpop.f32.mrb[0].mxu0
        %v2642 = vadd.f32 %v708, %v2641
        %v2643 = vpop.f32.mrb[0].mxu0
        %v2644 = vpop.f32.mrb[0].mxu0
        %v2645 = vpop.f32.mrb[0].mxu0
        %2646 = vdwg.mxu0
        %v2647 = vsel %vm1121, %v2642, -inf
        %2648 = vmax.xlane.f32.xlu0 %v2647
        %v2649 = vpop.xlane.xlu0 %2648
        %v2650 = vsub.f32 %v2642, %v2649
        %v2651 = vmul.f32 %v2650, 1.442695
        %v2652 = vpow.pop %v2651
        %v2653 = vsel %vm1121, %v2652, 0.0
        %2654 = vadd.xlane.f32.xlu0 %v2653
        %v2655 = vpop.xlane.xlu0 %2654
        %v2656 = vrcp.pop %v2655
        %v2657 = vmul.f32 %v2652, %v2656
        %v2658 = vpack.c.bf16 %v2657, %v2657
        %v2659 = vpack.c.bf16 %v2593, %v2593
        %v2661 = vsel %vm1121, %v2658, 0
        %v2664 = vsel %vm1138, %v2659, 0
        %2666 = vmatprep.subr.bf16.mxu0 0
        %2667 = vmatpush1.bf16.msra.mxu0 %v2664
        %2668 = vmatprep.subr.bf16.mxu0 0
        %2669 = vmatpush1.bf16.msra.mxu0 0
        %2670 = vmatprep.subr.bf16.mxu0 0
        %2671 = vmatpush1.bf16.msra.mxu0 0
        %2672 = vmatprep.subr.bf16.mxu0 0
        %2673 = vmatpush1.bf16.msra.mxu0 0
        %2674 = vmatprep.subr.bf16.mxu0 0
        %2675 = vmatpush1.bf16.msra.mxu0 0
        %2676 = vmatprep.subr.bf16.mxu0 0
        %2677 = vmatpush1.bf16.msra.mxu0 0
        %2678 = vmatprep.subr.bf16.mxu0 0
        %2679 = vmatpush1.bf16.msra.mxu0 0
        %2680 = vmatprep.subr.bf16.mxu0 0
        %2681 = vmatpush1.bf16.msra.mxu0 0
        %2682 = vmatprep.subr.bf16.mxu0 0
        %2683 = vmatpush1.bf16.msra.mxu0 0
        %2684 = vmatprep.subr.bf16.mxu0 0
        %2685 = vmatpush1.bf16.msra.mxu0 0
        %2686 = vmatprep.subr.bf16.mxu0 0
        %2687 = vmatpush1.bf16.msra.mxu0 0
        %2688 = vmatprep.subr.bf16.mxu0 0
        %2689 = vmatpush1.bf16.msra.mxu0 0
        %2690 = vmatprep.subr.bf16.mxu0 0
        %2691 = vmatpush1.bf16.msra.mxu0 0
        %2692 = vmatprep.subr.bf16.mxu0 0
        %2693 = vmatpush1.bf16.msra.mxu0 0
        %2694 = vmatprep.subr.bf16.mxu0 0
        %2695 = vmatpush1.bf16.msra.mxu0 0
        %2696 = vmatprep.subr.bf16.mxu0 0
        %2697 = vmatpush1.bf16.msra.mxu0 0
        %2698 = vmatprep.mubr.bf16.mxu0 0
        %2699 = vmatmul.mubr.bf16.gmra.mrb[0].mxu0 %v2661
        %v2700 = vpop.f32.mrb[0].mxu0
        %v2701 = vadd.f32 0.0, %v2700
        %v2702 = vpop.f32.mrb[0].mxu0
        %v2703 = vpop.f32.mrb[0].mxu0
        %v2704 = vpop.f32.mrb[0].mxu0
        %2705 = vdwg.mxu0
        %v2706 = vpack.c.bf16 %v2701, %v2701
        %s2707 = scalar_lea.vmem %s10, 48
        %v2708 = vld [vmem:[%s2707] sm:$0xf]
        %v2709 = vld [vmem:[%s2707 + $0x4] sm:$0xf]
        %v2710 = vld [vmem:[%s2707 + $0x8] sm:$0xf]
        %v2711 = vld [vmem:[%s2707 + $0xc] sm:$0xf]
        %v2716 = vunpack.c.l.b16 %v2708
        %v2717 = vunpack.c.l.b16 %v2709
        %v2718 = vunpack.c.l.b16 %v2710
        %v2719 = vunpack.c.l.b16 %v2711
        %v2720 = vpack.c.b16 %v2717, %v2716
        %v2721 = vpack.c.b16 %v2719, %v2718
        %v2725 = vsel %vm1074, %v2706, 0
        %2727 = vmatprep.subr.bf16.mxu0 0
        %2728 = vmatpush1.bf16.msra.mxu0 %v2720
        %2729 = vmatprep.subr.bf16.mxu0 0
        %2730 = vmatpush1.bf16.msra.mxu0 %v2721
        %2731 = vmatprep.subr.bf16.mxu0 0
        %2732 = vmatpush1.bf16.msra.mxu0 0
        %2733 = vmatprep.subr.bf16.mxu0 0
        %2734 = vmatpush1.bf16.msra.mxu0 0
        %2735 = vmatprep.subr.bf16.mxu0 0
        %2736 = vmatpush1.bf16.msra.mxu0 0
        %2737 = vmatprep.subr.bf16.mxu0 0
        %2738 = vmatpush1.bf16.msra.mxu0 0
        %2739 = vmatprep.subr.bf16.mxu0 0
        %2740 = vmatpush1.bf16.msra.mxu0 0
        %2741 = vmatprep.subr.bf16.mxu0 0
        %2742 = vmatpush1.bf16.msra.mxu0 0
        %2743 = vmatprep.subr.bf16.mxu0 0
        %2744 = vmatpush1.bf16.msra.mxu0 0
        %2745 = vmatprep.subr.bf16.mxu0 0
        %2746 = vmatpush1.bf16.msra.mxu0 0
        %2747 = vmatprep.subr.bf16.mxu0 0
        %2748 = vmatpush1.bf16.msra.mxu0 0
        %2749 = vmatprep.subr.bf16.mxu0 0
        %2750 = vmatpush1.bf16.msra.mxu0 0
        %2751 = vmatprep.subr.bf16.mxu0 0
        %2752 = vmatpush1.bf16.msra.mxu0 0
        %2753 = vmatprep.subr.bf16.mxu0 0
        %2754 = vmatpush1.bf16.msra.mxu0 0
        %2755 = vmatprep.subr.bf16.mxu0 0
        %2756 = vmatpush1.bf16.msra.mxu0 0
        %2757 = vmatprep.subr.bf16.mxu0 0
        %2758 = vmatpush1.bf16.msra.mxu0 0
        %2759 = vmatprep.mubr.bf16.mxu0 0
        %2760 = vmatmul.mubr.bf16.gmra.mrb[0].mxu0 %v2725
        %v2761 = vpop.f32.mrb[0].mxu0
        %v2762 = vadd.f32 0.0, %v2761
        %v2763 = vpop.f32.mrb[0].mxu0
        %v2764 = vpop.f32.mrb[0].mxu0
        %v2765 = vpop.f32.mrb[0].mxu0
        %2766 = vdwg.mxu0
        %v2767 = vadd.f32 %v2258, %v2762
        %v2768 = vadd.f32 %v694, %v2767
        %v2769 = vld [vmem:[%s11] sm:$0x1]
        %v2771 = vlaneseq
        %v2772 = vshrl.u32 %v2771, 7
        %v2773 = vsub.s32 0, %v2772
        %v2774 = vrot.slane %v2769, %v2773
        %v2776 = vadd.f32 %v2768, %v2774
        %v2777 = vld [vmem:[%s12] sm:$0x1]
        %v2778 = vld [vmem:[%s13] sm:$0x1]
        %2779 = vadd.xlane.f32.xlu0 %v2776
        %v2780 = vpop.xlane.xlu0 %2779
        %v2781 = vmul.f32 %v2780, %v713
        %v2782 = vsub.f32 %v2776, %v2781
        %v2783 = vmul.f32 %v2782, %v2782
        %2784 = vadd.xlane.f32.xlu0 %v2783
        %v2785 = vpop.xlane.xlu0 %2784
        %v2786 = vmul.f32 %v2785, %v713
        %v2787 = vadd.f32 %v2786, 1e-05
        %v2788 = vrsqrt.pop %v2787
        %v2789 = vmul.f32 %v2782, %v2788
        %v2791 = vlaneseq
        %v2792 = vshrl.u32 %v2791, 7
        %v2793 = vsub.s32 0, %v2792
        %v2794 = vrot.slane %v2777, %v2793
        %v2796 = vmul.f32 %v2789, %v2794
        %v2798 = vlaneseq
        %v2799 = vshrl.u32 %v2798, 7
        %v2800 = vsub.s32 0, %v2799
        %v2801 = vrot.slane %v2778, %v2800
        %v2803 = vadd.f32 %v2796, %v2801
        %v2804 = vpack.c.bf16 %v2803, %v2803
        %v2805 = vld [vmem:[%s14] sm:$0xff]
        %v2806 = vld [vmem:[%s14 + $0x8] sm:$0xff]
        %v2807 = vld [vmem:[%s14 + $0x10] sm:$0xff]
        %v2808 = vld [vmem:[%s14 + $0x18] sm:$0xff]
        %v2809 = vld [vmem:[%s14 + $0x20] sm:$0xff]
        %v2810 = vld [vmem:[%s14 + $0x28] sm:$0xff]
        %v2811 = vld [vmem:[%s14 + $0x30] sm:$0xff]
        %v2812 = vld [vmem:[%s14 + $0x38] sm:$0xff]
        %v2813 = vld [vmem:[%s14 + $0x40] sm:$0xff]
        %v2814 = vld [vmem:[%s14 + $0x48] sm:$0xff]
        %v2815 = vld [vmem:[%s14 + $0x50] sm:$0xff]
        %v2816 = vld [vmem:[%s14 + $0x58] sm:$0xff]
        %v2817 = vld [vmem:[%s14 + $0x60] sm:$0xff]
        %v2818 = vld [vmem:[%s14 + $0x68] sm:$0xff]
        %v2819 = vld [vmem:[%s14 + $0x70] sm:$0xff]
        %v2820 = vld [vmem:[%s14 + $0x78] sm:$0xff]
        %v2821 = vld [vmem:[%s15] sm:$0x3]
        %v2823 = vlaneseq
        %v2824 = vshrl.u32 %v2823, 7
        %v2825 = vsub.s32 0, %v2824
        %v2826 = vrot.slane %v2821, %v2825
        %v2827 = vlaneseq
        %v2828 = vshrl.u32 %v2827, 7
        %v2829 = vsub.s32 1, %v2828
        %v2830 = vrot.slane %v2821, %v2829
        %v2849 = vunpack.c.l.b16 %v2805
        %v2850 = vunpack.c.h.b16 %v2805
        %v2851 = vunpack.c.l.b16 %v2806
        %v2852 = vunpack.c.h.b16 %v2806
        %v2853 = vunpack.c.l.b16 %v2807
        %v2854 = vunpack.c.h.b16 %v2807
        %v2855 = vunpack.c.l.b16 %v2808
        %v2856 = vunpack.c.h.b16 %v2808
        %v2857 = vunpack.c.l.b16 %v2809
        %v2858 = vunpack.c.h.b16 %v2809
        %v2859 = vunpack.c.l.b16 %v2810
        %v2860 = vunpack.c.h.b16 %v2810
        %v2861 = vunpack.c.l.b16 %v2811
        %v2862 = vunpack.c.h.b16 %v2811
        %v2863 = vunpack.c.l.b16 %v2812
        %v2864 = vunpack.c.h.b16 %v2812
        %v2865 = vunpack.c.l.b16 %v2813
        %v2866 = vunpack.c.h.b16 %v2813
        %v2867 = vunpack.c.l.b16 %v2814
        %v2868 = vunpack.c.h.b16 %v2814
        %v2869 = vunpack.c.l.b16 %v2815
        %v2870 = vunpack.c.h.b16 %v2815
        %v2871 = vunpack.c.l.b16 %v2816
        %v2872 = vunpack.c.h.b16 %v2816
        %v2873 = vunpack.c.l.b16 %v2817
        %v2874 = vunpack.c.h.b16 %v2817
        %v2875 = vunpack.c.l.b16 %v2818
        %v2876 = vunpack.c.h.b16 %v2818
        %v2877 = vunpack.c.l.b16 %v2819
        %v2878 = vunpack.c.h.b16 %v2819
        %v2879 = vunpack.c.l.b16 %v2820
        %v2880 = vunpack.c.h.b16 %v2820
        %v2881 = vpack.c.b16 %v2851, %v2849
        %v2882 = vpack.c.b16 %v2852, %v2850
        %v2883 = vpack.c.b16 %v2855, %v2853
        %v2884 = vpack.c.b16 %v2856, %v2854
        %v2885 = vpack.c.b16 %v2859, %v2857
        %v2886 = vpack.c.b16 %v2860, %v2858
        %v2887 = vpack.c.b16 %v2863, %v2861
        %v2888 = vpack.c.b16 %v2864, %v2862
        %v2889 = vpack.c.b16 %v2867, %v2865
        %v2890 = vpack.c.b16 %v2868, %v2866
        %v2891 = vpack.c.b16 %v2871, %v2869
        %v2892 = vpack.c.b16 %v2872, %v2870
        %v2893 = vpack.c.b16 %v2875, %v2873
        %v2894 = vpack.c.b16 %v2876, %v2874
        %v2895 = vpack.c.b16 %v2879, %v2877
        %v2896 = vpack.c.b16 %v2880, %v2878
        %2913 = vmatprep.subr.bf16.mxu0 %v2882
        %2914 = vmatpush1.bf16.msra.mxu0 %v2881
        %2915 = vmatprep.subr.bf16.mxu0 %v2884
        %2916 = vmatpush1.bf16.msra.mxu0 %v2883
        %2917 = vmatprep.subr.bf16.mxu0 %v2886
        %2918 = vmatpush1.bf16.msra.mxu0 %v2885
        %2919 = vmatprep.subr.bf16.mxu0 %v2888
        %2920 = vmatpush1.bf16.msra.mxu0 %v2887
        %2921 = vmatprep.subr.bf16.mxu0 %v2890
        %2922 = vmatpush1.bf16.msra.mxu0 %v2889
        %2923 = vmatprep.subr.bf16.mxu0 %v2892
        %2924 = vmatpush1.bf16.msra.mxu0 %v2891
        %2925 = vmatprep.subr.bf16.mxu0 %v2894
        %2926 = vmatpush1.bf16.msra.mxu0 %v2893
        %2927 = vmatprep.subr.bf16.mxu0 %v2896
        %2928 = vmatpush1.bf16.msra.mxu0 %v2895
        %2929 = vmatprep.subr.bf16.mxu0 0
        %2930 = vmatpush1.bf16.msra.mxu0 0
        %2931 = vmatprep.subr.bf16.mxu0 0
        %2932 = vmatpush1.bf16.msra.mxu0 0
        %2933 = vmatprep.subr.bf16.mxu0 0
        %2934 = vmatpush1.bf16.msra.mxu0 0
        %2935 = vmatprep.subr.bf16.mxu0 0
        %2936 = vmatpush1.bf16.msra.mxu0 0
        %2937 = vmatprep.subr.bf16.mxu0 0
        %2938 = vmatpush1.bf16.msra.mxu0 0
        %2939 = vmatprep.subr.bf16.mxu0 0
        %2940 = vmatpush1.bf16.msra.mxu0 0
        %2941 = vmatprep.subr.bf16.mxu0 0
        %2942 = vmatpush1.bf16.msra.mxu0 0
        %2943 = vmatprep.subr.bf16.mxu0 0
        %2944 = vmatpush1.bf16.msra.mxu0 0
        %2945 = vmatprep.mubr.bf16.mxu0 0
        %2946 = vmatmul.mubr.bf16.gmra.mrb[0].mxu0 %v2804
        %v2947 = vpop.f32.mrb[0].mxu0
        %v2948 = vadd.f32 %v2826, %v2947
        %v2949 = vpop.f32.mrb[0].mxu0
        %v2950 = vadd.f32 %v2830, %v2949
        %v2951 = vpop.f32.mrb[0].mxu0
        %v2952 = vpop.f32.mrb[0].mxu0
        %2953 = vdwg.mxu0
        %v2954 = vmul.f32 %v2948, %v2948
        %v2955 = vmul.f32 %v2950, %v2950
        %v2956 = vmul.f32 %v2948, %v2954
        %v2957 = vmul.f32 %v2950, %v2955
        %v2958 = vmul.f32 %v2956, 0.044715
        %v2959 = vmul.f32 %v2957, 0.044715
        %v2960 = vadd.f32 %v2948, %v2958
        %v2961 = vadd.f32 %v2950, %v2959
        %v2962 = vmul.f32 %v2960, 0.7978846
        %v2963 = vmul.f32 %v2961, 0.7978846
        %v2964 = vtanh.pop %v2962
        %v2965 = vtanh.pop %v2963
        %v2966 = vadd.f32 %v2964, 1.0
        %v2967 = vadd.f32 %v2965, 1.0
        %v2968 = vmul.f32 %v2966, 0.5
        %v2969 = vmul.f32 %v2967, 0.5
        %v2970 = vmul.f32 %v2948, %v2968
        %v2971 = vmul.f32 %v2950, %v2969
        %v2972 = vpack.c.bf16 %v2970, %v2970
        %v2973 = vpack.c.bf16 %v2971, %v2971
        %v2974 = vld [vmem:[%s16] sm:$0xf]
        %v2975 = vld [vmem:[%s16 + $0x4] sm:$0xf]
        %v2976 = vld [vmem:[%s16 + $0x8] sm:$0xf]
        %v2977 = vld [vmem:[%s16 + $0xc] sm:$0xf]
        %v2978 = vld [vmem:[%s16 + $0x10] sm:$0xf]
        %v2979 = vld [vmem:[%s16 + $0x14] sm:$0xf]
        %v2980 = vld [vmem:[%s16 + $0x18] sm:$0xf]
        %v2981 = vld [vmem:[%s16 + $0x1c] sm:$0xf]
        %v2982 = vld [vmem:[%s16 + $0x20] sm:$0xf]
        %v2983 = vld [vmem:[%s16 + $0x24] sm:$0xf]
        %v2984 = vld [vmem:[%s16 + $0x28] sm:$0xf]
        %v2985 = vld [vmem:[%s16 + $0x2c] sm:$0xf]
        %v2986 = vld [vmem:[%s16 + $0x30] sm:$0xf]
        %v2987 = vld [vmem:[%s16 + $0x34] sm:$0xf]
        %v2988 = vld [vmem:[%s16 + $0x38] sm:$0xf]
        %v2989 = vld [vmem:[%s16 + $0x3c] sm:$0xf]
        %v2990 = vld [vmem:[%s16 + $0x40] sm:$0xf]
        %v2991 = vld [vmem:[%s16 + $0x44] sm:$0xf]
        %v2992 = vld [vmem:[%s16 + $0x48] sm:$0xf]
        %v2993 = vld [vmem:[%s16 + $0x4c] sm:$0xf]
        %v2994 = vld [vmem:[%s16 + $0x50] sm:$0xf]
        %v2995 = vld [vmem:[%s16 + $0x54] sm:$0xf]
        %v2996 = vld [vmem:[%s16 + $0x58] sm:$0xf]
        %v2997 = vld [vmem:[%s16 + $0x5c] sm:$0xf]
        %v2998 = vld [vmem:[%s16 + $0x60] sm:$0xf]
        %v2999 = vld [vmem:[%s16 + $0x64] sm:$0xf]
        %v3000 = vld [vmem:[%s16 + $0x68] sm:$0xf]
        %v3001 = vld [vmem:[%s16 + $0x6c] sm:$0xf]
        %v3002 = vld [vmem:[%s16 + $0x70] sm:$0xf]
        %v3003 = vld [vmem:[%s16 + $0x74] sm:$0xf]
        %v3004 = vld [vmem:[%s16 + $0x78] sm:$0xf]
        %v3005 = vld [vmem:[%s16 + $0x7c] sm:$0xf]
        %v3038 = vunpack.c.l.b16 %v2974
        %v3039 = vunpack.c.l.b16 %v2975
        %v3040 = vunpack.c.l.b16 %v2976
        %v3041 = vunpack.c.l.b16 %v2977
        %v3042 = vunpack.c.l.b16 %v2978
        %v3043 = vunpack.c.l.b16 %v2979
        %v3044 = vunpack.c.l.b16 %v2980
        %v3045 = vunpack.c.l.b16 %v2981
        %v3046 = vunpack.c.l.b16 %v2982
        %v3047 = vunpack.c.l.b16 %v2983
        %v3048 = vunpack.c.l.b16 %v2984
        %v3049 = vunpack.c.l.b16 %v2985
        %v3050 = vunpack.c.l.b16 %v2986
        %v3051 = vunpack.c.l.b16 %v2987
        %v3052 = vunpack.c.l.b16 %v2988
        %v3053 = vunpack.c.l.b16 %v2989
        %v3054 = vunpack.c.l.b16 %v2990
        %v3055 = vunpack.c.l.b16 %v2991
        %v3056 = vunpack.c.l.b16 %v2992
        %v3057 = vunpack.c.l.b16 %v2993
        %v3058 = vunpack.c.l.b16 %v2994
        %v3059 = vunpack.c.l.b16 %v2995
        %v3060 = vunpack.c.l.b16 %v2996
        %v3061 = vunpack.c.l.b16 %v2997
        %v3062 = vunpack.c.l.b16 %v2998
        %v3063 = vunpack.c.l.b16 %v2999
        %v3064 = vunpack.c.l.b16 %v3000
        %v3065 = vunpack.c.l.b16 %v3001
        %v3066 = vunpack.c.l.b16 %v3002
        %v3067 = vunpack.c.l.b16 %v3003
        %v3068 = vunpack.c.l.b16 %v3004
        %v3069 = vunpack.c.l.b16 %v3005
        %v3070 = vpack.c.b16 %v3039, %v3038
        %v3071 = vpack.c.b16 %v3041, %v3040
        %v3072 = vpack.c.b16 %v3043, %v3042
        %v3073 = vpack.c.b16 %v3045, %v3044
        %v3074 = vpack.c.b16 %v3047, %v3046
        %v3075 = vpack.c.b16 %v3049, %v3048
        %v3076 = vpack.c.b16 %v3051, %v3050
        %v3077 = vpack.c.b16 %v3053, %v3052
        %v3078 = vpack.c.b16 %v3055, %v3054
        %v3079 = vpack.c.b16 %v3057, %v3056
        %v3080 = vpack.c.b16 %v3059, %v3058
        %v3081 = vpack.c.b16 %v3061, %v3060
        %v3082 = vpack.c.b16 %v3063, %v3062
        %v3083 = vpack.c.b16 %v3065, %v3064
        %v3084 = vpack.c.b16 %v3067, %v3066
        %v3085 = vpack.c.b16 %v3069, %v3068
        %3102 = vmatprep.subr.bf16.mxu0 0
        %3103 = vmatpush1.bf16.msra.mxu0 %v3070
        %3104 = vmatprep.subr.bf16.mxu0 0
        %3105 = vmatpush1.bf16.msra.mxu0 %v3071
        %3106 = vmatprep.subr.bf16.mxu0 0
        %3107 = vmatpush1.bf16.msra.mxu0 %v3072
        %3108 = vmatprep.subr.bf16.mxu0 0
        %3109 = vmatpush1.bf16.msra.mxu0 %v3073
        %3110 = vmatprep.subr.bf16.mxu0 0
        %3111 = vmatpush1.bf16.msra.mxu0 %v3074
        %3112 = vmatprep.subr.bf16.mxu0 0
        %3113 = vmatpush1.bf16.msra.mxu0 %v3075
        %3114 = vmatprep.subr.bf16.mxu0 0
        %3115 = vmatpush1.bf16.msra.mxu0 %v3076
        %3116 = vmatprep.subr.bf16.mxu0 0
        %3117 = vmatpush1.bf16.msra.mxu0 %v3077
        %3118 = vmatprep.subr.bf16.mxu0 0
        %3119 = vmatpush1.bf16.msra.mxu0 %v3078
        %3120 = vmatprep.subr.bf16.mxu0 0
        %3121 = vmatpush1.bf16.msra.mxu0 %v3079
        %3122 = vmatprep.subr.bf16.mxu0 0
        %3123 = vmatpush1.bf16.msra.mxu0 %v3080
        %3124 = vmatprep.subr.bf16.mxu0 0
        %3125 = vmatpush1.bf16.msra.mxu0 %v3081
        %3126 = vmatprep.subr.bf16.mxu0 0
        %3127 = vmatpush1.bf16.msra.mxu0 %v3082
        %3128 = vmatprep.subr.bf16.mxu0 0
        %3129 = vmatpush1.bf16.msra.mxu0 %v3083
        %3130 = vmatprep.subr.bf16.mxu0 0
        %3131 = vmatpush1.bf16.msra.mxu0 %v3084
        %3132 = vmatprep.subr.bf16.mxu0 0
        %3133 = vmatpush1.bf16.msra.mxu0 %v3085
        %3134 = vmatprep.mubr.bf16.mxu0 %v2973
        %3135 = vmatmul.mubr.bf16.gmra.mrb[0].mxu0 %v2972
        %v3136 = vpop.f32.mrb[0].mxu0
        %v3137 = vadd.f32 0.0, %v3136
        %v3138 = vpop.f32.mrb[0].mxu0
        %v3139 = vpop.f32.mrb[0].mxu0
        %v3140 = vpop.f32.mrb[0].mxu0
        %3141 = vdwg.mxu0
        %v3142 = vadd.f32 %v2776, %v3137
        %v3143 = vld [vmem:[%s17] sm:$0x1]
        %v3145 = vlaneseq
        %v3146 = vshrl.u32 %v3145, 7
        %v3147 = vsub.s32 0, %v3146
        %v3148 = vrot.slane %v3143, %v3147
        %v3150 = vadd.f32 %v3142, %v3148
        %s3151 = scalar_lea.vmem %s2, 1
        %v3152 = vld [vmem:[%s3151] sm:$0x1]
        %s3153 = scalar_lea.vmem %s3, 1
        %v3154 = vld [vmem:[%s3153] sm:$0x1]
        %3155 = vadd.xlane.f32.xlu0 %v3150
        %v3156 = vpop.xlane.xlu0 %3155
        %v3157 = vmul.f32 %v3156, %v713
        %v3158 = vsub.f32 %v3150, %v3157
        %v3159 = vmul.f32 %v3158, %v3158
        %3160 = vadd.xlane.f32.xlu0 %v3159
        %v3161 = vpop.xlane.xlu0 %3160
        %v3162 = vmul.f32 %v3161, %v713
        %v3163 = vadd.f32 %v3162, 1e-05
        %v3164 = vrsqrt.pop %v3163
        %v3165 = vmul.f32 %v3158, %v3164
        %v3167 = vlaneseq
        %v3168 = vshrl.u32 %v3167, 7
        %v3169 = vsub.s32 0, %v3168
        %v3170 = vrot.slane %v3152, %v3169
        %v3172 = vmul.f32 %v3165, %v3170
        %v3174 = vlaneseq
        %v3175 = vshrl.u32 %v3174, 7
        %v3176 = vsub.s32 0, %v3175
        %v3177 = vrot.slane %v3154, %v3176
        %v3179 = vadd.f32 %v3172, %v3177
        %v3180 = vpack.c.bf16 %v3179, %v3179
        %s3181 = scalar_lea.vmem %s4, 256
        %v3182 = vld [vmem:[%s3181] sm:$0xf]
        %v3183 = vld [vmem:[%s3181 + $0x4] sm:$0xf]
        %v3184 = vld [vmem:[%s3181 + $0x8] sm:$0xf]
        %v3185 = vld [vmem:[%s3181 + $0xc] sm:$0xf]
        %v3186 = vld [vmem:[%s3181 + $0x10] sm:$0xf]
        %v3187 = vld [vmem:[%s3181 + $0x14] sm:$0xf]
        %v3188 = vld [vmem:[%s3181 + $0x18] sm:$0xf]
        %v3189 = vld [vmem:[%s3181 + $0x1c] sm:$0xf]
        %v3190 = vld [vmem:[%s3181 + $0x20] sm:$0xf]
        %v3191 = vld [vmem:[%s3181 + $0x24] sm:$0xf]
        %v3192 = vld [vmem:[%s3181 + $0x28] sm:$0xf]
        %v3193 = vld [vmem:[%s3181 + $0x2c] sm:$0xf]
        %v3194 = vld [vmem:[%s3181 + $0x30] sm:$0xf]
        %v3195 = vld [vmem:[%s3181 + $0x34] sm:$0xf]
        %v3196 = vld [vmem:[%s3181 + $0x38] sm:$0xf]
        %v3197 = vld [vmem:[%s3181 + $0x3c] sm:$0xf]
        %s3198 = scalar_lea.vmem %s5, 4
        %v3199 = vld [vmem:[%s3198] sm:$0x1]
        %v3201 = vlaneseq
        %v3202 = vshrl.u32 %v3201, 7
        %v3203 = vsub.s32 0, %v3202
        %v3204 = vrot.slane %v3199, %v3203
        %v3222 = vunpack.c.l.b16 %v3182
        %v3223 = vunpack.c.l.b16 %v3183
        %v3224 = vunpack.c.l.b16 %v3184
        %v3225 = vunpack.c.l.b16 %v3185
        %v3226 = vunpack.c.l.b16 %v3186
        %v3227 = vunpack.c.l.b16 %v3187
        %v3228 = vunpack.c.l.b16 %v3188
        %v3229 = vunpack.c.l.b16 %v3189
        %v3230 = vunpack.c.l.b16 %v3190
        %v3231 = vunpack.c.l.b16 %v3191
        %v3232 = vunpack.c.l.b16 %v3192
        %v3233 = vunpack.c.l.b16 %v3193
        %v3234 = vunpack.c.l.b16 %v3194
        %v3235 = vunpack.c.l.b16 %v3195
        %v3236 = vunpack.c.l.b16 %v3196
        %v3237 = vunpack.c.l.b16 %v3197
        %v3238 = vpack.c.b16 %v3223, %v3222
        %v3239 = vpack.c.b16 %v3225, %v3224
        %v3240 = vpack.c.b16 %v3227, %v3226
        %v3241 = vpack.c.b16 %v3229, %v3228
        %v3242 = vpack.c.b16 %v3231, %v3230
        %v3243 = vpack.c.b16 %v3233, %v3232
        %v3244 = vpack.c.b16 %v3235, %v3234
        %v3245 = vpack.c.b16 %v3237, %v3236
        %3254 = vmatprep.subr.bf16.mxu0 0
        %3255 = vmatpush1.bf16.msra.mxu0 %v3238
        %3256 = vmatprep.subr.bf16.mxu0 0
        %3257 = vmatpush1.bf16.msra.mxu0 %v3239
        %3258 = vmatprep.subr.bf16.mxu0 0
        %3259 = vmatpush1.bf16.msra.mxu0 %v3240
        %3260 = vmatprep.subr.bf16.mxu0 0
        %3261 = vmatpush1.bf16.msra.mxu0 %v3241
        %3262 = vmatprep.subr.bf16.mxu0 0
        %3263 = vmatpush1.bf16.msra.mxu0 %v3242
        %3264 = vmatprep.subr.bf16.mxu0 0
        %3265 = vmatpush1.bf16.msra.mxu0 %v3243
        %3266 = vmatprep.subr.bf16.mxu0 0
        %3267 = vmatpush1.bf16.msra.mxu0 %v3244
        %3268 = vmatprep.subr.bf16.mxu0 0
        %3269 = vmatpush1.bf16.msra.mxu0 %v3245
        %3270 = vmatprep.subr.bf16.mxu0 0
        %3271 = vmatpush1.bf16.msra.mxu0 0
        %3272 = vmatprep.subr.bf16.mxu0 0
        %3273 = vmatpush1.bf16.msra.mxu0 0
        %3274 = vmatprep.subr.bf16.mxu0 0
        %3275 = vmatpush1.bf16.msra.mxu0 0
        %3276 = vmatprep.subr.bf16.mxu0 0
        %3277 = vmatpush1.bf16.msra.mxu0 0
        %3278 = vmatprep.subr.bf16.mxu0 0
        %3279 = vmatpush1.bf16.msra.mxu0 0
        %3280 = vmatprep.subr.bf16.mxu0 0
        %3281 = vmatpush1.bf16.msra.mxu0 0
        %3282 = vmatprep.subr.bf16.mxu0 0
        %3283 = vmatpush1.bf16.msra.mxu0 0
        %3284 = vmatprep.subr.bf16.mxu0 0
        %3285 = vmatpush1.bf16.msra.mxu0 0
        %3286 = vmatprep.mubr.bf16.mxu0 0
        %3287 = vmatmul.mubr.bf16.gmra.mrb[0].mxu0 %v3180
        %v3288 = vpop.f32.mrb[0].mxu0
        %v3289 = vadd.f32 %v3204, %v3288
        %v3290 = vpop.f32.mrb[0].mxu0
        %v3291 = vpop.f32.mrb[0].mxu0
        %v3292 = vpop.f32.mrb[0].mxu0
        %3293 = vdwg.mxu0
        %s3294 = scalar_lea.vmem %s6, 256
        %v3295 = vld [vmem:[%s3294] sm:$0xf]
        %v3296 = vld [vmem:[%s3294 + $0x4] sm:$0xf]
        %v3297 = vld [vmem:[%s3294 + $0x8] sm:$0xf]
        %v3298 = vld [vmem:[%s3294 + $0xc] sm:$0xf]
        %v3299 = vld [vmem:[%s3294 + $0x10] sm:$0xf]
        %v3300 = vld [vmem:[%s3294 + $0x14] sm:$0xf]
        %v3301 = vld [vmem:[%s3294 + $0x18] sm:$0xf]
        %v3302 = vld [vmem:[%s3294 + $0x1c] sm:$0xf]
        %v3303 = vld [vmem:[%s3294 + $0x20] sm:$0xf]
        %v3304 = vld [vmem:[%s3294 + $0x24] sm:$0xf]
        %v3305 = vld [vmem:[%s3294 + $0x28] sm:$0xf]
        %v3306 = vld [vmem:[%s3294 + $0x2c] sm:$0xf]
        %v3307 = vld [vmem:[%s3294 + $0x30] sm:$0xf]
        %v3308 = vld [vmem:[%s3294 + $0x34] sm:$0xf]
        %v3309 = vld [vmem:[%s3294 + $0x38] sm:$0xf]
        %v3310 = vld [vmem:[%s3294 + $0x3c] sm:$0xf]
        %s3311 = scalar_lea.vmem %s7, 4
        %v3312 = vld [vmem:[%s3311] sm:$0x1]
        %v3314 = vlaneseq
        %v3315 = vshrl.u32 %v3314, 7
        %v3316 = vsub.s32 0, %v3315
        %v3317 = vrot.slane %v3312, %v3316
        %v3335 = vunpack.c.l.b16 %v3295
        %v3336 = vunpack.c.l.b16 %v3296
        %v3337 = vunpack.c.l.b16 %v3297
        %v3338 = vunpack.c.l.b16 %v3298
        %v3339 = vunpack.c.l.b16 %v3299
        %v3340 = vunpack.c.l.b16 %v3300
        %v3341 = vunpack.c.l.b16 %v3301
        %v3342 = vunpack.c.l.b16 %v3302
        %v3343 = vunpack.c.l.b16 %v3303
        %v3344 = vunpack.c.l.b16 %v3304
        %v3345 = vunpack.c.l.b16 %v3305
        %v3346 = vunpack.c.l.b16 %v3306
        %v3347 = vunpack.c.l.b16 %v3307
        %v3348 = vunpack.c.l.b16 %v3308
        %v3349 = vunpack.c.l.b16 %v3309
        %v3350 = vunpack.c.l.b16 %v3310
        %v3351 = vpack.c.b16 %v3336, %v3335
        %v3352 = vpack.c.b16 %v3338, %v3337
        %v3353 = vpack.c.b16 %v3340, %v3339
        %v3354 = vpack.c.b16 %v3342, %v3341
        %v3355 = vpack.c.b16 %v3344, %v3343
        %v3356 = vpack.c.b16 %v3346, %v3345
        %v3357 = vpack.c.b16 %v3348, %v3347
        %v3358 = vpack.c.b16 %v3350, %v3349
        %3367 = vmatprep.subr.bf16.mxu0 0
        %3368 = vmatpush1.bf16.msra.mxu0 %v3351
        %3369 = vmatprep.subr.bf16.mxu0 0
        %3370 = vmatpush1.bf16.msra.mxu0 %v3352
        %3371 = vmatprep.subr.bf16.mxu0 0
        %3372 = vmatpush1.bf16.msra.mxu0 %v3353
        %3373 = vmatprep.subr.bf16.mxu0 0
        %3374 = vmatpush1.bf16.msra.mxu0 %v3354
        %3375 = vmatprep.subr.bf16.mxu0 0
        %3376 = vmatpush1.bf16.msra.mxu0 %v3355
        %3377 = vmatprep.subr.bf16.mxu0 0
        %3378 = vmatpush1.bf16.msra.mxu0 %v3356
        %3379 = vmatprep.subr.bf16.mxu0 0
        %3380 = vmatpush1.bf16.msra.mxu0 %v3357
        %3381 = vmatprep.subr.bf16.mxu0 0
        %3382 = vmatpush1.bf16.msra.mxu0 %v3358
        %3383 = vmatprep.subr.bf16.mxu0 0
        %3384 = vmatpush1.bf16.msra.mxu0 0
        %3385 = vmatprep.subr.bf16.mxu0 0
        %3386 = vmatpush1.bf16.msra.mxu0 0
        %3387 = vmatprep.subr.bf16.mxu0 0
        %3388 = vmatpush1.bf16.msra.mxu0 0
        %3389 = vmatprep.subr.bf16.mxu0 0
        %3390 = vmatpush1.bf16.msra.mxu0 0
        %3391 = vmatprep.subr.bf16.mxu0 0
        %3392 = vmatpush1.bf16.msra.mxu0 0
        %3393 = vmatprep.subr.bf16.mxu0 0
        %3394 = vmatpush1.bf16.msra.mxu0 0
        %3395 = vmatprep.subr.bf16.mxu0 0
        %3396 = vmatpush1.bf16.msra.mxu0 0
        %3397 = vmatprep.subr.bf16.mxu0 0
        %3398 = vmatpush1.bf16.msra.mxu0 0
        %3399 = vmatprep.mubr.bf16.mxu0 0
        %3400 = vmatmul.mubr.bf16.gmra.mrb[0].mxu0 %v3180
        %v3401 = vpop.f32.mrb[0].mxu0
        %v3402 = vadd.f32 %v3317, %v3401
        %v3403 = vpop.f32.mrb[0].mxu0
        %v3404 = vpop.f32.mrb[0].mxu0
        %v3405 = vpop.f32.mrb[0].mxu0
        %3406 = vdwg.mxu0
        %s3407 = scalar_lea.vmem %s8, 256
        %v3408 = vld [vmem:[%s3407] sm:$0xf]
        %v3409 = vld [vmem:[%s3407 + $0x4] sm:$0xf]
        %v3410 = vld [vmem:[%s3407 + $0x8] sm:$0xf]
        %v3411 = vld [vmem:[%s3407 + $0xc] sm:$0xf]
        %v3412 = vld [vmem:[%s3407 + $0x10] sm:$0xf]
        %v3413 = vld [vmem:[%s3407 + $0x14] sm:$0xf]
        %v3414 = vld [vmem:[%s3407 + $0x18] sm:$0xf]
        %v3415 = vld [vmem:[%s3407 + $0x1c] sm:$0xf]
        %v3416 = vld [vmem:[%s3407 + $0x20] sm:$0xf]
        %v3417 = vld [vmem:[%s3407 + $0x24] sm:$0xf]
        %v3418 = vld [vmem:[%s3407 + $0x28] sm:$0xf]
        %v3419 = vld [vmem:[%s3407 + $0x2c] sm:$0xf]
        %v3420 = vld [vmem:[%s3407 + $0x30] sm:$0xf]
        %v3421 = vld [vmem:[%s3407 + $0x34] sm:$0xf]
        %v3422 = vld [vmem:[%s3407 + $0x38] sm:$0xf]
        %v3423 = vld [vmem:[%s3407 + $0x3c] sm:$0xf]
        %s3424 = scalar_lea.vmem %s9, 4
        %v3425 = vld [vmem:[%s3424] sm:$0x1]
        %v3427 = vlaneseq
        %v3428 = vshrl.u32 %v3427, 7
        %v3429 = vsub.s32 0, %v3428
        %v3430 = vrot.slane %v3425, %v3429
        %v3448 = vunpack.c.l.b16 %v3408
        %v3449 = vunpack.c.l.b16 %v3409
        %v3450 = vunpack.c.l.b16 %v3410
        %v3451 = vunpack.c.l.b16 %v3411
        %v3452 = vunpack.c.l.b16 %v3412
        %v3453 = vunpack.c.l.b16 %v3413
        %v3454 = vunpack.c.l.b16 %v3414
        %v3455 = vunpack.c.l.b16 %v3415
        %v3456 = vunpack.c.l.b16 %v3416
        %v3457 = vunpack.c.l.b16 %v3417
        %v3458 = vunpack.c.l.b16 %v3418
        %v3459 = vunpack.c.l.b16 %v3419
        %v3460 = vunpack.c.l.b16 %v3420
        %v3461 = vunpack.c.l.b16 %v3421
        %v3462 = vunpack.c.l.b16 %v3422
        %v3463 = vunpack.c.l.b16 %v3423
        %v3464 = vpack.c.b16 %v3449, %v3448
        %v3465 = vpack.c.b16 %v3451, %v3450
        %v3466 = vpack.c.b16 %v3453, %v3452
        %v3467 = vpack.c.b16 %v3455, %v3454
        %v3468 = vpack.c.b16 %v3457, %v3456
        %v3469 = vpack.c.b16 %v3459, %v3458
        %v3470 = vpack.c.b16 %v3461, %v3460
        %v3471 = vpack.c.b16 %v3463, %v3462
        %3480 = vmatprep.subr.bf16.mxu0 0
        %3481 = vmatpush1.bf16.msra.mxu0 %v3464
        %3482 = vmatprep.subr.bf16.mxu0 0
        %3483 = vmatpush1.bf16.msra.mxu0 %v3465
        %3484 = vmatprep.subr.bf16.mxu0 0
        %3485 = vmatpush1.bf16.msra.mxu0 %v3466
        %3486 = vmatprep.subr.bf16.mxu0 0
        %3487 = vmatpush1.bf16.msra.mxu0 %v3467
        %3488 = vmatprep.subr.bf16.mxu0 0
        %3489 = vmatpush1.bf16.msra.mxu0 %v3468
        %3490 = vmatprep.subr.bf16.mxu0 0
        %3491 = vmatpush1.bf16.msra.mxu0 %v3469
        %3492 = vmatprep.subr.bf16.mxu0 0
        %3493 = vmatpush1.bf16.msra.mxu0 %v3470
        %3494 = vmatprep.subr.bf16.mxu0 0
        %3495 = vmatpush1.bf16.msra.mxu0 %v3471
        %3496 = vmatprep.subr.bf16.mxu0 0
        %3497 = vmatpush1.bf16.msra.mxu0 0
        %3498 = vmatprep.subr.bf16.mxu0 0
        %3499 = vmatpush1.bf16.msra.mxu0 0
        %3500 = vmatprep.subr.bf16.mxu0 0
        %3501 = vmatpush1.bf16.msra.mxu0 0
        %3502 = vmatprep.subr.bf16.mxu0 0
        %3503 = vmatpush1.bf16.msra.mxu0 0
        %3504 = vmatprep.subr.bf16.mxu0 0
        %3505 = vmatpush1.bf16.msra.mxu0 0
        %3506 = vmatprep.subr.bf16.mxu0 0
        %3507 = vmatpush1.bf16.msra.mxu0 0
        %3508 = vmatprep.subr.bf16.mxu0 0
        %3509 = vmatpush1.bf16.msra.mxu0 0
        %3510 = vmatprep.subr.bf16.mxu0 0
        %3511 = vmatpush1.bf16.msra.mxu0 0
        %3512 = vmatprep.mubr.bf16.mxu0 0
        %3513 = vmatmul.mubr.bf16.gmra.mrb[0].mxu0 %v3180
        %v3514 = vpop.f32.mrb[0].mxu0
        %v3515 = vadd.f32 %v3430, %v3514
        %v3516 = vpop.f32.mrb[0].mxu0
        %v3517 = vpop.f32.mrb[0].mxu0
        %v3518 = vpop.f32.mrb[0].mxu0
        %3519 = vdwg.mxu0
        %v3520 = vmul.f32 %v3289, 0.17677669
        %v3521 = vpack.c.bf16 %v3520, %v3520
        %v3522 = vpack.c.bf16 %v3402, %v3402
        %v3524 = vsel %vm1074, %v3521, 0
        %v3527 = vsel %vm1074, %v3522, 0
        %3529 = vmatprep.subr.bf16.mxu0 0
        %3530 = vmatpush1.bf16.xpose.msra.mxu0 %v3527
        %3531 = vmatprep.subr.bf16.mxu0 0
        %3532 = vmatpush1.bf16.xpose.msra.mxu0 0
        %3533 = vmatprep.subr.bf16.mxu0 0
        %3534 = vmatpush1.bf16.xpose.msra.mxu0 0
        %3535 = vmatprep.subr.bf16.mxu0 0
        %3536 = vmatpush1.bf16.xpose.msra.mxu0 0
        %3537 = vmatprep.subr.bf16.mxu0 0
        %3538 = vmatpush1.bf16.xpose.msra.mxu0 0
        %3539 = vmatprep.subr.bf16.mxu0 0
        %3540 = vmatpush1.bf16.xpose.msra.mxu0 0
        %3541 = vmatprep.subr.bf16.mxu0 0
        %3542 = vmatpush1.bf16.xpose.msra.mxu0 0
        %3543 = vmatprep.subr.bf16.mxu0 0
        %3544 = vmatpush1.bf16.xpose.msra.mxu0 0
        %3545 = vmatprep.subr.bf16.mxu0 0
        %3546 = vmatpush1.bf16.xpose.msra.mxu0 0
        %3547 = vmatprep.subr.bf16.mxu0 0
        %3548 = vmatpush1.bf16.xpose.msra.mxu0 0
        %3549 = vmatprep.subr.bf16.mxu0 0
        %3550 = vmatpush1.bf16.xpose.msra.mxu0 0
        %3551 = vmatprep.subr.bf16.mxu0 0
        %3552 = vmatpush1.bf16.xpose.msra.mxu0 0
        %3553 = vmatprep.subr.bf16.mxu0 0
        %3554 = vmatpush1.bf16.xpose.msra.mxu0 0
        %3555 = vmatprep.subr.bf16.mxu0 0
        %3556 = vmatpush1.bf16.xpose.msra.mxu0 0
        %3557 = vmatprep.subr.bf16.mxu0 0
        %3558 = vmatpush1.bf16.xpose.msra.mxu0 0
        %3559 = vmatprep.subr.bf16.mxu0 0
        %3560 = vmatpush1.bf16.xpose.msra.mxu0 0
        %3561 = vmatprep.mubr.bf16.mxu0 0
        %3562 = vmatmul.mubr.bf16.gmra.mrb[0].mxu0 %v3524
        %v3563 = vpop.f32.mrb[0].mxu0
        %v3564 = vadd.f32 %v708, %v3563
        %v3565 = vpop.f32.mrb[0].mxu0
        %v3566 = vpop.f32.mrb[0].mxu0
        %v3567 = vpop.f32.mrb[0].mxu0
        %3568 = vdwg.mxu0
        %v3569 = vsel %vm1121, %v3564, -inf
        %3570 = vmax.xlane.f32.xlu0 %v3569
        %v3571 = vpop.xlane.xlu0 %3570
        %v3572 = vsub.f32 %v3564, %v3571
        %v3573 = vmul.f32 %v3572, 1.442695
        %v3574 = vpow.pop %v3573
        %v3575 = vsel %vm1121, %v3574, 0.0
        %3576 = vadd.xlane.f32.xlu0 %v3575
        %v3577 = vpop.xlane.xlu0 %3576
        %v3578 = vrcp.pop %v3577
        %v3579 = vmul.f32 %v3574, %v3578
        %v3580 = vpack.c.bf16 %v3579, %v3579
        %v3581 = vpack.c.bf16 %v3515, %v3515
        %v3583 = vsel %vm1121, %v3580, 0
        %v3586 = vsel %vm1138, %v3581, 0
        %3588 = vmatprep.subr.bf16.mxu0 0
        %3589 = vmatpush1.bf16.msra.mxu0 %v3586
        %3590 = vmatprep.subr.bf16.mxu0 0
        %3591 = vmatpush1.bf16.msra.mxu0 0
        %3592 = vmatprep.subr.bf16.mxu0 0
        %3593 = vmatpush1.bf16.msra.mxu0 0
        %3594 = vmatprep.subr.bf16.mxu0 0
        %3595 = vmatpush1.bf16.msra.mxu0 0
        %3596 = vmatprep.subr.bf16.mxu0 0
        %3597 = vmatpush1.bf16.msra.mxu0 0
        %3598 = vmatprep.subr.bf16.mxu0 0
        %3599 = vmatpush1.bf16.msra.mxu0 0
        %3600 = vmatprep.subr.bf16.mxu0 0
        %3601 = vmatpush1.bf16.msra.mxu0 0
        %3602 = vmatprep.subr.bf16.mxu0 0
        %3603 = vmatpush1.bf16.msra.mxu0 0
        %3604 = vmatprep.subr.bf16.mxu0 0
        %3605 = vmatpush1.bf16.msra.mxu0 0
        %3606 = vmatprep.subr.bf16.mxu0 0
        %3607 = vmatpush1.bf16.msra.mxu0 0
        %3608 = vmatprep.subr.bf16.mxu0 0
        %3609 = vmatpush1.bf16.msra.mxu0 0
        %3610 = vmatprep.subr.bf16.mxu0 0
        %3611 = vmatpush1.bf16.msra.mxu0 0
        %3612 = vmatprep.subr.bf16.mxu0 0
        %3613 = vmatpush1.bf16.msra.mxu0 0
        %3614 = vmatprep.subr.bf16.mxu0 0
        %3615 = vmatpush1.bf16.msra.mxu0 0
        %3616 = vmatprep.subr.bf16.mxu0 0
        %3617 = vmatpush1.bf16.msra.mxu0 0
        %3618 = vmatprep.subr.bf16.mxu0 0
        %3619 = vmatpush1.bf16.msra.mxu0 0
        %3620 = vmatprep.mubr.bf16.mxu0 0
        %3621 = vmatmul.mubr.bf16.gmra.mrb[0].mxu0 %v3583
        %v3622 = vpop.f32.mrb[0].mxu0
        %v3623 = vadd.f32 0.0, %v3622
        %v3624 = vpop.f32.mrb[0].mxu0
        %v3625 = vpop.f32.mrb[0].mxu0
        %v3626 = vpop.f32.mrb[0].mxu0
        %3627 = vdwg.mxu0
        %v3628 = vpack.c.bf16 %v3623, %v3623
        %s3629 = scalar_lea.vmem %s10, 64
        %v3630 = vld [vmem:[%s3629] sm:$0xf]
        %v3631 = vld [vmem:[%s3629 + $0x4] sm:$0xf]
        %v3632 = vld [vmem:[%s3629 + $0x8] sm:$0xf]
        %v3633 = vld [vmem:[%s3629 + $0xc] sm:$0xf]
        %s3634 = scalar_lea.vmem %s4, 320
        %v3635 = vld [vmem:[%s3634] sm:$0xf]
        %v3636 = vld [vmem:[%s3634 + $0x4] sm:$0xf]
        %v3637 = vld [vmem:[%s3634 + $0x8] sm:$0xf]
        %v3638 = vld [vmem:[%s3634 + $0xc] sm:$0xf]
        %v3639 = vld [vmem:[%s3634 + $0x10] sm:$0xf]
        %v3640 = vld [vmem:[%s3634 + $0x14] sm:$0xf]
        %v3641 = vld [vmem:[%s3634 + $0x18] sm:$0xf]
        %v3642 = vld [vmem:[%s3634 + $0x1c] sm:$0xf]
        %v3643 = vld [vmem:[%s3634 + $0x20] sm:$0xf]
        %v3644 = vld [vmem:[%s3634 + $0x24] sm:$0xf]
        %v3645 = vld [vmem:[%s3634 + $0x28] sm:$0xf]
        %v3646 = vld [vmem:[%s3634 + $0x2c] sm:$0xf]
        %v3647 = vld [vmem:[%s3634 + $0x30] sm:$0xf]
        %v3648 = vld [vmem:[%s3634 + $0x34] sm:$0xf]
        %v3649 = vld [vmem:[%s3634 + $0x38] sm:$0xf]
        %v3650 = vld [vmem:[%s3634 + $0x3c] sm:$0xf]
        %s3651 = scalar_lea.vmem %s5, 5
        %v3652 = vld [vmem:[%s3651] sm:$0x1]
        %v3654 = vlaneseq
        %v3655 = vshrl.u32 %v3654, 7
        %v3656 = vsub.s32 0, %v3655
        %v3657 = vrot.slane %v3652, %v3656
        %v3675 = vunpack.c.l.b16 %v3635
        %v3676 = vunpack.c.l.b16 %v3636
        %v3677 = vunpack.c.l.b16 %v3637
        %v3678 = vunpack.c.l.b16 %v3638
        %v3679 = vunpack.c.l.b16 %v3639
        %v3680 = vunpack.c.l.b16 %v3640
        %v3681 = vunpack.c.l.b16 %v3641
        %v3682 = vunpack.c.l.b16 %v3642
        %v3683 = vunpack.c.l.b16 %v3643
        %v3684 = vunpack.c.l.b16 %v3644
        %v3685 = vunpack.c.l.b16 %v3645
        %v3686 = vunpack.c.l.b16 %v3646
        %v3687 = vunpack.c.l.b16 %v3647
        %v3688 = vunpack.c.l.b16 %v3648
        %v3689 = vunpack.c.l.b16 %v3649
        %v3690 = vunpack.c.l.b16 %v3650
        %v3691 = vpack.c.b16 %v3676, %v3675
        %v3692 = vpack.c.b16 %v3678, %v3677
        %v3693 = vpack.c.b16 %v3680, %v3679
        %v3694 = vpack.c.b16 %v3682, %v3681
        %v3695 = vpack.c.b16 %v3684, %v3683
        %v3696 = vpack.c.b16 %v3686, %v3685
        %v3697 = vpack.c.b16 %v3688, %v3687
        %v3698 = vpack.c.b16 %v3690, %v3689
        %3707 = vmatprep.subr.bf16.mxu0 0
        %3708 = vmatpush1.bf16.msra.mxu0 %v3691
        %3709 = vmatprep.subr.bf16.mxu0 0
        %3710 = vmatpush1.bf16.msra.mxu0 %v3692
        %3711 = vmatprep.subr.bf16.mxu0 0
        %3712 = vmatpush1.bf16.msra.mxu0 %v3693
        %3713 = vmatprep.subr.bf16.mxu0 0
        %3714 = vmatpush1.bf16.msra.mxu0 %v3694
        %3715 = vmatprep.subr.bf16.mxu0 0
        %3716 = vmatpush1.bf16.msra.mxu0 %v3695
        %3717 = vmatprep.subr.bf16.mxu0 0
        %3718 = vmatpush1.bf16.msra.mxu0 %v3696
        %3719 = vmatprep.subr.bf16.mxu0 0
        %3720 = vmatpush1.bf16.msra.mxu0 %v3697
        %3721 = vmatprep.subr.bf16.mxu0 0
        %3722 = vmatpush1.bf16.msra.mxu0 %v3698
        %3723 = vmatprep.subr.bf16.mxu0 0
        %3724 = vmatpush1.bf16.msra.mxu0 0
        %3725 = vmatprep.subr.bf16.mxu0 0
        %3726 = vmatpush1.bf16.msra.mxu0 0
        %3727 = vmatprep.subr.bf16.mxu0 0
        %3728 = vmatpush1.bf16.msra.mxu0 0
        %3729 = vmatprep.subr.bf16.mxu0 0
        %3730 = vmatpush1.bf16.msra.mxu0 0
        %3731 = vmatprep.subr.bf16.mxu0 0
        %3732 = vmatpush1.bf16.msra.mxu0 0
        %3733 = vmatprep.subr.bf16.mxu0 0
        %3734 = vmatpush1.bf16.msra.mxu0 0
        %3735 = vmatprep.subr.bf16.mxu0 0
        %3736 = vmatpush1.bf16.msra.mxu0 0
        %3737 = vmatprep.subr.bf16.mxu0 0
        %3738 = vmatpush1.bf16.msra.mxu0 0
        %3739 = vmatprep.mubr.bf16.mxu0 0
        %3740 = vmatmul.mubr.bf16.gmra.mrb[0].mxu0 %v3180
        %v3741 = vpop.f32.mrb[0].mxu0
        %v3742 = vadd.f32 %v3657, %v3741
        %v3743 = vpop.f32.mrb[0].mxu0
        %v3744 = vpop.f32.mrb[0].mxu0
        %v3745 = vpop.f32.mrb[0].mxu0
        %3746 = vdwg.mxu0
        %s3747 = scalar_lea.vmem %s6, 320
        %v3748 = vld [vmem:[%s3747] sm:$0xf]
        %v3749 = vld [vmem:[%s3747 + $0x4] sm:$0xf]
        %v3750 = vld [vmem:[%s3747 + $0x8] sm:$0xf]
        %v3751 = vld [vmem:[%s3747 + $0xc] sm:$0xf]
        %v3752 = vld [vmem:[%s3747 + $0x10] sm:$0xf]
        %v3753 = vld [vmem:[%s3747 + $0x14] sm:$0xf]
        %v3754 = vld [vmem:[%s3747 + $0x18] sm:$0xf]
        %v3755 = vld [vmem:[%s3747 + $0x1c] sm:$0xf]
        %v3756 = vld [vmem:[%s3747 + $0x20] sm:$0xf]
        %v3757 = vld [vmem:[%s3747 + $0x24] sm:$0xf]
        %v3758 = vld [vmem:[%s3747 + $0x28] sm:$0xf]
        %v3759 = vld [vmem:[%s3747 + $0x2c] sm:$0xf]
        %v3760 = vld [vmem:[%s3747 + $0x30] sm:$0xf]
        %v3761 = vld [vmem:[%s3747 + $0x34] sm:$0xf]
        %v3762 = vld [vmem:[%s3747 + $0x38] sm:$0xf]
        %v3763 = vld [vmem:[%s3747 + $0x3c] sm:$0xf]
        %s3764 = scalar_lea.vmem %s7, 5
        %v3765 = vld [vmem:[%s3764] sm:$0x1]
        %v3767 = vlaneseq
        %v3768 = vshrl.u32 %v3767, 7
        %v3769 = vsub.s32 0, %v3768
        %v3770 = vrot.slane %v3765, %v3769
        %v3788 = vunpack.c.l.b16 %v3748
        %v3789 = vunpack.c.l.b16 %v3749
        %v3790 = vunpack.c.l.b16 %v3750
        %v3791 = vunpack.c.l.b16 %v3751
        %v3792 = vunpack.c.l.b16 %v3752
        %v3793 = vunpack.c.l.b16 %v3753
        %v3794 = vunpack.c.l.b16 %v3754
        %v3795 = vunpack.c.l.b16 %v3755
        %v3796 = vunpack.c.l.b16 %v3756
        %v3797 = vunpack.c.l.b16 %v3757
        %v3798 = vunpack.c.l.b16 %v3758
        %v3799 = vunpack.c.l.b16 %v3759
        %v3800 = vunpack.c.l.b16 %v3760
        %v3801 = vunpack.c.l.b16 %v3761
        %v3802 = vunpack.c.l.b16 %v3762
        %v3803 = vunpack.c.l.b16 %v3763
        %v3804 = vpack.c.b16 %v3789, %v3788
        %v3805 = vpack.c.b16 %v3791, %v3790
        %v3806 = vpack.c.b16 %v3793, %v3792
        %v3807 = vpack.c.b16 %v3795, %v3794
        %v3808 = vpack.c.b16 %v3797, %v3796
        %v3809 = vpack.c.b16 %v3799, %v3798
        %v3810 = vpack.c.b16 %v3801, %v3800
        %v3811 = vpack.c.b16 %v3803, %v3802
        %3820 = vmatprep.subr.bf16.mxu0 0
        %3821 = vmatpush1.bf16.msra.mxu0 %v3804
        %3822 = vmatprep.subr.bf16.mxu0 0
        %3823 = vmatpush1.bf16.msra.mxu0 %v3805
        %3824 = vmatprep.subr.bf16.mxu0 0
        %3825 = vmatpush1.bf16.msra.mxu0 %v3806
        %3826 = vmatprep.subr.bf16.mxu0 0
        %3827 = vmatpush1.bf16.msra.mxu0 %v3807
        %3828 = vmatprep.subr.bf16.mxu0 0
        %3829 = vmatpush1.bf16.msra.mxu0 %v3808
        %3830 = vmatprep.subr.bf16.mxu0 0
        %3831 = vmatpush1.bf16.msra.mxu0 %v3809
        %3832 = vmatprep.subr.bf16.mxu0 0
        %3833 = vmatpush1.bf16.msra.mxu0 %v3810
        %3834 = vmatprep.subr.bf16.mxu0 0
        %3835 = vmatpush1.bf16.msra.mxu0 %v3811
        %3836 = vmatprep.subr.bf16.mxu0 0
        %3837 = vmatpush1.bf16.msra.mxu0 0
        %3838 = vmatprep.subr.bf16.mxu0 0
        %3839 = vmatpush1.bf16.msra.mxu0 0
        %3840 = vmatprep.subr.bf16.mxu0 0
        %3841 = vmatpush1.bf16.msra.mxu0 0
        %3842 = vmatprep.subr.bf16.mxu0 0
        %3843 = vmatpush1.bf16.msra.mxu0 0
        %3844 = vmatprep.subr.bf16.mxu0 0
        %3845 = vmatpush1.bf16.msra.mxu0 0
        %3846 = vmatprep.subr.bf16.mxu0 0
        %3847 = vmatpush1.bf16.msra.mxu0 0
        %3848 = vmatprep.subr.bf16.mxu0 0
        %3849 = vmatpush1.bf16.msra.mxu0 0
        %3850 = vmatprep.subr.bf16.mxu0 0
        %3851 = vmatpush1.bf16.msra.mxu0 0
        %3852 = vmatprep.mubr.bf16.mxu0 0
        %3853 = vmatmul.mubr.bf16.gmra.mrb[0].mxu0 %v3180
        %v3854 = vpop.f32.mrb[0].mxu0
        %v3855 = vadd.f32 %v3770, %v3854
        %v3856 = vpop.f32.mrb[0].mxu0
        %v3857 = vpop.f32.mrb[0].mxu0
        %v3858 = vpop.f32.mrb[0].mxu0
        %3859 = vdwg.mxu0
        %s3860 = scalar_lea.vmem %s8, 320
        %v3861 = vld [vmem:[%s3860] sm:$0xf]
        %v3862 = vld [vmem:[%s3860 + $0x4] sm:$0xf]
        %v3863 = vld [vmem:[%s3860 + $0x8] sm:$0xf]
        %v3864 = vld [vmem:[%s3860 + $0xc] sm:$0xf]
        %v3865 = vld [vmem:[%s3860 + $0x10] sm:$0xf]
        %v3866 = vld [vmem:[%s3860 + $0x14] sm:$0xf]
        %v3867 = vld [vmem:[%s3860 + $0x18] sm:$0xf]
        %v3868 = vld [vmem:[%s3860 + $0x1c] sm:$0xf]
        %v3869 = vld [vmem:[%s3860 + $0x20] sm:$0xf]
        %v3870 = vld [vmem:[%s3860 + $0x24] sm:$0xf]
        %v3871 = vld [vmem:[%s3860 + $0x28] sm:$0xf]
        %v3872 = vld [vmem:[%s3860 + $0x2c] sm:$0xf]
        %v3873 = vld [vmem:[%s3860 + $0x30] sm:$0xf]
        %v3874 = vld [vmem:[%s3860 + $0x34] sm:$0xf]
        %v3875 = vld [vmem:[%s3860 + $0x38] sm:$0xf]
        %v3876 = vld [vmem:[%s3860 + $0x3c] sm:$0xf]
        %s3877 = scalar_lea.vmem %s9, 5
        %v3878 = vld [vmem:[%s3877] sm:$0x1]
        %v3880 = vlaneseq
        %v3881 = vshrl.u32 %v3880, 7
        %v3882 = vsub.s32 0, %v3881
        %v3883 = vrot.slane %v3878, %v3882
        %v3901 = vunpack.c.l.b16 %v3861
        %v3902 = vunpack.c.l.b16 %v3862
        %v3903 = vunpack.c.l.b16 %v3863
        %v3904 = vunpack.c.l.b16 %v3864
        %v3905 = vunpack.c.l.b16 %v3865
        %v3906 = vunpack.c.l.b16 %v3866
        %v3907 = vunpack.c.l.b16 %v3867
        %v3908 = vunpack.c.l.b16 %v3868
        %v3909 = vunpack.c.l.b16 %v3869
        %v3910 = vunpack.c.l.b16 %v3870
        %v3911 = vunpack.c.l.b16 %v3871
        %v3912 = vunpack.c.l.b16 %v3872
        %v3913 = vunpack.c.l.b16 %v3873
        %v3914 = vunpack.c.l.b16 %v3874
        %v3915 = vunpack.c.l.b16 %v3875
        %v3916 = vunpack.c.l.b16 %v3876
        %v3917 = vpack.c.b16 %v3902, %v3901
        %v3918 = vpack.c.b16 %v3904, %v3903
        %v3919 = vpack.c.b16 %v3906, %v3905
        %v3920 = vpack.c.b16 %v3908, %v3907
        %v3921 = vpack.c.b16 %v3910, %v3909
        %v3922 = vpack.c.b16 %v3912, %v3911
        %v3923 = vpack.c.b16 %v3914, %v3913
        %v3924 = vpack.c.b16 %v3916, %v3915
        %3933 = vmatprep.subr.bf16.mxu0 0
        %3934 = vmatpush1.bf16.msra.mxu0 %v3917
        %3935 = vmatprep.subr.bf16.mxu0 0
        %3936 = vmatpush1.bf16.msra.mxu0 %v3918
        %3937 = vmatprep.subr.bf16.mxu0 0
        %3938 = vmatpush1.bf16.msra.mxu0 %v3919
        %3939 = vmatprep.subr.bf16.mxu0 0
        %3940 = vmatpush1.bf16.msra.mxu0 %v3920
        %3941 = vmatprep.subr.bf16.mxu0 0
        %3942 = vmatpush1.bf16.msra.mxu0 %v3921
        %3943 = vmatprep.subr.bf16.mxu0 0
        %3944 = vmatpush1.bf16.msra.mxu0 %v3922
        %3945 = vmatprep.subr.bf16.mxu0 0
        %3946 = vmatpush1.bf16.msra.mxu0 %v3923
        %3947 = vmatprep.subr.bf16.mxu0 0
        %3948 = vmatpush1.bf16.msra.mxu0 %v3924
        %3949 = vmatprep.subr.bf16.mxu0 0
        %3950 = vmatpush1.bf16.msra.mxu0 0
        %3951 = vmatprep.subr.bf16.mxu0 0
        %3952 = vmatpush1.bf16.msra.mxu0 0
        %3953 = vmatprep.subr.bf16.mxu0 0
        %3954 = vmatpush1.bf16.msra.mxu0 0
        %3955 = vmatprep.subr.bf16.mxu0 0
        %3956 = vmatpush1.bf16.msra.mxu0 0
        %3957 = vmatprep.subr.bf16.mxu0 0
        %3958 = vmatpush1.bf16.msra.mxu0 0
        %3959 = vmatprep.subr.bf16.mxu0 0
        %3960 = vmatpush1.bf16.msra.mxu0 0
        %3961 = vmatprep.subr.bf16.mxu0 0
        %3962 = vmatpush1.bf16.msra.mxu0 0
        %3963 = vmatprep.subr.bf16.mxu0 0
        %3964 = vmatpush1.bf16.msra.mxu0 0
        %3965 = vmatprep.mubr.bf16.mxu0 0
        %3966 = vmatmul.mubr.bf16.gmra.mrb[0].mxu0 %v3180
        %v3967 = vpop.f32.mrb[0].mxu0
        %v3968 = vadd.f32 %v3883, %v3967
        %v3969 = vpop.f32.mrb[0].mxu0
        %v3970 = vpop.f32.mrb[0].mxu0
        %v3971 = vpop.f32.mrb[0].mxu0
        %3972 = vdwg.mxu0
        %v3973 = vmul.f32 %v3742, 0.17677669
        %v3974 = vpack.c.bf16 %v3973, %v3973
        %v3975 = vpack.c.bf16 %v3855, %v3855
        %v3977 = vsel %vm1074, %v3974, 0
        %v3980 = vsel %vm1074, %v3975, 0
        %3982 = vmatprep.subr.bf16.mxu0 0
        %3983 = vmatpush1.bf16.xpose.msra.mxu0 %v3980
        %3984 = vmatprep.subr.bf16.mxu0 0
        %3985 = vmatpush1.bf16.xpose.msra.mxu0 0
        %3986 = vmatprep.subr.bf16.mxu0 0
        %3987 = vmatpush1.bf16.xpose.msra.mxu0 0
        %3988 = vmatprep.subr.bf16.mxu0 0
        %3989 = vmatpush1.bf16.xpose.msra.mxu0 0
        %3990 = vmatprep.subr.bf16.mxu0 0
        %3991 = vmatpush1.bf16.xpose.msra.mxu0 0
        %3992 = vmatprep.subr.bf16.mxu0 0
        %3993 = vmatpush1.bf16.xpose.msra.mxu0 0
        %3994 = vmatprep.subr.bf16.mxu0 0
        %3995 = vmatpush1.bf16.xpose.msra.mxu0 0
        %3996 = vmatprep.subr.bf16.mxu0 0
        %3997 = vmatpush1.bf16.xpose.msra.mxu0 0
        %3998 = vmatprep.subr.bf16.mxu0 0
        %3999 = vmatpush1.bf16.xpose.msra.mxu0 0
        %4000 = vmatprep.subr.bf16.mxu0 0
        %4001 = vmatpush1.bf16.xpose.msra.mxu0 0
        %4002 = vmatprep.subr.bf16.mxu0 0
        %4003 = vmatpush1.bf16.xpose.msra.mxu0 0
        %4004 = vmatprep.subr.bf16.mxu0 0
        %4005 = vmatpush1.bf16.xpose.msra.mxu0 0
        %4006 = vmatprep.subr.bf16.mxu0 0
        %4007 = vmatpush1.bf16.xpose.msra.mxu0 0
        %4008 = vmatprep.subr.bf16.mxu0 0
        %4009 = vmatpush1.bf16.xpose.msra.mxu0 0
        %4010 = vmatprep.subr.bf16.mxu0 0
        %4011 = vmatpush1.bf16.xpose.msra.mxu0 0
        %4012 = vmatprep.subr.bf16.mxu0 0
        %4013 = vmatpush1.bf16.xpose.msra.mxu0 0
        %4014 = vmatprep.mubr.bf16.mxu0 0
        %4015 = vmatmul.mubr.bf16.gmra.mrb[0].mxu0 %v3977
        %v4016 = vpop.f32.mrb[0].mxu0
        %v4017 = vadd.f32 %v708, %v4016
        %v4018 = vpop.f32.mrb[0].mxu0
        %v4019 = vpop.f32.mrb[0].mxu0
        %v4020 = vpop.f32.mrb[0].mxu0
        %4021 = vdwg.mxu0
        %v4022 = vsel %vm1121, %v4017, -inf
        %4023 = vmax.xlane.f32.xlu0 %v4022
        %v4024 = vpop.xlane.xlu0 %4023
        %v4025 = vsub.f32 %v4017, %v4024
        %v4026 = vmul.f32 %v4025, 1.442695
        %v4027 = vpow.pop %v4026
        %v4028 = vsel %vm1121, %v4027, 0.0
        %4029 = vadd.xlane.f32.xlu0 %v4028
        %v4030 = vpop.xlane.xlu0 %4029
        %v4031 = vrcp.pop %v4030
        %v4032 = vmul.f32 %v4027, %v4031
        %v4033 = vpack.c.bf16 %v4032, %v4032
        %v4034 = vpack.c.bf16 %v3968, %v3968
        %v4036 = vsel %vm1121, %v4033, 0
        %v4039 = vsel %vm1138, %v4034, 0
        %4041 = vmatprep.subr.bf16.mxu0 0
        %4042 = vmatpush1.bf16.msra.mxu0 %v4039
        %4043 = vmatprep.subr.bf16.mxu0 0
        %4044 = vmatpush1.bf16.msra.mxu0 0
        %4045 = vmatprep.subr.bf16.mxu0 0
        %4046 = vmatpush1.bf16.msra.mxu0 0
        %4047 = vmatprep.subr.bf16.mxu0 0
        %4048 = vmatpush1.bf16.msra.mxu0 0
        %4049 = vmatprep.subr.bf16.mxu0 0
        %4050 = vmatpush1.bf16.msra.mxu0 0
        %4051 = vmatprep.subr.bf16.mxu0 0
        %4052 = vmatpush1.bf16.msra.mxu0 0
        %4053 = vmatprep.subr.bf16.mxu0 0
        %4054 = vmatpush1.bf16.msra.mxu0 0
        %4055 = vmatprep.subr.bf16.mxu0 0
        %4056 = vmatpush1.bf16.msra.mxu0 0
        %4057 = vmatprep.subr.bf16.mxu0 0
        %4058 = vmatpush1.bf16.msra.mxu0 0
        %4059 = vmatprep.subr.bf16.mxu0 0
        %4060 = vmatpush1.bf16.msra.mxu0 0
        %4061 = vmatprep.subr.bf16.mxu0 0
        %4062 = vmatpush1.bf16.msra.mxu0 0
        %4063 = vmatprep.subr.bf16.mxu0 0
        %4064 = vmatpush1.bf16.msra.mxu0 0
        %4065 = vmatprep.subr.bf16.mxu0 0
        %4066 = vmatpush1.bf16.msra.mxu0 0
        %4067 = vmatprep.subr.bf16.mxu0 0
        %4068 = vmatpush1.bf16.msra.mxu0 0
        %4069 = vmatprep.subr.bf16.mxu0 0
        %4070 = vmatpush1.bf16.msra.mxu0 0
        %4071 = vmatprep.subr.bf16.mxu0 0
        %4072 = vmatpush1.bf16.msra.mxu0 0
        %4073 = vmatprep.mubr.bf16.mxu0 0
        %4074 = vmatmul.mubr.bf16.gmra.mrb[0].mxu0 %v4036
        %v4075 = vpop.f32.mrb[0].mxu0
        %v4076 = vadd.f32 0.0, %v4075
        %v4077 = vpop.f32.mrb[0].mxu0
        %v4078 = vpop.f32.mrb[0].mxu0
        %v4079 = vpop.f32.mrb[0].mxu0
        %4080 = vdwg.mxu0
        %v4081 = vpack.c.bf16 %v4076, %v4076
        %s4082 = scalar_lea.vmem %s10, 80
        %v4083 = vld [vmem:[%s4082] sm:$0xf]
        %v4084 = vld [vmem:[%s4082 + $0x4] sm:$0xf]
        %v4085 = vld [vmem:[%s4082 + $0x8] sm:$0xf]
        %v4086 = vld [vmem:[%s4082 + $0xc] sm:$0xf]
        %v4091 = vunpack.c.l.b16 %v4083
        %v4092 = vunpack.c.l.b16 %v4084
        %v4093 = vunpack.c.l.b16 %v4085
        %v4094 = vunpack.c.l.b16 %v4086
        %v4095 = vpack.c.b16 %v4092, %v4091
        %v4096 = vpack.c.b16 %v4094, %v4093
        %v4100 = vsel %vm1074, %v4081, 0
        %4102 = vmatprep.subr.bf16.mxu0 0
        %4103 = vmatpush1.bf16.msra.mxu0 %v4095
        %4104 = vmatprep.subr.bf16.mxu0 0
        %4105 = vmatpush1.bf16.msra.mxu0 %v4096
        %4106 = vmatprep.subr.bf16.mxu0 0
        %4107 = vmatpush1.bf16.msra.mxu0 0
        %4108 = vmatprep.subr.bf16.mxu0 0
        %4109 = vmatpush1.bf16.msra.mxu0 0
        %4110 = vmatprep.subr.bf16.mxu0 0
        %4111 = vmatpush1.bf16.msra.mxu0 0
        %4112 = vmatprep.subr.bf16.mxu0 0
        %4113 = vmatpush1.bf16.msra.mxu0 0
        %4114 = vmatprep.subr.bf16.mxu0 0
        %4115 = vmatpush1.bf16.msra.mxu0 0
        %4116 = vmatprep.subr.bf16.mxu0 0
        %4117 = vmatpush1.bf16.msra.mxu0 0
        %4118 = vmatprep.subr.bf16.mxu0 0
        %4119 = vmatpush1.bf16.msra.mxu0 0
        %4120 = vmatprep.subr.bf16.mxu0 0
        %4121 = vmatpush1.bf16.msra.mxu0 0
        %4122 = vmatprep.subr.bf16.mxu0 0
        %4123 = vmatpush1.bf16.msra.mxu0 0
        %4124 = vmatprep.subr.bf16.mxu0 0
        %4125 = vmatpush1.bf16.msra.mxu0 0
        %4126 = vmatprep.subr.bf16.mxu0 0
        %4127 = vmatpush1.bf16.msra.mxu0 0
        %4128 = vmatprep.subr.bf16.mxu0 0
        %4129 = vmatpush1.bf16.msra.mxu0 0
        %4130 = vmatprep.subr.bf16.mxu0 0
        %4131 = vmatpush1.bf16.msra.mxu0 0
        %4132 = vmatprep.subr.bf16.mxu0 0
        %4133 = vmatpush1.bf16.msra.mxu0 0
        %4134 = vmatprep.mubr.bf16.mxu0 0
        %4135 = vmatmul.mubr.bf16.gmra.mrb[0].mxu0 %v4100
        %v4136 = vpop.f32.mrb[0].mxu0
        %v4137 = vadd.f32 0.0, %v4136
        %v4138 = vpop.f32.mrb[0].mxu0
        %v4139 = vpop.f32.mrb[0].mxu0
        %v4140 = vpop.f32.mrb[0].mxu0
        %4141 = vdwg.mxu0
        %v4146 = vunpack.c.l.b16 %v3630
        %v4147 = vunpack.c.l.b16 %v3631
        %v4148 = vunpack.c.l.b16 %v3632
        %v4149 = vunpack.c.l.b16 %v3633
        %v4150 = vpack.c.b16 %v4147, %v4146
        %v4151 = vpack.c.b16 %v4149, %v4148
        %v4155 = vsel %vm1074, %v3628, 0
        %4157 = vmatprep.subr.bf16.mxu0 0
        %4158 = vmatpush1.bf16.msra.mxu0 %v4150
        %4159 = vmatprep.subr.bf16.mxu0 0
        %4160 = vmatpush1.bf16.msra.mxu0 %v4151
        %4161 = vmatprep.subr.bf16.mxu0 0
        %4162 = vmatpush1.bf16.msra.mxu0 0
        %4163 = vmatprep.subr.bf16.mxu0 0
        %4164 = vmatpush1.bf16.msra.mxu0 0
        %4165 = vmatprep.subr.bf16.mxu0 0
        %4166 = vmatpush1.bf16.msra.mxu0 0
        %4167 = vmatprep.subr.bf16.mxu0 0
        %4168 = vmatpush1.bf16.msra.mxu0 0
        %4169 = vmatprep.subr.bf16.mxu0 0
        %4170 = vmatpush1.bf16.msra.mxu0 0
        %4171 = vmatprep.subr.bf16.mxu0 0
        %4172 = vmatpush1.bf16.msra.mxu0 0
        %4173 = vmatprep.subr.bf16.mxu0 0
        %4174 = vmatpush1.bf16.msra.mxu0 0
        %4175 = vmatprep.subr.bf16.mxu0 0
        %4176 = vmatpush1.bf16.msra.mxu0 0
        %4177 = vmatprep.subr.bf16.mxu0 0
        %4178 = vmatpush1.bf16.msra.mxu0 0
        %4179 = vmatprep.subr.bf16.mxu0 0
        %4180 = vmatpush1.bf16.msra.mxu0 0
        %4181 = vmatprep.subr.bf16.mxu0 0
        %4182 = vmatpush1.bf16.msra.mxu0 0
        %4183 = vmatprep.subr.bf16.mxu0 0
        %4184 = vmatpush1.bf16.msra.mxu0 0
        %4185 = vmatprep.subr.bf16.mxu0 0
        %4186 = vmatpush1.bf16.msra.mxu0 0
        %4187 = vmatprep.subr.bf16.mxu0 0
        %4188 = vmatpush1.bf16.msra.mxu0 0
        %4189 = vmatprep.mubr.bf16.mxu0 0
        %4190 = vmatmul.mubr.bf16.gmra.mrb[0].mxu0 %v4155
        %v4191 = vpop.f32.mrb[0].mxu0
        %v4192 = vadd.f32 %v4137, %v4191
        %v4193 = vpop.f32.mrb[0].mxu0
        %v4194 = vpop.f32.mrb[0].mxu0
        %v4195 = vpop.f32.mrb[0].mxu0
        %4196 = vdwg.mxu0
        %s4197 = scalar_lea.vmem %s4, 384
        %v4198 = vld [vmem:[%s4197] sm:$0xf]
        %v4199 = vld [vmem:[%s4197 + $0x4] sm:$0xf]
        %v4200 = vld [vmem:[%s4197 + $0x8] sm:$0xf]
        %v4201 = vld [vmem:[%s4197 + $0xc] sm:$0xf]
        %v4202 = vld [vmem:[%s4197 + $0x10] sm:$0xf]
        %v4203 = vld [vmem:[%s4197 + $0x14] sm:$0xf]
        %v4204 = vld [vmem:[%s4197 + $0x18] sm:$0xf]
        %v4205 = vld [vmem:[%s4197 + $0x1c] sm:$0xf]
        %v4206 = vld [vmem:[%s4197 + $0x20] sm:$0xf]
        %v4207 = vld [vmem:[%s4197 + $0x24] sm:$0xf]
        %v4208 = vld [vmem:[%s4197 + $0x28] sm:$0xf]
        %v4209 = vld [vmem:[%s4197 + $0x2c] sm:$0xf]
        %v4210 = vld [vmem:[%s4197 + $0x30] sm:$0xf]
        %v4211 = vld [vmem:[%s4197 + $0x34] sm:$0xf]
        %v4212 = vld [vmem:[%s4197 + $0x38] sm:$0xf]
        %v4213 = vld [vmem:[%s4197 + $0x3c] sm:$0xf]
        %s4214 = scalar_lea.vmem %s5, 6
        %v4215 = vld [vmem:[%s4214] sm:$0x1]
        %v4217 = vlaneseq
        %v4218 = vshrl.u32 %v4217, 7
        %v4219 = vsub.s32 0, %v4218
        %v4220 = vrot.slane %v4215, %v4219
        %v4238 = vunpack.c.l.b16 %v4198
        %v4239 = vunpack.c.l.b16 %v4199
        %v4240 = vunpack.c.l.b16 %v4200
        %v4241 = vunpack.c.l.b16 %v4201
        %v4242 = vunpack.c.l.b16 %v4202
        %v4243 = vunpack.c.l.b16 %v4203
        %v4244 = vunpack.c.l.b16 %v4204
        %v4245 = vunpack.c.l.b16 %v4205
        %v4246 = vunpack.c.l.b16 %v4206
        %v4247 = vunpack.c.l.b16 %v4207
        %v4248 = vunpack.c.l.b16 %v4208
        %v4249 = vunpack.c.l.b16 %v4209
        %v4250 = vunpack.c.l.b16 %v4210
        %v4251 = vunpack.c.l.b16 %v4211
        %v4252 = vunpack.c.l.b16 %v4212
        %v4253 = vunpack.c.l.b16 %v4213
        %v4254 = vpack.c.b16 %v4239, %v4238
        %v4255 = vpack.c.b16 %v4241, %v4240
        %v4256 = vpack.c.b16 %v4243, %v4242
        %v4257 = vpack.c.b16 %v4245, %v4244
        %v4258 = vpack.c.b16 %v4247, %v4246
        %v4259 = vpack.c.b16 %v4249, %v4248
        %v4260 = vpack.c.b16 %v4251, %v4250
        %v4261 = vpack.c.b16 %v4253, %v4252
        %4270 = vmatprep.subr.bf16.mxu0 0
        %4271 = vmatpush1.bf16.msra.mxu0 %v4254
        %4272 = vmatprep.subr.bf16.mxu0 0
        %4273 = vmatpush1.bf16.msra.mxu0 %v4255
        %4274 = vmatprep.subr.bf16.mxu0 0
        %4275 = vmatpush1.bf16.msra.mxu0 %v4256
        %4276 = vmatprep.subr.bf16.mxu0 0
        %4277 = vmatpush1.bf16.msra.mxu0 %v4257
        %4278 = vmatprep.subr.bf16.mxu0 0
        %4279 = vmatpush1.bf16.msra.mxu0 %v4258
        %4280 = vmatprep.subr.bf16.mxu0 0
        %4281 = vmatpush1.bf16.msra.mxu0 %v4259
        %4282 = vmatprep.subr.bf16.mxu0 0
        %4283 = vmatpush1.bf16.msra.mxu0 %v4260
        %4284 = vmatprep.subr.bf16.mxu0 0
        %4285 = vmatpush1.bf16.msra.mxu0 %v4261
        %4286 = vmatprep.subr.bf16.mxu0 0
        %4287 = vmatpush1.bf16.msra.mxu0 0
        %4288 = vmatprep.subr.bf16.mxu0 0
        %4289 = vmatpush1.bf16.msra.mxu0 0
        %4290 = vmatprep.subr.bf16.mxu0 0
        %4291 = vmatpush1.bf16.msra.mxu0 0
        %4292 = vmatprep.subr.bf16.mxu0 0
        %4293 = vmatpush1.bf16.msra.mxu0 0
        %4294 = vmatprep.subr.bf16.mxu0 0
        %4295 = vmatpush1.bf16.msra.mxu0 0
        %4296 = vmatprep.subr.bf16.mxu0 0
        %4297 = vmatpush1.bf16.msra.mxu0 0
        %4298 = vmatprep.subr.bf16.mxu0 0
        %4299 = vmatpush1.bf16.msra.mxu0 0
        %4300 = vmatprep.subr.bf16.mxu0 0
        %4301 = vmatpush1.bf16.msra.mxu0 0
        %4302 = vmatprep.mubr.bf16.mxu0 0
        %4303 = vmatmul.mubr.bf16.gmra.mrb[0].mxu0 %v3180
        %v4304 = vpop.f32.mrb[0].mxu0
        %v4305 = vadd.f32 %v4220, %v4304
        %v4306 = vpop.f32.mrb[0].mxu0
        %v4307 = vpop.f32.mrb[0].mxu0
        %v4308 = vpop.f32.mrb[0].mxu0
        %4309 = vdwg.mxu0
        %s4310 = scalar_lea.vmem %s6, 384
        %v4311 = vld [vmem:[%s4310] sm:$0xf]
        %v4312 = vld [vmem:[%s4310 + $0x4] sm:$0xf]
        %v4313 = vld [vmem:[%s4310 + $0x8] sm:$0xf]
        %v4314 = vld [vmem:[%s4310 + $0xc] sm:$0xf]
        %v4315 = vld [vmem:[%s4310 + $0x10] sm:$0xf]
        %v4316 = vld [vmem:[%s4310 + $0x14] sm:$0xf]
        %v4317 = vld [vmem:[%s4310 + $0x18] sm:$0xf]
        %v4318 = vld [vmem:[%s4310 + $0x1c] sm:$0xf]
        %v4319 = vld [vmem:[%s4310 + $0x20] sm:$0xf]
        %v4320 = vld [vmem:[%s4310 + $0x24] sm:$0xf]
        %v4321 = vld [vmem:[%s4310 + $0x28] sm:$0xf]
        %v4322 = vld [vmem:[%s4310 + $0x2c] sm:$0xf]
        %v4323 = vld [vmem:[%s4310 + $0x30] sm:$0xf]
        %v4324 = vld [vmem:[%s4310 + $0x34] sm:$0xf]
        %v4325 = vld [vmem:[%s4310 + $0x38] sm:$0xf]
        %v4326 = vld [vmem:[%s4310 + $0x3c] sm:$0xf]
        %s4327 = scalar_lea.vmem %s7, 6
        %v4328 = vld [vmem:[%s4327] sm:$0x1]
        %v4330 = vlaneseq
        %v4331 = vshrl.u32 %v4330, 7
        %v4332 = vsub.s32 0, %v4331
        %v4333 = vrot.slane %v4328, %v4332
        %v4351 = vunpack.c.l.b16 %v4311
        %v4352 = vunpack.c.l.b16 %v4312
        %v4353 = vunpack.c.l.b16 %v4313
        %v4354 = vunpack.c.l.b16 %v4314
        %v4355 = vunpack.c.l.b16 %v4315
        %v4356 = vunpack.c.l.b16 %v4316
        %v4357 = vunpack.c.l.b16 %v4317
        %v4358 = vunpack.c.l.b16 %v4318
        %v4359 = vunpack.c.l.b16 %v4319
        %v4360 = vunpack.c.l.b16 %v4320
        %v4361 = vunpack.c.l.b16 %v4321
        %v4362 = vunpack.c.l.b16 %v4322
        %v4363 = vunpack.c.l.b16 %v4323
        %v4364 = vunpack.c.l.b16 %v4324
        %v4365 = vunpack.c.l.b16 %v4325
        %v4366 = vunpack.c.l.b16 %v4326
        %v4367 = vpack.c.b16 %v4352, %v4351
        %v4368 = vpack.c.b16 %v4354, %v4353
        %v4369 = vpack.c.b16 %v4356, %v4355
        %v4370 = vpack.c.b16 %v4358, %v4357
        %v4371 = vpack.c.b16 %v4360, %v4359
        %v4372 = vpack.c.b16 %v4362, %v4361
        %v4373 = vpack.c.b16 %v4364, %v4363
        %v4374 = vpack.c.b16 %v4366, %v4365
        %4383 = vmatprep.subr.bf16.mxu0 0
        %4384 = vmatpush1.bf16.msra.mxu0 %v4367
        %4385 = vmatprep.subr.bf16.mxu0 0
        %4386 = vmatpush1.bf16.msra.mxu0 %v4368
        %4387 = vmatprep.subr.bf16.mxu0 0
        %4388 = vmatpush1.bf16.msra.mxu0 %v4369
        %4389 = vmatprep.subr.bf16.mxu0 0
        %4390 = vmatpush1.bf16.msra.mxu0 %v4370
        %4391 = vmatprep.subr.bf16.mxu0 0
        %4392 = vmatpush1.bf16.msra.mxu0 %v4371
        %4393 = vmatprep.subr.bf16.mxu0 0
        %4394 = vmatpush1.bf16.msra.mxu0 %v4372
        %4395 = vmatprep.subr.bf16.mxu0 0
        %4396 = vmatpush1.bf16.msra.mxu0 %v4373
        %4397 = vmatprep.subr.bf16.mxu0 0
        %4398 = vmatpush1.bf16.msra.mxu0 %v4374
        %4399 = vmatprep.subr.bf16.mxu0 0
        %4400 = vmatpush1.bf16.msra.mxu0 0
        %4401 = vmatprep.subr.bf16.mxu0 0
        %4402 = vmatpush1.bf16.msra.mxu0 0
        %4403 = vmatprep.subr.bf16.mxu0 0
        %4404 = vmatpush1.bf16.msra.mxu0 0
        %4405 = vmatprep.subr.bf16.mxu0 0
        %4406 = vmatpush1.bf16.msra.mxu0 0
        %4407 = vmatprep.subr.bf16.mxu0 0
        %4408 = vmatpush1.bf16.msra.mxu0 0
        %4409 = vmatprep.subr.bf16.mxu0 0
        %4410 = vmatpush1.bf16.msra.mxu0 0
        %4411 = vmatprep.subr.bf16.mxu0 0
        %4412 = vmatpush1.bf16.msra.mxu0 0
        %4413 = vmatprep.subr.bf16.mxu0 0
        %4414 = vmatpush1.bf16.msra.mxu0 0
        %4415 = vmatprep.mubr.bf16.mxu0 0
        %4416 = vmatmul.mubr.bf16.gmra.mrb[0].mxu0 %v3180
        %v4417 = vpop.f32.mrb[0].mxu0
        %v4418 = vadd.f32 %v4333, %v4417
        %v4419 = vpop.f32.mrb[0].mxu0
        %v4420 = vpop.f32.mrb[0].mxu0
        %v4421 = vpop.f32.mrb[0].mxu0
        %4422 = vdwg.mxu0
        %s4423 = scalar_lea.vmem %s8, 384
        %v4424 = vld [vmem:[%s4423] sm:$0xf]
        %v4425 = vld [vmem:[%s4423 + $0x4] sm:$0xf]
        %v4426 = vld [vmem:[%s4423 + $0x8] sm:$0xf]
        %v4427 = vld [vmem:[%s4423 + $0xc] sm:$0xf]
        %v4428 = vld [vmem:[%s4423 + $0x10] sm:$0xf]
        %v4429 = vld [vmem:[%s4423 + $0x14] sm:$0xf]
        %v4430 = vld [vmem:[%s4423 + $0x18] sm:$0xf]
        %v4431 = vld [vmem:[%s4423 + $0x1c] sm:$0xf]
        %v4432 = vld [vmem:[%s4423 + $0x20] sm:$0xf]
        %v4433 = vld [vmem:[%s4423 + $0x24] sm:$0xf]
        %v4434 = vld [vmem:[%s4423 + $0x28] sm:$0xf]
        %v4435 = vld [vmem:[%s4423 + $0x2c] sm:$0xf]
        %v4436 = vld [vmem:[%s4423 + $0x30] sm:$0xf]
        %v4437 = vld [vmem:[%s4423 + $0x34] sm:$0xf]
        %v4438 = vld [vmem:[%s4423 + $0x38] sm:$0xf]
        %v4439 = vld [vmem:[%s4423 + $0x3c] sm:$0xf]
        %s4440 = scalar_lea.vmem %s9, 6
        %v4441 = vld [vmem:[%s4440] sm:$0x1]
        %v4443 = vlaneseq
        %v4444 = vshrl.u32 %v4443, 7
        %v4445 = vsub.s32 0, %v4444
        %v4446 = vrot.slane %v4441, %v4445
        %v4464 = vunpack.c.l.b16 %v4424
        %v4465 = vunpack.c.l.b16 %v4425
        %v4466 = vunpack.c.l.b16 %v4426
        %v4467 = vunpack.c.l.b16 %v4427
        %v4468 = vunpack.c.l.b16 %v4428
        %v4469 = vunpack.c.l.b16 %v4429
        %v4470 = vunpack.c.l.b16 %v4430
        %v4471 = vunpack.c.l.b16 %v4431
        %v4472 = vunpack.c.l.b16 %v4432
        %v4473 = vunpack.c.l.b16 %v4433
        %v4474 = vunpack.c.l.b16 %v4434
        %v4475 = vunpack.c.l.b16 %v4435
        %v4476 = vunpack.c.l.b16 %v4436
        %v4477 = vunpack.c.l.b16 %v4437
        %v4478 = vunpack.c.l.b16 %v4438
        %v4479 = vunpack.c.l.b16 %v4439
        %v4480 = vpack.c.b16 %v4465, %v4464
        %v4481 = vpack.c.b16 %v4467, %v4466
        %v4482 = vpack.c.b16 %v4469, %v4468
        %v4483 = vpack.c.b16 %v4471, %v4470
        %v4484 = vpack.c.b16 %v4473, %v4472
        %v4485 = vpack.c.b16 %v4475, %v4474
        %v4486 = vpack.c.b16 %v4477, %v4476
        %v4487 = vpack.c.b16 %v4479, %v4478
        %4496 = vmatprep.subr.bf16.mxu0 0
        %4497 = vmatpush1.bf16.msra.mxu0 %v4480
        %4498 = vmatprep.subr.bf16.mxu0 0
        %4499 = vmatpush1.bf16.msra.mxu0 %v4481
        %4500 = vmatprep.subr.bf16.mxu0 0
        %4501 = vmatpush1.bf16.msra.mxu0 %v4482
        %4502 = vmatprep.subr.bf16.mxu0 0
        %4503 = vmatpush1.bf16.msra.mxu0 %v4483
        %4504 = vmatprep.subr.bf16.mxu0 0
        %4505 = vmatpush1.bf16.msra.mxu0 %v4484
        %4506 = vmatprep.subr.bf16.mxu0 0
        %4507 = vmatpush1.bf16.msra.mxu0 %v4485
        %4508 = vmatprep.subr.bf16.mxu0 0
        %4509 = vmatpush1.bf16.msra.mxu0 %v4486
        %4510 = vmatprep.subr.bf16.mxu0 0
        %4511 = vmatpush1.bf16.msra.mxu0 %v4487
        %4512 = vmatprep.subr.bf16.mxu0 0
        %4513 = vmatpush1.bf16.msra.mxu0 0
        %4514 = vmatprep.subr.bf16.mxu0 0
        %4515 = vmatpush1.bf16.msra.mxu0 0
        %4516 = vmatprep.subr.bf16.mxu0 0
        %4517 = vmatpush1.bf16.msra.mxu0 0
        %4518 = vmatprep.subr.bf16.mxu0 0
        %4519 = vmatpush1.bf16.msra.mxu0 0
        %4520 = vmatprep.subr.bf16.mxu0 0
        %4521 = vmatpush1.bf16.msra.mxu0 0
        %4522 = vmatprep.subr.bf16.mxu0 0
        %4523 = vmatpush1.bf16.msra.mxu0 0
        %4524 = vmatprep.subr.bf16.mxu0 0
        %4525 = vmatpush1.bf16.msra.mxu0 0
        %4526 = vmatprep.subr.bf16.mxu0 0
        %4527 = vmatpush1.bf16.msra.mxu0 0
        %4528 = vmatprep.mubr.bf16.mxu0 0
        %4529 = vmatmul.mubr.bf16.gmra.mrb[0].mxu0 %v3180
        %v4530 = vpop.f32.mrb[0].mxu0
        %v4531 = vadd.f32 %v4446, %v4530
        %v4532 = vpop.f32.mrb[0].mxu0
        %v4533 = vpop.f32.mrb[0].mxu0
        %v4534 = vpop.f32.mrb[0].mxu0
        %4535 = vdwg.mxu0
        %v4536 = vmul.f32 %v4305, 0.17677669
        %v4537 = vpack.c.bf16 %v4536, %v4536
        %v4538 = vpack.c.bf16 %v4418, %v4418
        %v4540 = vsel %vm1074, %v4537, 0
        %v4543 = vsel %vm1074, %v4538, 0
        %4545 = vmatprep.subr.bf16.mxu0 0
        %4546 = vmatpush1.bf16.xpose.msra.mxu0 %v4543
        %4547 = vmatprep.subr.bf16.mxu0 0
        %4548 = vmatpush1.bf16.xpose.msra.mxu0 0
        %4549 = vmatprep.subr.bf16.mxu0 0
        %4550 = vmatpush1.bf16.xpose.msra.mxu0 0
        %4551 = vmatprep.subr.bf16.mxu0 0
        %4552 = vmatpush1.bf16.xpose.msra.mxu0 0
        %4553 = vmatprep.subr.bf16.mxu0 0
        %4554 = vmatpush1.bf16.xpose.msra.mxu0 0
        %4555 = vmatprep.subr.bf16.mxu0 0
        %4556 = vmatpush1.bf16.xpose.msra.mxu0 0
        %4557 = vmatprep.subr.bf16.mxu0 0
        %4558 = vmatpush1.bf16.xpose.msra.mxu0 0
        %4559 = vmatprep.subr.bf16.mxu0 0
        %4560 = vmatpush1.bf16.xpose.msra.mxu0 0
        %4561 = vmatprep.subr.bf16.mxu0 0
        %4562 = vmatpush1.bf16.xpose.msra.mxu0 0
        %4563 = vmatprep.subr.bf16.mxu0 0
        %4564 = vmatpush1.bf16.xpose.msra.mxu0 0
        %4565 = vmatprep.subr.bf16.mxu0 0
        %4566 = vmatpush1.bf16.xpose.msra.mxu0 0
        %4567 = vmatprep.subr.bf16.mxu0 0
        %4568 = vmatpush1.bf16.xpose.msra.mxu0 0
        %4569 = vmatprep.subr.bf16.mxu0 0
        %4570 = vmatpush1.bf16.xpose.msra.mxu0 0
        %4571 = vmatprep.subr.bf16.mxu0 0
        %4572 = vmatpush1.bf16.xpose.msra.mxu0 0
        %4573 = vmatprep.subr.bf16.mxu0 0
        %4574 = vmatpush1.bf16.xpose.msra.mxu0 0
        %4575 = vmatprep.subr.bf16.mxu0 0
        %4576 = vmatpush1.bf16.xpose.msra.mxu0 0
        %4577 = vmatprep.mubr.bf16.mxu0 0
        %4578 = vmatmul.mubr.bf16.gmra.mrb[0].mxu0 %v4540
        %v4579 = vpop.f32.mrb[0].mxu0
        %v4580 = vadd.f32 %v708, %v4579
        %v4581 = vpop.f32.mrb[0].mxu0
        %v4582 = vpop.f32.mrb[0].mxu0
        %v4583 = vpop.f32.mrb[0].mxu0
        %4584 = vdwg.mxu0
        %v4585 = vsel %vm1121, %v4580, -inf
        %4586 = vmax.xlane.f32.xlu0 %v4585
        %v4587 = vpop.xlane.xlu0 %4586
        %v4588 = vsub.f32 %v4580, %v4587
        %v4589 = vmul.f32 %v4588, 1.442695
        %v4590 = vpow.pop %v4589
        %v4591 = vsel %vm1121, %v4590, 0.0
        %4592 = vadd.xlane.f32.xlu0 %v4591
        %v4593 = vpop.xlane.xlu0 %4592
        %v4594 = vrcp.pop %v4593
        %v4595 = vmul.f32 %v4590, %v4594
        %v4596 = vpack.c.bf16 %v4595, %v4595
        %v4597 = vpack.c.bf16 %v4531, %v4531
        %v4599 = vsel %vm1121, %v4596, 0
        %v4602 = vsel %vm1138, %v4597, 0
        %4604 = vmatprep.subr.bf16.mxu0 0
        %4605 = vmatpush1.bf16.msra.mxu0 %v4602
        %4606 = vmatprep.subr.bf16.mxu0 0
        %4607 = vmatpush1.bf16.msra.mxu0 0
        %4608 = vmatprep.subr.bf16.mxu0 0
        %4609 = vmatpush1.bf16.msra.mxu0 0
        %4610 = vmatprep.subr.bf16.mxu0 0
        %4611 = vmatpush1.bf16.msra.mxu0 0
        %4612 = vmatprep.subr.bf16.mxu0 0
        %4613 = vmatpush1.bf16.msra.mxu0 0
        %4614 = vmatprep.subr.bf16.mxu0 0
        %4615 = vmatpush1.bf16.msra.mxu0 0
        %4616 = vmatprep.subr.bf16.mxu0 0
        %4617 = vmatpush1.bf16.msra.mxu0 0
        %4618 = vmatprep.subr.bf16.mxu0 0
        %4619 = vmatpush1.bf16.msra.mxu0 0
        %4620 = vmatprep.subr.bf16.mxu0 0
        %4621 = vmatpush1.bf16.msra.mxu0 0
        %4622 = vmatprep.subr.bf16.mxu0 0
        %4623 = vmatpush1.bf16.msra.mxu0 0
        %4624 = vmatprep.subr.bf16.mxu0 0
        %4625 = vmatpush1.bf16.msra.mxu0 0
        %4626 = vmatprep.subr.bf16.mxu0 0
        %4627 = vmatpush1.bf16.msra.mxu0 0
        %4628 = vmatprep.subr.bf16.mxu0 0
        %4629 = vmatpush1.bf16.msra.mxu0 0
        %4630 = vmatprep.subr.bf16.mxu0 0
        %4631 = vmatpush1.bf16.msra.mxu0 0
        %4632 = vmatprep.subr.bf16.mxu0 0
        %4633 = vmatpush1.bf16.msra.mxu0 0
        %4634 = vmatprep.subr.bf16.mxu0 0
        %4635 = vmatpush1.bf16.msra.mxu0 0
        %4636 = vmatprep.mubr.bf16.mxu0 0
        %4637 = vmatmul.mubr.bf16.gmra.mrb[0].mxu0 %v4599
        %v4638 = vpop.f32.mrb[0].mxu0
        %v4639 = vadd.f32 0.0, %v4638
        %v4640 = vpop.f32.mrb[0].mxu0
        %v4641 = vpop.f32.mrb[0].mxu0
        %v4642 = vpop.f32.mrb[0].mxu0
        %4643 = vdwg.mxu0
        %v4644 = vpack.c.bf16 %v4639, %v4639
        %s4645 = scalar_lea.vmem %s10, 96
        %v4646 = vld [vmem:[%s4645] sm:$0xf]
        %v4647 = vld [vmem:[%s4645 + $0x4] sm:$0xf]
        %v4648 = vld [vmem:[%s4645 + $0x8] sm:$0xf]
        %v4649 = vld [vmem:[%s4645 + $0xc] sm:$0xf]
        %v4654 = vunpack.c.l.b16 %v4646
        %v4655 = vunpack.c.l.b16 %v4647
        %v4656 = vunpack.c.l.b16 %v4648
        %v4657 = vunpack.c.l.b16 %v4649
        %v4658 = vpack.c.b16 %v4655, %v4654
        %v4659 = vpack.c.b16 %v4657, %v4656
        %v4663 = vsel %vm1074, %v4644, 0
        %4665 = vmatprep.subr.bf16.mxu0 0
        %4666 = vmatpush1.bf16.msra.mxu0 %v4658
        %4667 = vmatprep.subr.bf16.mxu0 0
        %4668 = vmatpush1.bf16.msra.mxu0 %v4659
        %4669 = vmatprep.subr.bf16.mxu0 0
        %4670 = vmatpush1.bf16.msra.mxu0 0
        %4671 = vmatprep.subr.bf16.mxu0 0
        %4672 = vmatpush1.bf16.msra.mxu0 0
        %4673 = vmatprep.subr.bf16.mxu0 0
        %4674 = vmatpush1.bf16.msra.mxu0 0
        %4675 = vmatprep.subr.bf16.mxu0 0
        %4676 = vmatpush1.bf16.msra.mxu0 0
        %4677 = vmatprep.subr.bf16.mxu0 0
        %4678 = vmatpush1.bf16.msra.mxu0 0
        %4679 = vmatprep.subr.bf16.mxu0 0
        %4680 = vmatpush1.bf16.msra.mxu0 0
        %4681 = vmatprep.subr.bf16.mxu0 0
        %4682 = vmatpush1.bf16.msra.mxu0 0
        %4683 = vmatprep.subr.bf16.mxu0 0
        %4684 = vmatpush1.bf16.msra.mxu0 0
        %4685 = vmatprep.subr.bf16.mxu0 0
        %4686 = vmatpush1.bf16.msra.mxu0 0
        %4687 = vmatprep.subr.bf16.mxu0 0
        %4688 = vmatpush1.bf16.msra.mxu0 0
        %4689 = vmatprep.subr.bf16.mxu0 0
        %4690 = vmatpush1.bf16.msra.mxu0 0
        %4691 = vmatprep.subr.bf16.mxu0 0
        %4692 = vmatpush1.bf16.msra.mxu0 0
        %4693 = vmatprep.subr.bf16.mxu0 0
        %4694 = vmatpush1.bf16.msra.mxu0 0
        %4695 = vmatprep.subr.bf16.mxu0 0
        %4696 = vmatpush1.bf16.msra.mxu0 0
        %4697 = vmatprep.mubr.bf16.mxu0 0
        %4698 = vmatmul.mubr.bf16.gmra.mrb[0].mxu0 %v4663
        %v4699 = vpop.f32.mrb[0].mxu0
        %v4700 = vadd.f32 0.0, %v4699
        %v4701 = vpop.f32.mrb[0].mxu0
        %v4702 = vpop.f32.mrb[0].mxu0
        %v4703 = vpop.f32.mrb[0].mxu0
        %4704 = vdwg.mxu0
        %v4705 = vadd.f32 %v4192, %v4700
        %s4706 = scalar_lea.vmem %s4, 448
        %v4707 = vld [vmem:[%s4706] sm:$0xf]
        %v4708 = vld [vmem:[%s4706 + $0x4] sm:$0xf]
        %v4709 = vld [vmem:[%s4706 + $0x8] sm:$0xf]
        %v4710 = vld [vmem:[%s4706 + $0xc] sm:$0xf]
        %v4711 = vld [vmem:[%s4706 + $0x10] sm:$0xf]
        %v4712 = vld [vmem:[%s4706 + $0x14] sm:$0xf]
        %v4713 = vld [vmem:[%s4706 + $0x18] sm:$0xf]
        %v4714 = vld [vmem:[%s4706 + $0x1c] sm:$0xf]
        %v4715 = vld [vmem:[%s4706 + $0x20] sm:$0xf]
        %v4716 = vld [vmem:[%s4706 + $0x24] sm:$0xf]
        %v4717 = vld [vmem:[%s4706 + $0x28] sm:$0xf]
        %v4718 = vld [vmem:[%s4706 + $0x2c] sm:$0xf]
        %v4719 = vld [vmem:[%s4706 + $0x30] sm:$0xf]
        %v4720 = vld [vmem:[%s4706 + $0x34] sm:$0xf]
        %v4721 = vld [vmem:[%s4706 + $0x38] sm:$0xf]
        %v4722 = vld [vmem:[%s4706 + $0x3c] sm:$0xf]
        %s4723 = scalar_lea.vmem %s5, 7
        %v4724 = vld [vmem:[%s4723] sm:$0x1]
        %v4726 = vlaneseq
        %v4727 = vshrl.u32 %v4726, 7
        %v4728 = vsub.s32 0, %v4727
        %v4729 = vrot.slane %v4724, %v4728
        %v4747 = vunpack.c.l.b16 %v4707
        %v4748 = vunpack.c.l.b16 %v4708
        %v4749 = vunpack.c.l.b16 %v4709
        %v4750 = vunpack.c.l.b16 %v4710
        %v4751 = vunpack.c.l.b16 %v4711
        %v4752 = vunpack.c.l.b16 %v4712
        %v4753 = vunpack.c.l.b16 %v4713
        %v4754 = vunpack.c.l.b16 %v4714
        %v4755 = vunpack.c.l.b16 %v4715
        %v4756 = vunpack.c.l.b16 %v4716
        %v4757 = vunpack.c.l.b16 %v4717
        %v4758 = vunpack.c.l.b16 %v4718
        %v4759 = vunpack.c.l.b16 %v4719
        %v4760 = vunpack.c.l.b16 %v4720
        %v4761 = vunpack.c.l.b16 %v4721
        %v4762 = vunpack.c.l.b16 %v4722
        %v4763 = vpack.c.b16 %v4748, %v4747
        %v4764 = vpack.c.b16 %v4750, %v4749
        %v4765 = vpack.c.b16 %v4752, %v4751
        %v4766 = vpack.c.b16 %v4754, %v4753
        %v4767 = vpack.c.b16 %v4756, %v4755
        %v4768 = vpack.c.b16 %v4758, %v4757
        %v4769 = vpack.c.b16 %v4760, %v4759
        %v4770 = vpack.c.b16 %v4762, %v4761
        %4779 = vmatprep.subr.bf16.mxu0 0
        %4780 = vmatpush1.bf16.msra.mxu0 %v4763
        %4781 = vmatprep.subr.bf16.mxu0 0
        %4782 = vmatpush1.bf16.msra.mxu0 %v4764
        %4783 = vmatprep.subr.bf16.mxu0 0
        %4784 = vmatpush1.bf16.msra.mxu0 %v4765
        %4785 = vmatprep.subr.bf16.mxu0 0
        %4786 = vmatpush1.bf16.msra.mxu0 %v4766
        %4787 = vmatprep.subr.bf16.mxu0 0
        %4788 = vmatpush1.bf16.msra.mxu0 %v4767
        %4789 = vmatprep.subr.bf16.mxu0 0
        %4790 = vmatpush1.bf16.msra.mxu0 %v4768
        %4791 = vmatprep.subr.bf16.mxu0 0
        %4792 = vmatpush1.bf16.msra.mxu0 %v4769
        %4793 = vmatprep.subr.bf16.mxu0 0
        %4794 = vmatpush1.bf16.msra.mxu0 %v4770
        %4795 = vmatprep.subr.bf16.mxu0 0
        %4796 = vmatpush1.bf16.msra.mxu0 0
        %4797 = vmatprep.subr.bf16.mxu0 0
        %4798 = vmatpush1.bf16.msra.mxu0 0
        %4799 = vmatprep.subr.bf16.mxu0 0
        %4800 = vmatpush1.bf16.msra.mxu0 0
        %4801 = vmatprep.subr.bf16.mxu0 0
        %4802 = vmatpush1.bf16.msra.mxu0 0
        %4803 = vmatprep.subr.bf16.mxu0 0
        %4804 = vmatpush1.bf16.msra.mxu0 0
        %4805 = vmatprep.subr.bf16.mxu0 0
        %4806 = vmatpush1.bf16.msra.mxu0 0
        %4807 = vmatprep.subr.bf16.mxu0 0
        %4808 = vmatpush1.bf16.msra.mxu0 0
        %4809 = vmatprep.subr.bf16.mxu0 0
        %4810 = vmatpush1.bf16.msra.mxu0 0
        %4811 = vmatprep.mubr.bf16.mxu0 0
        %4812 = vmatmul.mubr.bf16.gmra.mrb[0].mxu0 %v3180
        %v4813 = vpop.f32.mrb[0].mxu0
        %v4814 = vadd.f32 %v4729, %v4813
        %v4815 = vpop.f32.mrb[0].mxu0
        %v4816 = vpop.f32.mrb[0].mxu0
        %v4817 = vpop.f32.mrb[0].mxu0
        %4818 = vdwg.mxu0
        %s4819 = scalar_lea.vmem %s6, 448
        %v4820 = vld [vmem:[%s4819] sm:$0xf]
        %v4821 = vld [vmem:[%s4819 + $0x4] sm:$0xf]
        %v4822 = vld [vmem:[%s4819 + $0x8] sm:$0xf]
        %v4823 = vld [vmem:[%s4819 + $0xc] sm:$0xf]
        %v4824 = vld [vmem:[%s4819 + $0x10] sm:$0xf]
        %v4825 = vld [vmem:[%s4819 + $0x14] sm:$0xf]
        %v4826 = vld [vmem:[%s4819 + $0x18] sm:$0xf]
        %v4827 = vld [vmem:[%s4819 + $0x1c] sm:$0xf]
        %v4828 = vld [vmem:[%s4819 + $0x20] sm:$0xf]
        %v4829 = vld [vmem:[%s4819 + $0x24] sm:$0xf]
        %v4830 = vld [vmem:[%s4819 + $0x28] sm:$0xf]
        %v4831 = vld [vmem:[%s4819 + $0x2c] sm:$0xf]
        %v4832 = vld [vmem:[%s4819 + $0x30] sm:$0xf]
        %v4833 = vld [vmem:[%s4819 + $0x34] sm:$0xf]
        %v4834 = vld [vmem:[%s4819 + $0x38] sm:$0xf]
        %v4835 = vld [vmem:[%s4819 + $0x3c] sm:$0xf]
        %s4836 = scalar_lea.vmem %s7, 7
        %v4837 = vld [vmem:[%s4836] sm:$0x1]
        %v4839 = vlaneseq
        %v4840 = vshrl.u32 %v4839, 7
        %v4841 = vsub.s32 0, %v4840
        %v4842 = vrot.slane %v4837, %v4841
        %v4860 = vunpack.c.l.b16 %v4820
        %v4861 = vunpack.c.l.b16 %v4821
        %v4862 = vunpack.c.l.b16 %v4822
        %v4863 = vunpack.c.l.b16 %v4823
        %v4864 = vunpack.c.l.b16 %v4824
        %v4865 = vunpack.c.l.b16 %v4825
        %v4866 = vunpack.c.l.b16 %v4826
        %v4867 = vunpack.c.l.b16 %v4827
        %v4868 = vunpack.c.l.b16 %v4828
        %v4869 = vunpack.c.l.b16 %v4829
        %v4870 = vunpack.c.l.b16 %v4830
        %v4871 = vunpack.c.l.b16 %v4831
        %v4872 = vunpack.c.l.b16 %v4832
        %v4873 = vunpack.c.l.b16 %v4833
        %v4874 = vunpack.c.l.b16 %v4834
        %v4875 = vunpack.c.l.b16 %v4835
        %v4876 = vpack.c.b16 %v4861, %v4860
        %v4877 = vpack.c.b16 %v4863, %v4862
        %v4878 = vpack.c.b16 %v4865, %v4864
        %v4879 = vpack.c.b16 %v4867, %v4866
        %v4880 = vpack.c.b16 %v4869, %v4868
        %v4881 = vpack.c.b16 %v4871, %v4870
        %v4882 = vpack.c.b16 %v4873, %v4872
        %v4883 = vpack.c.b16 %v4875, %v4874
        %4892 = vmatprep.subr.bf16.mxu0 0
        %4893 = vmatpush1.bf16.msra.mxu0 %v4876
        %4894 = vmatprep.subr.bf16.mxu0 0
        %4895 = vmatpush1.bf16.msra.mxu0 %v4877
        %4896 = vmatprep.subr.bf16.mxu0 0
        %4897 = vmatpush1.bf16.msra.mxu0 %v4878
        %4898 = vmatprep.subr.bf16.mxu0 0
        %4899 = vmatpush1.bf16.msra.mxu0 %v4879
        %4900 = vmatprep.subr.bf16.mxu0 0
        %4901 = vmatpush1.bf16.msra.mxu0 %v4880
        %4902 = vmatprep.subr.bf16.mxu0 0
        %4903 = vmatpush1.bf16.msra.mxu0 %v4881
        %4904 = vmatprep.subr.bf16.mxu0 0
        %4905 = vmatpush1.bf16.msra.mxu0 %v4882
        %4906 = vmatprep.subr.bf16.mxu0 0
        %4907 = vmatpush1.bf16.msra.mxu0 %v4883
        %4908 = vmatprep.subr.bf16.mxu0 0
        %4909 = vmatpush1.bf16.msra.mxu0 0
        %4910 = vmatprep.subr.bf16.mxu0 0
        %4911 = vmatpush1.bf16.msra.mxu0 0
        %4912 = vmatprep.subr.bf16.mxu0 0
        %4913 = vmatpush1.bf16.msra.mxu0 0
        %4914 = vmatprep.subr.bf16.mxu0 0
        %4915 = vmatpush1.bf16.msra.mxu0 0
        %4916 = vmatprep.subr.bf16.mxu0 0
        %4917 = vmatpush1.bf16.msra.mxu0 0
        %4918 = vmatprep.subr.bf16.mxu0 0
        %4919 = vmatpush1.bf16.msra.mxu0 0
        %4920 = vmatprep.subr.bf16.mxu0 0
        %4921 = vmatpush1.bf16.msra.mxu0 0
        %4922 = vmatprep.subr.bf16.mxu0 0
        %4923 = vmatpush1.bf16.msra.mxu0 0
        %4924 = vmatprep.mubr.bf16.mxu0 0
        %4925 = vmatmul.mubr.bf16.gmra.mrb[0].mxu0 %v3180
        %v4926 = vpop.f32.mrb[0].mxu0
        %v4927 = vadd.f32 %v4842, %v4926
        %v4928 = vpop.f32.mrb[0].mxu0
        %v4929 = vpop.f32.mrb[0].mxu0
        %v4930 = vpop.f32.mrb[0].mxu0
        %4931 = vdwg.mxu0
        %s4932 = scalar_lea.vmem %s8, 448
        %v4933 = vld [vmem:[%s4932] sm:$0xf]
        %v4934 = vld [vmem:[%s4932 + $0x4] sm:$0xf]
        %v4935 = vld [vmem:[%s4932 + $0x8] sm:$0xf]
        %v4936 = vld [vmem:[%s4932 + $0xc] sm:$0xf]
        %v4937 = vld [vmem:[%s4932 + $0x10] sm:$0xf]
        %v4938 = vld [vmem:[%s4932 + $0x14] sm:$0xf]
        %v4939 = vld [vmem:[%s4932 + $0x18] sm:$0xf]
        %v4940 = vld [vmem:[%s4932 + $0x1c] sm:$0xf]
        %v4941 = vld [vmem:[%s4932 + $0x20] sm:$0xf]
        %v4942 = vld [vmem:[%s4932 + $0x24] sm:$0xf]
        %v4943 = vld [vmem:[%s4932 + $0x28] sm:$0xf]
        %v4944 = vld [vmem:[%s4932 + $0x2c] sm:$0xf]
        %v4945 = vld [vmem:[%s4932 + $0x30] sm:$0xf]
        %v4946 = vld [vmem:[%s4932 + $0x34] sm:$0xf]
        %v4947 = vld [vmem:[%s4932 + $0x38] sm:$0xf]
        %v4948 = vld [vmem:[%s4932 + $0x3c] sm:$0xf]
        %s4949 = scalar_lea.vmem %s9, 7
        %v4950 = vld [vmem:[%s4949] sm:$0x1]
        %v4952 = vlaneseq
        %v4953 = vshrl.u32 %v4952, 7
        %v4954 = vsub.s32 0, %v4953
        %v4955 = vrot.slane %v4950, %v4954
        %v4973 = vunpack.c.l.b16 %v4933
        %v4974 = vunpack.c.l.b16 %v4934
        %v4975 = vunpack.c.l.b16 %v4935
        %v4976 = vunpack.c.l.b16 %v4936
        %v4977 = vunpack.c.l.b16 %v4937
        %v4978 = vunpack.c.l.b16 %v4938
        %v4979 = vunpack.c.l.b16 %v4939
        %v4980 = vunpack.c.l.b16 %v4940
        %v4981 = vunpack.c.l.b16 %v4941
        %v4982 = vunpack.c.l.b16 %v4942
        %v4983 = vunpack.c.l.b16 %v4943
        %v4984 = vunpack.c.l.b16 %v4944
        %v4985 = vunpack.c.l.b16 %v4945
        %v4986 = vunpack.c.l.b16 %v4946
        %v4987 = vunpack.c.l.b16 %v4947
        %v4988 = vunpack.c.l.b16 %v4948
        %v4989 = vpack.c.b16 %v4974, %v4973
        %v4990 = vpack.c.b16 %v4976, %v4975
        %v4991 = vpack.c.b16 %v4978, %v4977
        %v4992 = vpack.c.b16 %v4980, %v4979
        %v4993 = vpack.c.b16 %v4982, %v4981
        %v4994 = vpack.c.b16 %v4984, %v4983
        %v4995 = vpack.c.b16 %v4986, %v4985
        %v4996 = vpack.c.b16 %v4988, %v4987
        %5005 = vmatprep.subr.bf16.mxu0 0
        %5006 = vmatpush1.bf16.msra.mxu0 %v4989
        %5007 = vmatprep.subr.bf16.mxu0 0
        %5008 = vmatpush1.bf16.msra.mxu0 %v4990
        %5009 = vmatprep.subr.bf16.mxu0 0
        %5010 = vmatpush1.bf16.msra.mxu0 %v4991
        %5011 = vmatprep.subr.bf16.mxu0 0
        %5012 = vmatpush1.bf16.msra.mxu0 %v4992
        %5013 = vmatprep.subr.bf16.mxu0 0
        %5014 = vmatpush1.bf16.msra.mxu0 %v4993
        %5015 = vmatprep.subr.bf16.mxu0 0
        %5016 = vmatpush1.bf16.msra.mxu0 %v4994
        %5017 = vmatprep.subr.bf16.mxu0 0
        %5018 = vmatpush1.bf16.msra.mxu0 %v4995
        %5019 = vmatprep.subr.bf16.mxu0 0
        %5020 = vmatpush1.bf16.msra.mxu0 %v4996
        %5021 = vmatprep.subr.bf16.mxu0 0
        %5022 = vmatpush1.bf16.msra.mxu0 0
        %5023 = vmatprep.subr.bf16.mxu0 0
        %5024 = vmatpush1.bf16.msra.mxu0 0
        %5025 = vmatprep.subr.bf16.mxu0 0
        %5026 = vmatpush1.bf16.msra.mxu0 0
        %5027 = vmatprep.subr.bf16.mxu0 0
        %5028 = vmatpush1.bf16.msra.mxu0 0
        %5029 = vmatprep.subr.bf16.mxu0 0
        %5030 = vmatpush1.bf16.msra.mxu0 0
        %5031 = vmatprep.subr.bf16.mxu0 0
        %5032 = vmatpush1.bf16.msra.mxu0 0
        %5033 = vmatprep.subr.bf16.mxu0 0
        %5034 = vmatpush1.bf16.msra.mxu0 0
        %5035 = vmatprep.subr.bf16.mxu0 0
        %5036 = vmatpush1.bf16.msra.mxu0 0
        %5037 = vmatprep.mubr.bf16.mxu0 0
        %5038 = vmatmul.mubr.bf16.gmra.mrb[0].mxu0 %v3180
        %v5039 = vpop.f32.mrb[0].mxu0
        %v5040 = vadd.f32 %v4955, %v5039
        %v5041 = vpop.f32.mrb[0].mxu0
        %v5042 = vpop.f32.mrb[0].mxu0
        %v5043 = vpop.f32.mrb[0].mxu0
        %5044 = vdwg.mxu0
        %v5045 = vmul.f32 %v4814, 0.17677669
        %v5046 = vpack.c.bf16 %v5045, %v5045
        %v5047 = vpack.c.bf16 %v4927, %v4927
        %v5049 = vsel %vm1074, %v5046, 0
        %v5052 = vsel %vm1074, %v5047, 0
        %5054 = vmatprep.subr.bf16.mxu0 0
        %5055 = vmatpush1.bf16.xpose.msra.mxu0 %v5052
        %5056 = vmatprep.subr.bf16.mxu0 0
        %5057 = vmatpush1.bf16.xpose.msra.mxu0 0
        %5058 = vmatprep.subr.bf16.mxu0 0
        %5059 = vmatpush1.bf16.xpose.msra.mxu0 0
        %5060 = vmatprep.subr.bf16.mxu0 0
        %5061 = vmatpush1.bf16.xpose.msra.mxu0 0
        %5062 = vmatprep.subr.bf16.mxu0 0
        %5063 = vmatpush1.bf16.xpose.msra.mxu0 0
        %5064 = vmatprep.subr.bf16.mxu0 0
        %5065 = vmatpush1.bf16.xpose.msra.mxu0 0
        %5066 = vmatprep.subr.bf16.mxu0 0
        %5067 = vmatpush1.bf16.xpose.msra.mxu0 0
        %5068 = vmatprep.subr.bf16.mxu0 0
        %5069 = vmatpush1.bf16.xpose.msra.mxu0 0
        %5070 = vmatprep.subr.bf16.mxu0 0
        %5071 = vmatpush1.bf16.xpose.msra.mxu0 0
        %5072 = vmatprep.subr.bf16.mxu0 0
        %5073 = vmatpush1.bf16.xpose.msra.mxu0 0
        %5074 = vmatprep.subr.bf16.mxu0 0
        %5075 = vmatpush1.bf16.xpose.msra.mxu0 0
        %5076 = vmatprep.subr.bf16.mxu0 0
        %5077 = vmatpush1.bf16.xpose.msra.mxu0 0
        %5078 = vmatprep.subr.bf16.mxu0 0
        %5079 = vmatpush1.bf16.xpose.msra.mxu0 0
        %5080 = vmatprep.subr.bf16.mxu0 0
        %5081 = vmatpush1.bf16.xpose.msra.mxu0 0
        %5082 = vmatprep.subr.bf16.mxu0 0
        %5083 = vmatpush1.bf16.xpose.msra.mxu0 0
        %5084 = vmatprep.subr.bf16.mxu0 0
        %5085 = vmatpush1.bf16.xpose.msra.mxu0 0
        %5086 = vmatprep.mubr.bf16.mxu0 0
        %5087 = vmatmul.mubr.bf16.gmra.mrb[0].mxu0 %v5049
        %v5088 = vpop.f32.mrb[0].mxu0
        %v5089 = vadd.f32 %v708, %v5088
        %v5090 = vpop.f32.mrb[0].mxu0
        %v5091 = vpop.f32.mrb[0].mxu0
        %v5092 = vpop.f32.mrb[0].mxu0
        %5093 = vdwg.mxu0
        %v5094 = vsel %vm1121, %v5089, -inf
        %5095 = vmax.xlane.f32.xlu0 %v5094
        %v5096 = vpop.xlane.xlu0 %5095
        %v5097 = vsub.f32 %v5089, %v5096
        %v5098 = vmul.f32 %v5097, 1.442695
        %v5099 = vpow.pop %v5098
        %v5100 = vsel %vm1121, %v5099, 0.0
        %5101 = vadd.xlane.f32.xlu0 %v5100
        %v5102 = vpop.xlane.xlu0 %5101
        %v5103 = vrcp.pop %v5102
        %v5104 = vmul.f32 %v5099, %v5103
        %v5105 = vpack.c.bf16 %v5104, %v5104
        %v5106 = vpack.c.bf16 %v5040, %v5040
        %v5108 = vsel %vm1121, %v5105, 0
        %v5111 = vsel %vm1138, %v5106, 0
        %5113 = vmatprep.subr.bf16.mxu0 0
        %5114 = vmatpush1.bf16.msra.mxu0 %v5111
        %5115 = vmatprep.subr.bf16.mxu0 0
        %5116 = vmatpush1.bf16.msra.mxu0 0
        %5117 = vmatprep.subr.bf16.mxu0 0
        %5118 = vmatpush1.bf16.msra.mxu0 0
        %5119 = vmatprep.subr.bf16.mxu0 0
        %5120 = vmatpush1.bf16.msra.mxu0 0
        %5121 = vmatprep.subr.bf16.mxu0 0
        %5122 = vmatpush1.bf16.msra.mxu0 0
        %5123 = vmatprep.subr.bf16.mxu0 0
        %5124 = vmatpush1.bf16.msra.mxu0 0
        %5125 = vmatprep.subr.bf16.mxu0 0
        %5126 = vmatpush1.bf16.msra.mxu0 0
        %5127 = vmatprep.subr.bf16.mxu0 0
        %5128 = vmatpush1.bf16.msra.mxu0 0
        %5129 = vmatprep.subr.bf16.mxu0 0
        %5130 = vmatpush1.bf16.msra.mxu0 0
        %5131 = vmatprep.subr.bf16.mxu0 0
        %5132 = vmatpush1.bf16.msra.mxu0 0
        %5133 = vmatprep.subr.bf16.mxu0 0
        %5134 = vmatpush1.bf16.msra.mxu0 0
        %5135 = vmatprep.subr.bf16.mxu0 0
        %5136 = vmatpush1.bf16.msra.mxu0 0
        %5137 = vmatprep.subr.bf16.mxu0 0
        %5138 = vmatpush1.bf16.msra.mxu0 0
        %5139 = vmatprep.subr.bf16.mxu0 0
        %5140 = vmatpush1.bf16.msra.mxu0 0
        %5141 = vmatprep.subr.bf16.mxu0 0
        %5142 = vmatpush1.bf16.msra.mxu0 0
        %5143 = vmatprep.subr.bf16.mxu0 0
        %5144 = vmatpush1.bf16.msra.mxu0 0
        %5145 = vmatprep.mubr.bf16.mxu0 0
        %5146 = vmatmul.mubr.bf16.gmra.mrb[0].mxu0 %v5108
        %v5147 = vpop.f32.mrb[0].mxu0
        %v5148 = vadd.f32 0.0, %v5147
        %v5149 = vpop.f32.mrb[0].mxu0
        %v5150 = vpop.f32.mrb[0].mxu0
        %v5151 = vpop.f32.mrb[0].mxu0
        %5152 = vdwg.mxu0
        %v5153 = vpack.c.bf16 %v5148, %v5148
        %s5154 = scalar_lea.vmem %s10, 112
        %v5155 = vld [vmem:[%s5154] sm:$0xf]
        %v5156 = vld [vmem:[%s5154 + $0x4] sm:$0xf]
        %v5157 = vld [vmem:[%s5154 + $0x8] sm:$0xf]
        %v5158 = vld [vmem:[%s5154 + $0xc] sm:$0xf]
        %v5163 = vunpack.c.l.b16 %v5155
        %v5164 = vunpack.c.l.b16 %v5156
        %v5165 = vunpack.c.l.b16 %v5157
        %v5166 = vunpack.c.l.b16 %v5158
        %v5167 = vpack.c.b16 %v5164, %v5163
        %v5168 = vpack.c.b16 %v5166, %v5165
        %v5172 = vsel %vm1074, %v5153, 0
        %5174 = vmatprep.subr.bf16.mxu0 0
        %5175 = vmatpush1.bf16.msra.mxu0 %v5167
        %5176 = vmatprep.subr.bf16.mxu0 0
        %5177 = vmatpush1.bf16.msra.mxu0 %v5168
        %5178 = vmatprep.subr.bf16.mxu0 0
        %5179 = vmatpush1.bf16.msra.mxu0 0
        %5180 = vmatprep.subr.bf16.mxu0 0
        %5181 = vmatpush1.bf16.msra.mxu0 0
        %5182 = vmatprep.subr.bf16.mxu0 0
        %5183 = vmatpush1.bf16.msra.mxu0 0
        %5184 = vmatprep.subr.bf16.mxu0 0
        %5185 = vmatpush1.bf16.msra.mxu0 0
        %5186 = vmatprep.subr.bf16.mxu0 0
        %5187 = vmatpush1.bf16.msra.mxu0 0
        %5188 = vmatprep.subr.bf16.mxu0 0
        %5189 = vmatpush1.bf16.msra.mxu0 0
        %5190 = vmatprep.subr.bf16.mxu0 0
        %5191 = vmatpush1.bf16.msra.mxu0 0
        %5192 = vmatprep.subr.bf16.mxu0 0
        %5193 = vmatpush1.bf16.msra.mxu0 0
        %5194 = vmatprep.subr.bf16.mxu0 0
        %5195 = vmatpush1.bf16.msra.mxu0 0
        %5196 = vmatprep.subr.bf16.mxu0 0
        %5197 = vmatpush1.bf16.msra.mxu0 0
        %5198 = vmatprep.subr.bf16.mxu0 0
        %5199 = vmatpush1.bf16.msra.mxu0 0
        %5200 = vmatprep.subr.bf16.mxu0 0
        %5201 = vmatpush1.bf16.msra.mxu0 0
        %5202 = vmatprep.subr.bf16.mxu0 0
        %5203 = vmatpush1.bf16.msra.mxu0 0
        %5204 = vmatprep.subr.bf16.mxu0 0
        %5205 = vmatpush1.bf16.msra.mxu0 0
        %5206 = vmatprep.mubr.bf16.mxu0 0
        %5207 = vmatmul.mubr.bf16.gmra.mrb[0].mxu0 %v5172
        %v5208 = vpop.f32.mrb[0].mxu0
        %v5209 = vadd.f32 0.0, %v5208
        %v5210 = vpop.f32.mrb[0].mxu0
        %v5211 = vpop.f32.mrb[0].mxu0
        %v5212 = vpop.f32.mrb[0].mxu0
        %5213 = vdwg.mxu0
        %v5214 = vadd.f32 %v4705, %v5209
        %v5215 = vadd.f32 %v3150, %v5214
        %s5216 = scalar_lea.vmem %s11, 1
        %v5217 = vld [vmem:[%s5216] sm:$0x1]
        %v5219 = vlaneseq
        %v5220 = vshrl.u32 %v5219, 7
        %v5221 = vsub.s32 0, %v5220
        %v5222 = vrot.slane %v5217, %v5221
        %v5224 = vadd.f32 %v5215, %v5222
        %s5225 = scalar_lea.vmem %s12, 1
        %v5226 = vld [vmem:[%s5225] sm:$0x1]
        %s5227 = scalar_lea.vmem %s13, 1
        %v5228 = vld [vmem:[%s5227] sm:$0x1]
        %5229 = vadd.xlane.f32.xlu0 %v5224
        %v5230 = vpop.xlane.xlu0 %5229
        %v5231 = vmul.f32 %v5230, %v713
        %v5232 = vsub.f32 %v5224, %v5231
        %v5233 = vmul.f32 %v5232, %v5232
        %5234 = vadd.xlane.f32.xlu0 %v5233
        %v5235 = vpop.xlane.xlu0 %5234
        %v5236 = vmul.f32 %v5235, %v713
        %v5237 = vadd.f32 %v5236, 1e-05
        %v5238 = vrsqrt.pop %v5237
        %v5239 = vmul.f32 %v5232, %v5238
        %v5241 = vlaneseq
        %v5242 = vshrl.u32 %v5241, 7
        %v5243 = vsub.s32 0, %v5242
        %v5244 = vrot.slane %v5226, %v5243
        %v5246 = vmul.f32 %v5239, %v5244
        %v5248 = vlaneseq
        %v5249 = vshrl.u32 %v5248, 7
        %v5250 = vsub.s32 0, %v5249
        %v5251 = vrot.slane %v5228, %v5250
        %v5253 = vadd.f32 %v5246, %v5251
        %v5254 = vpack.c.bf16 %v5253, %v5253
        %s5255 = scalar_lea.vmem %s14, 128
        %v5256 = vld [vmem:[%s5255] sm:$0xff]
        %v5257 = vld [vmem:[%s5255 + $0x8] sm:$0xff]
        %v5258 = vld [vmem:[%s5255 + $0x10] sm:$0xff]
        %v5259 = vld [vmem:[%s5255 + $0x18] sm:$0xff]
        %v5260 = vld [vmem:[%s5255 + $0x20] sm:$0xff]
        %v5261 = vld [vmem:[%s5255 + $0x28] sm:$0xff]
        %v5262 = vld [vmem:[%s5255 + $0x30] sm:$0xff]
        %v5263 = vld [vmem:[%s5255 + $0x38] sm:$0xff]
        %v5264 = vld [vmem:[%s5255 + $0x40] sm:$0xff]
        %v5265 = vld [vmem:[%s5255 + $0x48] sm:$0xff]
        %v5266 = vld [vmem:[%s5255 + $0x50] sm:$0xff]
        %v5267 = vld [vmem:[%s5255 + $0x58] sm:$0xff]
        %v5268 = vld [vmem:[%s5255 + $0x60] sm:$0xff]
        %v5269 = vld [vmem:[%s5255 + $0x68] sm:$0xff]
        %v5270 = vld [vmem:[%s5255 + $0x70] sm:$0xff]
        %v5271 = vld [vmem:[%s5255 + $0x78] sm:$0xff]
        %s5272 = scalar_lea.vmem %s15, 2
        %v5273 = vld [vmem:[%s5272] sm:$0x3]
        %v5275 = vlaneseq
        %v5276 = vshrl.u32 %v5275, 7
        %v5277 = vsub.s32 0, %v5276
        %v5278 = vrot.slane %v5273, %v5277
        %v5279 = vlaneseq
        %v5280 = vshrl.u32 %v5279, 7
        %v5281 = vsub.s32 1, %v5280
        %v5282 = vrot.slane %v5273, %v5281
        %v5301 = vunpack.c.l.b16 %v5256
        %v5302 = vunpack.c.h.b16 %v5256
        %v5303 = vunpack.c.l.b16 %v5257
        %v5304 = vunpack.c.h.b16 %v5257
        %v5305 = vunpack.c.l.b16 %v5258
        %v5306 = vunpack.c.h.b16 %v5258
        %v5307 = vunpack.c.l.b16 %v5259
        %v5308 = vunpack.c.h.b16 %v5259
        %v5309 = vunpack.c.l.b16 %v5260
        %v5310 = vunpack.c.h.b16 %v5260
        %v5311 = vunpack.c.l.b16 %v5261
        %v5312 = vunpack.c.h.b16 %v5261
        %v5313 = vunpack.c.l.b16 %v5262
        %v5314 = vunpack.c.h.b16 %v5262
        %v5315 = vunpack.c.l.b16 %v5263
        %v5316 = vunpack.c.h.b16 %v5263
        %v5317 = vunpack.c.l.b16 %v5264
        %v5318 = vunpack.c.h.b16 %v5264
        %v5319 = vunpack.c.l.b16 %v5265
        %v5320 = vunpack.c.h.b16 %v5265
        %v5321 = vunpack.c.l.b16 %v5266
        %v5322 = vunpack.c.h.b16 %v5266
        %v5323 = vunpack.c.l.b16 %v5267
        %v5324 = vunpack.c.h.b16 %v5267
        %v5325 = vunpack.c.l.b16 %v5268
        %v5326 = vunpack.c.h.b16 %v5268
        %v5327 = vunpack.c.l.b16 %v5269
        %v5328 = vunpack.c.h.b16 %v5269
        %v5329 = vunpack.c.l.b16 %v5270
        %v5330 = vunpack.c.h.b16 %v5270
        %v5331 = vunpack.c.l.b16 %v5271
        %v5332 = vunpack.c.h.b16 %v5271
        %v5333 = vpack.c.b16 %v5303, %v5301
        %v5334 = vpack.c.b16 %v5304, %v5302
        %v5335 = vpack.c.b16 %v5307, %v5305
        %v5336 = vpack.c.b16 %v5308, %v5306
        %v5337 = vpack.c.b16 %v5311, %v5309
        %v5338 = vpack.c.b16 %v5312, %v5310
        %v5339 = vpack.c.b16 %v5315, %v5313
        %v5340 = vpack.c.b16 %v5316, %v5314
        %v5341 = vpack.c.b16 %v5319, %v5317
        %v5342 = vpack.c.b16 %v5320, %v5318
        %v5343 = vpack.c.b16 %v5323, %v5321
        %v5344 = vpack.c.b16 %v5324, %v5322
        %v5345 = vpack.c.b16 %v5327, %v5325
        %v5346 = vpack.c.b16 %v5328, %v5326
        %v5347 = vpack.c.b16 %v5331, %v5329
        %v5348 = vpack.c.b16 %v5332, %v5330
        %5365 = vmatprep.subr.bf16.mxu0 %v5334
        %5366 = vmatpush1.bf16.msra.mxu0 %v5333
        %5367 = vmatprep.subr.bf16.mxu0 %v5336
        %5368 = vmatpush1.bf16.msra.mxu0 %v5335
        %5369 = vmatprep.subr.bf16.mxu0 %v5338
        %5370 = vmatpush1.bf16.msra.mxu0 %v5337
        %5371 = vmatprep.subr.bf16.mxu0 %v5340
        %5372 = vmatpush1.bf16.msra.mxu0 %v5339
        %5373 = vmatprep.subr.bf16.mxu0 %v5342
        %5374 = vmatpush1.bf16.msra.mxu0 %v5341
        %5375 = vmatprep.subr.bf16.mxu0 %v5344
        %5376 = vmatpush1.bf16.msra.mxu0 %v5343
        %5377 = vmatprep.subr.bf16.mxu0 %v5346
        %5378 = vmatpush1.bf16.msra.mxu0 %v5345
        %5379 = vmatprep.subr.bf16.mxu0 %v5348
        %5380 = vmatpush1.bf16.msra.mxu0 %v5347
        %5381 = vmatprep.subr.bf16.mxu0 0
        %5382 = vmatpush1.bf16.msra.mxu0 0
        %5383 = vmatprep.subr.bf16.mxu0 0
        %5384 = vmatpush1.bf16.msra.mxu0 0
        %5385 = vmatprep.subr.bf16.mxu0 0
        %5386 = vmatpush1.bf16.msra.mxu0 0
        %5387 = vmatprep.subr.bf16.mxu0 0
        %5388 = vmatpush1.bf16.msra.mxu0 0
        %5389 = vmatprep.subr.bf16.mxu0 0
        %5390 = vmatpush1.bf16.msra.mxu0 0
        %5391 = vmatprep.subr.bf16.mxu0 0
        %5392 = vmatpush1.bf16.msra.mxu0 0
        %5393 = vmatprep.subr.bf16.mxu0 0
        %5394 = vmatpush1.bf16.msra.mxu0 0
        %5395 = vmatprep.subr.bf16.mxu0 0
        %5396 = vmatpush1.bf16.msra.mxu0 0
        %5397 = vmatprep.mubr.bf16.mxu0 0
        %5398 = vmatmul.mubr.bf16.gmra.mrb[0].mxu0 %v5254
        %v5399 = vpop.f32.mrb[0].mxu0
        %v5400 = vadd.f32 %v5278, %v5399
        %v5401 = vpop.f32.mrb[0].mxu0
        %v5402 = vadd.f32 %v5282, %v5401
        %v5403 = vpop.f32.mrb[0].mxu0
        %v5404 = vpop.f32.mrb[0].mxu0
        %5405 = vdwg.mxu0
        %v5406 = vmul.f32 %v5400, %v5400
        %v5407 = vmul.f32 %v5402, %v5402
        %v5408 = vmul.f32 %v5400, %v5406
        %v5409 = vmul.f32 %v5402, %v5407
        %v5410 = vmul.f32 %v5408, 0.044715
        %v5411 = vmul.f32 %v5409, 0.044715
        %v5412 = vadd.f32 %v5400, %v5410
        %v5413 = vadd.f32 %v5402, %v5411
        %v5414 = vmul.f32 %v5412, 0.7978846
        %v5415 = vmul.f32 %v5413, 0.7978846
        %v5416 = vtanh.pop %v5414
        %v5417 = vtanh.pop %v5415
        %v5418 = vadd.f32 %v5416, 1.0
        %v5419 = vadd.f32 %v5417, 1.0
        %v5420 = vmul.f32 %v5418, 0.5
        %v5421 = vmul.f32 %v5419, 0.5
        %v5422 = vmul.f32 %v5400, %v5420
        %v5423 = vmul.f32 %v5402, %v5421
        %v5424 = vpack.c.bf16 %v5422, %v5422
        %v5425 = vpack.c.bf16 %v5423, %v5423
        %s5426 = scalar_lea.vmem %s16, 128
        %v5427 = vld [vmem:[%s5426] sm:$0xf]
        %v5428 = vld [vmem:[%s5426 + $0x4] sm:$0xf]
        %v5429 = vld [vmem:[%s5426 + $0x8] sm:$0xf]
        %v5430 = vld [vmem:[%s5426 + $0xc] sm:$0xf]
        %v5431 = vld [vmem:[%s5426 + $0x10] sm:$0xf]
        %v5432 = vld [vmem:[%s5426 + $0x14] sm:$0xf]
        %v5433 = vld [vmem:[%s5426 + $0x18] sm:$0xf]
        %v5434 = vld [vmem:[%s5426 + $0x1c] sm:$0xf]
        %v5435 = vld [vmem:[%s5426 + $0x20] sm:$0xf]
        %v5436 = vld [vmem:[%s5426 + $0x24] sm:$0xf]
        %v5437 = vld [vmem:[%s5426 + $0x28] sm:$0xf]
        %v5438 = vld [vmem:[%s5426 + $0x2c] sm:$0xf]
        %v5439 = vld [vmem:[%s5426 + $0x30] sm:$0xf]
        %v5440 = vld [vmem:[%s5426 + $0x34] sm:$0xf]
        %v5441 = vld [vmem:[%s5426 + $0x38] sm:$0xf]
        %v5442 = vld [vmem:[%s5426 + $0x3c] sm:$0xf]
        %v5443 = vld [vmem:[%s5426 + $0x40] sm:$0xf]
        %v5444 = vld [vmem:[%s5426 + $0x44] sm:$0xf]
        %v5445 = vld [vmem:[%s5426 + $0x48] sm:$0xf]
        %v5446 = vld [vmem:[%s5426 + $0x4c] sm:$0xf]
        %v5447 = vld [vmem:[%s5426 + $0x50] sm:$0xf]
        %v5448 = vld [vmem:[%s5426 + $0x54] sm:$0xf]
        %v5449 = vld [vmem:[%s5426 + $0x58] sm:$0xf]
        %v5450 = vld [vmem:[%s5426 + $0x5c] sm:$0xf]
        %v5451 = vld [vmem:[%s5426 + $0x60] sm:$0xf]
        %v5452 = vld [vmem:[%s5426 + $0x64] sm:$0xf]
        %v5453 = vld [vmem:[%s5426 + $0x68] sm:$0xf]
        %v5454 = vld [vmem:[%s5426 + $0x6c] sm:$0xf]
        %v5455 = vld [vmem:[%s5426 + $0x70] sm:$0xf]
        %v5456 = vld [vmem:[%s5426 + $0x74] sm:$0xf]
        %v5457 = vld [vmem:[%s5426 + $0x78] sm:$0xf]
        %v5458 = vld [vmem:[%s5426 + $0x7c] sm:$0xf]
        %v5491 = vunpack.c.l.b16 %v5427
        %v5492 = vunpack.c.l.b16 %v5428
        %v5493 = vunpack.c.l.b16 %v5429
        %v5494 = vunpack.c.l.b16 %v5430
        %v5495 = vunpack.c.l.b16 %v5431
        %v5496 = vunpack.c.l.b16 %v5432
        %v5497 = vunpack.c.l.b16 %v5433
        %v5498 = vunpack.c.l.b16 %v5434
        %v5499 = vunpack.c.l.b16 %v5435
        %v5500 = vunpack.c.l.b16 %v5436
        %v5501 = vunpack.c.l.b16 %v5437
        %v5502 = vunpack.c.l.b16 %v5438
        %v5503 = vunpack.c.l.b16 %v5439
        %v5504 = vunpack.c.l.b16 %v5440
        %v5505 = vunpack.c.l.b16 %v5441
        %v5506 = vunpack.c.l.b16 %v5442
        %v5507 = vunpack.c.l.b16 %v5443
        %v5508 = vunpack.c.l.b16 %v5444
        %v5509 = vunpack.c.l.b16 %v5445
        %v5510 = vunpack.c.l.b16 %v5446
        %v5511 = vunpack.c.l.b16 %v5447
        %v5512 = vunpack.c.l.b16 %v5448
        %v5513 = vunpack.c.l.b16 %v5449
        %v5514 = vunpack.c.l.b16 %v5450
        %v5515 = vunpack.c.l.b16 %v5451
        %v5516 = vunpack.c.l.b16 %v5452
        %v5517 = vunpack.c.l.b16 %v5453
        %v5518 = vunpack.c.l.b16 %v5454
        %v5519 = vunpack.c.l.b16 %v5455
        %v5520 = vunpack.c.l.b16 %v5456
        %v5521 = vunpack.c.l.b16 %v5457
        %v5522 = vunpack.c.l.b16 %v5458
        %v5523 = vpack.c.b16 %v5492, %v5491
        %v5524 = vpack.c.b16 %v5494, %v5493
        %v5525 = vpack.c.b16 %v5496, %v5495
        %v5526 = vpack.c.b16 %v5498, %v5497
        %v5527 = vpack.c.b16 %v5500, %v5499
        %v5528 = vpack.c.b16 %v5502, %v5501
        %v5529 = vpack.c.b16 %v5504, %v5503
        %v5530 = vpack.c.b16 %v5506, %v5505
        %v5531 = vpack.c.b16 %v5508, %v5507
        %v5532 = vpack.c.b16 %v5510, %v5509
        %v5533 = vpack.c.b16 %v5512, %v5511
        %v5534 = vpack.c.b16 %v5514, %v5513
        %v5535 = vpack.c.b16 %v5516, %v5515
        %v5536 = vpack.c.b16 %v5518, %v5517
        %v5537 = vpack.c.b16 %v5520, %v5519
        %v5538 = vpack.c.b16 %v5522, %v5521
        %5555 = vmatprep.subr.bf16.mxu0 0
        %5556 = vmatpush1.bf16.msra.mxu0 %v5523
        %5557 = vmatprep.subr.bf16.mxu0 0
        %5558 = vmatpush1.bf16.msra.mxu0 %v5524
        %5559 = vmatprep.subr.bf16.mxu0 0
        %5560 = vmatpush1.bf16.msra.mxu0 %v5525
        %5561 = vmatprep.subr.bf16.mxu0 0
        %5562 = vmatpush1.bf16.msra.mxu0 %v5526
        %5563 = vmatprep.subr.bf16.mxu0 0
        %5564 = vmatpush1.bf16.msra.mxu0 %v5527
        %5565 = vmatprep.subr.bf16.mxu0 0
        %5566 = vmatpush1.bf16.msra.mxu0 %v5528
        %5567 = vmatprep.subr.bf16.mxu0 0
        %5568 = vmatpush1.bf16.msra.mxu0 %v5529
        %5569 = vmatprep.subr.bf16.mxu0 0
        %5570 = vmatpush1.bf16.msra.mxu0 %v5530
        %5571 = vmatprep.subr.bf16.mxu0 0
        %5572 = vmatpush1.bf16.msra.mxu0 %v5531
        %5573 = vmatprep.subr.bf16.mxu0 0
        %5574 = vmatpush1.bf16.msra.mxu0 %v5532
        %5575 = vmatprep.subr.bf16.mxu0 0
        %5576 = vmatpush1.bf16.msra.mxu0 %v5533
        %5577 = vmatprep.subr.bf16.mxu0 0
        %5578 = vmatpush1.bf16.msra.mxu0 %v5534
        %5579 = vmatprep.subr.bf16.mxu0 0
        %5580 = vmatpush1.bf16.msra.mxu0 %v5535
        %5581 = vmatprep.subr.bf16.mxu0 0
        %5582 = vmatpush1.bf16.msra.mxu0 %v5536
        %5583 = vmatprep.subr.bf16.mxu0 0
        %5584 = vmatpush1.bf16.msra.mxu0 %v5537
        %5585 = vmatprep.subr.bf16.mxu0 0
        %5586 = vmatpush1.bf16.msra.mxu0 %v5538
        %5587 = vmatprep.mubr.bf16.mxu0 %v5425
        %5588 = vmatmul.mubr.bf16.gmra.mrb[0].mxu0 %v5424
        %v5589 = vpop.f32.mrb[0].mxu0
        %v5590 = vadd.f32 0.0, %v5589
        %v5591 = vpop.f32.mrb[0].mxu0
        %v5592 = vpop.f32.mrb[0].mxu0
        %v5593 = vpop.f32.mrb[0].mxu0
        %5594 = vdwg.mxu0
        %v5595 = vadd.f32 %v5224, %v5590
        %s5596 = scalar_lea.vmem %s17, 1
        %v5597 = vld [vmem:[%s5596] sm:$0x1]
        %v5599 = vlaneseq
        %v5600 = vshrl.u32 %v5599, 7
        %v5601 = vsub.s32 0, %v5600
        %v5602 = vrot.slane %v5597, %v5601
        %v5604 = vadd.f32 %v5595, %v5602
        %v5605 = vld [vmem:[%s18] sm:$0x1]
        %v5606 = vld [vmem:[%s19] sm:$0x1]
        %5607 = vadd.xlane.f32.xlu0 %v5604
        %v5608 = vpop.xlane.xlu0 %5607
        %v5609 = vmul.f32 %v5608, %v713
        %v5610 = vsub.f32 %v5604, %v5609
        %v5611 = vmul.f32 %v5610, %v5610
        %5612 = vadd.xlane.f32.xlu0 %v5611
        %v5613 = vpop.xlane.xlu0 %5612
        %v5614 = vmul.f32 %v5613, %v713
        %v5615 = vadd.f32 %v5614, 1e-05
        %v5616 = vrsqrt.pop %v5615
        %v5617 = vmul.f32 %v5610, %v5616
        %v5619 = vlaneseq
        %v5620 = vshrl.u32 %v5619, 7
        %v5621 = vsub.s32 0, %v5620
        %v5622 = vrot.slane %v5605, %v5621
        %v5624 = vmul.f32 %v5617, %v5622
        %v5626 = vlaneseq
        %v5627 = vshrl.u32 %v5626, 7
        %v5628 = vsub.s32 0, %v5627
        %v5629 = vrot.slane %v5606, %v5628
        %v5631 = vadd.f32 %v5624, %v5629
        %v5632 = vpack.c.bf16 %v5631, %v5631
        %v5633 = vld [vmem:[%s20] sm:$0xff]
        %v5634 = vld [vmem:[%s20 + $0x8] sm:$0xff]
        %v5635 = vld [vmem:[%s20 + $0x10] sm:$0xff]
        %v5636 = vld [vmem:[%s20 + $0x18] sm:$0xff]
        %v5637 = vld [vmem:[%s20 + $0x20] sm:$0xff]
        %v5638 = vld [vmem:[%s20 + $0x28] sm:$0xff]
        %v5639 = vld [vmem:[%s20 + $0x30] sm:$0xff]
        %v5640 = vld [vmem:[%s20 + $0x38] sm:$0xff]
        %v5641 = vld [vmem:[%s20 + $0x40] sm:$0xff]
        %v5642 = vld [vmem:[%s20 + $0x48] sm:$0xff]
        %v5643 = vld [vmem:[%s20 + $0x50] sm:$0xff]
        %v5644 = vld [vmem:[%s20 + $0x58] sm:$0xff]
        %v5645 = vld [vmem:[%s20 + $0x60] sm:$0xff]
        %v5646 = vld [vmem:[%s20 + $0x68] sm:$0xff]
        %v5647 = vld [vmem:[%s20 + $0x70] sm:$0xff]
        %v5648 = vld [vmem:[%s20 + $0x78] sm:$0xff]
        %v5649 = vld [vmem:[%s21] sm:$0x3]
        %v5651 = vlaneseq
        %v5652 = vshrl.u32 %v5651, 7
        %v5653 = vsub.s32 0, %v5652
        %v5654 = vrot.slane %v5649, %v5653
        %v5655 = vlaneseq
        %v5656 = vshrl.u32 %v5655, 7
        %v5657 = vsub.s32 1, %v5656
        %v5658 = vrot.slane %v5649, %v5657
        %v5677 = vunpack.c.l.b16 %v5633
        %v5678 = vunpack.c.h.b16 %v5633
        %v5679 = vunpack.c.l.b16 %v5634
        %v5680 = vunpack.c.h.b16 %v5634
        %v5681 = vunpack.c.l.b16 %v5635
        %v5682 = vunpack.c.h.b16 %v5635
        %v5683 = vunpack.c.l.b16 %v5636
        %v5684 = vunpack.c.h.b16 %v5636
        %v5685 = vunpack.c.l.b16 %v5637
        %v5686 = vunpack.c.h.b16 %v5637
        %v5687 = vunpack.c.l.b16 %v5638
        %v5688 = vunpack.c.h.b16 %v5638
        %v5689 = vunpack.c.l.b16 %v5639
        %v5690 = vunpack.c.h.b16 %v5639
        %v5691 = vunpack.c.l.b16 %v5640
        %v5692 = vunpack.c.h.b16 %v5640
        %v5693 = vunpack.c.l.b16 %v5641
        %v5694 = vunpack.c.h.b16 %v5641
        %v5695 = vunpack.c.l.b16 %v5642
        %v5696 = vunpack.c.h.b16 %v5642
        %v5697 = vunpack.c.l.b16 %v5643
        %v5698 = vunpack.c.h.b16 %v5643
        %v5699 = vunpack.c.l.b16 %v5644
        %v5700 = vunpack.c.h.b16 %v5644
        %v5701 = vunpack.c.l.b16 %v5645
        %v5702 = vunpack.c.h.b16 %v5645
        %v5703 = vunpack.c.l.b16 %v5646
        %v5704 = vunpack.c.h.b16 %v5646
        %v5705 = vunpack.c.l.b16 %v5647
        %v5706 = vunpack.c.h.b16 %v5647
        %v5707 = vunpack.c.l.b16 %v5648
        %v5708 = vunpack.c.h.b16 %v5648
        %v5709 = vpack.c.b16 %v5679, %v5677
        %v5710 = vpack.c.b16 %v5680, %v5678
        %v5711 = vpack.c.b16 %v5683, %v5681
        %v5712 = vpack.c.b16 %v5684, %v5682
        %v5713 = vpack.c.b16 %v5687, %v5685
        %v5714 = vpack.c.b16 %v5688, %v5686
        %v5715 = vpack.c.b16 %v5691, %v5689
        %v5716 = vpack.c.b16 %v5692, %v5690
        %v5717 = vpack.c.b16 %v5695, %v5693
        %v5718 = vpack.c.b16 %v5696, %v5694
        %v5719 = vpack.c.b16 %v5699, %v5697
        %v5720 = vpack.c.b16 %v5700, %v5698
        %v5721 = vpack.c.b16 %v5703, %v5701
        %v5722 = vpack.c.b16 %v5704, %v5702
        %v5723 = vpack.c.b16 %v5707, %v5705
        %v5724 = vpack.c.b16 %v5708, %v5706
        %5741 = vmatprep.subr.bf16.mxu0 %v5710
        %5742 = vmatpush1.bf16.msra.mxu0 %v5709
        %5743 = vmatprep.subr.bf16.mxu0 %v5712
        %5744 = vmatpush1.bf16.msra.mxu0 %v5711
        %5745 = vmatprep.subr.bf16.mxu0 %v5714
        %5746 = vmatpush1.bf16.msra.mxu0 %v5713
        %5747 = vmatprep.subr.bf16.mxu0 %v5716
        %5748 = vmatpush1.bf16.msra.mxu0 %v5715
        %5749 = vmatprep.subr.bf16.mxu0 %v5718
        %5750 = vmatpush1.bf16.msra.mxu0 %v5717
        %5751 = vmatprep.subr.bf16.mxu0 %v5720
        %5752 = vmatpush1.bf16.msra.mxu0 %v5719
        %5753 = vmatprep.subr.bf16.mxu0 %v5722
        %5754 = vmatpush1.bf16.msra.mxu0 %v5721
        %5755 = vmatprep.subr.bf16.mxu0 %v5724
        %5756 = vmatpush1.bf16.msra.mxu0 %v5723
        %5757 = vmatprep.subr.bf16.mxu0 0
        %5758 = vmatpush1.bf16.msra.mxu0 0
        %5759 = vmatprep.subr.bf16.mxu0 0
        %5760 = vmatpush1.bf16.msra.mxu0 0
        %5761 = vmatprep.subr.bf16.mxu0 0
        %5762 = vmatpush1.bf16.msra.mxu0 0
        %5763 = vmatprep.subr.bf16.mxu0 0
        %5764 = vmatpush1.bf16.msra.mxu0 0
        %5765 = vmatprep.subr.bf16.mxu0 0
        %5766 = vmatpush1.bf16.msra.mxu0 0
        %5767 = vmatprep.subr.bf16.mxu0 0
        %5768 = vmatpush1.bf16.msra.mxu0 0
        %5769 = vmatprep.subr.bf16.mxu0 0
        %5770 = vmatpush1.bf16.msra.mxu0 0
        %5771 = vmatprep.subr.bf16.mxu0 0
        %5772 = vmatpush1.bf16.msra.mxu0 0
        %5773 = vmatprep.mubr.bf16.mxu0 0
        %5774 = vmatmul.mubr.bf16.gmra.mrb[0].mxu0 %v5632
        %v5775 = vpop.f32.mrb[0].mxu0
        %v5776 = vadd.f32 %v5654, %v5775
        %v5777 = vpop.f32.mrb[0].mxu0
        %v5778 = vadd.f32 %v5658, %v5777
        %v5779 = vpop.f32.mrb[0].mxu0
        %v5780 = vpop.f32.mrb[0].mxu0
        %5781 = vdwg.mxu0
        %5782 = vst [vmem:[%s685] sm:$0xff] %v5776
        %5783 = vst [vmem:[%s685 + $0x8] sm:$0xff] %v5778
        %s5784 = sand.u32 %s516, 1
        %s5785 = scalar_lea.sflag [#allocation3], %s5784
        %s5786 = sand.u32 %s516, 1
        %s5787 = smul.addr %s5786, 16
        %s5788 = scalar_lea.vmem [#allocation2], %s5787
        // Predicated region
        $region109: #{tpu_custom_call.1} parent=107 // pred_check
          %p5789 = pneg %p526
        $region110: #{tpu_custom_call.1} parent=107 // pred_check_branch
          %5791 = sbr.rel (%p5789) target = $region112
        $region111: #{tpu_custom_call.1} parent=107 // pred_region
          %s5793 = ssub.s32 256, 256
          %5794 = vsyncadd %s5785, %s5793
          %s5795 = smul.addr %s36, 2
          %s5796 = smul.addr %s5795, 128
          %s5797 = scalar_lea.hbm %s22, %s5796
          %s5799 = sshll.u32 %s5788, 4
          %s5800 = int_to_ptr.vmem [resolvable:$true] %s5799
          %5802 = dma.vmem_to_hbm [thread:$0]  %s5800, 256, %s5797, %s5785
        $region112: #{tpu_custom_call.1} parent=107 // pred_fallthru
          _
      $region108: #{tpu_custom_call.1} parent=5 // pred_fallthru
        _
      %p5803 = scmp.le.s32.totalorder 2, %s31
      // Predicated region
      $region113: #{tpu_custom_call.1} parent=5 // pred_check
        %p5804 = pneg %p5803
      $region114: #{tpu_custom_call.1} parent=5 // pred_check_branch
        %5806 = sbr.rel (%p5804) target = $region116
      $region115: #{tpu_custom_call.1} parent=5 // pred_region
        %s5807 = ssub.s32 %s31, 2
        // Predicated region
        $region117: #{tpu_custom_call.1} parent=115 // pred_check
          %p5808 = pneg %p532
        $region118: #{tpu_custom_call.1} parent=115 // pred_check_branch
          %5810 = sbr.rel (%p5808) target = $region120
        $region119: #{tpu_custom_call.1} parent=115 // pred_region
          %s5811 = sand.u32 %s517, 1
          %s5812 = scalar_lea.sflag [#allocation3], %s5811
          %s5813 = sand.u32 %s517, 1
          %s5814 = smul.addr %s5813, 16
          %s5815 = scalar_lea.vmem [#allocation2], %s5814
          %5816 = dma.done %s5812, 256
        $region120: #{tpu_custom_call.1} parent=115 // pred_fallthru
          _
      $region116: #{tpu_custom_call.1} parent=5 // pred_fallthru
        _
    $region6: #{tpu_custom_call.1} parent=1 // loop_footer
      %s35 = sadd.s32 1, %s31
    $region7: #{tpu_custom_call.1} parent=1 // loop_footer_branch
      %30 = sbr.rel target = $region3
    $region8: #{tpu_custom_call.1} parent=1 // loop_exit
      _
    %5817 = vsyncpa [#allocation3], 1
    %s5818 = scalar_lea.sflag [#allocation3], 1
    %5819 = vsyncpa %s5818, 1

</llo_original>
